<compile_context>
chip_gen: v5e
topology: v5e:2x2
jax: 0.10.0
libtpu: 0.0.40
codegen_flags: <defaults>
</compile_context>

<pallas_src>
import functools
import math

import jax
import jax.numpy as jnp
from jax import lax
from jax.experimental import pallas as pl
from jax.experimental.pallas import tpu as pltpu

NEG_SLOPE = 0.01   # nn.LeakyReLU / F.leaky_relu default
LN_EPS = 1e-5      # nn.LayerNorm default


def _leaky_relu(x):
    # valid because NEG_SLOPE < 1
    return jnp.maximum(x, NEG_SLOPE * x)


def _ceil_to(x, m):
    return ((x + m - 1) // m) * m


def _padded_bytes(shape, itemsize=4):
    """Rough VMEM footprint of an f32 buffer with (8,128) minor-dim padding."""
    shape = tuple(int(d) for d in shape)
    if len(shape) == 0:
        return 8 * 128 * itemsize
    if len(shape) == 1:
        return _ceil_to(shape[0], 8 * 128) * itemsize
    lead = 1
    for d in shape[:-2]:
        lead *= d
    return lead * _ceil_to(shape[-2], 8) * _ceil_to(shape[-1], 128) * itemsize


# --------------------------------------------------------------------------- #
# Kernel
# --------------------------------------------------------------------------- #
def qnetworkk_kernel(state_ref, act_ref,
                     ws_ref, wact_ref, b1_ref,
                     w2_ref, b2_ref, g_ref, beta_ref,
                     wqkv_ref, bqkv_ref, wo_ref, bo_ref,
                     wha_ref, bha_ref, whb_ref, bhb_ref,
                     out_ref, *, num_heads):
    tb, n, f = state_ref.shape
    h = ws_ref.shape[1]
    nh = num_heads
    dh = h // nh
    rows = tb * n

    # ----- shared_fc1 with merge_state_action folded in:
    #       xu @ W1 = state @ W_state + one_hot(action) (x) w_action
    obj = lax.broadcasted_iota(jnp.int32, (tb, n, 1), 1)
    mask = (obj == act_ref[...]).astype(jnp.float32)                  # (tb, n, 1)

    x = jnp.dot(state_ref[...].reshape(rows, f), ws_ref[...],
                preferred_element_type=jnp.float32) + b1_ref[...]
    x = x.reshape(tb, n, h) + mask * wact_ref[...]                    # (tb,n,1)*(1,1,H)
    x = _leaky_relu(x).reshape(rows, h)

    # ----- shared_fc2 + leaky_relu + LayerNorm
    x = _leaky_relu(jnp.dot(x, w2_ref[...],
                            preferred_element_type=jnp.float32) + b2_ref[...])
    mu = jnp.mean(x, axis=-1, keepdims=True)
    xc = x - mu
    var = jnp.mean(xc * xc, axis=-1, keepdims=True)
    x = xc * lax.rsqrt(var + LN_EPS) * g_ref[...] + beta_ref[...]

    # ----- fused QKV projection: ONE (rows, H) @ (H, 3H) matmul.
    #       Columns ordered [q | k | v], heads contiguous (dh each); q pre-scaled.
    qkv = jnp.dot(x, wqkv_ref[...],
                  preferred_element_type=jnp.float32) + bqkv_ref[...]

    def heads(base):
        # static lane slices (offsets are multiples of dh) + leading-dim reshapes only,
        # stacked onto a leading head axis, then head folded into the batch dim.
        return jnp.stack(
            [qkv[:, base + hd * dh: base + (hd + 1) * dh].reshape(tb, n, dh)
             for hd in range(nh)], axis=1).reshape(tb * nh, n, dh)

    qm = heads(0)          # (tb*nh, n, dh), already scaled by 1/sqrt(dh)
    km = heads(h)
    vm = heads(2 * h)

    # ----- attention core as ONE pair of batched matmuls over tb*nh tiny tiles
    s = jnp.einsum('bnd,bmd->bnm', qm, km, preferred_element_type=jnp.float32)
    s = s - jnp.max(s, axis=-1, keepdims=True)
    p = jnp.exp(s)
    den = jnp.sum(p, axis=-1, keepdims=True)
    r = pl.reciprocal(den, approx=True)
    r = r * (2.0 - den * r)          # one Newton step: ~f32-exact, still off the divide path
    p = p * r
    om = jnp.einsum('bnm,bmd->bnd', p, vm, preferred_element_type=jnp.float32)

    # ----- output projection: heads back onto the lane axis (PyTorch concat order),
    #       then ONE (rows, H) @ (H, H) matmul (no per-head accumulation).
    o4 = om.reshape(tb, nh, n, dh)
    o_cat = jnp.concatenate([o4[:, hd].reshape(rows, dh) for hd in range(nh)],
                            axis=-1)                                   # (rows, H)
    attn = jnp.dot(o_cat, wo_ref[...],
                   preferred_element_type=jnp.float32) + bo_ref[...]

    # ----- max over objects
    xb = jnp.max(attn.reshape(tb, n, h), axis=1)                       # (tb, H)

    # ----- fused twin Q-heads (concatenated first layer, block-diagonal second layer)
    hh = _leaky_relu(jnp.dot(xb, wha_ref[...],
                             preferred_element_type=jnp.float32) + bha_ref[...])
    out_ref[...] = (jnp.dot(hh, whb_ref[...],
                            preferred_element_type=jnp.float32)
                    + bhb_ref[...]).astype(out_ref.dtype)


# --------------------------------------------------------------------------- #
# Parameter construction (PyTorch-convention raw params + kernel-ready layout)
# --------------------------------------------------------------------------- #
def _uniform(key, shape, bound):
    return jax.random.uniform(key, shape, jnp.float32, -bound, bound)


def init_raw_params(key, num_inputs, output_dim, hidden_dim, num_heads):
    feat = num_inputs
    h = hidden_dim
    ks = jax.random.split(key, 8)

    def linear(k, in_f, out_f):
        kw, kb = jax.random.split(k)
        bound = 1.0 / math.sqrt(in_f)
        return _uniform(kw, (out_f, in_f), bound), _uniform(kb, (out_f,), bound)

    w1, b1 = linear(ks[0], feat + 1, h)
    w2, b2 = linear(ks[1], h, h)
    ln_g = jnp.ones((h,), jnp.float32)
    ln_b = jnp.zeros((h,), jnp.float32)

    xav = math.sqrt(6.0 / (h + 3 * h))                 # xavier_uniform_ on [3H, H]
    in_proj_w = _uniform(ks[2], (3 * h, h), xav)
    in_proj_b = jnp.zeros((3 * h,), jnp.float32)
    out_proj_w, _ = linear(ks[3], h, h)
    out_proj_b = jnp.zeros((h,), jnp.float32)          # PyTorch MHA zeros out_proj bias

    q1_w1, q1_b1 = linear(ks[4], h, h)
    q1_w2, q1_b2 = linear(ks[5], h, output_dim)
    q2_w1, q2_b1 = linear(ks[6], h, h)
    q2_w2, q2_b2 = linear(ks[7], h, output_dim)

    return dict(w1=w1, b1=b1, w2=w2, b2=b2, ln_g=ln_g, ln_b=ln_b,
                in_proj_w=in_proj_w, in_proj_b=in_proj_b,
                out_proj_w=out_proj_w, out_proj_b=out_proj_b,
                q1_w1=q1_w1, q1_b1=q1_b1, q1_w2=q1_w2, q1_b2=q1_b2,
                q2_w1=q2_w1, q2_b1=q2_b1, q2_w2=q2_w2, q2_b2=q2_b2,
                num_heads=num_heads)


def prepare_kernel_params(raw):
    h = raw['w2'].shape[0]
    feat = raw['w1'].shape[1] - 1
    nh = raw['num_heads']
    dh = h // nh
    out_dim = raw['q1_w2'].shape[0]

    w1 = raw['w1']                                     # [H, F+1] (PyTorch out x in)
    ws = w1[:, :feat].T                                # [F, H]
    wact = w1[:, feat].reshape(1, 1, h)                # [1, 1, H]
    b1 = raw['b1'].reshape(1, h)

    w2t = raw['w2'].T
    b2 = raw['b2'].reshape(1, h)
    ln_g = raw['ln_g'].reshape(1, h)
    ln_b = raw['ln_b'].reshape(1, h)

    # Fused QKV weight [H, 3H]; the q block is pre-scaled by 1/sqrt(dh) so the kernel
    # never multiplies q at runtime. Column order [q | k | v] with heads contiguous
    # (dh columns each) matches torch.nn.MultiheadAttention's head split.
    scale = 1.0 / math.sqrt(dh)
    in_w = jnp.concatenate([raw['in_proj_w'][:h] * scale, raw['in_proj_w'][h:]], axis=0)
    in_b = jnp.concatenate([raw['in_proj_b'][:h] * scale, raw['in_proj_b'][h:]], axis=0)
    wqkv = in_w.T                                      # [H, 3H]
    bqkv = in_b.reshape(1, 3 * h)

    wo = raw['out_proj_w'].T                           # [H, H] (rows = head-concat order)
    bo = raw['out_proj_b'].reshape(1, h)

    # Fused twin Q-heads: concatenated first layer [H, 2H] + block-diagonal second
    # layer [2H, 2*out] -> single (tb, 2*out) output, split in the wrapper.
    wha = jnp.concatenate([raw['q1_w1'].T, raw['q2_w1'].T], axis=1)          # [H, 2H]
    bha = jnp.concatenate([raw['q1_b1'], raw['q2_b1']]).reshape(1, 2 * h)
    whb = jnp.zeros((2 * h, 2 * out_dim), jnp.float32)
    whb = whb.at[:h, :out_dim].set(raw['q1_w2'].T)
    whb = whb.at[h:, out_dim:].set(raw['q2_w2'].T)
    bhb = jnp.concatenate([raw['q1_b2'], raw['q2_b2']]).reshape(1, 2 * out_dim)

    return (ws, wact, b1, w2t, b2, ln_g, ln_b,
            wqkv, bqkv, wo, bo, wha, bha, whb, bhb)


# --------------------------------------------------------------------------- #
# Forward wrapper
# --------------------------------------------------------------------------- #
@functools.partial(jax.jit, static_argnames=("num_heads", "batch_tile"))
def qnetworkk_forward(state, action, kparams, num_heads=4, batch_tile=None):
    B, N, F = state.shape
    weights = kparams
    (ws, wact, b1, w2t, b2, ln_g, ln_b,
     wqkv, bqkv, wo, bo, wha, bha, whb, bhb) = weights
    H = ws.shape[1]
    out2 = whb.shape[1]

    act = action.reshape(B).astype(jnp.int32).reshape(B, 1, 1)

    # ----- VMEM footprint model (f32, lane-padded to 128) -> batch tile + vmem limit
    lane_b = 128 * 4
    per_row = (2 * N * lane_b        # state tile (tb,N,F) -> (tb,N,128), double buffered
               + 2 * 8 * lane_b      # action tile (tb,1,1) -> (tb,8,128), double buffered
               + 10 * N * lane_b     # ~10 live (tb*N, <=128-lane) f32 activation slabs
               + 2 * lane_b)         # output tile, double buffered
    weights_vmem = 2 * sum(_padded_bytes(w.shape) for w in weights)

    if batch_tile is None:
        budget = 24 * 2**20          # conservative: safe on v5e/v6e/v7x scoped VMEM
        tb = max(8, ((budget - weights_vmem) // per_row) // 8 * 8)
        tb = min(512, tb)
        if B > 8:
            # at least two grid steps so both v7x TensorCores get work under
            # "parallel" semantics; costs one extra ~0.35us step on v5e/v6e only.
            tb = min(tb, _ceil_to(-(-B // 2), 8))
    else:
        tb = int(batch_tile)
    if tb >= B:
        tb = B
    elif tb % 8:
        tb = min(B, _ceil_to(tb, 8))   # keep (8,128)-friendly output block

    bp = _ceil_to(B, tb)
    if bp != B:
        pad = bp - B
        state = jnp.pad(state, ((0, pad), (0, 0), (0, 0)))
        act = jnp.pad(act, ((0, pad), (0, 0), (0, 0)))
    grid = (bp // tb,)

    vmem_limit = int(min(56 * 2**20,
                         max(32 * 2**20, 2 * (weights_vmem + per_row * tb))))

    def _const_spec(a):
        zero = (0,) * a.ndim
        return pl.BlockSpec(a.shape, lambda b, _z=zero: _z)

    in_specs = ([pl.BlockSpec((tb, N, F), lambda b: (b, 0, 0)),
                 pl.BlockSpec((tb, 1, 1), lambda b: (b, 0, 0))]
                + [_const_spec(w) for w in weights])
    # NOTE: (tb, out2) is only a few lanes wide -> masked store; a lane-dense transposed
    # layout is only legal when tb % 128 == 0, so the simple layout is kept here.
    out_specs = pl.BlockSpec((tb, out2), lambda b: (b, 0))
    out_shape = jax.ShapeDtypeStruct((bp, out2), jnp.float32)

    # advisory cost estimate so XLA can schedule around the custom call
    flops = 2 * bp * (N * (F * H + 5 * H * H + 2 * N * H)
                      + 2 * H * 2 * H + 2 * H * out2)
    transcendentals = bp * num_heads * (N * N + N)
    bytes_accessed = 4 * (int(state.size) + int(act.size) + bp * out2
                          + sum(int(w.size) for w in weights))
    cost = pl.CostEstimate(flops=int(flops),
                           transcendentals=int(transcendentals),
                           bytes_accessed=int(bytes_accessed))

    kernel = functools.partial(qnetworkk_kernel, num_heads=num_heads)
    out = pl.pallas_call(
        kernel,
        out_shape=out_shape,
        grid=grid,
        in_specs=in_specs,
        out_specs=out_specs,
        compiler_params=pltpu.CompilerParams(
            dimension_semantics=("parallel",),
            vmem_limit_bytes=vmem_limit),
        cost_estimate=cost,
    )(state, act, *weights)

    out = out[:B]
    od = out2 // 2
    return out[:, :od], out[:, od:]


# --------------------------------------------------------------------------- #
# Pure-JAX reference (PyTorch semantics, raw parameters)
# --------------------------------------------------------------------------- #
def qnetworkk_forward_ref(state, action, raw):
    B, N, _ = state.shape
    H = raw['w2'].shape[0]
    nh = raw['num_heads']
    dh = H // nh

    def leaky(v):
        return jnp.where(v >= 0, v, NEG_SLOPE * v)

    act = action.reshape(B).astype(jnp.int32)
    mask = (jnp.arange(N)[None, :] == act[:, None]).astype(jnp.float32)[..., None]
    xu = jnp.concatenate([state, mask], axis=-1)

    x = leaky(xu @ raw['w1'].T + raw['b1'])
    x = leaky(x @ raw['w2'].T + raw['b2'])
    mu = x.mean(-1, keepdims=True)
    var = ((x - mu) ** 2).mean(-1, keepdims=True)
    x = (x - mu) / jnp.sqrt(var + LN_EPS) * raw['ln_g'] + raw['ln_b']

    wq, wk, wv = jnp.split(raw['in_proj_w'], 3, axis=0)
    bq, bk, bv = jnp.split(raw['in_proj_b'], 3)
    q = x @ wq.T + bq
    k = x @ wk.T + bk
    v = x @ wv.T + bv

    def split_heads(t):
        return t.reshape(B, N, nh, dh).transpose(0, 2, 1, 3)

    qh, kh, vh = split_heads(q), split_heads(k), split_heads(v)
    s = jnp.einsum('bhnd,bhmd->bhnm', qh, kh) / math.sqrt(dh)
    p = jax.nn.softmax(s, axis=-1)
    o = jnp.einsum('bhnm,bhmd->bhnd', p, vh).transpose(0, 2, 1, 3).reshape(B, N, H)
    x = o @ raw['out_proj_w'].T + raw['out_proj_b']

    x = x.max(axis=1)
    q1 = leaky(x @ raw['q1_w1'].T + raw['q1_b1']) @ raw['q1_w2'].T + raw['q1_b2']
    q2 = leaky(x @ raw['q2_w1'].T + raw['q2_b1']) @ raw['q2_w2'].T + raw['q2_b2']
    return q1, q2


# --------------------------------------------------------------------------- #
if __name__ == "__main__":
    key = jax.random.PRNGKey(0)
    k_state, k_action, k_params = jax.random.split(key, 3)

    # Small shapes consistent with forward(): state [B, N, F], action [B]
    batch, num_objects, num_inputs = 32, 16, 12
    hidden_dim, output_dim, num_heads = 32, 1, 4

    state = jax.random.normal(k_state, (batch, num_objects, num_inputs), jnp.float32)
    action = jax.random.randint(k_action, (batch,), 0, num_objects).astype(jnp.float32)

    raw = init_raw_params(k_params, num_inputs, output_dim, hidden_dim, num_heads)
    kparams = prepare_kernel_params(raw)

    # default heuristic: tb=16 -> grid=(2,): exercises the parallel batch grid with
    # VMEM-resident weights (and keeps both TensorCores busy on v7x).
    q1, q2 = qnetworkk_forward(state, action, kparams, num_heads=num_heads)
    jax.block_until_ready((q1, q2))

    r1, r2 = qnetworkk_forward_ref(state, action, raw)
    assert q1.shape == (batch, output_dim) and q2.shape == (batch, output_dim)
    err1 = float(jnp.max(jnp.abs(q1 - r1)))
    err2 = float(jnp.max(jnp.abs(q2 - r2)))
    assert jnp.allclose(q1, r1, atol=1e-4, rtol=1e-4), err1
    assert jnp.allclose(q2, r2, atol=1e-4, rtol=1e-4), err2

    print("KERNEL_OK")
</pallas_src>

<mosaic_0001>
module attributes {stable_mosaic.version = 11 : i64} {
  func.func @qnetworkk_kernel(%arg0: i32, %arg1: memref<16x16x12xf32, #tpu.memory_space<vmem>>, %arg2: memref<16x1x1xi32, #tpu.memory_space<vmem>>, %arg3: memref<12x32xf32, #tpu.memory_space<vmem>>, %arg4: memref<1x1x32xf32, #tpu.memory_space<vmem>>, %arg5: memref<1x32xf32, #tpu.memory_space<vmem>>, %arg6: memref<32x32xf32, #tpu.memory_space<vmem>>, %arg7: memref<1x32xf32, #tpu.memory_space<vmem>>, %arg8: memref<1x32xf32, #tpu.memory_space<vmem>>, %arg9: memref<1x32xf32, #tpu.memory_space<vmem>>, %arg10: memref<32x96xf32, #tpu.memory_space<vmem>>, %arg11: memref<1x96xf32, #tpu.memory_space<vmem>>, %arg12: memref<32x32xf32, #tpu.memory_space<vmem>>, %arg13: memref<1x32xf32, #tpu.memory_space<vmem>>, %arg14: memref<32x64xf32, #tpu.memory_space<vmem>>, %arg15: memref<1x64xf32, #tpu.memory_space<vmem>>, %arg16: memref<64x2xf32, #tpu.memory_space<vmem>>, %arg17: memref<1x2xf32, #tpu.memory_space<vmem>>, %arg18: memref<16x2xf32, #tpu.memory_space<vmem>>) attributes {dimension_semantics = [#tpu.dimension_semantics<parallel>], iteration_bounds = array<i64: 2>, scalar_prefetch = 0 : i64, scratch_operands = 0 : i64, tpu.core_type = #tpu.core_type<tc>, window_params = [{transform_indices = @transform_0, window_bounds = array<i64: 16, 16, 12>}, {transform_indices = @transform_1, window_bounds = array<i64: 16, 1, 1>}, {pipeline_mode = #tpu.pipeline_mode<synchronous>, transform_indices = @transform_2, window_bounds = array<i64: 12, 32>}, {pipeline_mode = #tpu.pipeline_mode<synchronous>, transform_indices = @transform_3, window_bounds = array<i64: 1, 1, 32>}, {pipeline_mode = #tpu.pipeline_mode<synchronous>, transform_indices = @transform_4, window_bounds = array<i64: 1, 32>}, {pipeline_mode = #tpu.pipeline_mode<synchronous>, transform_indices = @transform_5, window_bounds = array<i64: 32, 32>}, {pipeline_mode = #tpu.pipeline_mode<synchronous>, transform_indices = @transform_6, window_bounds = array<i64: 1, 32>}, {pipeline_mode = #tpu.pipeline_mode<synchronous>, transform_indices = @transform_7, window_bounds = array<i64: 1, 32>}, {pipeline_mode = #tpu.pipeline_mode<synchronous>, transform_indices = @transform_8, window_bounds = array<i64: 1, 32>}, {pipeline_mode = #tpu.pipeline_mode<synchronous>, transform_indices = @transform_9, window_bounds = array<i64: 32, 96>}, {pipeline_mode = #tpu.pipeline_mode<synchronous>, transform_indices = @transform_10, window_bounds = array<i64: 1, 96>}, {pipeline_mode = #tpu.pipeline_mode<synchronous>, transform_indices = @transform_11, window_bounds = array<i64: 32, 32>}, {pipeline_mode = #tpu.pipeline_mode<synchronous>, transform_indices = @transform_12, window_bounds = array<i64: 1, 32>}, {pipeline_mode = #tpu.pipeline_mode<synchronous>, transform_indices = @transform_13, window_bounds = array<i64: 32, 64>}, {pipeline_mode = #tpu.pipeline_mode<synchronous>, transform_indices = @transform_14, window_bounds = array<i64: 1, 64>}, {pipeline_mode = #tpu.pipeline_mode<synchronous>, transform_indices = @transform_15, window_bounds = array<i64: 64, 2>}, {pipeline_mode = #tpu.pipeline_mode<synchronous>, transform_indices = @transform_16, window_bounds = array<i64: 1, 2>}, {transform_indices = @transform_17, window_bounds = array<i64: 16, 2>}]} {
    %0 = tpu.iota {dimensions = array<i32: 1>} : vector<16x16x1xi32>
    %c0 = arith.constant 0 : index
    %c0_0 = arith.constant 0 : index
    %c0_1 = arith.constant 0 : index
    %1 = vector.load %arg2[%c0, %c0_0, %c0_1] : memref<16x1x1xi32, #tpu.memory_space<vmem>>, vector<16x1x1xi32>
    %2 = vector.broadcast %1 : vector<16x1x1xi32> to vector<16x16x1xi32>
    %3 = arith.cmpi eq, %0, %2 : vector<16x16x1xi32>
    %4 = arith.extui %3 : vector<16x16x1xi1> to vector<16x16x1xi32>
    %5 = arith.sitofp %4 : vector<16x16x1xi32> to vector<16x16x1xf32>
    %c0_2 = arith.constant 0 : index
    %c0_3 = arith.constant 0 : index
    %c0_4 = arith.constant 0 : index
    %6 = vector.load %arg1[%c0_2, %c0_3, %c0_4] : memref<16x16x12xf32, #tpu.memory_space<vmem>>, vector<16x16x12xf32>
    %7 = vector.shape_cast %6 : vector<16x16x12xf32> to vector<256x12xf32>
    %c0_5 = arith.constant 0 : index
    %c0_6 = arith.constant 0 : index
    %8 = vector.load %arg3[%c0_5, %c0_6] : memref<12x32xf32, #tpu.memory_space<vmem>>, vector<12x32xf32>
    %cst = arith.constant dense<0.000000e+00> : vector<256x32xf32>
    %9 = tpu.matmul %7, %8, %cst {dimension_numbers = #tpu.dot_dimension_numbers<[1], [0], [0], [1], [0, 0, 1, 1], [], []>} : vector<256x12xf32>, vector<12x32xf32>, vector<256x32xf32> -> vector<256x32xf32>
    %c0_7 = arith.constant 0 : index
    %c0_8 = arith.constant 0 : index
    %10 = vector.load %arg5[%c0_7, %c0_8] : memref<1x32xf32, #tpu.memory_space<vmem>>, vector<1x32xf32>
    %11 = vector.broadcast %10 : vector<1x32xf32> to vector<256x32xf32>
    %12 = arith.addf %9, %11 : vector<256x32xf32>
    %13 = vector.shape_cast %12 : vector<256x32xf32> to vector<16x16x32xf32>
    %c0_9 = arith.constant 0 : index
    %c0_10 = arith.constant 0 : index
    %c0_11 = arith.constant 0 : index
    %14 = vector.load %arg4[%c0_9, %c0_10, %c0_11] : memref<1x1x32xf32, #tpu.memory_space<vmem>>, vector<1x1x32xf32>
    %15 = vector.broadcast %5 : vector<16x16x1xf32> to vector<16x16x32xf32>
    %16 = vector.broadcast %14 : vector<1x1x32xf32> to vector<16x16x32xf32>
    %17 = arith.mulf %15, %16 : vector<16x16x32xf32>
    %18 = arith.addf %13, %17 : vector<16x16x32xf32>
    %cst_12 = arith.constant 0.00999999977 : f32
    %19 = vector.broadcast %cst_12 : f32 to vector<16x16x32xf32>
    %20 = arith.mulf %19, %18 : vector<16x16x32xf32>
    %21 = arith.maximumf %18, %20 : vector<16x16x32xf32>
    %22 = vector.shape_cast %21 : vector<16x16x32xf32> to vector<256x32xf32>
    %c0_13 = arith.constant 0 : index
    %c0_14 = arith.constant 0 : index
    %23 = vector.load %arg6[%c0_13, %c0_14] : memref<32x32xf32, #tpu.memory_space<vmem>>, vector<32x32xf32>
    %cst_15 = arith.constant dense<0.000000e+00> : vector<256x32xf32>
    %24 = tpu.matmul %22, %23, %cst_15 {dimension_numbers = #tpu.dot_dimension_numbers<[1], [0], [0], [1], [0, 0, 1, 1], [], []>} : vector<256x32xf32>, vector<32x32xf32>, vector<256x32xf32> -> vector<256x32xf32>
    %c0_16 = arith.constant 0 : index
    %c0_17 = arith.constant 0 : index
    %25 = vector.load %arg7[%c0_16, %c0_17] : memref<1x32xf32, #tpu.memory_space<vmem>>, vector<1x32xf32>
    %26 = vector.broadcast %25 : vector<1x32xf32> to vector<256x32xf32>
    %27 = arith.addf %24, %26 : vector<256x32xf32>
    %cst_18 = arith.constant 0.00999999977 : f32
    %28 = vector.broadcast %cst_18 : f32 to vector<256x32xf32>
    %29 = arith.mulf %28, %27 : vector<256x32xf32>
    %30 = arith.maximumf %27, %29 : vector<256x32xf32>
    %cst_19 = arith.constant dense<0.000000e+00> : vector<256xf32>
    %31 = vector.multi_reduction <add>, %30, %cst_19 [1] : vector<256x32xf32> to vector<256xf32>
    %32 = vector.shape_cast %31 : vector<256xf32> to vector<256x1xf32>
    %cst_20 = arith.constant 3.200000e+01 : f32
    %33 = vector.broadcast %cst_20 : f32 to vector<256x1xf32>
    %34 = arith.divf %32, %33 : vector<256x1xf32>
    %35 = vector.broadcast %34 : vector<256x1xf32> to vector<256x32xf32>
    %36 = arith.subf %30, %35 : vector<256x32xf32>
    %37 = arith.mulf %36, %36 : vector<256x32xf32>
    %cst_21 = arith.constant dense<0.000000e+00> : vector<256xf32>
    %38 = vector.multi_reduction <add>, %37, %cst_21 [1] : vector<256x32xf32> to vector<256xf32>
    %39 = vector.shape_cast %38 : vector<256xf32> to vector<256x1xf32>
    %cst_22 = arith.constant 3.200000e+01 : f32
    %40 = vector.broadcast %cst_22 : f32 to vector<256x1xf32>
    %41 = arith.divf %39, %40 : vector<256x1xf32>
    %cst_23 = arith.constant 9.99999974E-6 : f32
    %42 = vector.broadcast %cst_23 : f32 to vector<256x1xf32>
    %43 = arith.addf %41, %42 : vector<256x1xf32>
    %44 = math.rsqrt %43 : vector<256x1xf32>
    %45 = vector.broadcast %44 : vector<256x1xf32> to vector<256x32xf32>
    %46 = arith.mulf %36, %45 : vector<256x32xf32>
    %c0_24 = arith.constant 0 : index
    %c0_25 = arith.constant 0 : index
    %47 = vector.load %arg8[%c0_24, %c0_25] : memref<1x32xf32, #tpu.memory_space<vmem>>, vector<1x32xf32>
    %48 = vector.broadcast %47 : vector<1x32xf32> to vector<256x32xf32>
    %49 = arith.mulf %46, %48 : vector<256x32xf32>
    %c0_26 = arith.constant 0 : index
    %c0_27 = arith.constant 0 : index
    %50 = vector.load %arg9[%c0_26, %c0_27] : memref<1x32xf32, #tpu.memory_space<vmem>>, vector<1x32xf32>
    %51 = vector.broadcast %50 : vector<1x32xf32> to vector<256x32xf32>
    %52 = arith.addf %49, %51 : vector<256x32xf32>
    %c0_28 = arith.constant 0 : index
    %c0_29 = arith.constant 0 : index
    %53 = vector.load %arg10[%c0_28, %c0_29] : memref<32x96xf32, #tpu.memory_space<vmem>>, vector<32x96xf32>
    %cst_30 = arith.constant dense<0.000000e+00> : vector<256x96xf32>
    %54 = tpu.matmul %52, %53, %cst_30 {dimension_numbers = #tpu.dot_dimension_numbers<[1], [0], [0], [1], [0, 0, 1, 1], [], []>} : vector<256x32xf32>, vector<32x96xf32>, vector<256x96xf32> -> vector<256x96xf32>
    %c0_31 = arith.constant 0 : index
    %c0_32 = arith.constant 0 : index
    %55 = vector.load %arg11[%c0_31, %c0_32] : memref<1x96xf32, #tpu.memory_space<vmem>>, vector<1x96xf32>
    %56 = vector.broadcast %55 : vector<1x96xf32> to vector<256x96xf32>
    %57 = arith.addf %54, %56 : vector<256x96xf32>
    %58 = vector.extract_strided_slice %57 {offsets = [0, 0], sizes = [256, 8], strides = [1, 1]} : vector<256x96xf32> to vector<256x8xf32>
    %59 = vector.shape_cast %58 : vector<256x8xf32> to vector<16x16x8xf32>
    %60 = vector.extract_strided_slice %57 {offsets = [0, 8], sizes = [256, 8], strides = [1, 1]} : vector<256x96xf32> to vector<256x8xf32>
    %61 = vector.shape_cast %60 : vector<256x8xf32> to vector<16x16x8xf32>
    %62 = vector.extract_strided_slice %57 {offsets = [0, 16], sizes = [256, 8], strides = [1, 1]} : vector<256x96xf32> to vector<256x8xf32>
    %63 = vector.shape_cast %62 : vector<256x8xf32> to vector<16x16x8xf32>
    %64 = vector.extract_strided_slice %57 {offsets = [0, 24], sizes = [256, 8], strides = [1, 1]} : vector<256x96xf32> to vector<256x8xf32>
    %65 = vector.shape_cast %64 : vector<256x8xf32> to vector<16x16x8xf32>
    %66 = vector.shape_cast %59 : vector<16x16x8xf32> to vector<16x1x16x8xf32>
    %67 = vector.shape_cast %61 : vector<16x16x8xf32> to vector<16x1x16x8xf32>
    %68 = vector.shape_cast %63 : vector<16x16x8xf32> to vector<16x1x16x8xf32>
    %69 = vector.shape_cast %65 : vector<16x16x8xf32> to vector<16x1x16x8xf32>
    %70 = tpu.concatenate %66, %67, %68, %69 in 1 : vector<16x1x16x8xf32>, vector<16x1x16x8xf32>, vector<16x1x16x8xf32>, vector<16x1x16x8xf32> -> vector<16x4x16x8xf32>
    %71 = vector.shape_cast %70 : vector<16x4x16x8xf32> to vector<64x16x8xf32>
    %72 = vector.extract_strided_slice %57 {offsets = [0, 32], sizes = [256, 8], strides = [1, 1]} : vector<256x96xf32> to vector<256x8xf32>
    %73 = vector.shape_cast %72 : vector<256x8xf32> to vector<16x16x8xf32>
    %74 = vector.extract_strided_slice %57 {offsets = [0, 40], sizes = [256, 8], strides = [1, 1]} : vector<256x96xf32> to vector<256x8xf32>
    %75 = vector.shape_cast %74 : vector<256x8xf32> to vector<16x16x8xf32>
    %76 = vector.extract_strided_slice %57 {offsets = [0, 48], sizes = [256, 8], strides = [1, 1]} : vector<256x96xf32> to vector<256x8xf32>
    %77 = vector.shape_cast %76 : vector<256x8xf32> to vector<16x16x8xf32>
    %78 = vector.extract_strided_slice %57 {offsets = [0, 56], sizes = [256, 8], strides = [1, 1]} : vector<256x96xf32> to vector<256x8xf32>
    %79 = vector.shape_cast %78 : vector<256x8xf32> to vector<16x16x8xf32>
    %80 = vector.shape_cast %73 : vector<16x16x8xf32> to vector<16x1x16x8xf32>
    %81 = vector.shape_cast %75 : vector<16x16x8xf32> to vector<16x1x16x8xf32>
    %82 = vector.shape_cast %77 : vector<16x16x8xf32> to vector<16x1x16x8xf32>
    %83 = vector.shape_cast %79 : vector<16x16x8xf32> to vector<16x1x16x8xf32>
    %84 = tpu.concatenate %80, %81, %82, %83 in 1 : vector<16x1x16x8xf32>, vector<16x1x16x8xf32>, vector<16x1x16x8xf32>, vector<16x1x16x8xf32> -> vector<16x4x16x8xf32>
    %85 = vector.shape_cast %84 : vector<16x4x16x8xf32> to vector<64x16x8xf32>
    %86 = vector.extract_strided_slice %57 {offsets = [0, 64], sizes = [256, 8], strides = [1, 1]} : vector<256x96xf32> to vector<256x8xf32>
    %87 = vector.shape_cast %86 : vector<256x8xf32> to vector<16x16x8xf32>
    %88 = vector.extract_strided_slice %57 {offsets = [0, 72], sizes = [256, 8], strides = [1, 1]} : vector<256x96xf32> to vector<256x8xf32>
    %89 = vector.shape_cast %88 : vector<256x8xf32> to vector<16x16x8xf32>
    %90 = vector.extract_strided_slice %57 {offsets = [0, 80], sizes = [256, 8], strides = [1, 1]} : vector<256x96xf32> to vector<256x8xf32>
    %91 = vector.shape_cast %90 : vector<256x8xf32> to vector<16x16x8xf32>
    %92 = vector.extract_strided_slice %57 {offsets = [0, 88], sizes = [256, 8], strides = [1, 1]} : vector<256x96xf32> to vector<256x8xf32>
    %93 = vector.shape_cast %92 : vector<256x8xf32> to vector<16x16x8xf32>
    %94 = vector.shape_cast %87 : vector<16x16x8xf32> to vector<16x1x16x8xf32>
    %95 = vector.shape_cast %89 : vector<16x16x8xf32> to vector<16x1x16x8xf32>
    %96 = vector.shape_cast %91 : vector<16x16x8xf32> to vector<16x1x16x8xf32>
    %97 = vector.shape_cast %93 : vector<16x16x8xf32> to vector<16x1x16x8xf32>
    %98 = tpu.concatenate %94, %95, %96, %97 in 1 : vector<16x1x16x8xf32>, vector<16x1x16x8xf32>, vector<16x1x16x8xf32>, vector<16x1x16x8xf32> -> vector<16x4x16x8xf32>
    %99 = vector.shape_cast %98 : vector<16x4x16x8xf32> to vector<64x16x8xf32>
    "tpu.trace_start"() <{level = 10 : i32, message = "bnd,bmd->bnm"}> : () -> ()
    %cst_33 = arith.constant dense<0.000000e+00> : vector<64x16x16xf32>
    %100 = tpu.matmul %71, %85, %cst_33 {dimension_numbers = #tpu.dot_dimension_numbers<[2], [2], [1], [1], [0, 0, 0, 1, 1, 1], [0], [0]>} : vector<64x16x8xf32>, vector<64x16x8xf32>, vector<64x16x16xf32> -> vector<64x16x16xf32>
    "tpu.trace_stop"() : () -> ()
    %cst_34 = arith.constant dense<0xFF800000> : vector<64x16xf32>
    %101 = vector.multi_reduction <maximumf>, %100, %cst_34 [2] : vector<64x16x16xf32> to vector<64x16xf32>
    %102 = vector.shape_cast %101 : vector<64x16xf32> to vector<64x16x1xf32>
    %103 = vector.broadcast %102 : vector<64x16x1xf32> to vector<64x16x16xf32>
    %104 = arith.subf %100, %103 : vector<64x16x16xf32>
    %105 = math.exp %104 : vector<64x16x16xf32>
    %cst_35 = arith.constant dense<0.000000e+00> : vector<64x16xf32>
    %106 = vector.multi_reduction <add>, %105, %cst_35 [2] : vector<64x16x16xf32> to vector<64x16xf32>
    %107 = vector.shape_cast %106 : vector<64x16xf32> to vector<64x16x1xf32>
    %108 = tpu.reciprocal %107 {approx = true} : vector<64x16x1xf32> -> vector<64x16x1xf32>
    %109 = arith.mulf %107, %108 : vector<64x16x1xf32>
    %cst_36 = arith.constant 2.000000e+00 : f32
    %110 = vector.broadcast %cst_36 : f32 to vector<64x16x1xf32>
    %111 = arith.subf %110, %109 : vector<64x16x1xf32>
    %112 = arith.mulf %108, %111 : vector<64x16x1xf32>
    %113 = vector.broadcast %112 : vector<64x16x1xf32> to vector<64x16x16xf32>
    %114 = arith.mulf %105, %113 : vector<64x16x16xf32>
    "tpu.trace_start"() <{level = 10 : i32, message = "bnm,bmd->bnd"}> : () -> ()
    %cst_37 = arith.constant dense<0.000000e+00> : vector<64x16x8xf32>
    %115 = tpu.matmul %114, %99, %cst_37 {dimension_numbers = #tpu.dot_dimension_numbers<[2], [1], [1], [2], [0, 0, 0, 1, 1, 2], [0], [0]>} : vector<64x16x16xf32>, vector<64x16x8xf32>, vector<64x16x8xf32> -> vector<64x16x8xf32>
    "tpu.trace_stop"() : () -> ()
    %116 = vector.shape_cast %115 : vector<64x16x8xf32> to vector<16x4x16x8xf32>
    %117 = vector.extract_strided_slice %116 {offsets = [0, 0, 0, 0], sizes = [16, 1, 16, 8], strides = [1, 1, 1, 1]} : vector<16x4x16x8xf32> to vector<16x1x16x8xf32>
    %118 = vector.shape_cast %117 : vector<16x1x16x8xf32> to vector<16x16x8xf32>
    %119 = vector.shape_cast %118 : vector<16x16x8xf32> to vector<256x8xf32>
    %120 = vector.extract_strided_slice %116 {offsets = [0, 1, 0, 0], sizes = [16, 1, 16, 8], strides = [1, 1, 1, 1]} : vector<16x4x16x8xf32> to vector<16x1x16x8xf32>
    %121 = vector.shape_cast %120 : vector<16x1x16x8xf32> to vector<16x16x8xf32>
    %122 = vector.shape_cast %121 : vector<16x16x8xf32> to vector<256x8xf32>
    %123 = vector.extract_strided_slice %116 {offsets = [0, 2, 0, 0], sizes = [16, 1, 16, 8], strides = [1, 1, 1, 1]} : vector<16x4x16x8xf32> to vector<16x1x16x8xf32>
    %124 = vector.shape_cast %123 : vector<16x1x16x8xf32> to vector<16x16x8xf32>
    %125 = vector.shape_cast %124 : vector<16x16x8xf32> to vector<256x8xf32>
    %126 = vector.extract_strided_slice %116 {offsets = [0, 3, 0, 0], sizes = [16, 1, 16, 8], strides = [1, 1, 1, 1]} : vector<16x4x16x8xf32> to vector<16x1x16x8xf32>
    %127 = vector.shape_cast %126 : vector<16x1x16x8xf32> to vector<16x16x8xf32>
    %128 = vector.shape_cast %127 : vector<16x16x8xf32> to vector<256x8xf32>
    %129 = tpu.concatenate %119, %122, %125, %128 in 1 : vector<256x8xf32>, vector<256x8xf32>, vector<256x8xf32>, vector<256x8xf32> -> vector<256x32xf32>
    %c0_38 = arith.constant 0 : index
    %c0_39 = arith.constant 0 : index
    %130 = vector.load %arg12[%c0_38, %c0_39] : memref<32x32xf32, #tpu.memory_space<vmem>>, vector<32x32xf32>
    %cst_40 = arith.constant dense<0.000000e+00> : vector<256x32xf32>
    %131 = tpu.matmul %129, %130, %cst_40 {dimension_numbers = #tpu.dot_dimension_numbers<[1], [0], [0], [1], [0, 0, 1, 1], [], []>} : vector<256x32xf32>, vector<32x32xf32>, vector<256x32xf32> -> vector<256x32xf32>
    %c0_41 = arith.constant 0 : index
    %c0_42 = arith.constant 0 : index
    %132 = vector.load %arg13[%c0_41, %c0_42] : memref<1x32xf32, #tpu.memory_space<vmem>>, vector<1x32xf32>
    %133 = vector.broadcast %132 : vector<1x32xf32> to vector<256x32xf32>
    %134 = arith.addf %131, %133 : vector<256x32xf32>
    %135 = vector.shape_cast %134 : vector<256x32xf32> to vector<16x16x32xf32>
    %cst_43 = arith.constant dense<0xFF800000> : vector<16x32xf32>
    %136 = vector.multi_reduction <maximumf>, %135, %cst_43 [1] : vector<16x16x32xf32> to vector<16x32xf32>
    %c0_44 = arith.constant 0 : index
    %c0_45 = arith.constant 0 : index
    %137 = vector.load %arg14[%c0_44, %c0_45] : memref<32x64xf32, #tpu.memory_space<vmem>>, vector<32x64xf32>
    %cst_46 = arith.constant dense<0.000000e+00> : vector<16x64xf32>
    %138 = tpu.matmul %136, %137, %cst_46 {dimension_numbers = #tpu.dot_dimension_numbers<[1], [0], [0], [1], [0, 0, 1, 1], [], []>} : vector<16x32xf32>, vector<32x64xf32>, vector<16x64xf32> -> vector<16x64xf32>
    %c0_47 = arith.constant 0 : index
    %c0_48 = arith.constant 0 : index
    %139 = vector.load %arg15[%c0_47, %c0_48] : memref<1x64xf32, #tpu.memory_space<vmem>>, vector<1x64xf32>
    %140 = vector.broadcast %139 : vector<1x64xf32> to vector<16x64xf32>
    %141 = arith.addf %138, %140 : vector<16x64xf32>
    %cst_49 = arith.constant 0.00999999977 : f32
    %142 = vector.broadcast %cst_49 : f32 to vector<16x64xf32>
    %143 = arith.mulf %142, %141 : vector<16x64xf32>
    %144 = arith.maximumf %141, %143 : vector<16x64xf32>
    %c0_50 = arith.constant 0 : index
    %c0_51 = arith.constant 0 : index
    %145 = vector.load %arg16[%c0_50, %c0_51] : memref<64x2xf32, #tpu.memory_space<vmem>>, vector<64x2xf32>
    %cst_52 = arith.constant dense<0.000000e+00> : vector<16x2xf32>
    %146 = tpu.matmul %144, %145, %cst_52 {dimension_numbers = #tpu.dot_dimension_numbers<[1], [0], [0], [1], [0, 0, 1, 1], [], []>} : vector<16x64xf32>, vector<64x2xf32>, vector<16x2xf32> -> vector<16x2xf32>
    %c0_53 = arith.constant 0 : index
    %c0_54 = arith.constant 0 : index
    %147 = vector.load %arg17[%c0_53, %c0_54] : memref<1x2xf32, #tpu.memory_space<vmem>>, vector<1x2xf32>
    %148 = vector.broadcast %147 : vector<1x2xf32> to vector<16x2xf32>
    %149 = arith.addf %146, %148 : vector<16x2xf32>
    %c0_55 = arith.constant 0 : index
    %c0_56 = arith.constant 0 : index
    %150 = vector.load %arg18[%c0_55, %c0_56] : memref<16x2xf32, #tpu.memory_space<vmem>>, vector<16x2xf32>
    tpu.vector_store %arg18[%c0_55, %c0_56], %149 {strides = array<i32>} : memref<16x2xf32, #tpu.memory_space<vmem>>, vector<16x2xf32>,
    return
  }
  func.func @transform_0(%arg0: i32) -> (i32, i32, i32) {
    %c0_i32 = arith.constant 0 : i32
    %c0_i32_0 = arith.constant 0 : i32
    %c0_i32_1 = arith.constant 0 : i32
    return %arg0, %c0_i32, %c0_i32_0 : i32, i32, i32
  }
  func.func @transform_1(%arg0: i32) -> (i32, i32, i32) {
    %c0_i32 = arith.constant 0 : i32
    %c0_i32_0 = arith.constant 0 : i32
    %c0_i32_1 = arith.constant 0 : i32
    return %arg0, %c0_i32, %c0_i32_0 : i32, i32, i32
  }
  func.func @transform_2(%arg0: i32) -> (i32, i32) {
    %c0_i32 = arith.constant 0 : i32
    %c0_i32_0 = arith.constant 0 : i32
    %c0_i32_1 = arith.constant 0 : i32
    return %c0_i32, %c0_i32_0 : i32, i32
  }
  func.func @transform_3(%arg0: i32) -> (i32, i32, i32) {
    %c0_i32 = arith.constant 0 : i32
    %c0_i32_0 = arith.constant 0 : i32
    %c0_i32_1 = arith.constant 0 : i32
    %c0_i32_2 = arith.constant 0 : i32
    return %c0_i32, %c0_i32_0, %c0_i32_1 : i32, i32, i32
  }
  func.func @transform_4(%arg0: i32) -> (i32, i32) {
    %c0_i32 = arith.constant 0 : i32
    %c0_i32_0 = arith.constant 0 : i32
    %c0_i32_1 = arith.constant 0 : i32
    return %c0_i32, %c0_i32_0 : i32, i32
  }
  func.func @transform_5(%arg0: i32) -> (i32, i32) {
    %c0_i32 = arith.constant 0 : i32
    %c0_i32_0 = arith.constant 0 : i32
    %c0_i32_1 = arith.constant 0 : i32
    return %c0_i32, %c0_i32_0 : i32, i32
  }
  func.func @transform_6(%arg0: i32) -> (i32, i32) {
    %c0_i32 = arith.constant 0 : i32
    %c0_i32_0 = arith.constant 0 : i32
    %c0_i32_1 = arith.constant 0 : i32
    return %c0_i32, %c0_i32_0 : i32, i32
  }
  func.func @transform_7(%arg0: i32) -> (i32, i32) {
    %c0_i32 = arith.constant 0 : i32
    %c0_i32_0 = arith.constant 0 : i32
    %c0_i32_1 = arith.constant 0 : i32
    return %c0_i32, %c0_i32_0 : i32, i32
  }
  func.func @transform_8(%arg0: i32) -> (i32, i32) {
    %c0_i32 = arith.constant 0 : i32
    %c0_i32_0 = arith.constant 0 : i32
    %c0_i32_1 = arith.constant 0 : i32
    return %c0_i32, %c0_i32_0 : i32, i32
  }
  func.func @transform_9(%arg0: i32) -> (i32, i32) {
    %c0_i32 = arith.constant 0 : i32
    %c0_i32_0 = arith.constant 0 : i32
    %c0_i32_1 = arith.constant 0 : i32
    return %c0_i32, %c0_i32_0 : i32, i32
  }
  func.func @transform_10(%arg0: i32) -> (i32, i32) {
    %c0_i32 = arith.constant 0 : i32
    %c0_i32_0 = arith.constant 0 : i32
    %c0_i32_1 = arith.constant 0 : i32
    return %c0_i32, %c0_i32_0 : i32, i32
  }
  func.func @transform_11(%arg0: i32) -> (i32, i32) {
    %c0_i32 = arith.constant 0 : i32
    %c0_i32_0 = arith.constant 0 : i32
    %c0_i32_1 = arith.constant 0 : i32
    return %c0_i32, %c0_i32_0 : i32, i32
  }
  func.func @transform_12(%arg0: i32) -> (i32, i32) {
    %c0_i32 = arith.constant 0 : i32
    %c0_i32_0 = arith.constant 0 : i32
    %c0_i32_1 = arith.constant 0 : i32
    return %c0_i32, %c0_i32_0 : i32, i32
  }
  func.func @transform_13(%arg0: i32) -> (i32, i32) {
    %c0_i32 = arith.constant 0 : i32
    %c0_i32_0 = arith.constant 0 : i32
    %c0_i32_1 = arith.constant 0 : i32
    return %c0_i32, %c0_i32_0 : i32, i32
  }
  func.func @transform_14(%arg0: i32) -> (i32, i32) {
    %c0_i32 = arith.constant 0 : i32
    %c0_i32_0 = arith.constant 0 : i32
    %c0_i32_1 = arith.constant 0 : i32
    return %c0_i32, %c0_i32_0 : i32, i32
  }
  func.func @transform_15(%arg0: i32) -> (i32, i32) {
    %c0_i32 = arith.constant 0 : i32
    %c0_i32_0 = arith.constant 0 : i32
    %c0_i32_1 = arith.constant 0 : i32
    return %c0_i32, %c0_i32_0 : i32, i32
  }
  func.func @transform_16(%arg0: i32) -> (i32, i32) {
    %c0_i32 = arith.constant 0 : i32
    %c0_i32_0 = arith.constant 0 : i32
    %c0_i32_1 = arith.constant 0 : i32
    return %c0_i32, %c0_i32_0 : i32, i32
  }
  func.func @transform_17(%arg0: i32) -> (i32, i32) {
    %c0_i32 = arith.constant 0 : i32
    %c0_i32_0 = arith.constant 0 : i32
    return %arg0, %c0_i32 : i32, i32
  }
}

</mosaic_0001>

<llo_original>
// kernel: qnetworkk_forward.1
$region0: #{qnetworkk_forward.1}
  #allocation0 [shape = 'u32[]', space=smem, size = 0x4, offset = 0x4, fixed_abs, tag = 'smem constant byte address 0x4 - core index']
  #allocation1 [shape = 'u32[72,128]{1,0:T(1,128)}', space=vmem, size = 0x9000, scoped, tag = 'internal scratch']
  %s0 = inlined_call_operand.vmem [shape: f32[32,16,12], index: 0, kind: input, shape index: {}]
  %s1 = inlined_call_operand.vmem [shape: s32[32,1,1], index: 1, kind: input, shape index: {}]
  %s2 = inlined_call_operand.vmem [shape: f32[12,32], index: 2, kind: input, shape index: {}]
  %s3 = inlined_call_operand.vmem [shape: f32[1,1,32], index: 3, kind: input, shape index: {}]
  %s4 = inlined_call_operand.vmem [shape: f32[1,32], index: 4, kind: input, shape index: {}]
  %s5 = inlined_call_operand.vmem [shape: f32[32,32], index: 5, kind: input, shape index: {}]
  %s6 = inlined_call_operand.vmem [shape: f32[1,32], index: 6, kind: input, shape index: {}]
  %s7 = inlined_call_operand.vmem [shape: f32[1,32], index: 7, kind: input, shape index: {}]
  %s8 = inlined_call_operand.vmem [shape: f32[1,32], index: 8, kind: input, shape index: {}]
  %s9 = inlined_call_operand.vmem [shape: f32[32,96], index: 9, kind: input, shape index: {}]
  %s10 = inlined_call_operand.vmem [shape: f32[1,96], index: 10, kind: input, shape index: {}]
  %s11 = inlined_call_operand.vmem [shape: f32[32,32], index: 11, kind: input, shape index: {}]
  %s12 = inlined_call_operand.vmem [shape: f32[1,32], index: 12, kind: input, shape index: {}]
  %s13 = inlined_call_operand.vmem [shape: f32[32,64], index: 13, kind: input, shape index: {}]
  %s14 = inlined_call_operand.vmem [shape: f32[1,64], index: 14, kind: input, shape index: {}]
  %s15 = inlined_call_operand.vmem [shape: f32[64,2], index: 15, kind: input, shape index: {}]
  %s16 = inlined_call_operand.vmem [shape: f32[1,2], index: 16, kind: input, shape index: {}]
  %s17 = inlined_call_operand.vmem [shape: f32[32,2], index: 17, kind: output, shape index: {}]
  %s18 = sld [smem:[#allocation0]]
  $region101: #{qnetworkk_forward.1} parent=0
    _
  %s20 = ssub.s32 1, %s18
  %s21 = scalar_select 0, %s20, %s18
  loop: start=0, step=1, limit=4
  $region2: #{qnetworkk_forward.1} parent=0 // loop_pre_header
    _
  $region3: #{qnetworkk_forward.1} parent=0 // loop_header
    %s23 = sphi 0, %s27
    %p24 = scmp.ge.s32.totalorder %s23, 4
    %s33 = sphi 0, %s35
    %s36 = sphi 0, %s33
    %s37 = sphi 0, %s36
    %s53 = sphi 0, %s37
    %s59 = sphi 0, %s61
    %s62 = sphi 0, %s59
    %s63 = sphi 0, %s62
    %s79 = sphi 0, %s63
    %s83 = sphi 0, %s83
    %s85 = sphi 0, %s83
    %s86 = sphi 0, %s85
    %s100 = sphi 0, %s86
    %s104 = sphi 0, %s104
    %s106 = sphi 0, %s104
    %s107 = sphi 0, %s106
    %s121 = sphi 0, %s107
    %s125 = sphi 0, %s125
    %s127 = sphi 0, %s125
    %s128 = sphi 0, %s127
    %s142 = sphi 0, %s128
    %s146 = sphi 0, %s146
    %s148 = sphi 0, %s146
    %s149 = sphi 0, %s148
    %s163 = sphi 0, %s149
    %s167 = sphi 0, %s167
    %s169 = sphi 0, %s167
    %s170 = sphi 0, %s169
    %s184 = sphi 0, %s170
    %s188 = sphi 0, %s188
    %s190 = sphi 0, %s188
    %s191 = sphi 0, %s190
    %s205 = sphi 0, %s191
    %s209 = sphi 0, %s209
    %s211 = sphi 0, %s209
    %s212 = sphi 0, %s211
    %s226 = sphi 0, %s212
    %s230 = sphi 0, %s230
    %s232 = sphi 0, %s230
    %s233 = sphi 0, %s232
    %s247 = sphi 0, %s233
    %s251 = sphi 0, %s251
    %s253 = sphi 0, %s251
    %s254 = sphi 0, %s253
    %s268 = sphi 0, %s254
    %s272 = sphi 0, %s272
    %s274 = sphi 0, %s272
    %s275 = sphi 0, %s274
    %s289 = sphi 0, %s275
    %s293 = sphi 0, %s293
    %s295 = sphi 0, %s293
    %s296 = sphi 0, %s295
    %s310 = sphi 0, %s296
    %s314 = sphi 0, %s314
    %s316 = sphi 0, %s314
    %s317 = sphi 0, %s316
    %s331 = sphi 0, %s317
    %s335 = sphi 0, %s335
    %s337 = sphi 0, %s335
    %s338 = sphi 0, %s337
    %s352 = sphi 0, %s338
    %s356 = sphi 0, %s356
    %s358 = sphi 0, %s356
    %s359 = sphi 0, %s358
    %s373 = sphi 0, %s359
    %s377 = sphi 0, %s377
    %s379 = sphi 0, %s377
    %s380 = sphi 0, %s379
    %s394 = sphi 0, %s380
    %s400 = sphi 0, %s402
    %s403 = sphi 0, %s400
    %s404 = sphi 0, %s403
    %s420 = sphi 0, %s404
  $region4: #{qnetworkk_forward.1} parent=0 // loop_header_branch
    %26 = sbr.rel (%p24) target = $region8
  $region5: #{qnetworkk_forward.1} parent=0 // loop_body
    %s28 = ssub.s32 %s23, 1
    %s29 = ssub.s32 %s23, 2
    %s30 = sadd.s32 %s23, 1
    %s31 = ssub.s32 %s23, %s30
    %p32 = scmp.eq.s32.totalorder %s31, 0
    %s34 = sadd.s32 %s33, 1
    %s35 = scalar_select %p32, %s33, %s34
    %p38 = pneg %p32
    %p39 = scmp.eq.s32.totalorder %s23, 1
    %p40 = por %p38, %p39
    %p41 = scmp.ne.s32.totalorder %s33, %s36
    %p42 = scmp.eq.s32.totalorder %s23, 0
    %p43 = por %p41, %p42
    %p44 = scmp.ne.s32.totalorder %s33, %s36
    %p45 = scmp.eq.s32.totalorder %s28, 1
    %p46 = por %p44, %p45
    %p47 = scmp.ne.s32.totalorder %s36, %s37
    %p48 = scmp.eq.s32.totalorder %s28, 0
    %p49 = por %p47, %p48
    %p50 = scmp.ne.s32.totalorder %s36, %s37
    %p51 = scmp.eq.s32.totalorder %s29, 1
    %p52 = por %p50, %p51
    %p54 = scmp.ne.s32.totalorder %s37, %s53
    %p55 = scmp.eq.s32.totalorder %s29, 0
    %p56 = por %p54, %p55
    %s57 = ssub.s32 %s23, %s30
    %p58 = scmp.eq.s32.totalorder %s57, 0
    %s60 = sadd.s32 %s59, 1
    %s61 = scalar_select %p58, %s59, %s60
    %p64 = pneg %p58
    %p65 = scmp.eq.s32.totalorder %s23, 1
    %p66 = por %p64, %p65
    %p67 = scmp.ne.s32.totalorder %s59, %s62
    %p68 = scmp.eq.s32.totalorder %s23, 0
    %p69 = por %p67, %p68
    %p70 = scmp.ne.s32.totalorder %s59, %s62
    %p71 = scmp.eq.s32.totalorder %s28, 1
    %p72 = por %p70, %p71
    %p73 = scmp.ne.s32.totalorder %s62, %s63
    %p74 = scmp.eq.s32.totalorder %s28, 0
    %p75 = por %p73, %p74
    %p76 = scmp.ne.s32.totalorder %s62, %s63
    %p77 = scmp.eq.s32.totalorder %s29, 1
    %p78 = por %p76, %p77
    %p80 = scmp.ne.s32.totalorder %s63, %s79
    %p81 = scmp.eq.s32.totalorder %s29, 0
    %p82 = por %p80, %p81
    %s84 = sadd.s32 %s83, 1
    %p87 = scmp.eq.s32.totalorder %s23, 1
    %p88 = scmp.ne.s32.totalorder %s83, %s85
    %p89 = scmp.eq.s32.totalorder %s23, 0
    %p90 = por %p88, %p89
    %p91 = scmp.ne.s32.totalorder %s83, %s85
    %p92 = scmp.eq.s32.totalorder %s28, 1
    %p93 = por %p91, %p92
    %p94 = scmp.ne.s32.totalorder %s85, %s86
    %p95 = scmp.eq.s32.totalorder %s28, 0
    %p96 = por %p94, %p95
    %p97 = scmp.ne.s32.totalorder %s85, %s86
    %p98 = scmp.eq.s32.totalorder %s29, 1
    %p99 = por %p97, %p98
    %p101 = scmp.ne.s32.totalorder %s86, %s100
    %p102 = scmp.eq.s32.totalorder %s29, 0
    %p103 = por %p101, %p102
    %s105 = sadd.s32 %s104, 1
    %p108 = scmp.eq.s32.totalorder %s23, 1
    %p109 = scmp.ne.s32.totalorder %s104, %s106
    %p110 = scmp.eq.s32.totalorder %s23, 0
    %p111 = por %p109, %p110
    %p112 = scmp.ne.s32.totalorder %s104, %s106
    %p113 = scmp.eq.s32.totalorder %s28, 1
    %p114 = por %p112, %p113
    %p115 = scmp.ne.s32.totalorder %s106, %s107
    %p116 = scmp.eq.s32.totalorder %s28, 0
    %p117 = por %p115, %p116
    %p118 = scmp.ne.s32.totalorder %s106, %s107
    %p119 = scmp.eq.s32.totalorder %s29, 1
    %p120 = por %p118, %p119
    %p122 = scmp.ne.s32.totalorder %s107, %s121
    %p123 = scmp.eq.s32.totalorder %s29, 0
    %p124 = por %p122, %p123
    %s126 = sadd.s32 %s125, 1
    %p129 = scmp.eq.s32.totalorder %s23, 1
    %p130 = scmp.ne.s32.totalorder %s125, %s127
    %p131 = scmp.eq.s32.totalorder %s23, 0
    %p132 = por %p130, %p131
    %p133 = scmp.ne.s32.totalorder %s125, %s127
    %p134 = scmp.eq.s32.totalorder %s28, 1
    %p135 = por %p133, %p134
    %p136 = scmp.ne.s32.totalorder %s127, %s128
    %p137 = scmp.eq.s32.totalorder %s28, 0
    %p138 = por %p136, %p137
    %p139 = scmp.ne.s32.totalorder %s127, %s128
    %p140 = scmp.eq.s32.totalorder %s29, 1
    %p141 = por %p139, %p140
    %p143 = scmp.ne.s32.totalorder %s128, %s142
    %p144 = scmp.eq.s32.totalorder %s29, 0
    %p145 = por %p143, %p144
    %s147 = sadd.s32 %s146, 1
    %p150 = scmp.eq.s32.totalorder %s23, 1
    %p151 = scmp.ne.s32.totalorder %s146, %s148
    %p152 = scmp.eq.s32.totalorder %s23, 0
    %p153 = por %p151, %p152
    %p154 = scmp.ne.s32.totalorder %s146, %s148
    %p155 = scmp.eq.s32.totalorder %s28, 1
    %p156 = por %p154, %p155
    %p157 = scmp.ne.s32.totalorder %s148, %s149
    %p158 = scmp.eq.s32.totalorder %s28, 0
    %p159 = por %p157, %p158
    %p160 = scmp.ne.s32.totalorder %s148, %s149
    %p161 = scmp.eq.s32.totalorder %s29, 1
    %p162 = por %p160, %p161
    %p164 = scmp.ne.s32.totalorder %s149, %s163
    %p165 = scmp.eq.s32.totalorder %s29, 0
    %p166 = por %p164, %p165
    %s168 = sadd.s32 %s167, 1
    %p171 = scmp.eq.s32.totalorder %s23, 1
    %p172 = scmp.ne.s32.totalorder %s167, %s169
    %p173 = scmp.eq.s32.totalorder %s23, 0
    %p174 = por %p172, %p173
    %p175 = scmp.ne.s32.totalorder %s167, %s169
    %p176 = scmp.eq.s32.totalorder %s28, 1
    %p177 = por %p175, %p176
    %p178 = scmp.ne.s32.totalorder %s169, %s170
    %p179 = scmp.eq.s32.totalorder %s28, 0
    %p180 = por %p178, %p179
    %p181 = scmp.ne.s32.totalorder %s169, %s170
    %p182 = scmp.eq.s32.totalorder %s29, 1
    %p183 = por %p181, %p182
    %p185 = scmp.ne.s32.totalorder %s170, %s184
    %p186 = scmp.eq.s32.totalorder %s29, 0
    %p187 = por %p185, %p186
    %s189 = sadd.s32 %s188, 1
    %p192 = scmp.eq.s32.totalorder %s23, 1
    %p193 = scmp.ne.s32.totalorder %s188, %s190
    %p194 = scmp.eq.s32.totalorder %s23, 0
    %p195 = por %p193, %p194
    %p196 = scmp.ne.s32.totalorder %s188, %s190
    %p197 = scmp.eq.s32.totalorder %s28, 1
    %p198 = por %p196, %p197
    %p199 = scmp.ne.s32.totalorder %s190, %s191
    %p200 = scmp.eq.s32.totalorder %s28, 0
    %p201 = por %p199, %p200
    %p202 = scmp.ne.s32.totalorder %s190, %s191
    %p203 = scmp.eq.s32.totalorder %s29, 1
    %p204 = por %p202, %p203
    %p206 = scmp.ne.s32.totalorder %s191, %s205
    %p207 = scmp.eq.s32.totalorder %s29, 0
    %p208 = por %p206, %p207
    %s210 = sadd.s32 %s209, 1
    %p213 = scmp.eq.s32.totalorder %s23, 1
    %p214 = scmp.ne.s32.totalorder %s209, %s211
    %p215 = scmp.eq.s32.totalorder %s23, 0
    %p216 = por %p214, %p215
    %p217 = scmp.ne.s32.totalorder %s209, %s211
    %p218 = scmp.eq.s32.totalorder %s28, 1
    %p219 = por %p217, %p218
    %p220 = scmp.ne.s32.totalorder %s211, %s212
    %p221 = scmp.eq.s32.totalorder %s28, 0
    %p222 = por %p220, %p221
    %p223 = scmp.ne.s32.totalorder %s211, %s212
    %p224 = scmp.eq.s32.totalorder %s29, 1
    %p225 = por %p223, %p224
    %p227 = scmp.ne.s32.totalorder %s212, %s226
    %p228 = scmp.eq.s32.totalorder %s29, 0
    %p229 = por %p227, %p228
    %s231 = sadd.s32 %s230, 1
    %p234 = scmp.eq.s32.totalorder %s23, 1
    %p235 = scmp.ne.s32.totalorder %s230, %s232
    %p236 = scmp.eq.s32.totalorder %s23, 0
    %p237 = por %p235, %p236
    %p238 = scmp.ne.s32.totalorder %s230, %s232
    %p239 = scmp.eq.s32.totalorder %s28, 1
    %p240 = por %p238, %p239
    %p241 = scmp.ne.s32.totalorder %s232, %s233
    %p242 = scmp.eq.s32.totalorder %s28, 0
    %p243 = por %p241, %p242
    %p244 = scmp.ne.s32.totalorder %s232, %s233
    %p245 = scmp.eq.s32.totalorder %s29, 1
    %p246 = por %p244, %p245
    %p248 = scmp.ne.s32.totalorder %s233, %s247
    %p249 = scmp.eq.s32.totalorder %s29, 0
    %p250 = por %p248, %p249
    %s252 = sadd.s32 %s251, 1
    %p255 = scmp.eq.s32.totalorder %s23, 1
    %p256 = scmp.ne.s32.totalorder %s251, %s253
    %p257 = scmp.eq.s32.totalorder %s23, 0
    %p258 = por %p256, %p257
    %p259 = scmp.ne.s32.totalorder %s251, %s253
    %p260 = scmp.eq.s32.totalorder %s28, 1
    %p261 = por %p259, %p260
    %p262 = scmp.ne.s32.totalorder %s253, %s254
    %p263 = scmp.eq.s32.totalorder %s28, 0
    %p264 = por %p262, %p263
    %p265 = scmp.ne.s32.totalorder %s253, %s254
    %p266 = scmp.eq.s32.totalorder %s29, 1
    %p267 = por %p265, %p266
    %p269 = scmp.ne.s32.totalorder %s254, %s268
    %p270 = scmp.eq.s32.totalorder %s29, 0
    %p271 = por %p269, %p270
    %s273 = sadd.s32 %s272, 1
    %p276 = scmp.eq.s32.totalorder %s23, 1
    %p277 = scmp.ne.s32.totalorder %s272, %s274
    %p278 = scmp.eq.s32.totalorder %s23, 0
    %p279 = por %p277, %p278
    %p280 = scmp.ne.s32.totalorder %s272, %s274
    %p281 = scmp.eq.s32.totalorder %s28, 1
    %p282 = por %p280, %p281
    %p283 = scmp.ne.s32.totalorder %s274, %s275
    %p284 = scmp.eq.s32.totalorder %s28, 0
    %p285 = por %p283, %p284
    %p286 = scmp.ne.s32.totalorder %s274, %s275
    %p287 = scmp.eq.s32.totalorder %s29, 1
    %p288 = por %p286, %p287
    %p290 = scmp.ne.s32.totalorder %s275, %s289
    %p291 = scmp.eq.s32.totalorder %s29, 0
    %p292 = por %p290, %p291
    %s294 = sadd.s32 %s293, 1
    %p297 = scmp.eq.s32.totalorder %s23, 1
    %p298 = scmp.ne.s32.totalorder %s293, %s295
    %p299 = scmp.eq.s32.totalorder %s23, 0
    %p300 = por %p298, %p299
    %p301 = scmp.ne.s32.totalorder %s293, %s295
    %p302 = scmp.eq.s32.totalorder %s28, 1
    %p303 = por %p301, %p302
    %p304 = scmp.ne.s32.totalorder %s295, %s296
    %p305 = scmp.eq.s32.totalorder %s28, 0
    %p306 = por %p304, %p305
    %p307 = scmp.ne.s32.totalorder %s295, %s296
    %p308 = scmp.eq.s32.totalorder %s29, 1
    %p309 = por %p307, %p308
    %p311 = scmp.ne.s32.totalorder %s296, %s310
    %p312 = scmp.eq.s32.totalorder %s29, 0
    %p313 = por %p311, %p312
    %s315 = sadd.s32 %s314, 1
    %p318 = scmp.eq.s32.totalorder %s23, 1
    %p319 = scmp.ne.s32.totalorder %s314, %s316
    %p320 = scmp.eq.s32.totalorder %s23, 0
    %p321 = por %p319, %p320
    %p322 = scmp.ne.s32.totalorder %s314, %s316
    %p323 = scmp.eq.s32.totalorder %s28, 1
    %p324 = por %p322, %p323
    %p325 = scmp.ne.s32.totalorder %s316, %s317
    %p326 = scmp.eq.s32.totalorder %s28, 0
    %p327 = por %p325, %p326
    %p328 = scmp.ne.s32.totalorder %s316, %s317
    %p329 = scmp.eq.s32.totalorder %s29, 1
    %p330 = por %p328, %p329
    %p332 = scmp.ne.s32.totalorder %s317, %s331
    %p333 = scmp.eq.s32.totalorder %s29, 0
    %p334 = por %p332, %p333
    %s336 = sadd.s32 %s335, 1
    %p339 = scmp.eq.s32.totalorder %s23, 1
    %p340 = scmp.ne.s32.totalorder %s335, %s337
    %p341 = scmp.eq.s32.totalorder %s23, 0
    %p342 = por %p340, %p341
    %p343 = scmp.ne.s32.totalorder %s335, %s337
    %p344 = scmp.eq.s32.totalorder %s28, 1
    %p345 = por %p343, %p344
    %p346 = scmp.ne.s32.totalorder %s337, %s338
    %p347 = scmp.eq.s32.totalorder %s28, 0
    %p348 = por %p346, %p347
    %p349 = scmp.ne.s32.totalorder %s337, %s338
    %p350 = scmp.eq.s32.totalorder %s29, 1
    %p351 = por %p349, %p350
    %p353 = scmp.ne.s32.totalorder %s338, %s352
    %p354 = scmp.eq.s32.totalorder %s29, 0
    %p355 = por %p353, %p354
    %s357 = sadd.s32 %s356, 1
    %p360 = scmp.eq.s32.totalorder %s23, 1
    %p361 = scmp.ne.s32.totalorder %s356, %s358
    %p362 = scmp.eq.s32.totalorder %s23, 0
    %p363 = por %p361, %p362
    %p364 = scmp.ne.s32.totalorder %s356, %s358
    %p365 = scmp.eq.s32.totalorder %s28, 1
    %p366 = por %p364, %p365
    %p367 = scmp.ne.s32.totalorder %s358, %s359
    %p368 = scmp.eq.s32.totalorder %s28, 0
    %p369 = por %p367, %p368
    %p370 = scmp.ne.s32.totalorder %s358, %s359
    %p371 = scmp.eq.s32.totalorder %s29, 1
    %p372 = por %p370, %p371
    %p374 = scmp.ne.s32.totalorder %s359, %s373
    %p375 = scmp.eq.s32.totalorder %s29, 0
    %p376 = por %p374, %p375
    %s378 = sadd.s32 %s377, 1
    %p381 = scmp.eq.s32.totalorder %s23, 1
    %p382 = scmp.ne.s32.totalorder %s377, %s379
    %p383 = scmp.eq.s32.totalorder %s23, 0
    %p384 = por %p382, %p383
    %p385 = scmp.ne.s32.totalorder %s377, %s379
    %p386 = scmp.eq.s32.totalorder %s28, 1
    %p387 = por %p385, %p386
    %p388 = scmp.ne.s32.totalorder %s379, %s380
    %p389 = scmp.eq.s32.totalorder %s28, 0
    %p390 = por %p388, %p389
    %p391 = scmp.ne.s32.totalorder %s379, %s380
    %p392 = scmp.eq.s32.totalorder %s29, 1
    %p393 = por %p391, %p392
    %p395 = scmp.ne.s32.totalorder %s380, %s394
    %p396 = scmp.eq.s32.totalorder %s29, 0
    %p397 = por %p395, %p396
    %s398 = ssub.s32 %s23, %s30
    %p399 = scmp.eq.s32.totalorder %s398, 0
    %s401 = sadd.s32 %s400, 1
    %s402 = scalar_select %p399, %s400, %s401
    %p405 = pneg %p399
    %p406 = scmp.eq.s32.totalorder %s23, 1
    %p407 = por %p405, %p406
    %p408 = scmp.ne.s32.totalorder %s400, %s403
    %p409 = scmp.eq.s32.totalorder %s23, 0
    %p410 = por %p408, %p409
    %p411 = scmp.ne.s32.totalorder %s400, %s403
    %p412 = scmp.eq.s32.totalorder %s28, 1
    %p413 = por %p411, %p412
    %p414 = scmp.ne.s32.totalorder %s403, %s404
    %p415 = scmp.eq.s32.totalorder %s28, 0
    %p416 = por %p414, %p415
    %p417 = scmp.ne.s32.totalorder %s403, %s404
    %p418 = scmp.eq.s32.totalorder %s29, 1
    %p419 = por %p417, %p418
    %p421 = scmp.ne.s32.totalorder %s404, %s420
    %p422 = scmp.eq.s32.totalorder %s29, 0
    %p423 = por %p421, %p422
    %p424 = scmp.le.s32.totalorder 1, %s23
    %p425 = scmp.lt.s32.totalorder %s23, 3
    %p426 = pnand %p424, %p425
    %p427 = pneg %p426
    // Predicated region
    $region9: #{qnetworkk_forward.1} parent=5 // pred_check
      _
    $region10: #{qnetworkk_forward.1} parent=5 // pred_check_branch
      %429 = sbr.rel (%p426) target = $region12
    $region11: #{qnetworkk_forward.1} parent=5 // pred_region
      %s430 = ssub.s32 %s23, 1
      // Predicated region
      $region13: #{qnetworkk_forward.1} parent=11 // pred_check
        %p431 = pneg %p96
      $region14: #{qnetworkk_forward.1} parent=11 // pred_check_branch
        %433 = sbr.rel (%p431) target = $region16
      $region15: #{qnetworkk_forward.1} parent=11 // pred_region
        _
      $region16: #{qnetworkk_forward.1} parent=11 // pred_fallthru
        _
      // Predicated region
      $region17: #{qnetworkk_forward.1} parent=11 // pred_check
        %p434 = pneg %p117
      $region18: #{qnetworkk_forward.1} parent=11 // pred_check_branch
        %436 = sbr.rel (%p434) target = $region20
      $region19: #{qnetworkk_forward.1} parent=11 // pred_region
        _
      $region20: #{qnetworkk_forward.1} parent=11 // pred_fallthru
        _
      // Predicated region
      $region21: #{qnetworkk_forward.1} parent=11 // pred_check
        %p437 = pneg %p138
      $region22: #{qnetworkk_forward.1} parent=11 // pred_check_branch
        %439 = sbr.rel (%p437) target = $region24
      $region23: #{qnetworkk_forward.1} parent=11 // pred_region
        _
      $region24: #{qnetworkk_forward.1} parent=11 // pred_fallthru
        _
      // Predicated region
      $region25: #{qnetworkk_forward.1} parent=11 // pred_check
        %p440 = pneg %p159
      $region26: #{qnetworkk_forward.1} parent=11 // pred_check_branch
        %442 = sbr.rel (%p440) target = $region28
      $region27: #{qnetworkk_forward.1} parent=11 // pred_region
        _
      $region28: #{qnetworkk_forward.1} parent=11 // pred_fallthru
        _
      // Predicated region
      $region29: #{qnetworkk_forward.1} parent=11 // pred_check
        %p443 = pneg %p180
      $region30: #{qnetworkk_forward.1} parent=11 // pred_check_branch
        %445 = sbr.rel (%p443) target = $region32
      $region31: #{qnetworkk_forward.1} parent=11 // pred_region
        _
      $region32: #{qnetworkk_forward.1} parent=11 // pred_fallthru
        _
      // Predicated region
      $region33: #{qnetworkk_forward.1} parent=11 // pred_check
        %p446 = pneg %p201
      $region34: #{qnetworkk_forward.1} parent=11 // pred_check_branch
        %448 = sbr.rel (%p446) target = $region36
      $region35: #{qnetworkk_forward.1} parent=11 // pred_region
        _
      $region36: #{qnetworkk_forward.1} parent=11 // pred_fallthru
        _
      // Predicated region
      $region37: #{qnetworkk_forward.1} parent=11 // pred_check
        %p449 = pneg %p222
      $region38: #{qnetworkk_forward.1} parent=11 // pred_check_branch
        %451 = sbr.rel (%p449) target = $region40
      $region39: #{qnetworkk_forward.1} parent=11 // pred_region
        _
      $region40: #{qnetworkk_forward.1} parent=11 // pred_fallthru
        _
      // Predicated region
      $region41: #{qnetworkk_forward.1} parent=11 // pred_check
        %p452 = pneg %p243
      $region42: #{qnetworkk_forward.1} parent=11 // pred_check_branch
        %454 = sbr.rel (%p452) target = $region44
      $region43: #{qnetworkk_forward.1} parent=11 // pred_region
        _
      $region44: #{qnetworkk_forward.1} parent=11 // pred_fallthru
        _
      // Predicated region
      $region45: #{qnetworkk_forward.1} parent=11 // pred_check
        %p455 = pneg %p264
      $region46: #{qnetworkk_forward.1} parent=11 // pred_check_branch
        %457 = sbr.rel (%p455) target = $region48
      $region47: #{qnetworkk_forward.1} parent=11 // pred_region
        _
      $region48: #{qnetworkk_forward.1} parent=11 // pred_fallthru
        _
      // Predicated region
      $region49: #{qnetworkk_forward.1} parent=11 // pred_check
        %p458 = pneg %p285
      $region50: #{qnetworkk_forward.1} parent=11 // pred_check_branch
        %460 = sbr.rel (%p458) target = $region52
      $region51: #{qnetworkk_forward.1} parent=11 // pred_region
        _
      $region52: #{qnetworkk_forward.1} parent=11 // pred_fallthru
        _
      // Predicated region
      $region53: #{qnetworkk_forward.1} parent=11 // pred_check
        %p461 = pneg %p306
      $region54: #{qnetworkk_forward.1} parent=11 // pred_check_branch
        %463 = sbr.rel (%p461) target = $region56
      $region55: #{qnetworkk_forward.1} parent=11 // pred_region
        _
      $region56: #{qnetworkk_forward.1} parent=11 // pred_fallthru
        _
      // Predicated region
      $region57: #{qnetworkk_forward.1} parent=11 // pred_check
        %p464 = pneg %p327
      $region58: #{qnetworkk_forward.1} parent=11 // pred_check_branch
        %466 = sbr.rel (%p464) target = $region60
      $region59: #{qnetworkk_forward.1} parent=11 // pred_region
        _
      $region60: #{qnetworkk_forward.1} parent=11 // pred_fallthru
        _
      // Predicated region
      $region61: #{qnetworkk_forward.1} parent=11 // pred_check
        %p467 = pneg %p348
      $region62: #{qnetworkk_forward.1} parent=11 // pred_check_branch
        %469 = sbr.rel (%p467) target = $region64
      $region63: #{qnetworkk_forward.1} parent=11 // pred_region
        _
      $region64: #{qnetworkk_forward.1} parent=11 // pred_fallthru
        _
      // Predicated region
      $region65: #{qnetworkk_forward.1} parent=11 // pred_check
        %p470 = pneg %p369
      $region66: #{qnetworkk_forward.1} parent=11 // pred_check_branch
        %472 = sbr.rel (%p470) target = $region68
      $region67: #{qnetworkk_forward.1} parent=11 // pred_region
        _
      $region68: #{qnetworkk_forward.1} parent=11 // pred_fallthru
        _
      // Predicated region
      $region69: #{qnetworkk_forward.1} parent=11 // pred_check
        %p473 = pneg %p390
      $region70: #{qnetworkk_forward.1} parent=11 // pred_check_branch
        %475 = sbr.rel (%p473) target = $region72
      $region71: #{qnetworkk_forward.1} parent=11 // pred_region
        _
      $region72: #{qnetworkk_forward.1} parent=11 // pred_fallthru
        _
    $region12: #{qnetworkk_forward.1} parent=5 // pred_fallthru
      _
    %p476 = scmp.lt.s32.totalorder %s23, 2
    // Predicated region
    $region73: #{qnetworkk_forward.1} parent=5 // pred_check
      %p477 = pneg %p476
    $region74: #{qnetworkk_forward.1} parent=5 // pred_check_branch
      %479 = sbr.rel (%p477) target = $region76
    $region75: #{qnetworkk_forward.1} parent=5 // pred_region
      // Predicated region
      $region77: #{qnetworkk_forward.1} parent=75 // pred_check
        %p480 = pneg %p43
      $region78: #{qnetworkk_forward.1} parent=75 // pred_check_branch
        %482 = sbr.rel (%p480) target = $region80
      $region79: #{qnetworkk_forward.1} parent=75 // pred_region
        %s483 = smul.u32 16, %s23
        %p484 = scmp.lt.s32.totalorder %s483, 31
        %s485 = scalar_select %p484, %s483, 31
        %s486 = smul.addr %s485, 2
        %s487 = smul.addr %s486, 8
        %s488 = scalar_lea.vmem %s0, %s487
        %s489 = smul.u32 16, %s23
      $region80: #{qnetworkk_forward.1} parent=75 // pred_fallthru
        _
      // Predicated region
      $region81: #{qnetworkk_forward.1} parent=75 // pred_check
        %p490 = pneg %p69
      $region82: #{qnetworkk_forward.1} parent=75 // pred_check_branch
        %492 = sbr.rel (%p490) target = $region84
      $region83: #{qnetworkk_forward.1} parent=75 // pred_region
        %s493 = smul.u32 16, %s23
        %p494 = scmp.lt.s32.totalorder %s493, 31
        %s495 = scalar_select %p494, %s493, 31
        %s496 = scalar_lea.vmem %s1, %s495
        %s497 = smul.u32 16, %s23
      $region84: #{qnetworkk_forward.1} parent=75 // pred_fallthru
        _
    $region76: #{qnetworkk_forward.1} parent=5 // pred_fallthru
      _
    %p498 = scmp.le.s32.totalorder 1, %s23
    %p499 = scmp.lt.s32.totalorder %s23, 3
    %p500 = pnand %p498, %p499
    %p501 = pneg %p500
    // Predicated region
    $region85: #{qnetworkk_forward.1} parent=5 // pred_check
      _
    $region86: #{qnetworkk_forward.1} parent=5 // pred_check_branch
      %503 = sbr.rel (%p500) target = $region88
    $region87: #{qnetworkk_forward.1} parent=5 // pred_region
      %s504 = ssub.s32 %s23, 1
      %s505 = smul.u32 16, %s28
      %p506 = scmp.lt.s32.totalorder %s505, 31
      %s507 = scalar_select %p506, %s505, 31
      %s508 = smul.addr %s507, 2
      %s509 = smul.addr %s508, 8
      %s510 = scalar_lea.vmem %s0, %s509
      %p511 = pneg %p49
      %p512 = pneg %p46
      %s513 = smul.u32 16, %s28
      %p514 = scmp.lt.s32.totalorder %s513, 31
      %s515 = scalar_select %p514, %s513, 31
      %s516 = scalar_lea.vmem %s1, %s515
      %p517 = pneg %p75
      %p518 = pneg %p72
      %p519 = pneg %p96
      %p520 = pneg %p93
      %p521 = pneg %p117
      %p522 = pneg %p114
      %p523 = pneg %p138
      %p524 = pneg %p135
      %p525 = pneg %p159
      %p526 = pneg %p156
      %p527 = pneg %p180
      %p528 = pneg %p177
      %p529 = pneg %p201
      %p530 = pneg %p198
      %p531 = pneg %p222
      %p532 = pneg %p219
      %p533 = pneg %p243
      %p534 = pneg %p240
      %p535 = pneg %p264
      %p536 = pneg %p261
      %p537 = pneg %p285
      %p538 = pneg %p282
      %p539 = pneg %p306
      %p540 = pneg %p303
      %p541 = pneg %p327
      %p542 = pneg %p324
      %p543 = pneg %p348
      %p544 = pneg %p345
      %p545 = pneg %p369
      %p546 = pneg %p366
      %p547 = pneg %p390
      %p548 = pneg %p387
      %p549 = pneg %p416
      %p550 = pneg %p413
      %s551 = smul.u32 2, %s28
      %p552 = scmp.lt.s32.totalorder %s551, 3
      %s553 = scalar_select %p552, %s551, 3
      %s554 = smul.addr %s553, 8
      %s555 = scalar_lea.vmem %s17, %s554
      %s556 = smul.u32 16, %s28
      %p557 = scmp.lt.s32.totalorder %s556, 31
      %s558 = scalar_select %p557, %s556, 31
      %s559 = smul.addr %s558, 2
      %s560 = smul.addr %s559, 8
      %s561 = scalar_lea.vmem %s0, %s560
      %s562 = smul.u32 16, %s28
      %s563 = smul.u32 16, %s28
      %p564 = scmp.lt.s32.totalorder %s563, 31
      %s565 = scalar_select %p564, %s563, 31
      %s566 = scalar_lea.vmem %s1, %s565
      %s567 = smul.u32 16, %s28
      %s568 = smul.u32 2, %s28
      %p569 = scmp.lt.s32.totalorder %s568, 3
      %s570 = scalar_select %p569, %s568, 3
      %s571 = smul.addr %s570, 8
      %s572 = scalar_lea.vmem %s17, %s571
      %s573 = smul.u32 2, %s28
      %v574 = vlaneseq
      %v575 = vshrl.u32 %v574, 7
      %v576 = vadd.s32 %v575, 8
      %v577 = vld [vmem:[%s566] sm:$0x1]
      %v578 = vld [vmem:[%s566 + $0x1] sm:$0x1]
      %v579 = vld [vmem:[%s566 + $0x2] sm:$0x1]
      %v580 = vld [vmem:[%s566 + $0x3] sm:$0x1]
      %v581 = vld [vmem:[%s566 + $0x4] sm:$0x1]
      %v582 = vld [vmem:[%s566 + $0x5] sm:$0x1]
      %v583 = vld [vmem:[%s566 + $0x6] sm:$0x1]
      %v584 = vld [vmem:[%s566 + $0x7] sm:$0x1]
      %v585 = vld [vmem:[%s566 + $0x8] sm:$0x1]
      %v586 = vld [vmem:[%s566 + $0x9] sm:$0x1]
      %v587 = vld [vmem:[%s566 + $0xa] sm:$0x1]
      %v588 = vld [vmem:[%s566 + $0xb] sm:$0x1]
      %v589 = vld [vmem:[%s566 + $0xc] sm:$0x1]
      %v590 = vld [vmem:[%s566 + $0xd] sm:$0x1]
      %v591 = vld [vmem:[%s566 + $0xe] sm:$0x1]
      %v592 = vld [vmem:[%s566 + $0xf] sm:$0x1]
      %v593 = vperm.slane %v577, 0
      %v594 = vperm.slane %v578, 0
      %v595 = vperm.slane %v579, 0
      %v596 = vperm.slane %v580, 0
      %v597 = vperm.slane %v581, 0
      %v598 = vperm.slane %v582, 0
      %v599 = vperm.slane %v583, 0
      %v600 = vperm.slane %v584, 0
      %v601 = vperm.slane %v585, 0
      %v602 = vperm.slane %v586, 0
      %v603 = vperm.slane %v587, 0
      %v604 = vperm.slane %v588, 0
      %v605 = vperm.slane %v589, 0
      %v606 = vperm.slane %v590, 0
      %v607 = vperm.slane %v591, 0
      %v608 = vperm.slane %v592, 0
      %vm609 = vcmp.eq.s32.totalorder %v575, %v593
      %vm610 = vcmp.eq.s32.totalorder %v576, %v593
      %vm611 = vcmp.eq.s32.totalorder %v575, %v594
      %vm612 = vcmp.eq.s32.totalorder %v576, %v594
      %vm613 = vcmp.eq.s32.totalorder %v575, %v595
      %vm614 = vcmp.eq.s32.totalorder %v576, %v595
      %vm615 = vcmp.eq.s32.totalorder %v575, %v596
      %vm616 = vcmp.eq.s32.totalorder %v576, %v596
      %vm617 = vcmp.eq.s32.totalorder %v575, %v597
      %vm618 = vcmp.eq.s32.totalorder %v576, %v597
      %vm619 = vcmp.eq.s32.totalorder %v575, %v598
      %vm620 = vcmp.eq.s32.totalorder %v576, %v598
      %vm621 = vcmp.eq.s32.totalorder %v575, %v599
      %vm622 = vcmp.eq.s32.totalorder %v576, %v599
      %vm623 = vcmp.eq.s32.totalorder %v575, %v600
      %vm624 = vcmp.eq.s32.totalorder %v576, %v600
      %vm625 = vcmp.eq.s32.totalorder %v575, %v601
      %vm626 = vcmp.eq.s32.totalorder %v576, %v601
      %vm627 = vcmp.eq.s32.totalorder %v575, %v602
      %vm628 = vcmp.eq.s32.totalorder %v576, %v602
      %vm629 = vcmp.eq.s32.totalorder %v575, %v603
      %vm630 = vcmp.eq.s32.totalorder %v576, %v603
      %vm631 = vcmp.eq.s32.totalorder %v575, %v604
      %vm632 = vcmp.eq.s32.totalorder %v576, %v604
      %vm633 = vcmp.eq.s32.totalorder %v575, %v605
      %vm634 = vcmp.eq.s32.totalorder %v576, %v605
      %vm635 = vcmp.eq.s32.totalorder %v575, %v606
      %vm636 = vcmp.eq.s32.totalorder %v576, %v606
      %vm637 = vcmp.eq.s32.totalorder %v575, %v607
      %vm638 = vcmp.eq.s32.totalorder %v576, %v607
      %vm639 = vcmp.eq.s32.totalorder %v575, %v608
      %vm640 = vcmp.eq.s32.totalorder %v576, %v608
      %v641 = vsel %vm609, 1, 0
      %v642 = vsel %vm610, 1, 0
      %v643 = vsel %vm611, 1, 0
      %v644 = vsel %vm612, 1, 0
      %v645 = vsel %vm613, 1, 0
      %v646 = vsel %vm614, 1, 0
      %v647 = vsel %vm615, 1, 0
      %v648 = vsel %vm616, 1, 0
      %v649 = vsel %vm617, 1, 0
      %v650 = vsel %vm618, 1, 0
      %v651 = vsel %vm619, 1, 0
      %v652 = vsel %vm620, 1, 0
      %v653 = vsel %vm621, 1, 0
      %v654 = vsel %vm622, 1, 0
      %v655 = vsel %vm623, 1, 0
      %v656 = vsel %vm624, 1, 0
      %v657 = vsel %vm625, 1, 0
      %v658 = vsel %vm626, 1, 0
      %v659 = vsel %vm627, 1, 0
      %v660 = vsel %vm628, 1, 0
      %v661 = vsel %vm629, 1, 0
      %v662 = vsel %vm630, 1, 0
      %v663 = vsel %vm631, 1, 0
      %v664 = vsel %vm632, 1, 0
      %v665 = vsel %vm633, 1, 0
      %v666 = vsel %vm634, 1, 0
      %v667 = vsel %vm635, 1, 0
      %v668 = vsel %vm636, 1, 0
      %v669 = vsel %vm637, 1, 0
      %v670 = vsel %vm638, 1, 0
      %v671 = vsel %vm639, 1, 0
      %v672 = vsel %vm640, 1, 0
      %v673 = vcvt.s32.f32 %v641
      %v674 = vcvt.s32.f32 %v642
      %v675 = vcvt.s32.f32 %v643
      %v676 = vcvt.s32.f32 %v644
      %v677 = vcvt.s32.f32 %v645
      %v678 = vcvt.s32.f32 %v646
      %v679 = vcvt.s32.f32 %v647
      %v680 = vcvt.s32.f32 %v648
      %v681 = vcvt.s32.f32 %v649
      %v682 = vcvt.s32.f32 %v650
      %v683 = vcvt.s32.f32 %v651
      %v684 = vcvt.s32.f32 %v652
      %v685 = vcvt.s32.f32 %v653
      %v686 = vcvt.s32.f32 %v654
      %v687 = vcvt.s32.f32 %v655
      %v688 = vcvt.s32.f32 %v656
      %v689 = vcvt.s32.f32 %v657
      %v690 = vcvt.s32.f32 %v658
      %v691 = vcvt.s32.f32 %v659
      %v692 = vcvt.s32.f32 %v660
      %v693 = vcvt.s32.f32 %v661
      %v694 = vcvt.s32.f32 %v662
      %v695 = vcvt.s32.f32 %v663
      %v696 = vcvt.s32.f32 %v664
      %v697 = vcvt.s32.f32 %v665
      %v698 = vcvt.s32.f32 %v666
      %v699 = vcvt.s32.f32 %v667
      %v700 = vcvt.s32.f32 %v668
      %v701 = vcvt.s32.f32 %v669
      %v702 = vcvt.s32.f32 %v670
      %v703 = vcvt.s32.f32 %v671
      %v704 = vcvt.s32.f32 %v672
      %v705 = vld [vmem:[%s561] sm:$0xff]
      %v706 = vld [vmem:[%s561 + $0x8] sm:$0xff]
      %v707 = vld [vmem:[%s561 + $0x10] sm:$0xff]
      %v708 = vld [vmem:[%s561 + $0x18] sm:$0xff]
      %v709 = vld [vmem:[%s561 + $0x20] sm:$0xff]
      %v710 = vld [vmem:[%s561 + $0x28] sm:$0xff]
      %v711 = vld [vmem:[%s561 + $0x30] sm:$0xff]
      %v712 = vld [vmem:[%s561 + $0x38] sm:$0xff]
      %v713 = vld [vmem:[%s561 + $0x40] sm:$0xff]
      %v714 = vld [vmem:[%s561 + $0x48] sm:$0xff]
      %v715 = vld [vmem:[%s561 + $0x50] sm:$0xff]
      %v716 = vld [vmem:[%s561 + $0x58] sm:$0xff]
      %v717 = vld [vmem:[%s561 + $0x60] sm:$0xff]
      %v718 = vld [vmem:[%s561 + $0x68] sm:$0xff]
      %v719 = vld [vmem:[%s561 + $0x70] sm:$0xff]
      %v720 = vld [vmem:[%s561 + $0x78] sm:$0xff]
      %v721 = vld [vmem:[%s561 + $0x80] sm:$0xff]
      %v722 = vld [vmem:[%s561 + $0x88] sm:$0xff]
      %v723 = vld [vmem:[%s561 + $0x90] sm:$0xff]
      %v724 = vld [vmem:[%s561 + $0x98] sm:$0xff]
      %v725 = vld [vmem:[%s561 + $0xa0] sm:$0xff]
      %v726 = vld [vmem:[%s561 + $0xa8] sm:$0xff]
      %v727 = vld [vmem:[%s561 + $0xb0] sm:$0xff]
      %v728 = vld [vmem:[%s561 + $0xb8] sm:$0xff]
      %v729 = vld [vmem:[%s561 + $0xc0] sm:$0xff]
      %v730 = vld [vmem:[%s561 + $0xc8] sm:$0xff]
      %v731 = vld [vmem:[%s561 + $0xd0] sm:$0xff]
      %v732 = vld [vmem:[%s561 + $0xd8] sm:$0xff]
      %v733 = vld [vmem:[%s561 + $0xe0] sm:$0xff]
      %v734 = vld [vmem:[%s561 + $0xe8] sm:$0xff]
      %v735 = vld [vmem:[%s561 + $0xf0] sm:$0xff]
      %v736 = vld [vmem:[%s561 + $0xf8] sm:$0xff]
      %v737 = vld [vmem:[%s2] sm:$0xff]
      %v738 = vld [vmem:[%s2 + $0x8] sm:$0xf]
      %v739 = vld [vmem:[%s4] sm:$0x1]
      %v741 = vperm.slane %v739, 0
      %vm743 = vcmask 97280
      %v745 = vsel %vm743, %v705, 0
      %v748 = vsel %vm743, %v706, 0
      %v751 = vsel %vm743, %v707, 0
      %v754 = vsel %vm743, %v708, 0
      %v757 = vsel %vm743, %v709, 0
      %v760 = vsel %vm743, %v710, 0
      %v763 = vsel %vm743, %v711, 0
      %v766 = vsel %vm743, %v712, 0
      %v769 = vsel %vm743, %v713, 0
      %v772 = vsel %vm743, %v714, 0
      %v775 = vsel %vm743, %v715, 0
      %v778 = vsel %vm743, %v716, 0
      %v781 = vsel %vm743, %v717, 0
      %v784 = vsel %vm743, %v718, 0
      %v787 = vsel %vm743, %v719, 0
      %v790 = vsel %vm743, %v720, 0
      %v793 = vsel %vm743, %v721, 0
      %v796 = vsel %vm743, %v722, 0
      %v799 = vsel %vm743, %v723, 0
      %v802 = vsel %vm743, %v724, 0
      %v805 = vsel %vm743, %v725, 0
      %v808 = vsel %vm743, %v726, 0
      %v811 = vsel %vm743, %v727, 0
      %v814 = vsel %vm743, %v728, 0
      %v817 = vsel %vm743, %v729, 0
      %v820 = vsel %vm743, %v730, 0
      %v823 = vsel %vm743, %v731, 0
      %v826 = vsel %vm743, %v732, 0
      %v829 = vsel %vm743, %v733, 0
      %v832 = vsel %vm743, %v734, 0
      %v835 = vsel %vm743, %v735, 0
      %v838 = vsel %vm743, %v736, 0
      %vm840 = vcmask 1043456
      %v842 = vsel %vm840, %v738, 0
      %844 = vmatpush.msra.mxu0 0.0
      %845 = vmatpush.msra.mxu0 0.0
      %846 = vmatpush.msra.mxu0 0.0
      %847 = vmatpush.msra.mxu0 0.0
      %848 = vmatpush.msra.mxu0 0.0
      %849 = vmatpush.msra.mxu0 0.0
      %850 = vmatpush.msra.mxu0 0.0
      %851 = vmatpush.msra.mxu0 0.0
      %852 = vmatpush.msra.mxu0 0.0
      %853 = vmatpush.msra.mxu0 0.0
      %854 = vmatpush.msra.mxu0 0.0
      %855 = vmatpush.msra.mxu0 0.0
      %856 = vmatpush.msra.mxu0 0.0
      %857 = vmatpush.msra.mxu0 0.0
      %858 = vmatpush.msra.mxu0 %v842
      %859 = vmatpush.msra.mxu0 %v737
      %860 = vmatmul.f32.gmra.mxu0 %v745
      %v861 = vpop.f32.mrf.mxu0
      %v862 = vadd.f32 %v741, %v861
      %863 = vmatmul.f32.gmra.mxu0 %v748
      %v864 = vpop.f32.mrf.mxu0
      %v865 = vadd.f32 %v741, %v864
      %866 = vmatmul.f32.gmra.mxu0 %v751
      %v867 = vpop.f32.mrf.mxu0
      %v868 = vadd.f32 %v741, %v867
      %869 = vmatmul.f32.gmra.mxu0 %v754
      %v870 = vpop.f32.mrf.mxu0
      %v871 = vadd.f32 %v741, %v870
      %872 = vmatmul.f32.gmra.mxu0 %v757
      %v873 = vpop.f32.mrf.mxu0
      %v874 = vadd.f32 %v741, %v873
      %875 = vmatmul.f32.gmra.mxu0 %v760
      %v876 = vpop.f32.mrf.mxu0
      %v877 = vadd.f32 %v741, %v876
      %878 = vmatmul.f32.gmra.mxu0 %v763
      %v879 = vpop.f32.mrf.mxu0
      %v880 = vadd.f32 %v741, %v879
      %881 = vmatmul.f32.gmra.mxu0 %v766
      %v882 = vpop.f32.mrf.mxu0
      %v883 = vadd.f32 %v741, %v882
      %884 = vmatmul.f32.gmra.mxu0 %v769
      %v885 = vpop.f32.mrf.mxu0
      %v886 = vadd.f32 %v741, %v885
      %887 = vmatmul.f32.gmra.mxu0 %v772
      %v888 = vpop.f32.mrf.mxu0
      %v889 = vadd.f32 %v741, %v888
      %890 = vmatmul.f32.gmra.mxu0 %v775
      %v891 = vpop.f32.mrf.mxu0
      %v892 = vadd.f32 %v741, %v891
      %893 = vmatmul.f32.gmra.mxu0 %v778
      %v894 = vpop.f32.mrf.mxu0
      %v895 = vadd.f32 %v741, %v894
      %896 = vmatmul.f32.gmra.mxu0 %v781
      %v897 = vpop.f32.mrf.mxu0
      %v898 = vadd.f32 %v741, %v897
      %899 = vmatmul.f32.gmra.mxu0 %v784
      %v900 = vpop.f32.mrf.mxu0
      %v901 = vadd.f32 %v741, %v900
      %902 = vmatmul.f32.gmra.mxu0 %v787
      %v903 = vpop.f32.mrf.mxu0
      %v904 = vadd.f32 %v741, %v903
      %905 = vmatmul.f32.gmra.mxu0 %v790
      %v906 = vpop.f32.mrf.mxu0
      %v907 = vadd.f32 %v741, %v906
      %908 = vmatmul.f32.gmra.mxu0 %v793
      %v909 = vpop.f32.mrf.mxu0
      %v910 = vadd.f32 %v741, %v909
      %911 = vmatmul.f32.gmra.mxu0 %v796
      %v912 = vpop.f32.mrf.mxu0
      %v913 = vadd.f32 %v741, %v912
      %914 = vmatmul.f32.gmra.mxu0 %v799
      %v915 = vpop.f32.mrf.mxu0
      %v916 = vadd.f32 %v741, %v915
      %917 = vmatmul.f32.gmra.mxu0 %v802
      %v918 = vpop.f32.mrf.mxu0
      %v919 = vadd.f32 %v741, %v918
      %920 = vmatmul.f32.gmra.mxu0 %v805
      %v921 = vpop.f32.mrf.mxu0
      %v922 = vadd.f32 %v741, %v921
      %923 = vmatmul.f32.gmra.mxu0 %v808
      %v924 = vpop.f32.mrf.mxu0
      %v925 = vadd.f32 %v741, %v924
      %926 = vmatmul.f32.gmra.mxu0 %v811
      %v927 = vpop.f32.mrf.mxu0
      %v928 = vadd.f32 %v741, %v927
      %929 = vmatmul.f32.gmra.mxu0 %v814
      %v930 = vpop.f32.mrf.mxu0
      %v931 = vadd.f32 %v741, %v930
      %932 = vmatmul.f32.gmra.mxu0 %v817
      %v933 = vpop.f32.mrf.mxu0
      %v934 = vadd.f32 %v741, %v933
      %935 = vmatmul.f32.gmra.mxu0 %v820
      %v936 = vpop.f32.mrf.mxu0
      %v937 = vadd.f32 %v741, %v936
      %938 = vmatmul.f32.gmra.mxu0 %v823
      %v939 = vpop.f32.mrf.mxu0
      %v940 = vadd.f32 %v741, %v939
      %941 = vmatmul.f32.gmra.mxu0 %v826
      %v942 = vpop.f32.mrf.mxu0
      %v943 = vadd.f32 %v741, %v942
      %944 = vmatmul.f32.gmra.mxu0 %v829
      %v945 = vpop.f32.mrf.mxu0
      %v946 = vadd.f32 %v741, %v945
      %947 = vmatmul.f32.gmra.mxu0 %v832
      %v948 = vpop.f32.mrf.mxu0
      %v949 = vadd.f32 %v741, %v948
      %950 = vmatmul.f32.gmra.mxu0 %v835
      %v951 = vpop.f32.mrf.mxu0
      %v952 = vadd.f32 %v741, %v951
      %953 = vmatmul.f32.gmra.mxu0 %v838
      %v954 = vpop.f32.mrf.mxu0
      %v955 = vadd.f32 %v741, %v954
      %956 = vdwg.mxu0
      %v957 = vld [vmem:[%s3] sm:$0x1]
      %959 = vset.pattern.permute.xlu0 0
      %960 = vperm.xlu0 %959, %v673
      %v961 = vpop.permute.xlu0 %960
      %964 = vset.pattern.permute.xlu0 0
      %965 = vperm.xlu0 %964, %v674
      %v966 = vpop.permute.xlu0 %965
      %969 = vset.pattern.permute.xlu0 0
      %970 = vperm.xlu0 %969, %v675
      %v971 = vpop.permute.xlu0 %970
      %974 = vset.pattern.permute.xlu0 0
      %975 = vperm.xlu0 %974, %v676
      %v976 = vpop.permute.xlu0 %975
      %979 = vset.pattern.permute.xlu0 0
      %980 = vperm.xlu0 %979, %v677
      %v981 = vpop.permute.xlu0 %980
      %984 = vset.pattern.permute.xlu0 0
      %985 = vperm.xlu0 %984, %v678
      %v986 = vpop.permute.xlu0 %985
      %989 = vset.pattern.permute.xlu0 0
      %990 = vperm.xlu0 %989, %v679
      %v991 = vpop.permute.xlu0 %990
      %994 = vset.pattern.permute.xlu0 0
      %995 = vperm.xlu0 %994, %v680
      %v996 = vpop.permute.xlu0 %995
      %999 = vset.pattern.permute.xlu0 0
      %1000 = vperm.xlu0 %999, %v681
      %v1001 = vpop.permute.xlu0 %1000
      %1004 = vset.pattern.permute.xlu0 0
      %1005 = vperm.xlu0 %1004, %v682
      %v1006 = vpop.permute.xlu0 %1005
      %1009 = vset.pattern.permute.xlu0 0
      %1010 = vperm.xlu0 %1009, %v683
      %v1011 = vpop.permute.xlu0 %1010
      %1014 = vset.pattern.permute.xlu0 0
      %1015 = vperm.xlu0 %1014, %v684
      %v1016 = vpop.permute.xlu0 %1015
      %1019 = vset.pattern.permute.xlu0 0
      %1020 = vperm.xlu0 %1019, %v685
      %v1021 = vpop.permute.xlu0 %1020
      %1024 = vset.pattern.permute.xlu0 0
      %1025 = vperm.xlu0 %1024, %v686
      %v1026 = vpop.permute.xlu0 %1025
      %1029 = vset.pattern.permute.xlu0 0
      %1030 = vperm.xlu0 %1029, %v687
      %v1031 = vpop.permute.xlu0 %1030
      %1034 = vset.pattern.permute.xlu0 0
      %1035 = vperm.xlu0 %1034, %v688
      %v1036 = vpop.permute.xlu0 %1035
      %1039 = vset.pattern.permute.xlu0 0
      %1040 = vperm.xlu0 %1039, %v689
      %v1041 = vpop.permute.xlu0 %1040
      %1044 = vset.pattern.permute.xlu0 0
      %1045 = vperm.xlu0 %1044, %v690
      %v1046 = vpop.permute.xlu0 %1045
      %1049 = vset.pattern.permute.xlu0 0
      %1050 = vperm.xlu0 %1049, %v691
      %v1051 = vpop.permute.xlu0 %1050
      %1054 = vset.pattern.permute.xlu0 0
      %1055 = vperm.xlu0 %1054, %v692
      %v1056 = vpop.permute.xlu0 %1055
      %1059 = vset.pattern.permute.xlu0 0
      %1060 = vperm.xlu0 %1059, %v693
      %v1061 = vpop.permute.xlu0 %1060
      %1064 = vset.pattern.permute.xlu0 0
      %1065 = vperm.xlu0 %1064, %v694
      %v1066 = vpop.permute.xlu0 %1065
      %1069 = vset.pattern.permute.xlu0 0
      %1070 = vperm.xlu0 %1069, %v695
      %v1071 = vpop.permute.xlu0 %1070
      %1074 = vset.pattern.permute.xlu0 0
      %1075 = vperm.xlu0 %1074, %v696
      %v1076 = vpop.permute.xlu0 %1075
      %1079 = vset.pattern.permute.xlu0 0
      %1080 = vperm.xlu0 %1079, %v697
      %v1081 = vpop.permute.xlu0 %1080
      %1084 = vset.pattern.permute.xlu0 0
      %1085 = vperm.xlu0 %1084, %v698
      %v1086 = vpop.permute.xlu0 %1085
      %1089 = vset.pattern.permute.xlu0 0
      %1090 = vperm.xlu0 %1089, %v699
      %v1091 = vpop.permute.xlu0 %1090
      %1094 = vset.pattern.permute.xlu0 0
      %1095 = vperm.xlu0 %1094, %v700
      %v1096 = vpop.permute.xlu0 %1095
      %1099 = vset.pattern.permute.xlu0 0
      %1100 = vperm.xlu0 %1099, %v701
      %v1101 = vpop.permute.xlu0 %1100
      %1104 = vset.pattern.permute.xlu0 0
      %1105 = vperm.xlu0 %1104, %v702
      %v1106 = vpop.permute.xlu0 %1105
      %1109 = vset.pattern.permute.xlu0 0
      %1110 = vperm.xlu0 %1109, %v703
      %v1111 = vpop.permute.xlu0 %1110
      %1114 = vset.pattern.permute.xlu0 0
      %1115 = vperm.xlu0 %1114, %v704
      %v1116 = vpop.permute.xlu0 %1115
      %v1119 = vperm.slane %v957, 0
      %v1121 = vmul.f32 %v961, %v1119
      %v1122 = vmul.f32 %v966, %v1119
      %v1123 = vmul.f32 %v971, %v1119
      %v1124 = vmul.f32 %v976, %v1119
      %v1125 = vmul.f32 %v981, %v1119
      %v1126 = vmul.f32 %v986, %v1119
      %v1127 = vmul.f32 %v991, %v1119
      %v1128 = vmul.f32 %v996, %v1119
      %v1129 = vmul.f32 %v1001, %v1119
      %v1130 = vmul.f32 %v1006, %v1119
      %v1131 = vmul.f32 %v1011, %v1119
      %v1132 = vmul.f32 %v1016, %v1119
      %v1133 = vmul.f32 %v1021, %v1119
      %v1134 = vmul.f32 %v1026, %v1119
      %v1135 = vmul.f32 %v1031, %v1119
      %v1136 = vmul.f32 %v1036, %v1119
      %v1137 = vmul.f32 %v1041, %v1119
      %v1138 = vmul.f32 %v1046, %v1119
      %v1139 = vmul.f32 %v1051, %v1119
      %v1140 = vmul.f32 %v1056, %v1119
      %v1141 = vmul.f32 %v1061, %v1119
      %v1142 = vmul.f32 %v1066, %v1119
      %v1143 = vmul.f32 %v1071, %v1119
      %v1144 = vmul.f32 %v1076, %v1119
      %v1145 = vmul.f32 %v1081, %v1119
      %v1146 = vmul.f32 %v1086, %v1119
      %v1147 = vmul.f32 %v1091, %v1119
      %v1148 = vmul.f32 %v1096, %v1119
      %v1149 = vmul.f32 %v1101, %v1119
      %v1150 = vmul.f32 %v1106, %v1119
      %v1151 = vmul.f32 %v1111, %v1119
      %v1152 = vmul.f32 %v1116, %v1119
      %v1153 = vadd.f32 %v862, %v1121
      %v1154 = vadd.f32 %v865, %v1122
      %v1155 = vadd.f32 %v868, %v1123
      %v1156 = vadd.f32 %v871, %v1124
      %v1157 = vadd.f32 %v874, %v1125
      %v1158 = vadd.f32 %v877, %v1126
      %v1159 = vadd.f32 %v880, %v1127
      %v1160 = vadd.f32 %v883, %v1128
      %v1161 = vadd.f32 %v886, %v1129
      %v1162 = vadd.f32 %v889, %v1130
      %v1163 = vadd.f32 %v892, %v1131
      %v1164 = vadd.f32 %v895, %v1132
      %v1165 = vadd.f32 %v898, %v1133
      %v1166 = vadd.f32 %v901, %v1134
      %v1167 = vadd.f32 %v904, %v1135
      %v1168 = vadd.f32 %v907, %v1136
      %v1169 = vadd.f32 %v910, %v1137
      %v1170 = vadd.f32 %v913, %v1138
      %v1171 = vadd.f32 %v916, %v1139
      %v1172 = vadd.f32 %v919, %v1140
      %v1173 = vadd.f32 %v922, %v1141
      %v1174 = vadd.f32 %v925, %v1142
      %v1175 = vadd.f32 %v928, %v1143
      %v1176 = vadd.f32 %v931, %v1144
      %v1177 = vadd.f32 %v934, %v1145
      %v1178 = vadd.f32 %v937, %v1146
      %v1179 = vadd.f32 %v940, %v1147
      %v1180 = vadd.f32 %v943, %v1148
      %v1181 = vadd.f32 %v946, %v1149
      %v1182 = vadd.f32 %v949, %v1150
      %v1183 = vadd.f32 %v952, %v1151
      %v1184 = vadd.f32 %v955, %v1152
      %v1185 = vmul.f32 %v1153, 0.01
      %v1186 = vmul.f32 %v1154, 0.01
      %v1187 = vmul.f32 %v1155, 0.01
      %v1188 = vmul.f32 %v1156, 0.01
      %v1189 = vmul.f32 %v1157, 0.01
      %v1190 = vmul.f32 %v1158, 0.01
      %v1191 = vmul.f32 %v1159, 0.01
      %v1192 = vmul.f32 %v1160, 0.01
      %v1193 = vmul.f32 %v1161, 0.01
      %v1194 = vmul.f32 %v1162, 0.01
      %v1195 = vmul.f32 %v1163, 0.01
      %v1196 = vmul.f32 %v1164, 0.01
      %v1197 = vmul.f32 %v1165, 0.01
      %v1198 = vmul.f32 %v1166, 0.01
      %v1199 = vmul.f32 %v1167, 0.01
      %v1200 = vmul.f32 %v1168, 0.01
      %v1201 = vmul.f32 %v1169, 0.01
      %v1202 = vmul.f32 %v1170, 0.01
      %v1203 = vmul.f32 %v1171, 0.01
      %v1204 = vmul.f32 %v1172, 0.01
      %v1205 = vmul.f32 %v1173, 0.01
      %v1206 = vmul.f32 %v1174, 0.01
      %v1207 = vmul.f32 %v1175, 0.01
      %v1208 = vmul.f32 %v1176, 0.01
      %v1209 = vmul.f32 %v1177, 0.01
      %v1210 = vmul.f32 %v1178, 0.01
      %v1211 = vmul.f32 %v1179, 0.01
      %v1212 = vmul.f32 %v1180, 0.01
      %v1213 = vmul.f32 %v1181, 0.01
      %v1214 = vmul.f32 %v1182, 0.01
      %v1215 = vmul.f32 %v1183, 0.01
      %v1216 = vmul.f32 %v1184, 0.01
      %v1217 = vmax.f32 %v1153, %v1185
      %v1218 = vmax.f32 %v1154, %v1186
      %v1219 = vmax.f32 %v1155, %v1187
      %v1220 = vmax.f32 %v1156, %v1188
      %v1221 = vmax.f32 %v1157, %v1189
      %v1222 = vmax.f32 %v1158, %v1190
      %v1223 = vmax.f32 %v1159, %v1191
      %v1224 = vmax.f32 %v1160, %v1192
      %v1225 = vmax.f32 %v1161, %v1193
      %v1226 = vmax.f32 %v1162, %v1194
      %v1227 = vmax.f32 %v1163, %v1195
      %v1228 = vmax.f32 %v1164, %v1196
      %v1229 = vmax.f32 %v1165, %v1197
      %v1230 = vmax.f32 %v1166, %v1198
      %v1231 = vmax.f32 %v1167, %v1199
      %v1232 = vmax.f32 %v1168, %v1200
      %v1233 = vmax.f32 %v1169, %v1201
      %v1234 = vmax.f32 %v1170, %v1202
      %v1235 = vmax.f32 %v1171, %v1203
      %v1236 = vmax.f32 %v1172, %v1204
      %v1237 = vmax.f32 %v1173, %v1205
      %v1238 = vmax.f32 %v1174, %v1206
      %v1239 = vmax.f32 %v1175, %v1207
      %v1240 = vmax.f32 %v1176, %v1208
      %v1241 = vmax.f32 %v1177, %v1209
      %v1242 = vmax.f32 %v1178, %v1210
      %v1243 = vmax.f32 %v1179, %v1211
      %v1244 = vmax.f32 %v1180, %v1212
      %v1245 = vmax.f32 %v1181, %v1213
      %v1246 = vmax.f32 %v1182, %v1214
      %v1247 = vmax.f32 %v1183, %v1215
      %v1248 = vmax.f32 %v1184, %v1216
      %v1249 = vld [vmem:[%s5] sm:$0xff]
      %v1250 = vld [vmem:[%s5 + $0x8] sm:$0xff]
      %v1251 = vld [vmem:[%s5 + $0x10] sm:$0xff]
      %v1252 = vld [vmem:[%s5 + $0x18] sm:$0xff]
      %v1253 = vld [vmem:[%s6] sm:$0x1]
      %v1255 = vperm.slane %v1253, 0
      %vm1257 = vcmask 261120
      %v1259 = vsel %vm1257, %v1217, 0
      %v1262 = vsel %vm1257, %v1218, 0
      %v1265 = vsel %vm1257, %v1219, 0
      %v1268 = vsel %vm1257, %v1220, 0
      %v1271 = vsel %vm1257, %v1221, 0
      %v1274 = vsel %vm1257, %v1222, 0
      %v1277 = vsel %vm1257, %v1223, 0
      %v1280 = vsel %vm1257, %v1224, 0
      %v1283 = vsel %vm1257, %v1225, 0
      %v1286 = vsel %vm1257, %v1226, 0
      %v1289 = vsel %vm1257, %v1227, 0
      %v1292 = vsel %vm1257, %v1228, 0
      %v1295 = vsel %vm1257, %v1229, 0
      %v1298 = vsel %vm1257, %v1230, 0
      %v1301 = vsel %vm1257, %v1231, 0
      %v1304 = vsel %vm1257, %v1232, 0
      %v1307 = vsel %vm1257, %v1233, 0
      %v1310 = vsel %vm1257, %v1234, 0
      %v1313 = vsel %vm1257, %v1235, 0
      %v1316 = vsel %vm1257, %v1236, 0
      %v1319 = vsel %vm1257, %v1237, 0
      %v1322 = vsel %vm1257, %v1238, 0
      %v1325 = vsel %vm1257, %v1239, 0
      %v1328 = vsel %vm1257, %v1240, 0
      %v1331 = vsel %vm1257, %v1241, 0
      %v1334 = vsel %vm1257, %v1242, 0
      %v1337 = vsel %vm1257, %v1243, 0
      %v1340 = vsel %vm1257, %v1244, 0
      %v1343 = vsel %vm1257, %v1245, 0
      %v1346 = vsel %vm1257, %v1246, 0
      %v1349 = vsel %vm1257, %v1247, 0
      %v1352 = vsel %vm1257, %v1248, 0
      %1354 = vmatpush.msra.mxu0 0.0
      %1355 = vmatpush.msra.mxu0 0.0
      %1356 = vmatpush.msra.mxu0 0.0
      %1357 = vmatpush.msra.mxu0 0.0
      %1358 = vmatpush.msra.mxu0 0.0
      %1359 = vmatpush.msra.mxu0 0.0
      %1360 = vmatpush.msra.mxu0 0.0
      %1361 = vmatpush.msra.mxu0 0.0
      %1362 = vmatpush.msra.mxu0 0.0
      %1363 = vmatpush.msra.mxu0 0.0
      %1364 = vmatpush.msra.mxu0 0.0
      %1365 = vmatpush.msra.mxu0 0.0
      %1366 = vmatpush.msra.mxu0 %v1252
      %1367 = vmatpush.msra.mxu0 %v1251
      %1368 = vmatpush.msra.mxu0 %v1250
      %1369 = vmatpush.msra.mxu0 %v1249
      %1370 = vmatmul.f32.gmra.mxu0 %v1259
      %v1371 = vpop.f32.mrf.mxu0
      %v1372 = vadd.f32 %v1255, %v1371
      %1373 = vmatmul.f32.gmra.mxu0 %v1262
      %v1374 = vpop.f32.mrf.mxu0
      %v1375 = vadd.f32 %v1255, %v1374
      %1376 = vmatmul.f32.gmra.mxu0 %v1265
      %v1377 = vpop.f32.mrf.mxu0
      %v1378 = vadd.f32 %v1255, %v1377
      %1379 = vmatmul.f32.gmra.mxu0 %v1268
      %v1380 = vpop.f32.mrf.mxu0
      %v1381 = vadd.f32 %v1255, %v1380
      %1382 = vmatmul.f32.gmra.mxu0 %v1271
      %v1383 = vpop.f32.mrf.mxu0
      %v1384 = vadd.f32 %v1255, %v1383
      %1385 = vmatmul.f32.gmra.mxu0 %v1274
      %v1386 = vpop.f32.mrf.mxu0
      %v1387 = vadd.f32 %v1255, %v1386
      %1388 = vmatmul.f32.gmra.mxu0 %v1277
      %v1389 = vpop.f32.mrf.mxu0
      %v1390 = vadd.f32 %v1255, %v1389
      %1391 = vmatmul.f32.gmra.mxu0 %v1280
      %v1392 = vpop.f32.mrf.mxu0
      %v1393 = vadd.f32 %v1255, %v1392
      %1394 = vmatmul.f32.gmra.mxu0 %v1283
      %v1395 = vpop.f32.mrf.mxu0
      %v1396 = vadd.f32 %v1255, %v1395
      %1397 = vmatmul.f32.gmra.mxu0 %v1286
      %v1398 = vpop.f32.mrf.mxu0
      %v1399 = vadd.f32 %v1255, %v1398
      %1400 = vmatmul.f32.gmra.mxu0 %v1289
      %v1401 = vpop.f32.mrf.mxu0
      %v1402 = vadd.f32 %v1255, %v1401
      %1403 = vmatmul.f32.gmra.mxu0 %v1292
      %v1404 = vpop.f32.mrf.mxu0
      %v1405 = vadd.f32 %v1255, %v1404
      %1406 = vmatmul.f32.gmra.mxu0 %v1295
      %v1407 = vpop.f32.mrf.mxu0
      %v1408 = vadd.f32 %v1255, %v1407
      %1409 = vmatmul.f32.gmra.mxu0 %v1298
      %v1410 = vpop.f32.mrf.mxu0
      %v1411 = vadd.f32 %v1255, %v1410
      %1412 = vmatmul.f32.gmra.mxu0 %v1301
      %v1413 = vpop.f32.mrf.mxu0
      %v1414 = vadd.f32 %v1255, %v1413
      %1415 = vmatmul.f32.gmra.mxu0 %v1304
      %v1416 = vpop.f32.mrf.mxu0
      %v1417 = vadd.f32 %v1255, %v1416
      %1418 = vmatmul.f32.gmra.mxu0 %v1307
      %v1419 = vpop.f32.mrf.mxu0
      %v1420 = vadd.f32 %v1255, %v1419
      %1421 = vmatmul.f32.gmra.mxu0 %v1310
      %v1422 = vpop.f32.mrf.mxu0
      %v1423 = vadd.f32 %v1255, %v1422
      %1424 = vmatmul.f32.gmra.mxu0 %v1313
      %v1425 = vpop.f32.mrf.mxu0
      %v1426 = vadd.f32 %v1255, %v1425
      %1427 = vmatmul.f32.gmra.mxu0 %v1316
      %v1428 = vpop.f32.mrf.mxu0
      %v1429 = vadd.f32 %v1255, %v1428
      %1430 = vmatmul.f32.gmra.mxu0 %v1319
      %v1431 = vpop.f32.mrf.mxu0
      %v1432 = vadd.f32 %v1255, %v1431
      %1433 = vmatmul.f32.gmra.mxu0 %v1322
      %v1434 = vpop.f32.mrf.mxu0
      %v1435 = vadd.f32 %v1255, %v1434
      %1436 = vmatmul.f32.gmra.mxu0 %v1325
      %v1437 = vpop.f32.mrf.mxu0
      %v1438 = vadd.f32 %v1255, %v1437
      %1439 = vmatmul.f32.gmra.mxu0 %v1328
      %v1440 = vpop.f32.mrf.mxu0
      %v1441 = vadd.f32 %v1255, %v1440
      %1442 = vmatmul.f32.gmra.mxu0 %v1331
      %v1443 = vpop.f32.mrf.mxu0
      %v1444 = vadd.f32 %v1255, %v1443
      %1445 = vmatmul.f32.gmra.mxu0 %v1334
      %v1446 = vpop.f32.mrf.mxu0
      %v1447 = vadd.f32 %v1255, %v1446
      %1448 = vmatmul.f32.gmra.mxu0 %v1337
      %v1449 = vpop.f32.mrf.mxu0
      %v1450 = vadd.f32 %v1255, %v1449
      %1451 = vmatmul.f32.gmra.mxu0 %v1340
      %v1452 = vpop.f32.mrf.mxu0
      %v1453 = vadd.f32 %v1255, %v1452
      %1454 = vmatmul.f32.gmra.mxu0 %v1343
      %v1455 = vpop.f32.mrf.mxu0
      %v1456 = vadd.f32 %v1255, %v1455
      %1457 = vmatmul.f32.gmra.mxu0 %v1346
      %v1458 = vpop.f32.mrf.mxu0
      %v1459 = vadd.f32 %v1255, %v1458
      %1460 = vmatmul.f32.gmra.mxu0 %v1349
      %v1461 = vpop.f32.mrf.mxu0
      %v1462 = vadd.f32 %v1255, %v1461
      %1463 = vmatmul.f32.gmra.mxu0 %v1352
      %v1464 = vpop.f32.mrf.mxu0
      %v1465 = vadd.f32 %v1255, %v1464
      %1466 = vdwg.mxu0
      %v1467 = vmul.f32 %v1372, 0.01
      %v1468 = vmul.f32 %v1375, 0.01
      %v1469 = vmul.f32 %v1378, 0.01
      %v1470 = vmul.f32 %v1381, 0.01
      %v1471 = vmul.f32 %v1384, 0.01
      %v1472 = vmul.f32 %v1387, 0.01
      %v1473 = vmul.f32 %v1390, 0.01
      %v1474 = vmul.f32 %v1393, 0.01
      %v1475 = vmul.f32 %v1396, 0.01
      %v1476 = vmul.f32 %v1399, 0.01
      %v1477 = vmul.f32 %v1402, 0.01
      %v1478 = vmul.f32 %v1405, 0.01
      %v1479 = vmul.f32 %v1408, 0.01
      %v1480 = vmul.f32 %v1411, 0.01
      %v1481 = vmul.f32 %v1414, 0.01
      %v1482 = vmul.f32 %v1417, 0.01
      %v1483 = vmul.f32 %v1420, 0.01
      %v1484 = vmul.f32 %v1423, 0.01
      %v1485 = vmul.f32 %v1426, 0.01
      %v1486 = vmul.f32 %v1429, 0.01
      %v1487 = vmul.f32 %v1432, 0.01
      %v1488 = vmul.f32 %v1435, 0.01
      %v1489 = vmul.f32 %v1438, 0.01
      %v1490 = vmul.f32 %v1441, 0.01
      %v1491 = vmul.f32 %v1444, 0.01
      %v1492 = vmul.f32 %v1447, 0.01
      %v1493 = vmul.f32 %v1450, 0.01
      %v1494 = vmul.f32 %v1453, 0.01
      %v1495 = vmul.f32 %v1456, 0.01
      %v1496 = vmul.f32 %v1459, 0.01
      %v1497 = vmul.f32 %v1462, 0.01
      %v1498 = vmul.f32 %v1465, 0.01
      %v1499 = vmax.f32 %v1372, %v1467
      %v1500 = vmax.f32 %v1375, %v1468
      %v1501 = vmax.f32 %v1378, %v1469
      %v1502 = vmax.f32 %v1381, %v1470
      %v1503 = vmax.f32 %v1384, %v1471
      %v1504 = vmax.f32 %v1387, %v1472
      %v1505 = vmax.f32 %v1390, %v1473
      %v1506 = vmax.f32 %v1393, %v1474
      %v1507 = vmax.f32 %v1396, %v1475
      %v1508 = vmax.f32 %v1399, %v1476
      %v1509 = vmax.f32 %v1402, %v1477
      %v1510 = vmax.f32 %v1405, %v1478
      %v1511 = vmax.f32 %v1408, %v1479
      %v1512 = vmax.f32 %v1411, %v1480
      %v1513 = vmax.f32 %v1414, %v1481
      %v1514 = vmax.f32 %v1417, %v1482
      %v1515 = vmax.f32 %v1420, %v1483
      %v1516 = vmax.f32 %v1423, %v1484
      %v1517 = vmax.f32 %v1426, %v1485
      %v1518 = vmax.f32 %v1429, %v1486
      %v1519 = vmax.f32 %v1432, %v1487
      %v1520 = vmax.f32 %v1435, %v1488
      %v1521 = vmax.f32 %v1438, %v1489
      %v1522 = vmax.f32 %v1441, %v1490
      %v1523 = vmax.f32 %v1444, %v1491
      %v1524 = vmax.f32 %v1447, %v1492
      %v1525 = vmax.f32 %v1450, %v1493
      %v1526 = vmax.f32 %v1453, %v1494
      %v1527 = vmax.f32 %v1456, %v1495
      %v1528 = vmax.f32 %v1459, %v1496
      %v1529 = vmax.f32 %v1462, %v1497
      %v1530 = vmax.f32 %v1465, %v1498
      %v1531 = vsel %vm1257, %v1499, 0.0
      %1532 = vadd.xlane.f32.xlu0 %v1531
      %v1533 = vpop.xlane.xlu0 %1532
      %v1534 = vsel %vm1257, %v1500, 0.0
      %1535 = vadd.xlane.f32.xlu0 %v1534
      %v1536 = vpop.xlane.xlu0 %1535
      %v1537 = vsel %vm1257, %v1501, 0.0
      %1538 = vadd.xlane.f32.xlu0 %v1537
      %v1539 = vpop.xlane.xlu0 %1538
      %v1540 = vsel %vm1257, %v1502, 0.0
      %1541 = vadd.xlane.f32.xlu0 %v1540
      %v1542 = vpop.xlane.xlu0 %1541
      %v1543 = vsel %vm1257, %v1503, 0.0
      %1544 = vadd.xlane.f32.xlu0 %v1543
      %v1545 = vpop.xlane.xlu0 %1544
      %v1546 = vsel %vm1257, %v1504, 0.0
      %1547 = vadd.xlane.f32.xlu0 %v1546
      %v1548 = vpop.xlane.xlu0 %1547
      %v1549 = vsel %vm1257, %v1505, 0.0
      %1550 = vadd.xlane.f32.xlu0 %v1549
      %v1551 = vpop.xlane.xlu0 %1550
      %v1552 = vsel %vm1257, %v1506, 0.0
      %1553 = vadd.xlane.f32.xlu0 %v1552
      %v1554 = vpop.xlane.xlu0 %1553
      %v1555 = vsel %vm1257, %v1507, 0.0
      %1556 = vadd.xlane.f32.xlu0 %v1555
      %v1557 = vpop.xlane.xlu0 %1556
      %v1558 = vsel %vm1257, %v1508, 0.0
      %1559 = vadd.xlane.f32.xlu0 %v1558
      %v1560 = vpop.xlane.xlu0 %1559
      %v1561 = vsel %vm1257, %v1509, 0.0
      %1562 = vadd.xlane.f32.xlu0 %v1561
      %v1563 = vpop.xlane.xlu0 %1562
      %v1564 = vsel %vm1257, %v1510, 0.0
      %1565 = vadd.xlane.f32.xlu0 %v1564
      %v1566 = vpop.xlane.xlu0 %1565
      %v1567 = vsel %vm1257, %v1511, 0.0
      %1568 = vadd.xlane.f32.xlu0 %v1567
      %v1569 = vpop.xlane.xlu0 %1568
      %v1570 = vsel %vm1257, %v1512, 0.0
      %1571 = vadd.xlane.f32.xlu0 %v1570
      %v1572 = vpop.xlane.xlu0 %1571
      %v1573 = vsel %vm1257, %v1513, 0.0
      %1574 = vadd.xlane.f32.xlu0 %v1573
      %v1575 = vpop.xlane.xlu0 %1574
      %v1576 = vsel %vm1257, %v1514, 0.0
      %1577 = vadd.xlane.f32.xlu0 %v1576
      %v1578 = vpop.xlane.xlu0 %1577
      %v1579 = vsel %vm1257, %v1515, 0.0
      %1580 = vadd.xlane.f32.xlu0 %v1579
      %v1581 = vpop.xlane.xlu0 %1580
      %v1582 = vsel %vm1257, %v1516, 0.0
      %1583 = vadd.xlane.f32.xlu0 %v1582
      %v1584 = vpop.xlane.xlu0 %1583
      %v1585 = vsel %vm1257, %v1517, 0.0
      %1586 = vadd.xlane.f32.xlu0 %v1585
      %v1587 = vpop.xlane.xlu0 %1586
      %v1588 = vsel %vm1257, %v1518, 0.0
      %1589 = vadd.xlane.f32.xlu0 %v1588
      %v1590 = vpop.xlane.xlu0 %1589
      %v1591 = vsel %vm1257, %v1519, 0.0
      %1592 = vadd.xlane.f32.xlu0 %v1591
      %v1593 = vpop.xlane.xlu0 %1592
      %v1594 = vsel %vm1257, %v1520, 0.0
      %1595 = vadd.xlane.f32.xlu0 %v1594
      %v1596 = vpop.xlane.xlu0 %1595
      %v1597 = vsel %vm1257, %v1521, 0.0
      %1598 = vadd.xlane.f32.xlu0 %v1597
      %v1599 = vpop.xlane.xlu0 %1598
      %v1600 = vsel %vm1257, %v1522, 0.0
      %1601 = vadd.xlane.f32.xlu0 %v1600
      %v1602 = vpop.xlane.xlu0 %1601
      %v1603 = vsel %vm1257, %v1523, 0.0
      %1604 = vadd.xlane.f32.xlu0 %v1603
      %v1605 = vpop.xlane.xlu0 %1604
      %v1606 = vsel %vm1257, %v1524, 0.0
      %1607 = vadd.xlane.f32.xlu0 %v1606
      %v1608 = vpop.xlane.xlu0 %1607
      %v1609 = vsel %vm1257, %v1525, 0.0
      %1610 = vadd.xlane.f32.xlu0 %v1609
      %v1611 = vpop.xlane.xlu0 %1610
      %v1612 = vsel %vm1257, %v1526, 0.0
      %1613 = vadd.xlane.f32.xlu0 %v1612
      %v1614 = vpop.xlane.xlu0 %1613
      %v1615 = vsel %vm1257, %v1527, 0.0
      %1616 = vadd.xlane.f32.xlu0 %v1615
      %v1617 = vpop.xlane.xlu0 %1616
      %v1618 = vsel %vm1257, %v1528, 0.0
      %1619 = vadd.xlane.f32.xlu0 %v1618
      %v1620 = vpop.xlane.xlu0 %1619
      %v1621 = vsel %vm1257, %v1529, 0.0
      %1622 = vadd.xlane.f32.xlu0 %v1621
      %v1623 = vpop.xlane.xlu0 %1622
      %v1624 = vsel %vm1257, %v1530, 0.0
      %1625 = vadd.xlane.f32.xlu0 %v1624
      %v1626 = vpop.xlane.xlu0 %1625
      %v1627 = vrcp.pop 32.0
      %v1628 = vmul.f32 32.0, %v1627
      %v1629 = vsub.f32 1.0, %v1628
      %v1630 = vmul.f32 %v1627, %v1629
      %v1631 = vadd.f32 %v1627, %v1630
      %vm1632 = vweird.f32 %v1627
      %v1633 = vsel %vm1632, %v1627, %v1631
      %v1634 = vmul.f32 %v1533, %v1633
      %v1635 = vmul.f32 %v1536, %v1633
      %v1636 = vmul.f32 %v1539, %v1633
      %v1637 = vmul.f32 %v1542, %v1633
      %v1638 = vmul.f32 %v1545, %v1633
      %v1639 = vmul.f32 %v1548, %v1633
      %v1640 = vmul.f32 %v1551, %v1633
      %v1641 = vmul.f32 %v1554, %v1633
      %v1642 = vmul.f32 %v1557, %v1633
      %v1643 = vmul.f32 %v1560, %v1633
      %v1644 = vmul.f32 %v1563, %v1633
      %v1645 = vmul.f32 %v1566, %v1633
      %v1646 = vmul.f32 %v1569, %v1633
      %v1647 = vmul.f32 %v1572, %v1633
      %v1648 = vmul.f32 %v1575, %v1633
      %v1649 = vmul.f32 %v1578, %v1633
      %v1650 = vmul.f32 %v1581, %v1633
      %v1651 = vmul.f32 %v1584, %v1633
      %v1652 = vmul.f32 %v1587, %v1633
      %v1653 = vmul.f32 %v1590, %v1633
      %v1654 = vmul.f32 %v1593, %v1633
      %v1655 = vmul.f32 %v1596, %v1633
      %v1656 = vmul.f32 %v1599, %v1633
      %v1657 = vmul.f32 %v1602, %v1633
      %v1658 = vmul.f32 %v1605, %v1633
      %v1659 = vmul.f32 %v1608, %v1633
      %v1660 = vmul.f32 %v1611, %v1633
      %v1661 = vmul.f32 %v1614, %v1633
      %v1662 = vmul.f32 %v1617, %v1633
      %v1663 = vmul.f32 %v1620, %v1633
      %v1664 = vmul.f32 %v1623, %v1633
      %v1665 = vmul.f32 %v1626, %v1633
      %v1666 = vsub.f32 %v1499, %v1634
      %v1667 = vsub.f32 %v1500, %v1635
      %v1668 = vsub.f32 %v1501, %v1636
      %v1669 = vsub.f32 %v1502, %v1637
      %v1670 = vsub.f32 %v1503, %v1638
      %v1671 = vsub.f32 %v1504, %v1639
      %v1672 = vsub.f32 %v1505, %v1640
      %v1673 = vsub.f32 %v1506, %v1641
      %v1674 = vsub.f32 %v1507, %v1642
      %v1675 = vsub.f32 %v1508, %v1643
      %v1676 = vsub.f32 %v1509, %v1644
      %v1677 = vsub.f32 %v1510, %v1645
      %v1678 = vsub.f32 %v1511, %v1646
      %v1679 = vsub.f32 %v1512, %v1647
      %v1680 = vsub.f32 %v1513, %v1648
      %v1681 = vsub.f32 %v1514, %v1649
      %v1682 = vsub.f32 %v1515, %v1650
      %v1683 = vsub.f32 %v1516, %v1651
      %v1684 = vsub.f32 %v1517, %v1652
      %v1685 = vsub.f32 %v1518, %v1653
      %v1686 = vsub.f32 %v1519, %v1654
      %v1687 = vsub.f32 %v1520, %v1655
      %v1688 = vsub.f32 %v1521, %v1656
      %v1689 = vsub.f32 %v1522, %v1657
      %v1690 = vsub.f32 %v1523, %v1658
      %v1691 = vsub.f32 %v1524, %v1659
      %v1692 = vsub.f32 %v1525, %v1660
      %v1693 = vsub.f32 %v1526, %v1661
      %v1694 = vsub.f32 %v1527, %v1662
      %v1695 = vsub.f32 %v1528, %v1663
      %v1696 = vsub.f32 %v1529, %v1664
      %v1697 = vsub.f32 %v1530, %v1665
      %v1698 = vmul.f32 %v1666, %v1666
      %v1699 = vmul.f32 %v1667, %v1667
      %v1700 = vmul.f32 %v1668, %v1668
      %v1701 = vmul.f32 %v1669, %v1669
      %v1702 = vmul.f32 %v1670, %v1670
      %v1703 = vmul.f32 %v1671, %v1671
      %v1704 = vmul.f32 %v1672, %v1672
      %v1705 = vmul.f32 %v1673, %v1673
      %v1706 = vmul.f32 %v1674, %v1674
      %v1707 = vmul.f32 %v1675, %v1675
      %v1708 = vmul.f32 %v1676, %v1676
      %v1709 = vmul.f32 %v1677, %v1677
      %v1710 = vmul.f32 %v1678, %v1678
      %v1711 = vmul.f32 %v1679, %v1679
      %v1712 = vmul.f32 %v1680, %v1680
      %v1713 = vmul.f32 %v1681, %v1681
      %v1714 = vmul.f32 %v1682, %v1682
      %v1715 = vmul.f32 %v1683, %v1683
      %v1716 = vmul.f32 %v1684, %v1684
      %v1717 = vmul.f32 %v1685, %v1685
      %v1718 = vmul.f32 %v1686, %v1686
      %v1719 = vmul.f32 %v1687, %v1687
      %v1720 = vmul.f32 %v1688, %v1688
      %v1721 = vmul.f32 %v1689, %v1689
      %v1722 = vmul.f32 %v1690, %v1690
      %v1723 = vmul.f32 %v1691, %v1691
      %v1724 = vmul.f32 %v1692, %v1692
      %v1725 = vmul.f32 %v1693, %v1693
      %v1726 = vmul.f32 %v1694, %v1694
      %v1727 = vmul.f32 %v1695, %v1695
      %v1728 = vmul.f32 %v1696, %v1696
      %v1729 = vmul.f32 %v1697, %v1697
      %v1730 = vsel %vm1257, %v1698, 0.0
      %1731 = vadd.xlane.f32.xlu0 %v1730
      %v1732 = vpop.xlane.xlu0 %1731
      %v1733 = vsel %vm1257, %v1699, 0.0
      %1734 = vadd.xlane.f32.xlu0 %v1733
      %v1735 = vpop.xlane.xlu0 %1734
      %v1736 = vsel %vm1257, %v1700, 0.0
      %1737 = vadd.xlane.f32.xlu0 %v1736
      %v1738 = vpop.xlane.xlu0 %1737
      %v1739 = vsel %vm1257, %v1701, 0.0
      %1740 = vadd.xlane.f32.xlu0 %v1739
      %v1741 = vpop.xlane.xlu0 %1740
      %v1742 = vsel %vm1257, %v1702, 0.0
      %1743 = vadd.xlane.f32.xlu0 %v1742
      %v1744 = vpop.xlane.xlu0 %1743
      %v1745 = vsel %vm1257, %v1703, 0.0
      %1746 = vadd.xlane.f32.xlu0 %v1745
      %v1747 = vpop.xlane.xlu0 %1746
      %v1748 = vsel %vm1257, %v1704, 0.0
      %1749 = vadd.xlane.f32.xlu0 %v1748
      %v1750 = vpop.xlane.xlu0 %1749
      %v1751 = vsel %vm1257, %v1705, 0.0
      %1752 = vadd.xlane.f32.xlu0 %v1751
      %v1753 = vpop.xlane.xlu0 %1752
      %v1754 = vsel %vm1257, %v1706, 0.0
      %1755 = vadd.xlane.f32.xlu0 %v1754
      %v1756 = vpop.xlane.xlu0 %1755
      %v1757 = vsel %vm1257, %v1707, 0.0
      %1758 = vadd.xlane.f32.xlu0 %v1757
      %v1759 = vpop.xlane.xlu0 %1758
      %v1760 = vsel %vm1257, %v1708, 0.0
      %1761 = vadd.xlane.f32.xlu0 %v1760
      %v1762 = vpop.xlane.xlu0 %1761
      %v1763 = vsel %vm1257, %v1709, 0.0
      %1764 = vadd.xlane.f32.xlu0 %v1763
      %v1765 = vpop.xlane.xlu0 %1764
      %v1766 = vsel %vm1257, %v1710, 0.0
      %1767 = vadd.xlane.f32.xlu0 %v1766
      %v1768 = vpop.xlane.xlu0 %1767
      %v1769 = vsel %vm1257, %v1711, 0.0
      %1770 = vadd.xlane.f32.xlu0 %v1769
      %v1771 = vpop.xlane.xlu0 %1770
      %v1772 = vsel %vm1257, %v1712, 0.0
      %1773 = vadd.xlane.f32.xlu0 %v1772
      %v1774 = vpop.xlane.xlu0 %1773
      %v1775 = vsel %vm1257, %v1713, 0.0
      %1776 = vadd.xlane.f32.xlu0 %v1775
      %v1777 = vpop.xlane.xlu0 %1776
      %v1778 = vsel %vm1257, %v1714, 0.0
      %1779 = vadd.xlane.f32.xlu0 %v1778
      %v1780 = vpop.xlane.xlu0 %1779
      %v1781 = vsel %vm1257, %v1715, 0.0
      %1782 = vadd.xlane.f32.xlu0 %v1781
      %v1783 = vpop.xlane.xlu0 %1782
      %v1784 = vsel %vm1257, %v1716, 0.0
      %1785 = vadd.xlane.f32.xlu0 %v1784
      %v1786 = vpop.xlane.xlu0 %1785
      %v1787 = vsel %vm1257, %v1717, 0.0
      %1788 = vadd.xlane.f32.xlu0 %v1787
      %v1789 = vpop.xlane.xlu0 %1788
      %v1790 = vsel %vm1257, %v1718, 0.0
      %1791 = vadd.xlane.f32.xlu0 %v1790
      %v1792 = vpop.xlane.xlu0 %1791
      %v1793 = vsel %vm1257, %v1719, 0.0
      %1794 = vadd.xlane.f32.xlu0 %v1793
      %v1795 = vpop.xlane.xlu0 %1794
      %v1796 = vsel %vm1257, %v1720, 0.0
      %1797 = vadd.xlane.f32.xlu0 %v1796
      %v1798 = vpop.xlane.xlu0 %1797
      %v1799 = vsel %vm1257, %v1721, 0.0
      %1800 = vadd.xlane.f32.xlu0 %v1799
      %v1801 = vpop.xlane.xlu0 %1800
      %v1802 = vsel %vm1257, %v1722, 0.0
      %1803 = vadd.xlane.f32.xlu0 %v1802
      %v1804 = vpop.xlane.xlu0 %1803
      %v1805 = vsel %vm1257, %v1723, 0.0
      %1806 = vadd.xlane.f32.xlu0 %v1805
      %v1807 = vpop.xlane.xlu0 %1806
      %v1808 = vsel %vm1257, %v1724, 0.0
      %1809 = vadd.xlane.f32.xlu0 %v1808
      %v1810 = vpop.xlane.xlu0 %1809
      %v1811 = vsel %vm1257, %v1725, 0.0
      %1812 = vadd.xlane.f32.xlu0 %v1811
      %v1813 = vpop.xlane.xlu0 %1812
      %v1814 = vsel %vm1257, %v1726, 0.0
      %1815 = vadd.xlane.f32.xlu0 %v1814
      %v1816 = vpop.xlane.xlu0 %1815
      %v1817 = vsel %vm1257, %v1727, 0.0
      %1818 = vadd.xlane.f32.xlu0 %v1817
      %v1819 = vpop.xlane.xlu0 %1818
      %v1820 = vsel %vm1257, %v1728, 0.0
      %1821 = vadd.xlane.f32.xlu0 %v1820
      %v1822 = vpop.xlane.xlu0 %1821
      %v1823 = vsel %vm1257, %v1729, 0.0
      %1824 = vadd.xlane.f32.xlu0 %v1823
      %v1825 = vpop.xlane.xlu0 %1824
      %v1826 = vmul.f32 %v1732, %v1633
      %v1827 = vmul.f32 %v1735, %v1633
      %v1828 = vmul.f32 %v1738, %v1633
      %v1829 = vmul.f32 %v1741, %v1633
      %v1830 = vmul.f32 %v1744, %v1633
      %v1831 = vmul.f32 %v1747, %v1633
      %v1832 = vmul.f32 %v1750, %v1633
      %v1833 = vmul.f32 %v1753, %v1633
      %v1834 = vmul.f32 %v1756, %v1633
      %v1835 = vmul.f32 %v1759, %v1633
      %v1836 = vmul.f32 %v1762, %v1633
      %v1837 = vmul.f32 %v1765, %v1633
      %v1838 = vmul.f32 %v1768, %v1633
      %v1839 = vmul.f32 %v1771, %v1633
      %v1840 = vmul.f32 %v1774, %v1633
      %v1841 = vmul.f32 %v1777, %v1633
      %v1842 = vmul.f32 %v1780, %v1633
      %v1843 = vmul.f32 %v1783, %v1633
      %v1844 = vmul.f32 %v1786, %v1633
      %v1845 = vmul.f32 %v1789, %v1633
      %v1846 = vmul.f32 %v1792, %v1633
      %v1847 = vmul.f32 %v1795, %v1633
      %v1848 = vmul.f32 %v1798, %v1633
      %v1849 = vmul.f32 %v1801, %v1633
      %v1850 = vmul.f32 %v1804, %v1633
      %v1851 = vmul.f32 %v1807, %v1633
      %v1852 = vmul.f32 %v1810, %v1633
      %v1853 = vmul.f32 %v1813, %v1633
      %v1854 = vmul.f32 %v1816, %v1633
      %v1855 = vmul.f32 %v1819, %v1633
      %v1856 = vmul.f32 %v1822, %v1633
      %v1857 = vmul.f32 %v1825, %v1633
      %v1858 = vadd.f32 %v1826, 1e-05
      %v1859 = vadd.f32 %v1827, 1e-05
      %v1860 = vadd.f32 %v1828, 1e-05
      %v1861 = vadd.f32 %v1829, 1e-05
      %v1862 = vadd.f32 %v1830, 1e-05
      %v1863 = vadd.f32 %v1831, 1e-05
      %v1864 = vadd.f32 %v1832, 1e-05
      %v1865 = vadd.f32 %v1833, 1e-05
      %v1866 = vadd.f32 %v1834, 1e-05
      %v1867 = vadd.f32 %v1835, 1e-05
      %v1868 = vadd.f32 %v1836, 1e-05
      %v1869 = vadd.f32 %v1837, 1e-05
      %v1870 = vadd.f32 %v1838, 1e-05
      %v1871 = vadd.f32 %v1839, 1e-05
      %v1872 = vadd.f32 %v1840, 1e-05
      %v1873 = vadd.f32 %v1841, 1e-05
      %v1874 = vadd.f32 %v1842, 1e-05
      %v1875 = vadd.f32 %v1843, 1e-05
      %v1876 = vadd.f32 %v1844, 1e-05
      %v1877 = vadd.f32 %v1845, 1e-05
      %v1878 = vadd.f32 %v1846, 1e-05
      %v1879 = vadd.f32 %v1847, 1e-05
      %v1880 = vadd.f32 %v1848, 1e-05
      %v1881 = vadd.f32 %v1849, 1e-05
      %v1882 = vadd.f32 %v1850, 1e-05
      %v1883 = vadd.f32 %v1851, 1e-05
      %v1884 = vadd.f32 %v1852, 1e-05
      %v1885 = vadd.f32 %v1853, 1e-05
      %v1886 = vadd.f32 %v1854, 1e-05
      %v1887 = vadd.f32 %v1855, 1e-05
      %v1888 = vadd.f32 %v1856, 1e-05
      %v1889 = vadd.f32 %v1857, 1e-05
      %v1890 = vrsqrt.pop %v1858
      %v1891 = vmul.f32 %v1890, %v1858
      %v1892 = vmul.f32 %v1891, %v1890
      %v1893 = vmul.f32 0.5, %v1892
      %v1894 = vsub.f32 1.5, %v1893
      %v1895 = vmul.f32 %v1890, %v1894
      %vm1896 = vweird.f32 %v1858
      %vm1897 = vweird.f32 %v1890
      %vm1898 = vmor %vm1896, %vm1897
      %v1899 = vsel %vm1898, %v1890, %v1895
      %v1900 = vrsqrt.pop %v1859
      %v1901 = vmul.f32 %v1900, %v1859
      %v1902 = vmul.f32 %v1901, %v1900
      %v1903 = vmul.f32 0.5, %v1902
      %v1904 = vsub.f32 1.5, %v1903
      %v1905 = vmul.f32 %v1900, %v1904
      %vm1906 = vweird.f32 %v1859
      %vm1907 = vweird.f32 %v1900
      %vm1908 = vmor %vm1906, %vm1907
      %v1909 = vsel %vm1908, %v1900, %v1905
      %v1910 = vrsqrt.pop %v1860
      %v1911 = vmul.f32 %v1910, %v1860
      %v1912 = vmul.f32 %v1911, %v1910
      %v1913 = vmul.f32 0.5, %v1912
      %v1914 = vsub.f32 1.5, %v1913
      %v1915 = vmul.f32 %v1910, %v1914
      %vm1916 = vweird.f32 %v1860
      %vm1917 = vweird.f32 %v1910
      %vm1918 = vmor %vm1916, %vm1917
      %v1919 = vsel %vm1918, %v1910, %v1915
      %v1920 = vrsqrt.pop %v1861
      %v1921 = vmul.f32 %v1920, %v1861
      %v1922 = vmul.f32 %v1921, %v1920
      %v1923 = vmul.f32 0.5, %v1922
      %v1924 = vsub.f32 1.5, %v1923
      %v1925 = vmul.f32 %v1920, %v1924
      %vm1926 = vweird.f32 %v1861
      %vm1927 = vweird.f32 %v1920
      %vm1928 = vmor %vm1926, %vm1927
      %v1929 = vsel %vm1928, %v1920, %v1925
      %v1930 = vrsqrt.pop %v1862
      %v1931 = vmul.f32 %v1930, %v1862
      %v1932 = vmul.f32 %v1931, %v1930
      %v1933 = vmul.f32 0.5, %v1932
      %v1934 = vsub.f32 1.5, %v1933
      %v1935 = vmul.f32 %v1930, %v1934
      %vm1936 = vweird.f32 %v1862
      %vm1937 = vweird.f32 %v1930
      %vm1938 = vmor %vm1936, %vm1937
      %v1939 = vsel %vm1938, %v1930, %v1935
      %v1940 = vrsqrt.pop %v1863
      %v1941 = vmul.f32 %v1940, %v1863
      %v1942 = vmul.f32 %v1941, %v1940
      %v1943 = vmul.f32 0.5, %v1942
      %v1944 = vsub.f32 1.5, %v1943
      %v1945 = vmul.f32 %v1940, %v1944
      %vm1946 = vweird.f32 %v1863
      %vm1947 = vweird.f32 %v1940
      %vm1948 = vmor %vm1946, %vm1947
      %v1949 = vsel %vm1948, %v1940, %v1945
      %v1950 = vrsqrt.pop %v1864
      %v1951 = vmul.f32 %v1950, %v1864
      %v1952 = vmul.f32 %v1951, %v1950
      %v1953 = vmul.f32 0.5, %v1952
      %v1954 = vsub.f32 1.5, %v1953
      %v1955 = vmul.f32 %v1950, %v1954
      %vm1956 = vweird.f32 %v1864
      %vm1957 = vweird.f32 %v1950
      %vm1958 = vmor %vm1956, %vm1957
      %v1959 = vsel %vm1958, %v1950, %v1955
      %v1960 = vrsqrt.pop %v1865
      %v1961 = vmul.f32 %v1960, %v1865
      %v1962 = vmul.f32 %v1961, %v1960
      %v1963 = vmul.f32 0.5, %v1962
      %v1964 = vsub.f32 1.5, %v1963
      %v1965 = vmul.f32 %v1960, %v1964
      %vm1966 = vweird.f32 %v1865
      %vm1967 = vweird.f32 %v1960
      %vm1968 = vmor %vm1966, %vm1967
      %v1969 = vsel %vm1968, %v1960, %v1965
      %v1970 = vrsqrt.pop %v1866
      %v1971 = vmul.f32 %v1970, %v1866
      %v1972 = vmul.f32 %v1971, %v1970
      %v1973 = vmul.f32 0.5, %v1972
      %v1974 = vsub.f32 1.5, %v1973
      %v1975 = vmul.f32 %v1970, %v1974
      %vm1976 = vweird.f32 %v1866
      %vm1977 = vweird.f32 %v1970
      %vm1978 = vmor %vm1976, %vm1977
      %v1979 = vsel %vm1978, %v1970, %v1975
      %v1980 = vrsqrt.pop %v1867
      %v1981 = vmul.f32 %v1980, %v1867
      %v1982 = vmul.f32 %v1981, %v1980
      %v1983 = vmul.f32 0.5, %v1982
      %v1984 = vsub.f32 1.5, %v1983
      %v1985 = vmul.f32 %v1980, %v1984
      %vm1986 = vweird.f32 %v1867
      %vm1987 = vweird.f32 %v1980
      %vm1988 = vmor %vm1986, %vm1987
      %v1989 = vsel %vm1988, %v1980, %v1985
      %v1990 = vrsqrt.pop %v1868
      %v1991 = vmul.f32 %v1990, %v1868
      %v1992 = vmul.f32 %v1991, %v1990
      %v1993 = vmul.f32 0.5, %v1992
      %v1994 = vsub.f32 1.5, %v1993
      %v1995 = vmul.f32 %v1990, %v1994
      %vm1996 = vweird.f32 %v1868
      %vm1997 = vweird.f32 %v1990
      %vm1998 = vmor %vm1996, %vm1997
      %v1999 = vsel %vm1998, %v1990, %v1995
      %v2000 = vrsqrt.pop %v1869
      %v2001 = vmul.f32 %v2000, %v1869
      %v2002 = vmul.f32 %v2001, %v2000
      %v2003 = vmul.f32 0.5, %v2002
      %v2004 = vsub.f32 1.5, %v2003
      %v2005 = vmul.f32 %v2000, %v2004
      %vm2006 = vweird.f32 %v1869
      %vm2007 = vweird.f32 %v2000
      %vm2008 = vmor %vm2006, %vm2007
      %v2009 = vsel %vm2008, %v2000, %v2005
      %v2010 = vrsqrt.pop %v1870
      %v2011 = vmul.f32 %v2010, %v1870
      %v2012 = vmul.f32 %v2011, %v2010
      %v2013 = vmul.f32 0.5, %v2012
      %v2014 = vsub.f32 1.5, %v2013
      %v2015 = vmul.f32 %v2010, %v2014
      %vm2016 = vweird.f32 %v1870
      %vm2017 = vweird.f32 %v2010
      %vm2018 = vmor %vm2016, %vm2017
      %v2019 = vsel %vm2018, %v2010, %v2015
      %v2020 = vrsqrt.pop %v1871
      %v2021 = vmul.f32 %v2020, %v1871
      %v2022 = vmul.f32 %v2021, %v2020
      %v2023 = vmul.f32 0.5, %v2022
      %v2024 = vsub.f32 1.5, %v2023
      %v2025 = vmul.f32 %v2020, %v2024
      %vm2026 = vweird.f32 %v1871
      %vm2027 = vweird.f32 %v2020
      %vm2028 = vmor %vm2026, %vm2027
      %v2029 = vsel %vm2028, %v2020, %v2025
      %v2030 = vrsqrt.pop %v1872
      %v2031 = vmul.f32 %v2030, %v1872
      %v2032 = vmul.f32 %v2031, %v2030
      %v2033 = vmul.f32 0.5, %v2032
      %v2034 = vsub.f32 1.5, %v2033
      %v2035 = vmul.f32 %v2030, %v2034
      %vm2036 = vweird.f32 %v1872
      %vm2037 = vweird.f32 %v2030
      %vm2038 = vmor %vm2036, %vm2037
      %v2039 = vsel %vm2038, %v2030, %v2035
      %v2040 = vrsqrt.pop %v1873
      %v2041 = vmul.f32 %v2040, %v1873
      %v2042 = vmul.f32 %v2041, %v2040
      %v2043 = vmul.f32 0.5, %v2042
      %v2044 = vsub.f32 1.5, %v2043
      %v2045 = vmul.f32 %v2040, %v2044
      %vm2046 = vweird.f32 %v1873
      %vm2047 = vweird.f32 %v2040
      %vm2048 = vmor %vm2046, %vm2047
      %v2049 = vsel %vm2048, %v2040, %v2045
      %v2050 = vrsqrt.pop %v1874
      %v2051 = vmul.f32 %v2050, %v1874
      %v2052 = vmul.f32 %v2051, %v2050
      %v2053 = vmul.f32 0.5, %v2052
      %v2054 = vsub.f32 1.5, %v2053
      %v2055 = vmul.f32 %v2050, %v2054
      %vm2056 = vweird.f32 %v1874
      %vm2057 = vweird.f32 %v2050
      %vm2058 = vmor %vm2056, %vm2057
      %v2059 = vsel %vm2058, %v2050, %v2055
      %v2060 = vrsqrt.pop %v1875
      %v2061 = vmul.f32 %v2060, %v1875
      %v2062 = vmul.f32 %v2061, %v2060
      %v2063 = vmul.f32 0.5, %v2062
      %v2064 = vsub.f32 1.5, %v2063
      %v2065 = vmul.f32 %v2060, %v2064
      %vm2066 = vweird.f32 %v1875
      %vm2067 = vweird.f32 %v2060
      %vm2068 = vmor %vm2066, %vm2067
      %v2069 = vsel %vm2068, %v2060, %v2065
      %v2070 = vrsqrt.pop %v1876
      %v2071 = vmul.f32 %v2070, %v1876
      %v2072 = vmul.f32 %v2071, %v2070
      %v2073 = vmul.f32 0.5, %v2072
      %v2074 = vsub.f32 1.5, %v2073
      %v2075 = vmul.f32 %v2070, %v2074
      %vm2076 = vweird.f32 %v1876
      %vm2077 = vweird.f32 %v2070
      %vm2078 = vmor %vm2076, %vm2077
      %v2079 = vsel %vm2078, %v2070, %v2075
      %v2080 = vrsqrt.pop %v1877
      %v2081 = vmul.f32 %v2080, %v1877
      %v2082 = vmul.f32 %v2081, %v2080
      %v2083 = vmul.f32 0.5, %v2082
      %v2084 = vsub.f32 1.5, %v2083
      %v2085 = vmul.f32 %v2080, %v2084
      %vm2086 = vweird.f32 %v1877
      %vm2087 = vweird.f32 %v2080
      %vm2088 = vmor %vm2086, %vm2087
      %v2089 = vsel %vm2088, %v2080, %v2085
      %v2090 = vrsqrt.pop %v1878
      %v2091 = vmul.f32 %v2090, %v1878
      %v2092 = vmul.f32 %v2091, %v2090
      %v2093 = vmul.f32 0.5, %v2092
      %v2094 = vsub.f32 1.5, %v2093
      %v2095 = vmul.f32 %v2090, %v2094
      %vm2096 = vweird.f32 %v1878
      %vm2097 = vweird.f32 %v2090
      %vm2098 = vmor %vm2096, %vm2097
      %v2099 = vsel %vm2098, %v2090, %v2095
      %v2100 = vrsqrt.pop %v1879
      %v2101 = vmul.f32 %v2100, %v1879
      %v2102 = vmul.f32 %v2101, %v2100
      %v2103 = vmul.f32 0.5, %v2102
      %v2104 = vsub.f32 1.5, %v2103
      %v2105 = vmul.f32 %v2100, %v2104
      %vm2106 = vweird.f32 %v1879
      %vm2107 = vweird.f32 %v2100
      %vm2108 = vmor %vm2106, %vm2107
      %v2109 = vsel %vm2108, %v2100, %v2105
      %v2110 = vrsqrt.pop %v1880
      %v2111 = vmul.f32 %v2110, %v1880
      %v2112 = vmul.f32 %v2111, %v2110
      %v2113 = vmul.f32 0.5, %v2112
      %v2114 = vsub.f32 1.5, %v2113
      %v2115 = vmul.f32 %v2110, %v2114
      %vm2116 = vweird.f32 %v1880
      %vm2117 = vweird.f32 %v2110
      %vm2118 = vmor %vm2116, %vm2117
      %v2119 = vsel %vm2118, %v2110, %v2115
      %v2120 = vrsqrt.pop %v1881
      %v2121 = vmul.f32 %v2120, %v1881
      %v2122 = vmul.f32 %v2121, %v2120
      %v2123 = vmul.f32 0.5, %v2122
      %v2124 = vsub.f32 1.5, %v2123
      %v2125 = vmul.f32 %v2120, %v2124
      %vm2126 = vweird.f32 %v1881
      %vm2127 = vweird.f32 %v2120
      %vm2128 = vmor %vm2126, %vm2127
      %v2129 = vsel %vm2128, %v2120, %v2125
      %v2130 = vrsqrt.pop %v1882
      %v2131 = vmul.f32 %v2130, %v1882
      %v2132 = vmul.f32 %v2131, %v2130
      %v2133 = vmul.f32 0.5, %v2132
      %v2134 = vsub.f32 1.5, %v2133
      %v2135 = vmul.f32 %v2130, %v2134
      %vm2136 = vweird.f32 %v1882
      %vm2137 = vweird.f32 %v2130
      %vm2138 = vmor %vm2136, %vm2137
      %v2139 = vsel %vm2138, %v2130, %v2135
      %v2140 = vrsqrt.pop %v1883
      %v2141 = vmul.f32 %v2140, %v1883
      %v2142 = vmul.f32 %v2141, %v2140
      %v2143 = vmul.f32 0.5, %v2142
      %v2144 = vsub.f32 1.5, %v2143
      %v2145 = vmul.f32 %v2140, %v2144
      %vm2146 = vweird.f32 %v1883
      %vm2147 = vweird.f32 %v2140
      %vm2148 = vmor %vm2146, %vm2147
      %v2149 = vsel %vm2148, %v2140, %v2145
      %v2150 = vrsqrt.pop %v1884
      %v2151 = vmul.f32 %v2150, %v1884
      %v2152 = vmul.f32 %v2151, %v2150
      %v2153 = vmul.f32 0.5, %v2152
      %v2154 = vsub.f32 1.5, %v2153
      %v2155 = vmul.f32 %v2150, %v2154
      %vm2156 = vweird.f32 %v1884
      %vm2157 = vweird.f32 %v2150
      %vm2158 = vmor %vm2156, %vm2157
      %v2159 = vsel %vm2158, %v2150, %v2155
      %v2160 = vrsqrt.pop %v1885
      %v2161 = vmul.f32 %v2160, %v1885
      %v2162 = vmul.f32 %v2161, %v2160
      %v2163 = vmul.f32 0.5, %v2162
      %v2164 = vsub.f32 1.5, %v2163
      %v2165 = vmul.f32 %v2160, %v2164
      %vm2166 = vweird.f32 %v1885
      %vm2167 = vweird.f32 %v2160
      %vm2168 = vmor %vm2166, %vm2167
      %v2169 = vsel %vm2168, %v2160, %v2165
      %v2170 = vrsqrt.pop %v1886
      %v2171 = vmul.f32 %v2170, %v1886
      %v2172 = vmul.f32 %v2171, %v2170
      %v2173 = vmul.f32 0.5, %v2172
      %v2174 = vsub.f32 1.5, %v2173
      %v2175 = vmul.f32 %v2170, %v2174
      %vm2176 = vweird.f32 %v1886
      %vm2177 = vweird.f32 %v2170
      %vm2178 = vmor %vm2176, %vm2177
      %v2179 = vsel %vm2178, %v2170, %v2175
      %v2180 = vrsqrt.pop %v1887
      %v2181 = vmul.f32 %v2180, %v1887
      %v2182 = vmul.f32 %v2181, %v2180
      %v2183 = vmul.f32 0.5, %v2182
      %v2184 = vsub.f32 1.5, %v2183
      %v2185 = vmul.f32 %v2180, %v2184
      %vm2186 = vweird.f32 %v1887
      %vm2187 = vweird.f32 %v2180
      %vm2188 = vmor %vm2186, %vm2187
      %v2189 = vsel %vm2188, %v2180, %v2185
      %v2190 = vrsqrt.pop %v1888
      %v2191 = vmul.f32 %v2190, %v1888
      %v2192 = vmul.f32 %v2191, %v2190
      %v2193 = vmul.f32 0.5, %v2192
      %v2194 = vsub.f32 1.5, %v2193
      %v2195 = vmul.f32 %v2190, %v2194
      %vm2196 = vweird.f32 %v1888
      %vm2197 = vweird.f32 %v2190
      %vm2198 = vmor %vm2196, %vm2197
      %v2199 = vsel %vm2198, %v2190, %v2195
      %v2200 = vrsqrt.pop %v1889
      %v2201 = vmul.f32 %v2200, %v1889
      %v2202 = vmul.f32 %v2201, %v2200
      %v2203 = vmul.f32 0.5, %v2202
      %v2204 = vsub.f32 1.5, %v2203
      %v2205 = vmul.f32 %v2200, %v2204
      %vm2206 = vweird.f32 %v1889
      %vm2207 = vweird.f32 %v2200
      %vm2208 = vmor %vm2206, %vm2207
      %v2209 = vsel %vm2208, %v2200, %v2205
      %v2210 = vmul.f32 %v1666, %v1899
      %v2211 = vmul.f32 %v1667, %v1909
      %v2212 = vmul.f32 %v1668, %v1919
      %v2213 = vmul.f32 %v1669, %v1929
      %v2214 = vmul.f32 %v1670, %v1939
      %v2215 = vmul.f32 %v1671, %v1949
      %v2216 = vmul.f32 %v1672, %v1959
      %v2217 = vmul.f32 %v1673, %v1969
      %v2218 = vmul.f32 %v1674, %v1979
      %v2219 = vmul.f32 %v1675, %v1989
      %v2220 = vmul.f32 %v1676, %v1999
      %v2221 = vmul.f32 %v1677, %v2009
      %v2222 = vmul.f32 %v1678, %v2019
      %v2223 = vmul.f32 %v1679, %v2029
      %v2224 = vmul.f32 %v1680, %v2039
      %v2225 = vmul.f32 %v1681, %v2049
      %v2226 = vmul.f32 %v1682, %v2059
      %v2227 = vmul.f32 %v1683, %v2069
      %v2228 = vmul.f32 %v1684, %v2079
      %v2229 = vmul.f32 %v1685, %v2089
      %v2230 = vmul.f32 %v1686, %v2099
      %v2231 = vmul.f32 %v1687, %v2109
      %v2232 = vmul.f32 %v1688, %v2119
      %v2233 = vmul.f32 %v1689, %v2129
      %v2234 = vmul.f32 %v1690, %v2139
      %v2235 = vmul.f32 %v1691, %v2149
      %v2236 = vmul.f32 %v1692, %v2159
      %v2237 = vmul.f32 %v1693, %v2169
      %v2238 = vmul.f32 %v1694, %v2179
      %v2239 = vmul.f32 %v1695, %v2189
      %v2240 = vmul.f32 %v1696, %v2199
      %v2241 = vmul.f32 %v1697, %v2209
      %v2242 = vld [vmem:[%s7] sm:$0x1]
      %v2244 = vperm.slane %v2242, 0
      %v2246 = vmul.f32 %v2210, %v2244
      %v2247 = vmul.f32 %v2211, %v2244
      %v2248 = vmul.f32 %v2212, %v2244
      %v2249 = vmul.f32 %v2213, %v2244
      %v2250 = vmul.f32 %v2214, %v2244
      %v2251 = vmul.f32 %v2215, %v2244
      %v2252 = vmul.f32 %v2216, %v2244
      %v2253 = vmul.f32 %v2217, %v2244
      %v2254 = vmul.f32 %v2218, %v2244
      %v2255 = vmul.f32 %v2219, %v2244
      %v2256 = vmul.f32 %v2220, %v2244
      %v2257 = vmul.f32 %v2221, %v2244
      %v2258 = vmul.f32 %v2222, %v2244
      %v2259 = vmul.f32 %v2223, %v2244
      %v2260 = vmul.f32 %v2224, %v2244
      %v2261 = vmul.f32 %v2225, %v2244
      %v2262 = vmul.f32 %v2226, %v2244
      %v2263 = vmul.f32 %v2227, %v2244
      %v2264 = vmul.f32 %v2228, %v2244
      %v2265 = vmul.f32 %v2229, %v2244
      %v2266 = vmul.f32 %v2230, %v2244
      %v2267 = vmul.f32 %v2231, %v2244
      %v2268 = vmul.f32 %v2232, %v2244
      %v2269 = vmul.f32 %v2233, %v2244
      %v2270 = vmul.f32 %v2234, %v2244
      %v2271 = vmul.f32 %v2235, %v2244
      %v2272 = vmul.f32 %v2236, %v2244
      %v2273 = vmul.f32 %v2237, %v2244
      %v2274 = vmul.f32 %v2238, %v2244
      %v2275 = vmul.f32 %v2239, %v2244
      %v2276 = vmul.f32 %v2240, %v2244
      %v2277 = vmul.f32 %v2241, %v2244
      %v2278 = vld [vmem:[%s8] sm:$0x1]
      %v2280 = vperm.slane %v2278, 0
      %v2282 = vadd.f32 %v2246, %v2280
      %v2283 = vadd.f32 %v2247, %v2280
      %v2284 = vadd.f32 %v2248, %v2280
      %v2285 = vadd.f32 %v2249, %v2280
      %v2286 = vadd.f32 %v2250, %v2280
      %v2287 = vadd.f32 %v2251, %v2280
      %v2288 = vadd.f32 %v2252, %v2280
      %v2289 = vadd.f32 %v2253, %v2280
      %v2290 = vadd.f32 %v2254, %v2280
      %v2291 = vadd.f32 %v2255, %v2280
      %v2292 = vadd.f32 %v2256, %v2280
      %v2293 = vadd.f32 %v2257, %v2280
      %v2294 = vadd.f32 %v2258, %v2280
      %v2295 = vadd.f32 %v2259, %v2280
      %v2296 = vadd.f32 %v2260, %v2280
      %v2297 = vadd.f32 %v2261, %v2280
      %v2298 = vadd.f32 %v2262, %v2280
      %v2299 = vadd.f32 %v2263, %v2280
      %v2300 = vadd.f32 %v2264, %v2280
      %v2301 = vadd.f32 %v2265, %v2280
      %v2302 = vadd.f32 %v2266, %v2280
      %v2303 = vadd.f32 %v2267, %v2280
      %v2304 = vadd.f32 %v2268, %v2280
      %v2305 = vadd.f32 %v2269, %v2280
      %v2306 = vadd.f32 %v2270, %v2280
      %v2307 = vadd.f32 %v2271, %v2280
      %v2308 = vadd.f32 %v2272, %v2280
      %v2309 = vadd.f32 %v2273, %v2280
      %v2310 = vadd.f32 %v2274, %v2280
      %v2311 = vadd.f32 %v2275, %v2280
      %v2312 = vadd.f32 %v2276, %v2280
      %v2313 = vadd.f32 %v2277, %v2280
      %v2314 = vld [vmem:[%s9] sm:$0xff]
      %v2315 = vld [vmem:[%s9 + $0x8] sm:$0xff]
      %v2316 = vld [vmem:[%s9 + $0x10] sm:$0xff]
      %v2317 = vld [vmem:[%s9 + $0x18] sm:$0xff]
      %v2318 = vld [vmem:[%s10] sm:$0x1]
      %v2320 = vperm.slane %v2318, 0
      %v2323 = vsel %vm1257, %v2282, 0
      %v2326 = vsel %vm1257, %v2283, 0
      %v2329 = vsel %vm1257, %v2284, 0
      %v2332 = vsel %vm1257, %v2285, 0
      %v2335 = vsel %vm1257, %v2286, 0
      %v2338 = vsel %vm1257, %v2287, 0
      %v2341 = vsel %vm1257, %v2288, 0
      %v2344 = vsel %vm1257, %v2289, 0
      %v2347 = vsel %vm1257, %v2290, 0
      %v2350 = vsel %vm1257, %v2291, 0
      %v2353 = vsel %vm1257, %v2292, 0
      %v2356 = vsel %vm1257, %v2293, 0
      %v2359 = vsel %vm1257, %v2294, 0
      %v2362 = vsel %vm1257, %v2295, 0
      %v2365 = vsel %vm1257, %v2296, 0
      %v2368 = vsel %vm1257, %v2297, 0
      %v2371 = vsel %vm1257, %v2298, 0
      %v2374 = vsel %vm1257, %v2299, 0
      %v2377 = vsel %vm1257, %v2300, 0
      %v2380 = vsel %vm1257, %v2301, 0
      %v2383 = vsel %vm1257, %v2302, 0
      %v2386 = vsel %vm1257, %v2303, 0
      %v2389 = vsel %vm1257, %v2304, 0
      %v2392 = vsel %vm1257, %v2305, 0
      %v2395 = vsel %vm1257, %v2306, 0
      %v2398 = vsel %vm1257, %v2307, 0
      %v2401 = vsel %vm1257, %v2308, 0
      %v2404 = vsel %vm1257, %v2309, 0
      %v2407 = vsel %vm1257, %v2310, 0
      %v2410 = vsel %vm1257, %v2311, 0
      %v2413 = vsel %vm1257, %v2312, 0
      %v2416 = vsel %vm1257, %v2313, 0
      %2418 = vmatpush.msra.mxu0 0.0
      %2419 = vmatpush.msra.mxu0 0.0
      %2420 = vmatpush.msra.mxu0 0.0
      %2421 = vmatpush.msra.mxu0 0.0
      %2422 = vmatpush.msra.mxu0 0.0
      %2423 = vmatpush.msra.mxu0 0.0
      %2424 = vmatpush.msra.mxu0 0.0
      %2425 = vmatpush.msra.mxu0 0.0
      %2426 = vmatpush.msra.mxu0 0.0
      %2427 = vmatpush.msra.mxu0 0.0
      %2428 = vmatpush.msra.mxu0 0.0
      %2429 = vmatpush.msra.mxu0 0.0
      %2430 = vmatpush.msra.mxu0 %v2317
      %2431 = vmatpush.msra.mxu0 %v2316
      %2432 = vmatpush.msra.mxu0 %v2315
      %2433 = vmatpush.msra.mxu0 %v2314
      %2434 = vmatmul.f32.gmra.mxu0 %v2323
      %v2435 = vpop.f32.mrf.mxu0
      %v2436 = vadd.f32 %v2320, %v2435
      %2437 = vmatmul.f32.gmra.mxu0 %v2326
      %v2438 = vpop.f32.mrf.mxu0
      %v2439 = vadd.f32 %v2320, %v2438
      %2440 = vmatmul.f32.gmra.mxu0 %v2329
      %v2441 = vpop.f32.mrf.mxu0
      %v2442 = vadd.f32 %v2320, %v2441
      %2443 = vmatmul.f32.gmra.mxu0 %v2332
      %v2444 = vpop.f32.mrf.mxu0
      %v2445 = vadd.f32 %v2320, %v2444
      %2446 = vmatmul.f32.gmra.mxu0 %v2335
      %v2447 = vpop.f32.mrf.mxu0
      %v2448 = vadd.f32 %v2320, %v2447
      %2449 = vmatmul.f32.gmra.mxu0 %v2338
      %v2450 = vpop.f32.mrf.mxu0
      %v2451 = vadd.f32 %v2320, %v2450
      %2452 = vmatmul.f32.gmra.mxu0 %v2341
      %v2453 = vpop.f32.mrf.mxu0
      %v2454 = vadd.f32 %v2320, %v2453
      %2455 = vmatmul.f32.gmra.mxu0 %v2344
      %v2456 = vpop.f32.mrf.mxu0
      %v2457 = vadd.f32 %v2320, %v2456
      %2458 = vmatmul.f32.gmra.mxu0 %v2347
      %v2459 = vpop.f32.mrf.mxu0
      %v2460 = vadd.f32 %v2320, %v2459
      %2461 = vmatmul.f32.gmra.mxu0 %v2350
      %v2462 = vpop.f32.mrf.mxu0
      %v2463 = vadd.f32 %v2320, %v2462
      %2464 = vmatmul.f32.gmra.mxu0 %v2353
      %v2465 = vpop.f32.mrf.mxu0
      %v2466 = vadd.f32 %v2320, %v2465
      %2467 = vmatmul.f32.gmra.mxu0 %v2356
      %v2468 = vpop.f32.mrf.mxu0
      %v2469 = vadd.f32 %v2320, %v2468
      %2470 = vmatmul.f32.gmra.mxu0 %v2359
      %v2471 = vpop.f32.mrf.mxu0
      %v2472 = vadd.f32 %v2320, %v2471
      %2473 = vmatmul.f32.gmra.mxu0 %v2362
      %v2474 = vpop.f32.mrf.mxu0
      %v2475 = vadd.f32 %v2320, %v2474
      %2476 = vmatmul.f32.gmra.mxu0 %v2365
      %v2477 = vpop.f32.mrf.mxu0
      %v2478 = vadd.f32 %v2320, %v2477
      %2479 = vmatmul.f32.gmra.mxu0 %v2368
      %v2480 = vpop.f32.mrf.mxu0
      %v2481 = vadd.f32 %v2320, %v2480
      %2482 = vmatmul.f32.gmra.mxu0 %v2371
      %v2483 = vpop.f32.mrf.mxu0
      %v2484 = vadd.f32 %v2320, %v2483
      %2485 = vmatmul.f32.gmra.mxu0 %v2374
      %v2486 = vpop.f32.mrf.mxu0
      %v2487 = vadd.f32 %v2320, %v2486
      %2488 = vmatmul.f32.gmra.mxu0 %v2377
      %v2489 = vpop.f32.mrf.mxu0
      %v2490 = vadd.f32 %v2320, %v2489
      %2491 = vmatmul.f32.gmra.mxu0 %v2380
      %v2492 = vpop.f32.mrf.mxu0
      %v2493 = vadd.f32 %v2320, %v2492
      %2494 = vmatmul.f32.gmra.mxu0 %v2383
      %v2495 = vpop.f32.mrf.mxu0
      %v2496 = vadd.f32 %v2320, %v2495
      %2497 = vmatmul.f32.gmra.mxu0 %v2386
      %v2498 = vpop.f32.mrf.mxu0
      %v2499 = vadd.f32 %v2320, %v2498
      %2500 = vmatmul.f32.gmra.mxu0 %v2389
      %v2501 = vpop.f32.mrf.mxu0
      %v2502 = vadd.f32 %v2320, %v2501
      %2503 = vmatmul.f32.gmra.mxu0 %v2392
      %v2504 = vpop.f32.mrf.mxu0
      %v2505 = vadd.f32 %v2320, %v2504
      %2506 = vmatmul.f32.gmra.mxu0 %v2395
      %v2507 = vpop.f32.mrf.mxu0
      %v2508 = vadd.f32 %v2320, %v2507
      %2509 = vmatmul.f32.gmra.mxu0 %v2398
      %v2510 = vpop.f32.mrf.mxu0
      %v2511 = vadd.f32 %v2320, %v2510
      %2512 = vmatmul.f32.gmra.mxu0 %v2401
      %v2513 = vpop.f32.mrf.mxu0
      %v2514 = vadd.f32 %v2320, %v2513
      %2515 = vmatmul.f32.gmra.mxu0 %v2404
      %v2516 = vpop.f32.mrf.mxu0
      %v2517 = vadd.f32 %v2320, %v2516
      %2518 = vmatmul.f32.gmra.mxu0 %v2407
      %v2519 = vpop.f32.mrf.mxu0
      %v2520 = vadd.f32 %v2320, %v2519
      %2521 = vmatmul.f32.gmra.mxu0 %v2410
      %v2522 = vpop.f32.mrf.mxu0
      %v2523 = vadd.f32 %v2320, %v2522
      %2524 = vmatmul.f32.gmra.mxu0 %v2413
      %v2525 = vpop.f32.mrf.mxu0
      %v2526 = vadd.f32 %v2320, %v2525
      %2527 = vmatmul.f32.gmra.mxu0 %v2416
      %v2528 = vpop.f32.mrf.mxu0
      %v2529 = vadd.f32 %v2320, %v2528
      %2530 = vdwg.mxu0
      %2563 = vrot.lane.b32.xlu0 %v2436, 120
      %v2564 = vpop.permute.xlu0 %2563
      %2565 = vrot.lane.b32.xlu0 %v2439, 120
      %v2566 = vpop.permute.xlu0 %2565
      %2567 = vrot.lane.b32.xlu0 %v2442, 120
      %v2568 = vpop.permute.xlu0 %2567
      %2569 = vrot.lane.b32.xlu0 %v2445, 120
      %v2570 = vpop.permute.xlu0 %2569
      %2571 = vrot.lane.b32.xlu0 %v2448, 120
      %v2572 = vpop.permute.xlu0 %2571
      %2573 = vrot.lane.b32.xlu0 %v2451, 120
      %v2574 = vpop.permute.xlu0 %2573
      %2575 = vrot.lane.b32.xlu0 %v2454, 120
      %v2576 = vpop.permute.xlu0 %2575
      %2577 = vrot.lane.b32.xlu0 %v2457, 120
      %v2578 = vpop.permute.xlu0 %2577
      %2579 = vrot.lane.b32.xlu0 %v2460, 120
      %v2580 = vpop.permute.xlu0 %2579
      %2581 = vrot.lane.b32.xlu0 %v2463, 120
      %v2582 = vpop.permute.xlu0 %2581
      %2583 = vrot.lane.b32.xlu0 %v2466, 120
      %v2584 = vpop.permute.xlu0 %2583
      %2585 = vrot.lane.b32.xlu0 %v2469, 120
      %v2586 = vpop.permute.xlu0 %2585
      %2587 = vrot.lane.b32.xlu0 %v2472, 120
      %v2588 = vpop.permute.xlu0 %2587
      %2589 = vrot.lane.b32.xlu0 %v2475, 120
      %v2590 = vpop.permute.xlu0 %2589
      %2591 = vrot.lane.b32.xlu0 %v2478, 120
      %v2592 = vpop.permute.xlu0 %2591
      %2593 = vrot.lane.b32.xlu0 %v2481, 120
      %v2594 = vpop.permute.xlu0 %2593
      %2595 = vrot.lane.b32.xlu0 %v2484, 120
      %v2596 = vpop.permute.xlu0 %2595
      %2597 = vrot.lane.b32.xlu0 %v2487, 120
      %v2598 = vpop.permute.xlu0 %2597
      %2599 = vrot.lane.b32.xlu0 %v2490, 120
      %v2600 = vpop.permute.xlu0 %2599
      %2601 = vrot.lane.b32.xlu0 %v2493, 120
      %v2602 = vpop.permute.xlu0 %2601
      %2603 = vrot.lane.b32.xlu0 %v2496, 120
      %v2604 = vpop.permute.xlu0 %2603
      %2605 = vrot.lane.b32.xlu0 %v2499, 120
      %v2606 = vpop.permute.xlu0 %2605
      %2607 = vrot.lane.b32.xlu0 %v2502, 120
      %v2608 = vpop.permute.xlu0 %2607
      %2609 = vrot.lane.b32.xlu0 %v2505, 120
      %v2610 = vpop.permute.xlu0 %2609
      %2611 = vrot.lane.b32.xlu0 %v2508, 120
      %v2612 = vpop.permute.xlu0 %2611
      %2613 = vrot.lane.b32.xlu0 %v2511, 120
      %v2614 = vpop.permute.xlu0 %2613
      %2615 = vrot.lane.b32.xlu0 %v2514, 120
      %v2616 = vpop.permute.xlu0 %2615
      %2617 = vrot.lane.b32.xlu0 %v2517, 120
      %v2618 = vpop.permute.xlu0 %2617
      %2619 = vrot.lane.b32.xlu0 %v2520, 120
      %v2620 = vpop.permute.xlu0 %2619
      %2621 = vrot.lane.b32.xlu0 %v2523, 120
      %v2622 = vpop.permute.xlu0 %2621
      %2623 = vrot.lane.b32.xlu0 %v2526, 120
      %v2624 = vpop.permute.xlu0 %2623
      %2625 = vrot.lane.b32.xlu0 %v2529, 120
      %v2626 = vpop.permute.xlu0 %2625
      %2627 = vrot.lane.b32.xlu0 %v2436, 112
      %v2628 = vpop.permute.xlu0 %2627
      %2629 = vrot.lane.b32.xlu0 %v2439, 112
      %v2630 = vpop.permute.xlu0 %2629
      %2631 = vrot.lane.b32.xlu0 %v2442, 112
      %v2632 = vpop.permute.xlu0 %2631
      %2633 = vrot.lane.b32.xlu0 %v2445, 112
      %v2634 = vpop.permute.xlu0 %2633
      %2635 = vrot.lane.b32.xlu0 %v2448, 112
      %v2636 = vpop.permute.xlu0 %2635
      %2637 = vrot.lane.b32.xlu0 %v2451, 112
      %v2638 = vpop.permute.xlu0 %2637
      %2639 = vrot.lane.b32.xlu0 %v2454, 112
      %v2640 = vpop.permute.xlu0 %2639
      %2641 = vrot.lane.b32.xlu0 %v2457, 112
      %v2642 = vpop.permute.xlu0 %2641
      %2643 = vrot.lane.b32.xlu0 %v2460, 112
      %v2644 = vpop.permute.xlu0 %2643
      %2645 = vrot.lane.b32.xlu0 %v2463, 112
      %v2646 = vpop.permute.xlu0 %2645
      %2647 = vrot.lane.b32.xlu0 %v2466, 112
      %v2648 = vpop.permute.xlu0 %2647
      %2649 = vrot.lane.b32.xlu0 %v2469, 112
      %v2650 = vpop.permute.xlu0 %2649
      %2651 = vrot.lane.b32.xlu0 %v2472, 112
      %v2652 = vpop.permute.xlu0 %2651
      %2653 = vrot.lane.b32.xlu0 %v2475, 112
      %v2654 = vpop.permute.xlu0 %2653
      %2655 = vrot.lane.b32.xlu0 %v2478, 112
      %v2656 = vpop.permute.xlu0 %2655
      %2657 = vrot.lane.b32.xlu0 %v2481, 112
      %v2658 = vpop.permute.xlu0 %2657
      %2659 = vrot.lane.b32.xlu0 %v2484, 112
      %v2660 = vpop.permute.xlu0 %2659
      %2661 = vrot.lane.b32.xlu0 %v2487, 112
      %v2662 = vpop.permute.xlu0 %2661
      %2663 = vrot.lane.b32.xlu0 %v2490, 112
      %v2664 = vpop.permute.xlu0 %2663
      %2665 = vrot.lane.b32.xlu0 %v2493, 112
      %v2666 = vpop.permute.xlu0 %2665
      %2667 = vrot.lane.b32.xlu0 %v2496, 112
      %v2668 = vpop.permute.xlu0 %2667
      %2669 = vrot.lane.b32.xlu0 %v2499, 112
      %v2670 = vpop.permute.xlu0 %2669
      %2671 = vrot.lane.b32.xlu0 %v2502, 112
      %v2672 = vpop.permute.xlu0 %2671
      %2673 = vrot.lane.b32.xlu0 %v2505, 112
      %v2674 = vpop.permute.xlu0 %2673
      %2675 = vrot.lane.b32.xlu0 %v2508, 112
      %v2676 = vpop.permute.xlu0 %2675
      %2677 = vrot.lane.b32.xlu0 %v2511, 112
      %v2678 = vpop.permute.xlu0 %2677
      %2679 = vrot.lane.b32.xlu0 %v2514, 112
      %v2680 = vpop.permute.xlu0 %2679
      %2681 = vrot.lane.b32.xlu0 %v2517, 112
      %v2682 = vpop.permute.xlu0 %2681
      %2683 = vrot.lane.b32.xlu0 %v2520, 112
      %v2684 = vpop.permute.xlu0 %2683
      %2685 = vrot.lane.b32.xlu0 %v2523, 112
      %v2686 = vpop.permute.xlu0 %2685
      %2687 = vrot.lane.b32.xlu0 %v2526, 112
      %v2688 = vpop.permute.xlu0 %2687
      %2689 = vrot.lane.b32.xlu0 %v2529, 112
      %v2690 = vpop.permute.xlu0 %2689
      %2691 = vrot.lane.b32.xlu0 %v2436, 104
      %v2692 = vpop.permute.xlu0 %2691
      %2693 = vrot.lane.b32.xlu0 %v2439, 104
      %v2694 = vpop.permute.xlu0 %2693
      %2695 = vrot.lane.b32.xlu0 %v2442, 104
      %v2696 = vpop.permute.xlu0 %2695
      %2697 = vrot.lane.b32.xlu0 %v2445, 104
      %v2698 = vpop.permute.xlu0 %2697
      %2699 = vrot.lane.b32.xlu0 %v2448, 104
      %v2700 = vpop.permute.xlu0 %2699
      %2701 = vrot.lane.b32.xlu0 %v2451, 104
      %v2702 = vpop.permute.xlu0 %2701
      %2703 = vrot.lane.b32.xlu0 %v2454, 104
      %v2704 = vpop.permute.xlu0 %2703
      %2705 = vrot.lane.b32.xlu0 %v2457, 104
      %v2706 = vpop.permute.xlu0 %2705
      %2707 = vrot.lane.b32.xlu0 %v2460, 104
      %v2708 = vpop.permute.xlu0 %2707
      %2709 = vrot.lane.b32.xlu0 %v2463, 104
      %v2710 = vpop.permute.xlu0 %2709
      %2711 = vrot.lane.b32.xlu0 %v2466, 104
      %v2712 = vpop.permute.xlu0 %2711
      %2713 = vrot.lane.b32.xlu0 %v2469, 104
      %v2714 = vpop.permute.xlu0 %2713
      %2715 = vrot.lane.b32.xlu0 %v2472, 104
      %v2716 = vpop.permute.xlu0 %2715
      %2717 = vrot.lane.b32.xlu0 %v2475, 104
      %v2718 = vpop.permute.xlu0 %2717
      %2719 = vrot.lane.b32.xlu0 %v2478, 104
      %v2720 = vpop.permute.xlu0 %2719
      %2721 = vrot.lane.b32.xlu0 %v2481, 104
      %v2722 = vpop.permute.xlu0 %2721
      %2723 = vrot.lane.b32.xlu0 %v2484, 104
      %v2724 = vpop.permute.xlu0 %2723
      %2725 = vrot.lane.b32.xlu0 %v2487, 104
      %v2726 = vpop.permute.xlu0 %2725
      %2727 = vrot.lane.b32.xlu0 %v2490, 104
      %v2728 = vpop.permute.xlu0 %2727
      %2729 = vrot.lane.b32.xlu0 %v2493, 104
      %v2730 = vpop.permute.xlu0 %2729
      %2731 = vrot.lane.b32.xlu0 %v2496, 104
      %v2732 = vpop.permute.xlu0 %2731
      %2733 = vrot.lane.b32.xlu0 %v2499, 104
      %v2734 = vpop.permute.xlu0 %2733
      %2735 = vrot.lane.b32.xlu0 %v2502, 104
      %v2736 = vpop.permute.xlu0 %2735
      %2737 = vrot.lane.b32.xlu0 %v2505, 104
      %v2738 = vpop.permute.xlu0 %2737
      %2739 = vrot.lane.b32.xlu0 %v2508, 104
      %v2740 = vpop.permute.xlu0 %2739
      %2741 = vrot.lane.b32.xlu0 %v2511, 104
      %v2742 = vpop.permute.xlu0 %2741
      %2743 = vrot.lane.b32.xlu0 %v2514, 104
      %v2744 = vpop.permute.xlu0 %2743
      %2745 = vrot.lane.b32.xlu0 %v2517, 104
      %v2746 = vpop.permute.xlu0 %2745
      %2747 = vrot.lane.b32.xlu0 %v2520, 104
      %v2748 = vpop.permute.xlu0 %2747
      %2749 = vrot.lane.b32.xlu0 %v2523, 104
      %v2750 = vpop.permute.xlu0 %2749
      %2751 = vrot.lane.b32.xlu0 %v2526, 104
      %v2752 = vpop.permute.xlu0 %2751
      %2753 = vrot.lane.b32.xlu0 %v2529, 104
      %v2754 = vpop.permute.xlu0 %2753
      %2755 = vrot.lane.b32.xlu0 %v2436, 96
      %v2756 = vpop.permute.xlu0 %2755
      %2757 = vrot.lane.b32.xlu0 %v2439, 96
      %v2758 = vpop.permute.xlu0 %2757
      %vm2759 = vcmask 64512
      %v2760 = vsel %vm2759, %v2436, 0
      %v2762 = vsel %vm2759, %v2439, 0
      %v2764 = vsel %vm2759, %v2756, 0
      %v2766 = vsel %vm2759, %v2758, 0
      %2768 = vmatpush.xpose.msra.mxu0 0.0
      %2769 = vmatpush.xpose.msra.mxu0 0.0
      %2770 = vmatpush.xpose.msra.mxu0 0.0
      %2771 = vmatpush.xpose.msra.mxu0 0.0
      %2772 = vmatpush.xpose.msra.mxu0 0.0
      %2773 = vmatpush.xpose.msra.mxu0 0.0
      %2774 = vmatpush.xpose.msra.mxu0 0.0
      %2775 = vmatpush.xpose.msra.mxu0 0.0
      %2776 = vmatpush.xpose.msra.mxu0 0.0
      %2777 = vmatpush.xpose.msra.mxu0 0.0
      %2778 = vmatpush.xpose.msra.mxu0 0.0
      %2779 = vmatpush.xpose.msra.mxu0 0.0
      %2780 = vmatpush.xpose.msra.mxu0 0.0
      %2781 = vmatpush.xpose.msra.mxu0 0.0
      %2782 = vmatpush.xpose.msra.mxu0 %v2766
      %2783 = vmatpush.xpose.msra.mxu0 %v2764
      %2784 = vmatmul.f32.gmra.mxu0 %v2760
      %v2785 = vpop.f32.mrf.mxu0
      %v2786 = vadd.f32 0.0, %v2785
      %2787 = vmatmul.f32.gmra.mxu0 %v2762
      %v2788 = vpop.f32.mrf.mxu0
      %v2789 = vadd.f32 0.0, %v2788
      %2790 = vdwg.mxu0
      %2791 = vrot.lane.b32.xlu0 %v2564, 96
      %v2792 = vpop.permute.xlu0 %2791
      %2793 = vrot.lane.b32.xlu0 %v2566, 96
      %v2794 = vpop.permute.xlu0 %2793
      %v2795 = vsel %vm2759, %v2564, 0
      %v2797 = vsel %vm2759, %v2566, 0
      %v2799 = vsel %vm2759, %v2792, 0
      %v2801 = vsel %vm2759, %v2794, 0
      %2803 = vmatpush.xpose.msra.mxu0 0.0
      %2804 = vmatpush.xpose.msra.mxu0 0.0
      %2805 = vmatpush.xpose.msra.mxu0 0.0
      %2806 = vmatpush.xpose.msra.mxu0 0.0
      %2807 = vmatpush.xpose.msra.mxu0 0.0
      %2808 = vmatpush.xpose.msra.mxu0 0.0
      %2809 = vmatpush.xpose.msra.mxu0 0.0
      %2810 = vmatpush.xpose.msra.mxu0 0.0
      %2811 = vmatpush.xpose.msra.mxu0 0.0
      %2812 = vmatpush.xpose.msra.mxu0 0.0
      %2813 = vmatpush.xpose.msra.mxu0 0.0
      %2814 = vmatpush.xpose.msra.mxu0 0.0
      %2815 = vmatpush.xpose.msra.mxu0 0.0
      %2816 = vmatpush.xpose.msra.mxu0 0.0
      %2817 = vmatpush.xpose.msra.mxu0 %v2801
      %2818 = vmatpush.xpose.msra.mxu0 %v2799
      %2819 = vmatmul.f32.gmra.mxu0 %v2795
      %v2820 = vpop.f32.mrf.mxu0
      %v2821 = vadd.f32 0.0, %v2820
      %2822 = vmatmul.f32.gmra.mxu0 %v2797
      %v2823 = vpop.f32.mrf.mxu0
      %v2824 = vadd.f32 0.0, %v2823
      %2825 = vdwg.mxu0
      %2826 = vrot.lane.b32.xlu0 %v2628, 96
      %v2827 = vpop.permute.xlu0 %2826
      %2828 = vrot.lane.b32.xlu0 %v2630, 96
      %v2829 = vpop.permute.xlu0 %2828
      %v2830 = vsel %vm2759, %v2628, 0
      %v2832 = vsel %vm2759, %v2630, 0
      %v2834 = vsel %vm2759, %v2827, 0
      %v2836 = vsel %vm2759, %v2829, 0
      %2838 = vmatpush.xpose.msra.mxu0 0.0
      %2839 = vmatpush.xpose.msra.mxu0 0.0
      %2840 = vmatpush.xpose.msra.mxu0 0.0
      %2841 = vmatpush.xpose.msra.mxu0 0.0
      %2842 = vmatpush.xpose.msra.mxu0 0.0
      %2843 = vmatpush.xpose.msra.mxu0 0.0
      %2844 = vmatpush.xpose.msra.mxu0 0.0
      %2845 = vmatpush.xpose.msra.mxu0 0.0
      %2846 = vmatpush.xpose.msra.mxu0 0.0
      %2847 = vmatpush.xpose.msra.mxu0 0.0
      %2848 = vmatpush.xpose.msra.mxu0 0.0
      %2849 = vmatpush.xpose.msra.mxu0 0.0
      %2850 = vmatpush.xpose.msra.mxu0 0.0
      %2851 = vmatpush.xpose.msra.mxu0 0.0
      %2852 = vmatpush.xpose.msra.mxu0 %v2836
      %2853 = vmatpush.xpose.msra.mxu0 %v2834
      %2854 = vmatmul.f32.gmra.mxu0 %v2830
      %v2855 = vpop.f32.mrf.mxu0
      %v2856 = vadd.f32 0.0, %v2855
      %2857 = vmatmul.f32.gmra.mxu0 %v2832
      %v2858 = vpop.f32.mrf.mxu0
      %v2859 = vadd.f32 0.0, %v2858
      %2860 = vdwg.mxu0
      %2861 = vrot.lane.b32.xlu0 %v2692, 96
      %v2862 = vpop.permute.xlu0 %2861
      %2863 = vrot.lane.b32.xlu0 %v2694, 96
      %v2864 = vpop.permute.xlu0 %2863
      %v2865 = vsel %vm2759, %v2692, 0
      %v2867 = vsel %vm2759, %v2694, 0
      %v2869 = vsel %vm2759, %v2862, 0
      %v2871 = vsel %vm2759, %v2864, 0
      %2873 = vmatpush.xpose.msra.mxu0 0.0
      %2874 = vmatpush.xpose.msra.mxu0 0.0
      %2875 = vmatpush.xpose.msra.mxu0 0.0
      %2876 = vmatpush.xpose.msra.mxu0 0.0
      %2877 = vmatpush.xpose.msra.mxu0 0.0
      %2878 = vmatpush.xpose.msra.mxu0 0.0
      %2879 = vmatpush.xpose.msra.mxu0 0.0
      %2880 = vmatpush.xpose.msra.mxu0 0.0
      %2881 = vmatpush.xpose.msra.mxu0 0.0
      %2882 = vmatpush.xpose.msra.mxu0 0.0
      %2883 = vmatpush.xpose.msra.mxu0 0.0
      %2884 = vmatpush.xpose.msra.mxu0 0.0
      %2885 = vmatpush.xpose.msra.mxu0 0.0
      %2886 = vmatpush.xpose.msra.mxu0 0.0
      %2887 = vmatpush.xpose.msra.mxu0 %v2871
      %2888 = vmatpush.xpose.msra.mxu0 %v2869
      %2889 = vmatmul.f32.gmra.mxu0 %v2865
      %v2890 = vpop.f32.mrf.mxu0
      %v2891 = vadd.f32 0.0, %v2890
      %2892 = vmatmul.f32.gmra.mxu0 %v2867
      %v2893 = vpop.f32.mrf.mxu0
      %v2894 = vadd.f32 0.0, %v2893
      %2895 = vdwg.mxu0
      %2896 = vrot.lane.b32.xlu0 %v2442, 96
      %v2897 = vpop.permute.xlu0 %2896
      %2898 = vrot.lane.b32.xlu0 %v2445, 96
      %v2899 = vpop.permute.xlu0 %2898
      %v2900 = vsel %vm2759, %v2442, 0
      %v2902 = vsel %vm2759, %v2445, 0
      %v2904 = vsel %vm2759, %v2897, 0
      %v2906 = vsel %vm2759, %v2899, 0
      %2908 = vmatpush.xpose.msra.mxu0 0.0
      %2909 = vmatpush.xpose.msra.mxu0 0.0
      %2910 = vmatpush.xpose.msra.mxu0 0.0
      %2911 = vmatpush.xpose.msra.mxu0 0.0
      %2912 = vmatpush.xpose.msra.mxu0 0.0
      %2913 = vmatpush.xpose.msra.mxu0 0.0
      %2914 = vmatpush.xpose.msra.mxu0 0.0
      %2915 = vmatpush.xpose.msra.mxu0 0.0
      %2916 = vmatpush.xpose.msra.mxu0 0.0
      %2917 = vmatpush.xpose.msra.mxu0 0.0
      %2918 = vmatpush.xpose.msra.mxu0 0.0
      %2919 = vmatpush.xpose.msra.mxu0 0.0
      %2920 = vmatpush.xpose.msra.mxu0 0.0
      %2921 = vmatpush.xpose.msra.mxu0 0.0
      %2922 = vmatpush.xpose.msra.mxu0 %v2906
      %2923 = vmatpush.xpose.msra.mxu0 %v2904
      %2924 = vmatmul.f32.gmra.mxu0 %v2900
      %v2925 = vpop.f32.mrf.mxu0
      %v2926 = vadd.f32 0.0, %v2925
      %2927 = vmatmul.f32.gmra.mxu0 %v2902
      %v2928 = vpop.f32.mrf.mxu0
      %v2929 = vadd.f32 0.0, %v2928
      %2930 = vdwg.mxu0
      %2931 = vrot.lane.b32.xlu0 %v2568, 96
      %v2932 = vpop.permute.xlu0 %2931
      %2933 = vrot.lane.b32.xlu0 %v2570, 96
      %v2934 = vpop.permute.xlu0 %2933
      %v2935 = vsel %vm2759, %v2568, 0
      %v2937 = vsel %vm2759, %v2570, 0
      %v2939 = vsel %vm2759, %v2932, 0
      %v2941 = vsel %vm2759, %v2934, 0
      %2943 = vmatpush.xpose.msra.mxu0 0.0
      %2944 = vmatpush.xpose.msra.mxu0 0.0
      %2945 = vmatpush.xpose.msra.mxu0 0.0
      %2946 = vmatpush.xpose.msra.mxu0 0.0
      %2947 = vmatpush.xpose.msra.mxu0 0.0
      %2948 = vmatpush.xpose.msra.mxu0 0.0
      %2949 = vmatpush.xpose.msra.mxu0 0.0
      %2950 = vmatpush.xpose.msra.mxu0 0.0
      %2951 = vmatpush.xpose.msra.mxu0 0.0
      %2952 = vmatpush.xpose.msra.mxu0 0.0
      %2953 = vmatpush.xpose.msra.mxu0 0.0
      %2954 = vmatpush.xpose.msra.mxu0 0.0
      %2955 = vmatpush.xpose.msra.mxu0 0.0
      %2956 = vmatpush.xpose.msra.mxu0 0.0
      %2957 = vmatpush.xpose.msra.mxu0 %v2941
      %2958 = vmatpush.xpose.msra.mxu0 %v2939
      %2959 = vmatmul.f32.gmra.mxu0 %v2935
      %v2960 = vpop.f32.mrf.mxu0
      %v2961 = vadd.f32 0.0, %v2960
      %2962 = vmatmul.f32.gmra.mxu0 %v2937
      %v2963 = vpop.f32.mrf.mxu0
      %v2964 = vadd.f32 0.0, %v2963
      %2965 = vdwg.mxu0
      %2966 = vrot.lane.b32.xlu0 %v2632, 96
      %v2967 = vpop.permute.xlu0 %2966
      %2968 = vrot.lane.b32.xlu0 %v2634, 96
      %v2969 = vpop.permute.xlu0 %2968
      %v2970 = vsel %vm2759, %v2632, 0
      %v2972 = vsel %vm2759, %v2634, 0
      %v2974 = vsel %vm2759, %v2967, 0
      %v2976 = vsel %vm2759, %v2969, 0
      %2978 = vmatpush.xpose.msra.mxu0 0.0
      %2979 = vmatpush.xpose.msra.mxu0 0.0
      %2980 = vmatpush.xpose.msra.mxu0 0.0
      %2981 = vmatpush.xpose.msra.mxu0 0.0
      %2982 = vmatpush.xpose.msra.mxu0 0.0
      %2983 = vmatpush.xpose.msra.mxu0 0.0
      %2984 = vmatpush.xpose.msra.mxu0 0.0
      %2985 = vmatpush.xpose.msra.mxu0 0.0
      %2986 = vmatpush.xpose.msra.mxu0 0.0
      %2987 = vmatpush.xpose.msra.mxu0 0.0
      %2988 = vmatpush.xpose.msra.mxu0 0.0
      %2989 = vmatpush.xpose.msra.mxu0 0.0
      %2990 = vmatpush.xpose.msra.mxu0 0.0
      %2991 = vmatpush.xpose.msra.mxu0 0.0
      %2992 = vmatpush.xpose.msra.mxu0 %v2976
      %2993 = vmatpush.xpose.msra.mxu0 %v2974
      %2994 = vmatmul.f32.gmra.mxu0 %v2970
      %v2995 = vpop.f32.mrf.mxu0
      %v2996 = vadd.f32 0.0, %v2995
      %2997 = vmatmul.f32.gmra.mxu0 %v2972
      %v2998 = vpop.f32.mrf.mxu0
      %v2999 = vadd.f32 0.0, %v2998
      %3000 = vdwg.mxu0
      %3001 = vrot.lane.b32.xlu0 %v2696, 96
      %v3002 = vpop.permute.xlu0 %3001
      %3003 = vrot.lane.b32.xlu0 %v2698, 96
      %v3004 = vpop.permute.xlu0 %3003
      %v3005 = vsel %vm2759, %v2696, 0
      %v3007 = vsel %vm2759, %v2698, 0
      %v3009 = vsel %vm2759, %v3002, 0
      %v3011 = vsel %vm2759, %v3004, 0
      %3013 = vmatpush.xpose.msra.mxu0 0.0
      %3014 = vmatpush.xpose.msra.mxu0 0.0
      %3015 = vmatpush.xpose.msra.mxu0 0.0
      %3016 = vmatpush.xpose.msra.mxu0 0.0
      %3017 = vmatpush.xpose.msra.mxu0 0.0
      %3018 = vmatpush.xpose.msra.mxu0 0.0
      %3019 = vmatpush.xpose.msra.mxu0 0.0
      %3020 = vmatpush.xpose.msra.mxu0 0.0
      %3021 = vmatpush.xpose.msra.mxu0 0.0
      %3022 = vmatpush.xpose.msra.mxu0 0.0
      %3023 = vmatpush.xpose.msra.mxu0 0.0
      %3024 = vmatpush.xpose.msra.mxu0 0.0
      %3025 = vmatpush.xpose.msra.mxu0 0.0
      %3026 = vmatpush.xpose.msra.mxu0 0.0
      %3027 = vmatpush.xpose.msra.mxu0 %v3011
      %3028 = vmatpush.xpose.msra.mxu0 %v3009
      %3029 = vmatmul.f32.gmra.mxu0 %v3005
      %v3030 = vpop.f32.mrf.mxu0
      %v3031 = vadd.f32 0.0, %v3030
      %3032 = vmatmul.f32.gmra.mxu0 %v3007
      %v3033 = vpop.f32.mrf.mxu0
      %v3034 = vadd.f32 0.0, %v3033
      %3035 = vdwg.mxu0
      %3036 = vrot.lane.b32.xlu0 %v2448, 96
      %v3037 = vpop.permute.xlu0 %3036
      %3038 = vrot.lane.b32.xlu0 %v2451, 96
      %v3039 = vpop.permute.xlu0 %3038
      %v3040 = vsel %vm2759, %v2448, 0
      %v3042 = vsel %vm2759, %v2451, 0
      %v3044 = vsel %vm2759, %v3037, 0
      %v3046 = vsel %vm2759, %v3039, 0
      %3048 = vmatpush.xpose.msra.mxu0 0.0
      %3049 = vmatpush.xpose.msra.mxu0 0.0
      %3050 = vmatpush.xpose.msra.mxu0 0.0
      %3051 = vmatpush.xpose.msra.mxu0 0.0
      %3052 = vmatpush.xpose.msra.mxu0 0.0
      %3053 = vmatpush.xpose.msra.mxu0 0.0
      %3054 = vmatpush.xpose.msra.mxu0 0.0
      %3055 = vmatpush.xpose.msra.mxu0 0.0
      %3056 = vmatpush.xpose.msra.mxu0 0.0
      %3057 = vmatpush.xpose.msra.mxu0 0.0
      %3058 = vmatpush.xpose.msra.mxu0 0.0
      %3059 = vmatpush.xpose.msra.mxu0 0.0
      %3060 = vmatpush.xpose.msra.mxu0 0.0
      %3061 = vmatpush.xpose.msra.mxu0 0.0
      %3062 = vmatpush.xpose.msra.mxu0 %v3046
      %3063 = vmatpush.xpose.msra.mxu0 %v3044
      %3064 = vmatmul.f32.gmra.mxu0 %v3040
      %v3065 = vpop.f32.mrf.mxu0
      %v3066 = vadd.f32 0.0, %v3065
      %3067 = vmatmul.f32.gmra.mxu0 %v3042
      %v3068 = vpop.f32.mrf.mxu0
      %v3069 = vadd.f32 0.0, %v3068
      %3070 = vdwg.mxu0
      %3071 = vrot.lane.b32.xlu0 %v2572, 96
      %v3072 = vpop.permute.xlu0 %3071
      %3073 = vrot.lane.b32.xlu0 %v2574, 96
      %v3074 = vpop.permute.xlu0 %3073
      %v3075 = vsel %vm2759, %v2572, 0
      %v3077 = vsel %vm2759, %v2574, 0
      %v3079 = vsel %vm2759, %v3072, 0
      %v3081 = vsel %vm2759, %v3074, 0
      %3083 = vmatpush.xpose.msra.mxu0 0.0
      %3084 = vmatpush.xpose.msra.mxu0 0.0
      %3085 = vmatpush.xpose.msra.mxu0 0.0
      %3086 = vmatpush.xpose.msra.mxu0 0.0
      %3087 = vmatpush.xpose.msra.mxu0 0.0
      %3088 = vmatpush.xpose.msra.mxu0 0.0
      %3089 = vmatpush.xpose.msra.mxu0 0.0
      %3090 = vmatpush.xpose.msra.mxu0 0.0
      %3091 = vmatpush.xpose.msra.mxu0 0.0
      %3092 = vmatpush.xpose.msra.mxu0 0.0
      %3093 = vmatpush.xpose.msra.mxu0 0.0
      %3094 = vmatpush.xpose.msra.mxu0 0.0
      %3095 = vmatpush.xpose.msra.mxu0 0.0
      %3096 = vmatpush.xpose.msra.mxu0 0.0
      %3097 = vmatpush.xpose.msra.mxu0 %v3081
      %3098 = vmatpush.xpose.msra.mxu0 %v3079
      %3099 = vmatmul.f32.gmra.mxu0 %v3075
      %v3100 = vpop.f32.mrf.mxu0
      %v3101 = vadd.f32 0.0, %v3100
      %3102 = vmatmul.f32.gmra.mxu0 %v3077
      %v3103 = vpop.f32.mrf.mxu0
      %v3104 = vadd.f32 0.0, %v3103
      %3105 = vdwg.mxu0
      %3106 = vrot.lane.b32.xlu0 %v2636, 96
      %v3107 = vpop.permute.xlu0 %3106
      %3108 = vrot.lane.b32.xlu0 %v2638, 96
      %v3109 = vpop.permute.xlu0 %3108
      %v3110 = vsel %vm2759, %v2636, 0
      %v3112 = vsel %vm2759, %v2638, 0
      %v3114 = vsel %vm2759, %v3107, 0
      %v3116 = vsel %vm2759, %v3109, 0
      %3118 = vmatpush.xpose.msra.mxu0 0.0
      %3119 = vmatpush.xpose.msra.mxu0 0.0
      %3120 = vmatpush.xpose.msra.mxu0 0.0
      %3121 = vmatpush.xpose.msra.mxu0 0.0
      %3122 = vmatpush.xpose.msra.mxu0 0.0
      %3123 = vmatpush.xpose.msra.mxu0 0.0
      %3124 = vmatpush.xpose.msra.mxu0 0.0
      %3125 = vmatpush.xpose.msra.mxu0 0.0
      %3126 = vmatpush.xpose.msra.mxu0 0.0
      %3127 = vmatpush.xpose.msra.mxu0 0.0
      %3128 = vmatpush.xpose.msra.mxu0 0.0
      %3129 = vmatpush.xpose.msra.mxu0 0.0
      %3130 = vmatpush.xpose.msra.mxu0 0.0
      %3131 = vmatpush.xpose.msra.mxu0 0.0
      %3132 = vmatpush.xpose.msra.mxu0 %v3116
      %3133 = vmatpush.xpose.msra.mxu0 %v3114
      %3134 = vmatmul.f32.gmra.mxu0 %v3110
      %v3135 = vpop.f32.mrf.mxu0
      %v3136 = vadd.f32 0.0, %v3135
      %3137 = vmatmul.f32.gmra.mxu0 %v3112
      %v3138 = vpop.f32.mrf.mxu0
      %v3139 = vadd.f32 0.0, %v3138
      %3140 = vdwg.mxu0
      %3141 = vrot.lane.b32.xlu0 %v2700, 96
      %v3142 = vpop.permute.xlu0 %3141
      %3143 = vrot.lane.b32.xlu0 %v2702, 96
      %v3144 = vpop.permute.xlu0 %3143
      %v3145 = vsel %vm2759, %v2700, 0
      %v3147 = vsel %vm2759, %v2702, 0
      %v3149 = vsel %vm2759, %v3142, 0
      %v3151 = vsel %vm2759, %v3144, 0
      %3153 = vmatpush.xpose.msra.mxu0 0.0
      %3154 = vmatpush.xpose.msra.mxu0 0.0
      %3155 = vmatpush.xpose.msra.mxu0 0.0
      %3156 = vmatpush.xpose.msra.mxu0 0.0
      %3157 = vmatpush.xpose.msra.mxu0 0.0
      %3158 = vmatpush.xpose.msra.mxu0 0.0
      %3159 = vmatpush.xpose.msra.mxu0 0.0
      %3160 = vmatpush.xpose.msra.mxu0 0.0
      %3161 = vmatpush.xpose.msra.mxu0 0.0
      %3162 = vmatpush.xpose.msra.mxu0 0.0
      %3163 = vmatpush.xpose.msra.mxu0 0.0
      %3164 = vmatpush.xpose.msra.mxu0 0.0
      %3165 = vmatpush.xpose.msra.mxu0 0.0
      %3166 = vmatpush.xpose.msra.mxu0 0.0
      %3167 = vmatpush.xpose.msra.mxu0 %v3151
      %3168 = vmatpush.xpose.msra.mxu0 %v3149
      %3169 = vmatmul.f32.gmra.mxu0 %v3145
      %v3170 = vpop.f32.mrf.mxu0
      %v3171 = vadd.f32 0.0, %v3170
      %3172 = vmatmul.f32.gmra.mxu0 %v3147
      %v3173 = vpop.f32.mrf.mxu0
      %v3174 = vadd.f32 0.0, %v3173
      %3175 = vdwg.mxu0
      %3176 = vrot.lane.b32.xlu0 %v2454, 96
      %v3177 = vpop.permute.xlu0 %3176
      %3178 = vrot.lane.b32.xlu0 %v2457, 96
      %v3179 = vpop.permute.xlu0 %3178
      %v3180 = vsel %vm2759, %v2454, 0
      %v3182 = vsel %vm2759, %v2457, 0
      %v3184 = vsel %vm2759, %v3177, 0
      %v3186 = vsel %vm2759, %v3179, 0
      %3188 = vmatpush.xpose.msra.mxu0 0.0
      %3189 = vmatpush.xpose.msra.mxu0 0.0
      %3190 = vmatpush.xpose.msra.mxu0 0.0
      %3191 = vmatpush.xpose.msra.mxu0 0.0
      %3192 = vmatpush.xpose.msra.mxu0 0.0
      %3193 = vmatpush.xpose.msra.mxu0 0.0
      %3194 = vmatpush.xpose.msra.mxu0 0.0
      %3195 = vmatpush.xpose.msra.mxu0 0.0
      %3196 = vmatpush.xpose.msra.mxu0 0.0
      %3197 = vmatpush.xpose.msra.mxu0 0.0
      %3198 = vmatpush.xpose.msra.mxu0 0.0
      %3199 = vmatpush.xpose.msra.mxu0 0.0
      %3200 = vmatpush.xpose.msra.mxu0 0.0
      %3201 = vmatpush.xpose.msra.mxu0 0.0
      %3202 = vmatpush.xpose.msra.mxu0 %v3186
      %3203 = vmatpush.xpose.msra.mxu0 %v3184
      %3204 = vmatmul.f32.gmra.mxu0 %v3180
      %v3205 = vpop.f32.mrf.mxu0
      %v3206 = vadd.f32 0.0, %v3205
      %3207 = vmatmul.f32.gmra.mxu0 %v3182
      %v3208 = vpop.f32.mrf.mxu0
      %v3209 = vadd.f32 0.0, %v3208
      %3210 = vdwg.mxu0
      %3211 = vrot.lane.b32.xlu0 %v2576, 96
      %v3212 = vpop.permute.xlu0 %3211
      %3213 = vrot.lane.b32.xlu0 %v2578, 96
      %v3214 = vpop.permute.xlu0 %3213
      %v3215 = vsel %vm2759, %v2576, 0
      %v3217 = vsel %vm2759, %v2578, 0
      %v3219 = vsel %vm2759, %v3212, 0
      %v3221 = vsel %vm2759, %v3214, 0
      %3223 = vmatpush.xpose.msra.mxu0 0.0
      %3224 = vmatpush.xpose.msra.mxu0 0.0
      %3225 = vmatpush.xpose.msra.mxu0 0.0
      %3226 = vmatpush.xpose.msra.mxu0 0.0
      %3227 = vmatpush.xpose.msra.mxu0 0.0
      %3228 = vmatpush.xpose.msra.mxu0 0.0
      %3229 = vmatpush.xpose.msra.mxu0 0.0
      %3230 = vmatpush.xpose.msra.mxu0 0.0
      %3231 = vmatpush.xpose.msra.mxu0 0.0
      %3232 = vmatpush.xpose.msra.mxu0 0.0
      %3233 = vmatpush.xpose.msra.mxu0 0.0
      %3234 = vmatpush.xpose.msra.mxu0 0.0
      %3235 = vmatpush.xpose.msra.mxu0 0.0
      %3236 = vmatpush.xpose.msra.mxu0 0.0
      %3237 = vmatpush.xpose.msra.mxu0 %v3221
      %3238 = vmatpush.xpose.msra.mxu0 %v3219
      %3239 = vmatmul.f32.gmra.mxu0 %v3215
      %v3240 = vpop.f32.mrf.mxu0
      %v3241 = vadd.f32 0.0, %v3240
      %3242 = vmatmul.f32.gmra.mxu0 %v3217
      %v3243 = vpop.f32.mrf.mxu0
      %v3244 = vadd.f32 0.0, %v3243
      %3245 = vdwg.mxu0
      %3246 = vrot.lane.b32.xlu0 %v2640, 96
      %v3247 = vpop.permute.xlu0 %3246
      %3248 = vrot.lane.b32.xlu0 %v2642, 96
      %v3249 = vpop.permute.xlu0 %3248
      %v3250 = vsel %vm2759, %v2640, 0
      %v3252 = vsel %vm2759, %v2642, 0
      %v3254 = vsel %vm2759, %v3247, 0
      %v3256 = vsel %vm2759, %v3249, 0
      %3258 = vmatpush.xpose.msra.mxu0 0.0
      %3259 = vmatpush.xpose.msra.mxu0 0.0
      %3260 = vmatpush.xpose.msra.mxu0 0.0
      %3261 = vmatpush.xpose.msra.mxu0 0.0
      %3262 = vmatpush.xpose.msra.mxu0 0.0
      %3263 = vmatpush.xpose.msra.mxu0 0.0
      %3264 = vmatpush.xpose.msra.mxu0 0.0
      %3265 = vmatpush.xpose.msra.mxu0 0.0
      %3266 = vmatpush.xpose.msra.mxu0 0.0
      %3267 = vmatpush.xpose.msra.mxu0 0.0
      %3268 = vmatpush.xpose.msra.mxu0 0.0
      %3269 = vmatpush.xpose.msra.mxu0 0.0
      %3270 = vmatpush.xpose.msra.mxu0 0.0
      %3271 = vmatpush.xpose.msra.mxu0 0.0
      %3272 = vmatpush.xpose.msra.mxu0 %v3256
      %3273 = vmatpush.xpose.msra.mxu0 %v3254
      %3274 = vmatmul.f32.gmra.mxu0 %v3250
      %v3275 = vpop.f32.mrf.mxu0
      %v3276 = vadd.f32 0.0, %v3275
      %3277 = vmatmul.f32.gmra.mxu0 %v3252
      %v3278 = vpop.f32.mrf.mxu0
      %v3279 = vadd.f32 0.0, %v3278
      %3280 = vdwg.mxu0
      %3281 = vrot.lane.b32.xlu0 %v2704, 96
      %v3282 = vpop.permute.xlu0 %3281
      %3283 = vrot.lane.b32.xlu0 %v2706, 96
      %v3284 = vpop.permute.xlu0 %3283
      %v3285 = vsel %vm2759, %v2704, 0
      %v3287 = vsel %vm2759, %v2706, 0
      %v3289 = vsel %vm2759, %v3282, 0
      %v3291 = vsel %vm2759, %v3284, 0
      %3293 = vmatpush.xpose.msra.mxu0 0.0
      %3294 = vmatpush.xpose.msra.mxu0 0.0
      %3295 = vmatpush.xpose.msra.mxu0 0.0
      %3296 = vmatpush.xpose.msra.mxu0 0.0
      %3297 = vmatpush.xpose.msra.mxu0 0.0
      %3298 = vmatpush.xpose.msra.mxu0 0.0
      %3299 = vmatpush.xpose.msra.mxu0 0.0
      %3300 = vmatpush.xpose.msra.mxu0 0.0
      %3301 = vmatpush.xpose.msra.mxu0 0.0
      %3302 = vmatpush.xpose.msra.mxu0 0.0
      %3303 = vmatpush.xpose.msra.mxu0 0.0
      %3304 = vmatpush.xpose.msra.mxu0 0.0
      %3305 = vmatpush.xpose.msra.mxu0 0.0
      %3306 = vmatpush.xpose.msra.mxu0 0.0
      %3307 = vmatpush.xpose.msra.mxu0 %v3291
      %3308 = vmatpush.xpose.msra.mxu0 %v3289
      %3309 = vmatmul.f32.gmra.mxu0 %v3285
      %v3310 = vpop.f32.mrf.mxu0
      %v3311 = vadd.f32 0.0, %v3310
      %3312 = vmatmul.f32.gmra.mxu0 %v3287
      %v3313 = vpop.f32.mrf.mxu0
      %v3314 = vadd.f32 0.0, %v3313
      %3315 = vdwg.mxu0
      %3316 = vrot.lane.b32.xlu0 %v2460, 96
      %v3317 = vpop.permute.xlu0 %3316
      %3318 = vrot.lane.b32.xlu0 %v2463, 96
      %v3319 = vpop.permute.xlu0 %3318
      %v3320 = vsel %vm2759, %v2460, 0
      %v3322 = vsel %vm2759, %v2463, 0
      %v3324 = vsel %vm2759, %v3317, 0
      %v3326 = vsel %vm2759, %v3319, 0
      %3328 = vmatpush.xpose.msra.mxu0 0.0
      %3329 = vmatpush.xpose.msra.mxu0 0.0
      %3330 = vmatpush.xpose.msra.mxu0 0.0
      %3331 = vmatpush.xpose.msra.mxu0 0.0
      %3332 = vmatpush.xpose.msra.mxu0 0.0
      %3333 = vmatpush.xpose.msra.mxu0 0.0
      %3334 = vmatpush.xpose.msra.mxu0 0.0
      %3335 = vmatpush.xpose.msra.mxu0 0.0
      %3336 = vmatpush.xpose.msra.mxu0 0.0
      %3337 = vmatpush.xpose.msra.mxu0 0.0
      %3338 = vmatpush.xpose.msra.mxu0 0.0
      %3339 = vmatpush.xpose.msra.mxu0 0.0
      %3340 = vmatpush.xpose.msra.mxu0 0.0
      %3341 = vmatpush.xpose.msra.mxu0 0.0
      %3342 = vmatpush.xpose.msra.mxu0 %v3326
      %3343 = vmatpush.xpose.msra.mxu0 %v3324
      %3344 = vmatmul.f32.gmra.mxu0 %v3320
      %v3345 = vpop.f32.mrf.mxu0
      %v3346 = vadd.f32 0.0, %v3345
      %3347 = vmatmul.f32.gmra.mxu0 %v3322
      %v3348 = vpop.f32.mrf.mxu0
      %v3349 = vadd.f32 0.0, %v3348
      %3350 = vdwg.mxu0
      %3351 = vrot.lane.b32.xlu0 %v2580, 96
      %v3352 = vpop.permute.xlu0 %3351
      %3353 = vrot.lane.b32.xlu0 %v2582, 96
      %v3354 = vpop.permute.xlu0 %3353
      %v3355 = vsel %vm2759, %v2580, 0
      %v3357 = vsel %vm2759, %v2582, 0
      %v3359 = vsel %vm2759, %v3352, 0
      %v3361 = vsel %vm2759, %v3354, 0
      %3363 = vmatpush.xpose.msra.mxu0 0.0
      %3364 = vmatpush.xpose.msra.mxu0 0.0
      %3365 = vmatpush.xpose.msra.mxu0 0.0
      %3366 = vmatpush.xpose.msra.mxu0 0.0
      %3367 = vmatpush.xpose.msra.mxu0 0.0
      %3368 = vmatpush.xpose.msra.mxu0 0.0
      %3369 = vmatpush.xpose.msra.mxu0 0.0
      %3370 = vmatpush.xpose.msra.mxu0 0.0
      %3371 = vmatpush.xpose.msra.mxu0 0.0
      %3372 = vmatpush.xpose.msra.mxu0 0.0
      %3373 = vmatpush.xpose.msra.mxu0 0.0
      %3374 = vmatpush.xpose.msra.mxu0 0.0
      %3375 = vmatpush.xpose.msra.mxu0 0.0
      %3376 = vmatpush.xpose.msra.mxu0 0.0
      %3377 = vmatpush.xpose.msra.mxu0 %v3361
      %3378 = vmatpush.xpose.msra.mxu0 %v3359
      %3379 = vmatmul.f32.gmra.mxu0 %v3355
      %v3380 = vpop.f32.mrf.mxu0
      %v3381 = vadd.f32 0.0, %v3380
      %3382 = vmatmul.f32.gmra.mxu0 %v3357
      %v3383 = vpop.f32.mrf.mxu0
      %v3384 = vadd.f32 0.0, %v3383
      %3385 = vdwg.mxu0
      %3386 = vrot.lane.b32.xlu0 %v2644, 96
      %v3387 = vpop.permute.xlu0 %3386
      %3388 = vrot.lane.b32.xlu0 %v2646, 96
      %v3389 = vpop.permute.xlu0 %3388
      %v3390 = vsel %vm2759, %v2644, 0
      %v3392 = vsel %vm2759, %v2646, 0
      %v3394 = vsel %vm2759, %v3387, 0
      %v3396 = vsel %vm2759, %v3389, 0
      %3398 = vmatpush.xpose.msra.mxu0 0.0
      %3399 = vmatpush.xpose.msra.mxu0 0.0
      %3400 = vmatpush.xpose.msra.mxu0 0.0
      %3401 = vmatpush.xpose.msra.mxu0 0.0
      %3402 = vmatpush.xpose.msra.mxu0 0.0
      %3403 = vmatpush.xpose.msra.mxu0 0.0
      %3404 = vmatpush.xpose.msra.mxu0 0.0
      %3405 = vmatpush.xpose.msra.mxu0 0.0
      %3406 = vmatpush.xpose.msra.mxu0 0.0
      %3407 = vmatpush.xpose.msra.mxu0 0.0
      %3408 = vmatpush.xpose.msra.mxu0 0.0
      %3409 = vmatpush.xpose.msra.mxu0 0.0
      %3410 = vmatpush.xpose.msra.mxu0 0.0
      %3411 = vmatpush.xpose.msra.mxu0 0.0
      %3412 = vmatpush.xpose.msra.mxu0 %v3396
      %3413 = vmatpush.xpose.msra.mxu0 %v3394
      %3414 = vmatmul.f32.gmra.mxu0 %v3390
      %v3415 = vpop.f32.mrf.mxu0
      %v3416 = vadd.f32 0.0, %v3415
      %3417 = vmatmul.f32.gmra.mxu0 %v3392
      %v3418 = vpop.f32.mrf.mxu0
      %v3419 = vadd.f32 0.0, %v3418
      %3420 = vdwg.mxu0
      %3421 = vrot.lane.b32.xlu0 %v2708, 96
      %v3422 = vpop.permute.xlu0 %3421
      %3423 = vrot.lane.b32.xlu0 %v2710, 96
      %v3424 = vpop.permute.xlu0 %3423
      %v3425 = vsel %vm2759, %v2708, 0
      %v3427 = vsel %vm2759, %v2710, 0
      %v3429 = vsel %vm2759, %v3422, 0
      %v3431 = vsel %vm2759, %v3424, 0
      %3433 = vmatpush.xpose.msra.mxu0 0.0
      %3434 = vmatpush.xpose.msra.mxu0 0.0
      %3435 = vmatpush.xpose.msra.mxu0 0.0
      %3436 = vmatpush.xpose.msra.mxu0 0.0
      %3437 = vmatpush.xpose.msra.mxu0 0.0
      %3438 = vmatpush.xpose.msra.mxu0 0.0
      %3439 = vmatpush.xpose.msra.mxu0 0.0
      %3440 = vmatpush.xpose.msra.mxu0 0.0
      %3441 = vmatpush.xpose.msra.mxu0 0.0
      %3442 = vmatpush.xpose.msra.mxu0 0.0
      %3443 = vmatpush.xpose.msra.mxu0 0.0
      %3444 = vmatpush.xpose.msra.mxu0 0.0
      %3445 = vmatpush.xpose.msra.mxu0 0.0
      %3446 = vmatpush.xpose.msra.mxu0 0.0
      %3447 = vmatpush.xpose.msra.mxu0 %v3431
      %3448 = vmatpush.xpose.msra.mxu0 %v3429
      %3449 = vmatmul.f32.gmra.mxu0 %v3425
      %v3450 = vpop.f32.mrf.mxu0
      %v3451 = vadd.f32 0.0, %v3450
      %3452 = vmatmul.f32.gmra.mxu0 %v3427
      %v3453 = vpop.f32.mrf.mxu0
      %v3454 = vadd.f32 0.0, %v3453
      %3455 = vdwg.mxu0
      %3456 = vrot.lane.b32.xlu0 %v2466, 96
      %v3457 = vpop.permute.xlu0 %3456
      %3458 = vrot.lane.b32.xlu0 %v2469, 96
      %v3459 = vpop.permute.xlu0 %3458
      %v3460 = vsel %vm2759, %v2466, 0
      %v3462 = vsel %vm2759, %v2469, 0
      %v3464 = vsel %vm2759, %v3457, 0
      %v3466 = vsel %vm2759, %v3459, 0
      %3468 = vmatpush.xpose.msra.mxu0 0.0
      %3469 = vmatpush.xpose.msra.mxu0 0.0
      %3470 = vmatpush.xpose.msra.mxu0 0.0
      %3471 = vmatpush.xpose.msra.mxu0 0.0
      %3472 = vmatpush.xpose.msra.mxu0 0.0
      %3473 = vmatpush.xpose.msra.mxu0 0.0
      %3474 = vmatpush.xpose.msra.mxu0 0.0
      %3475 = vmatpush.xpose.msra.mxu0 0.0
      %3476 = vmatpush.xpose.msra.mxu0 0.0
      %3477 = vmatpush.xpose.msra.mxu0 0.0
      %3478 = vmatpush.xpose.msra.mxu0 0.0
      %3479 = vmatpush.xpose.msra.mxu0 0.0
      %3480 = vmatpush.xpose.msra.mxu0 0.0
      %3481 = vmatpush.xpose.msra.mxu0 0.0
      %3482 = vmatpush.xpose.msra.mxu0 %v3466
      %3483 = vmatpush.xpose.msra.mxu0 %v3464
      %3484 = vmatmul.f32.gmra.mxu0 %v3460
      %v3485 = vpop.f32.mrf.mxu0
      %v3486 = vadd.f32 0.0, %v3485
      %3487 = vmatmul.f32.gmra.mxu0 %v3462
      %v3488 = vpop.f32.mrf.mxu0
      %v3489 = vadd.f32 0.0, %v3488
      %3490 = vdwg.mxu0
      %3491 = vrot.lane.b32.xlu0 %v2584, 96
      %v3492 = vpop.permute.xlu0 %3491
      %3493 = vrot.lane.b32.xlu0 %v2586, 96
      %v3494 = vpop.permute.xlu0 %3493
      %v3495 = vsel %vm2759, %v2584, 0
      %v3497 = vsel %vm2759, %v2586, 0
      %v3499 = vsel %vm2759, %v3492, 0
      %v3501 = vsel %vm2759, %v3494, 0
      %3503 = vmatpush.xpose.msra.mxu0 0.0
      %3504 = vmatpush.xpose.msra.mxu0 0.0
      %3505 = vmatpush.xpose.msra.mxu0 0.0
      %3506 = vmatpush.xpose.msra.mxu0 0.0
      %3507 = vmatpush.xpose.msra.mxu0 0.0
      %3508 = vmatpush.xpose.msra.mxu0 0.0
      %3509 = vmatpush.xpose.msra.mxu0 0.0
      %3510 = vmatpush.xpose.msra.mxu0 0.0
      %3511 = vmatpush.xpose.msra.mxu0 0.0
      %3512 = vmatpush.xpose.msra.mxu0 0.0
      %3513 = vmatpush.xpose.msra.mxu0 0.0
      %3514 = vmatpush.xpose.msra.mxu0 0.0
      %3515 = vmatpush.xpose.msra.mxu0 0.0
      %3516 = vmatpush.xpose.msra.mxu0 0.0
      %3517 = vmatpush.xpose.msra.mxu0 %v3501
      %3518 = vmatpush.xpose.msra.mxu0 %v3499
      %3519 = vmatmul.f32.gmra.mxu0 %v3495
      %v3520 = vpop.f32.mrf.mxu0
      %v3521 = vadd.f32 0.0, %v3520
      %3522 = vmatmul.f32.gmra.mxu0 %v3497
      %v3523 = vpop.f32.mrf.mxu0
      %v3524 = vadd.f32 0.0, %v3523
      %3525 = vdwg.mxu0
      %3526 = vrot.lane.b32.xlu0 %v2648, 96
      %v3527 = vpop.permute.xlu0 %3526
      %3528 = vrot.lane.b32.xlu0 %v2650, 96
      %v3529 = vpop.permute.xlu0 %3528
      %v3530 = vsel %vm2759, %v2648, 0
      %v3532 = vsel %vm2759, %v2650, 0
      %v3534 = vsel %vm2759, %v3527, 0
      %v3536 = vsel %vm2759, %v3529, 0
      %3538 = vmatpush.xpose.msra.mxu0 0.0
      %3539 = vmatpush.xpose.msra.mxu0 0.0
      %3540 = vmatpush.xpose.msra.mxu0 0.0
      %3541 = vmatpush.xpose.msra.mxu0 0.0
      %3542 = vmatpush.xpose.msra.mxu0 0.0
      %3543 = vmatpush.xpose.msra.mxu0 0.0
      %3544 = vmatpush.xpose.msra.mxu0 0.0
      %3545 = vmatpush.xpose.msra.mxu0 0.0
      %3546 = vmatpush.xpose.msra.mxu0 0.0
      %3547 = vmatpush.xpose.msra.mxu0 0.0
      %3548 = vmatpush.xpose.msra.mxu0 0.0
      %3549 = vmatpush.xpose.msra.mxu0 0.0
      %3550 = vmatpush.xpose.msra.mxu0 0.0
      %3551 = vmatpush.xpose.msra.mxu0 0.0
      %3552 = vmatpush.xpose.msra.mxu0 %v3536
      %3553 = vmatpush.xpose.msra.mxu0 %v3534
      %3554 = vmatmul.f32.gmra.mxu0 %v3530
      %v3555 = vpop.f32.mrf.mxu0
      %v3556 = vadd.f32 0.0, %v3555
      %3557 = vmatmul.f32.gmra.mxu0 %v3532
      %v3558 = vpop.f32.mrf.mxu0
      %v3559 = vadd.f32 0.0, %v3558
      %3560 = vdwg.mxu0
      %3561 = vrot.lane.b32.xlu0 %v2712, 96
      %v3562 = vpop.permute.xlu0 %3561
      %3563 = vrot.lane.b32.xlu0 %v2714, 96
      %v3564 = vpop.permute.xlu0 %3563
      %v3565 = vsel %vm2759, %v2712, 0
      %v3567 = vsel %vm2759, %v2714, 0
      %v3569 = vsel %vm2759, %v3562, 0
      %v3571 = vsel %vm2759, %v3564, 0
      %3573 = vmatpush.xpose.msra.mxu0 0.0
      %3574 = vmatpush.xpose.msra.mxu0 0.0
      %3575 = vmatpush.xpose.msra.mxu0 0.0
      %3576 = vmatpush.xpose.msra.mxu0 0.0
      %3577 = vmatpush.xpose.msra.mxu0 0.0
      %3578 = vmatpush.xpose.msra.mxu0 0.0
      %3579 = vmatpush.xpose.msra.mxu0 0.0
      %3580 = vmatpush.xpose.msra.mxu0 0.0
      %3581 = vmatpush.xpose.msra.mxu0 0.0
      %3582 = vmatpush.xpose.msra.mxu0 0.0
      %3583 = vmatpush.xpose.msra.mxu0 0.0
      %3584 = vmatpush.xpose.msra.mxu0 0.0
      %3585 = vmatpush.xpose.msra.mxu0 0.0
      %3586 = vmatpush.xpose.msra.mxu0 0.0
      %3587 = vmatpush.xpose.msra.mxu0 %v3571
      %3588 = vmatpush.xpose.msra.mxu0 %v3569
      %3589 = vmatmul.f32.gmra.mxu0 %v3565
      %v3590 = vpop.f32.mrf.mxu0
      %v3591 = vadd.f32 0.0, %v3590
      %3592 = vmatmul.f32.gmra.mxu0 %v3567
      %v3593 = vpop.f32.mrf.mxu0
      %v3594 = vadd.f32 0.0, %v3593
      %3595 = vdwg.mxu0
      %3596 = vrot.lane.b32.xlu0 %v2472, 96
      %v3597 = vpop.permute.xlu0 %3596
      %3598 = vrot.lane.b32.xlu0 %v2475, 96
      %v3599 = vpop.permute.xlu0 %3598
      %v3600 = vsel %vm2759, %v2472, 0
      %v3602 = vsel %vm2759, %v2475, 0
      %v3604 = vsel %vm2759, %v3597, 0
      %v3606 = vsel %vm2759, %v3599, 0
      %3608 = vmatpush.xpose.msra.mxu0 0.0
      %3609 = vmatpush.xpose.msra.mxu0 0.0
      %3610 = vmatpush.xpose.msra.mxu0 0.0
      %3611 = vmatpush.xpose.msra.mxu0 0.0
      %3612 = vmatpush.xpose.msra.mxu0 0.0
      %3613 = vmatpush.xpose.msra.mxu0 0.0
      %3614 = vmatpush.xpose.msra.mxu0 0.0
      %3615 = vmatpush.xpose.msra.mxu0 0.0
      %3616 = vmatpush.xpose.msra.mxu0 0.0
      %3617 = vmatpush.xpose.msra.mxu0 0.0
      %3618 = vmatpush.xpose.msra.mxu0 0.0
      %3619 = vmatpush.xpose.msra.mxu0 0.0
      %3620 = vmatpush.xpose.msra.mxu0 0.0
      %3621 = vmatpush.xpose.msra.mxu0 0.0
      %3622 = vmatpush.xpose.msra.mxu0 %v3606
      %3623 = vmatpush.xpose.msra.mxu0 %v3604
      %3624 = vmatmul.f32.gmra.mxu0 %v3600
      %v3625 = vpop.f32.mrf.mxu0
      %v3626 = vadd.f32 0.0, %v3625
      %3627 = vmatmul.f32.gmra.mxu0 %v3602
      %v3628 = vpop.f32.mrf.mxu0
      %v3629 = vadd.f32 0.0, %v3628
      %3630 = vdwg.mxu0
      %3631 = vrot.lane.b32.xlu0 %v2588, 96
      %v3632 = vpop.permute.xlu0 %3631
      %3633 = vrot.lane.b32.xlu0 %v2590, 96
      %v3634 = vpop.permute.xlu0 %3633
      %v3635 = vsel %vm2759, %v2588, 0
      %v3637 = vsel %vm2759, %v2590, 0
      %v3639 = vsel %vm2759, %v3632, 0
      %v3641 = vsel %vm2759, %v3634, 0
      %3643 = vmatpush.xpose.msra.mxu0 0.0
      %3644 = vmatpush.xpose.msra.mxu0 0.0
      %3645 = vmatpush.xpose.msra.mxu0 0.0
      %3646 = vmatpush.xpose.msra.mxu0 0.0
      %3647 = vmatpush.xpose.msra.mxu0 0.0
      %3648 = vmatpush.xpose.msra.mxu0 0.0
      %3649 = vmatpush.xpose.msra.mxu0 0.0
      %3650 = vmatpush.xpose.msra.mxu0 0.0
      %3651 = vmatpush.xpose.msra.mxu0 0.0
      %3652 = vmatpush.xpose.msra.mxu0 0.0
      %3653 = vmatpush.xpose.msra.mxu0 0.0
      %3654 = vmatpush.xpose.msra.mxu0 0.0
      %3655 = vmatpush.xpose.msra.mxu0 0.0
      %3656 = vmatpush.xpose.msra.mxu0 0.0
      %3657 = vmatpush.xpose.msra.mxu0 %v3641
      %3658 = vmatpush.xpose.msra.mxu0 %v3639
      %3659 = vmatmul.f32.gmra.mxu0 %v3635
      %v3660 = vpop.f32.mrf.mxu0
      %v3661 = vadd.f32 0.0, %v3660
      %3662 = vmatmul.f32.gmra.mxu0 %v3637
      %v3663 = vpop.f32.mrf.mxu0
      %v3664 = vadd.f32 0.0, %v3663
      %3665 = vdwg.mxu0
      %3666 = vrot.lane.b32.xlu0 %v2652, 96
      %v3667 = vpop.permute.xlu0 %3666
      %3668 = vrot.lane.b32.xlu0 %v2654, 96
      %v3669 = vpop.permute.xlu0 %3668
      %v3670 = vsel %vm2759, %v2652, 0
      %v3672 = vsel %vm2759, %v2654, 0
      %v3674 = vsel %vm2759, %v3667, 0
      %v3676 = vsel %vm2759, %v3669, 0
      %3678 = vmatpush.xpose.msra.mxu0 0.0
      %3679 = vmatpush.xpose.msra.mxu0 0.0
      %3680 = vmatpush.xpose.msra.mxu0 0.0
      %3681 = vmatpush.xpose.msra.mxu0 0.0
      %3682 = vmatpush.xpose.msra.mxu0 0.0
      %3683 = vmatpush.xpose.msra.mxu0 0.0
      %3684 = vmatpush.xpose.msra.mxu0 0.0
      %3685 = vmatpush.xpose.msra.mxu0 0.0
      %3686 = vmatpush.xpose.msra.mxu0 0.0
      %3687 = vmatpush.xpose.msra.mxu0 0.0
      %3688 = vmatpush.xpose.msra.mxu0 0.0
      %3689 = vmatpush.xpose.msra.mxu0 0.0
      %3690 = vmatpush.xpose.msra.mxu0 0.0
      %3691 = vmatpush.xpose.msra.mxu0 0.0
      %3692 = vmatpush.xpose.msra.mxu0 %v3676
      %3693 = vmatpush.xpose.msra.mxu0 %v3674
      %3694 = vmatmul.f32.gmra.mxu0 %v3670
      %v3695 = vpop.f32.mrf.mxu0
      %v3696 = vadd.f32 0.0, %v3695
      %3697 = vmatmul.f32.gmra.mxu0 %v3672
      %v3698 = vpop.f32.mrf.mxu0
      %v3699 = vadd.f32 0.0, %v3698
      %3700 = vdwg.mxu0
      %3701 = vrot.lane.b32.xlu0 %v2716, 96
      %v3702 = vpop.permute.xlu0 %3701
      %3703 = vrot.lane.b32.xlu0 %v2718, 96
      %v3704 = vpop.permute.xlu0 %3703
      %v3705 = vsel %vm2759, %v2716, 0
      %v3707 = vsel %vm2759, %v2718, 0
      %v3709 = vsel %vm2759, %v3702, 0
      %v3711 = vsel %vm2759, %v3704, 0
      %3713 = vmatpush.xpose.msra.mxu0 0.0
      %3714 = vmatpush.xpose.msra.mxu0 0.0
      %3715 = vmatpush.xpose.msra.mxu0 0.0
      %3716 = vmatpush.xpose.msra.mxu0 0.0
      %3717 = vmatpush.xpose.msra.mxu0 0.0
      %3718 = vmatpush.xpose.msra.mxu0 0.0
      %3719 = vmatpush.xpose.msra.mxu0 0.0
      %3720 = vmatpush.xpose.msra.mxu0 0.0
      %3721 = vmatpush.xpose.msra.mxu0 0.0
      %3722 = vmatpush.xpose.msra.mxu0 0.0
      %3723 = vmatpush.xpose.msra.mxu0 0.0
      %3724 = vmatpush.xpose.msra.mxu0 0.0
      %3725 = vmatpush.xpose.msra.mxu0 0.0
      %3726 = vmatpush.xpose.msra.mxu0 0.0
      %3727 = vmatpush.xpose.msra.mxu0 %v3711
      %3728 = vmatpush.xpose.msra.mxu0 %v3709
      %3729 = vmatmul.f32.gmra.mxu0 %v3705
      %v3730 = vpop.f32.mrf.mxu0
      %v3731 = vadd.f32 0.0, %v3730
      %3732 = vmatmul.f32.gmra.mxu0 %v3707
      %v3733 = vpop.f32.mrf.mxu0
      %v3734 = vadd.f32 0.0, %v3733
      %3735 = vdwg.mxu0
      %3736 = vrot.lane.b32.xlu0 %v2478, 96
      %v3737 = vpop.permute.xlu0 %3736
      %3738 = vrot.lane.b32.xlu0 %v2481, 96
      %v3739 = vpop.permute.xlu0 %3738
      %v3740 = vsel %vm2759, %v2478, 0
      %v3742 = vsel %vm2759, %v2481, 0
      %v3744 = vsel %vm2759, %v3737, 0
      %v3746 = vsel %vm2759, %v3739, 0
      %3748 = vmatpush.xpose.msra.mxu0 0.0
      %3749 = vmatpush.xpose.msra.mxu0 0.0
      %3750 = vmatpush.xpose.msra.mxu0 0.0
      %3751 = vmatpush.xpose.msra.mxu0 0.0
      %3752 = vmatpush.xpose.msra.mxu0 0.0
      %3753 = vmatpush.xpose.msra.mxu0 0.0
      %3754 = vmatpush.xpose.msra.mxu0 0.0
      %3755 = vmatpush.xpose.msra.mxu0 0.0
      %3756 = vmatpush.xpose.msra.mxu0 0.0
      %3757 = vmatpush.xpose.msra.mxu0 0.0
      %3758 = vmatpush.xpose.msra.mxu0 0.0
      %3759 = vmatpush.xpose.msra.mxu0 0.0
      %3760 = vmatpush.xpose.msra.mxu0 0.0
      %3761 = vmatpush.xpose.msra.mxu0 0.0
      %3762 = vmatpush.xpose.msra.mxu0 %v3746
      %3763 = vmatpush.xpose.msra.mxu0 %v3744
      %3764 = vmatmul.f32.gmra.mxu0 %v3740
      %v3765 = vpop.f32.mrf.mxu0
      %v3766 = vadd.f32 0.0, %v3765
      %3767 = vmatmul.f32.gmra.mxu0 %v3742
      %v3768 = vpop.f32.mrf.mxu0
      %v3769 = vadd.f32 0.0, %v3768
      %3770 = vdwg.mxu0
      %3771 = vrot.lane.b32.xlu0 %v2592, 96
      %v3772 = vpop.permute.xlu0 %3771
      %3773 = vrot.lane.b32.xlu0 %v2594, 96
      %v3774 = vpop.permute.xlu0 %3773
      %v3775 = vsel %vm2759, %v2592, 0
      %v3777 = vsel %vm2759, %v2594, 0
      %v3779 = vsel %vm2759, %v3772, 0
      %v3781 = vsel %vm2759, %v3774, 0
      %3783 = vmatpush.xpose.msra.mxu0 0.0
      %3784 = vmatpush.xpose.msra.mxu0 0.0
      %3785 = vmatpush.xpose.msra.mxu0 0.0
      %3786 = vmatpush.xpose.msra.mxu0 0.0
      %3787 = vmatpush.xpose.msra.mxu0 0.0
      %3788 = vmatpush.xpose.msra.mxu0 0.0
      %3789 = vmatpush.xpose.msra.mxu0 0.0
      %3790 = vmatpush.xpose.msra.mxu0 0.0
      %3791 = vmatpush.xpose.msra.mxu0 0.0
      %3792 = vmatpush.xpose.msra.mxu0 0.0
      %3793 = vmatpush.xpose.msra.mxu0 0.0
      %3794 = vmatpush.xpose.msra.mxu0 0.0
      %3795 = vmatpush.xpose.msra.mxu0 0.0
      %3796 = vmatpush.xpose.msra.mxu0 0.0
      %3797 = vmatpush.xpose.msra.mxu0 %v3781
      %3798 = vmatpush.xpose.msra.mxu0 %v3779
      %3799 = vmatmul.f32.gmra.mxu0 %v3775
      %v3800 = vpop.f32.mrf.mxu0
      %v3801 = vadd.f32 0.0, %v3800
      %3802 = vmatmul.f32.gmra.mxu0 %v3777
      %v3803 = vpop.f32.mrf.mxu0
      %v3804 = vadd.f32 0.0, %v3803
      %3805 = vdwg.mxu0
      %3806 = vrot.lane.b32.xlu0 %v2656, 96
      %v3807 = vpop.permute.xlu0 %3806
      %3808 = vrot.lane.b32.xlu0 %v2658, 96
      %v3809 = vpop.permute.xlu0 %3808
      %v3810 = vsel %vm2759, %v2656, 0
      %v3812 = vsel %vm2759, %v2658, 0
      %v3814 = vsel %vm2759, %v3807, 0
      %v3816 = vsel %vm2759, %v3809, 0
      %3818 = vmatpush.xpose.msra.mxu0 0.0
      %3819 = vmatpush.xpose.msra.mxu0 0.0
      %3820 = vmatpush.xpose.msra.mxu0 0.0
      %3821 = vmatpush.xpose.msra.mxu0 0.0
      %3822 = vmatpush.xpose.msra.mxu0 0.0
      %3823 = vmatpush.xpose.msra.mxu0 0.0
      %3824 = vmatpush.xpose.msra.mxu0 0.0
      %3825 = vmatpush.xpose.msra.mxu0 0.0
      %3826 = vmatpush.xpose.msra.mxu0 0.0
      %3827 = vmatpush.xpose.msra.mxu0 0.0
      %3828 = vmatpush.xpose.msra.mxu0 0.0
      %3829 = vmatpush.xpose.msra.mxu0 0.0
      %3830 = vmatpush.xpose.msra.mxu0 0.0
      %3831 = vmatpush.xpose.msra.mxu0 0.0
      %3832 = vmatpush.xpose.msra.mxu0 %v3816
      %3833 = vmatpush.xpose.msra.mxu0 %v3814
      %3834 = vmatmul.f32.gmra.mxu0 %v3810
      %v3835 = vpop.f32.mrf.mxu0
      %v3836 = vadd.f32 0.0, %v3835
      %3837 = vmatmul.f32.gmra.mxu0 %v3812
      %v3838 = vpop.f32.mrf.mxu0
      %v3839 = vadd.f32 0.0, %v3838
      %3840 = vdwg.mxu0
      %3841 = vrot.lane.b32.xlu0 %v2720, 96
      %v3842 = vpop.permute.xlu0 %3841
      %3843 = vrot.lane.b32.xlu0 %v2722, 96
      %v3844 = vpop.permute.xlu0 %3843
      %v3845 = vsel %vm2759, %v2720, 0
      %v3847 = vsel %vm2759, %v2722, 0
      %v3849 = vsel %vm2759, %v3842, 0
      %v3851 = vsel %vm2759, %v3844, 0
      %3853 = vmatpush.xpose.msra.mxu0 0.0
      %3854 = vmatpush.xpose.msra.mxu0 0.0
      %3855 = vmatpush.xpose.msra.mxu0 0.0
      %3856 = vmatpush.xpose.msra.mxu0 0.0
      %3857 = vmatpush.xpose.msra.mxu0 0.0
      %3858 = vmatpush.xpose.msra.mxu0 0.0
      %3859 = vmatpush.xpose.msra.mxu0 0.0
      %3860 = vmatpush.xpose.msra.mxu0 0.0
      %3861 = vmatpush.xpose.msra.mxu0 0.0
      %3862 = vmatpush.xpose.msra.mxu0 0.0
      %3863 = vmatpush.xpose.msra.mxu0 0.0
      %3864 = vmatpush.xpose.msra.mxu0 0.0
      %3865 = vmatpush.xpose.msra.mxu0 0.0
      %3866 = vmatpush.xpose.msra.mxu0 0.0
      %3867 = vmatpush.xpose.msra.mxu0 %v3851
      %3868 = vmatpush.xpose.msra.mxu0 %v3849
      %3869 = vmatmul.f32.gmra.mxu0 %v3845
      %v3870 = vpop.f32.mrf.mxu0
      %v3871 = vadd.f32 0.0, %v3870
      %3872 = vmatmul.f32.gmra.mxu0 %v3847
      %v3873 = vpop.f32.mrf.mxu0
      %v3874 = vadd.f32 0.0, %v3873
      %3875 = vdwg.mxu0
      %3876 = vrot.lane.b32.xlu0 %v2484, 96
      %v3877 = vpop.permute.xlu0 %3876
      %3878 = vrot.lane.b32.xlu0 %v2487, 96
      %v3879 = vpop.permute.xlu0 %3878
      %v3880 = vsel %vm2759, %v2484, 0
      %v3882 = vsel %vm2759, %v2487, 0
      %v3884 = vsel %vm2759, %v3877, 0
      %v3886 = vsel %vm2759, %v3879, 0
      %3888 = vmatpush.xpose.msra.mxu0 0.0
      %3889 = vmatpush.xpose.msra.mxu0 0.0
      %3890 = vmatpush.xpose.msra.mxu0 0.0
      %3891 = vmatpush.xpose.msra.mxu0 0.0
      %3892 = vmatpush.xpose.msra.mxu0 0.0
      %3893 = vmatpush.xpose.msra.mxu0 0.0
      %3894 = vmatpush.xpose.msra.mxu0 0.0
      %3895 = vmatpush.xpose.msra.mxu0 0.0
      %3896 = vmatpush.xpose.msra.mxu0 0.0
      %3897 = vmatpush.xpose.msra.mxu0 0.0
      %3898 = vmatpush.xpose.msra.mxu0 0.0
      %3899 = vmatpush.xpose.msra.mxu0 0.0
      %3900 = vmatpush.xpose.msra.mxu0 0.0
      %3901 = vmatpush.xpose.msra.mxu0 0.0
      %3902 = vmatpush.xpose.msra.mxu0 %v3886
      %3903 = vmatpush.xpose.msra.mxu0 %v3884
      %3904 = vmatmul.f32.gmra.mxu0 %v3880
      %v3905 = vpop.f32.mrf.mxu0
      %v3906 = vadd.f32 0.0, %v3905
      %3907 = vmatmul.f32.gmra.mxu0 %v3882
      %v3908 = vpop.f32.mrf.mxu0
      %v3909 = vadd.f32 0.0, %v3908
      %3910 = vdwg.mxu0
      %3911 = vrot.lane.b32.xlu0 %v2596, 96
      %v3912 = vpop.permute.xlu0 %3911
      %3913 = vrot.lane.b32.xlu0 %v2598, 96
      %v3914 = vpop.permute.xlu0 %3913
      %v3915 = vsel %vm2759, %v2596, 0
      %v3917 = vsel %vm2759, %v2598, 0
      %v3919 = vsel %vm2759, %v3912, 0
      %v3921 = vsel %vm2759, %v3914, 0
      %3923 = vmatpush.xpose.msra.mxu0 0.0
      %3924 = vmatpush.xpose.msra.mxu0 0.0
      %3925 = vmatpush.xpose.msra.mxu0 0.0
      %3926 = vmatpush.xpose.msra.mxu0 0.0
      %3927 = vmatpush.xpose.msra.mxu0 0.0
      %3928 = vmatpush.xpose.msra.mxu0 0.0
      %3929 = vmatpush.xpose.msra.mxu0 0.0
      %3930 = vmatpush.xpose.msra.mxu0 0.0
      %3931 = vmatpush.xpose.msra.mxu0 0.0
      %3932 = vmatpush.xpose.msra.mxu0 0.0
      %3933 = vmatpush.xpose.msra.mxu0 0.0
      %3934 = vmatpush.xpose.msra.mxu0 0.0
      %3935 = vmatpush.xpose.msra.mxu0 0.0
      %3936 = vmatpush.xpose.msra.mxu0 0.0
      %3937 = vmatpush.xpose.msra.mxu0 %v3921
      %3938 = vmatpush.xpose.msra.mxu0 %v3919
      %3939 = vmatmul.f32.gmra.mxu0 %v3915
      %v3940 = vpop.f32.mrf.mxu0
      %v3941 = vadd.f32 0.0, %v3940
      %3942 = vmatmul.f32.gmra.mxu0 %v3917
      %v3943 = vpop.f32.mrf.mxu0
      %v3944 = vadd.f32 0.0, %v3943
      %3945 = vdwg.mxu0
      %3946 = vrot.lane.b32.xlu0 %v2660, 96
      %v3947 = vpop.permute.xlu0 %3946
      %3948 = vrot.lane.b32.xlu0 %v2662, 96
      %v3949 = vpop.permute.xlu0 %3948
      %v3950 = vsel %vm2759, %v2660, 0
      %v3952 = vsel %vm2759, %v2662, 0
      %v3954 = vsel %vm2759, %v3947, 0
      %v3956 = vsel %vm2759, %v3949, 0
      %3958 = vmatpush.xpose.msra.mxu0 0.0
      %3959 = vmatpush.xpose.msra.mxu0 0.0
      %3960 = vmatpush.xpose.msra.mxu0 0.0
      %3961 = vmatpush.xpose.msra.mxu0 0.0
      %3962 = vmatpush.xpose.msra.mxu0 0.0
      %3963 = vmatpush.xpose.msra.mxu0 0.0
      %3964 = vmatpush.xpose.msra.mxu0 0.0
      %3965 = vmatpush.xpose.msra.mxu0 0.0
      %3966 = vmatpush.xpose.msra.mxu0 0.0
      %3967 = vmatpush.xpose.msra.mxu0 0.0
      %3968 = vmatpush.xpose.msra.mxu0 0.0
      %3969 = vmatpush.xpose.msra.mxu0 0.0
      %3970 = vmatpush.xpose.msra.mxu0 0.0
      %3971 = vmatpush.xpose.msra.mxu0 0.0
      %3972 = vmatpush.xpose.msra.mxu0 %v3956
      %3973 = vmatpush.xpose.msra.mxu0 %v3954
      %3974 = vmatmul.f32.gmra.mxu0 %v3950
      %v3975 = vpop.f32.mrf.mxu0
      %v3976 = vadd.f32 0.0, %v3975
      %3977 = vmatmul.f32.gmra.mxu0 %v3952
      %v3978 = vpop.f32.mrf.mxu0
      %v3979 = vadd.f32 0.0, %v3978
      %3980 = vdwg.mxu0
      %3981 = vrot.lane.b32.xlu0 %v2724, 96
      %v3982 = vpop.permute.xlu0 %3981
      %3983 = vrot.lane.b32.xlu0 %v2726, 96
      %v3984 = vpop.permute.xlu0 %3983
      %v3985 = vsel %vm2759, %v2724, 0
      %v3987 = vsel %vm2759, %v2726, 0
      %v3989 = vsel %vm2759, %v3982, 0
      %v3991 = vsel %vm2759, %v3984, 0
      %3993 = vmatpush.xpose.msra.mxu0 0.0
      %3994 = vmatpush.xpose.msra.mxu0 0.0
      %3995 = vmatpush.xpose.msra.mxu0 0.0
      %3996 = vmatpush.xpose.msra.mxu0 0.0
      %3997 = vmatpush.xpose.msra.mxu0 0.0
      %3998 = vmatpush.xpose.msra.mxu0 0.0
      %3999 = vmatpush.xpose.msra.mxu0 0.0
      %4000 = vmatpush.xpose.msra.mxu0 0.0
      %4001 = vmatpush.xpose.msra.mxu0 0.0
      %4002 = vmatpush.xpose.msra.mxu0 0.0
      %4003 = vmatpush.xpose.msra.mxu0 0.0
      %4004 = vmatpush.xpose.msra.mxu0 0.0
      %4005 = vmatpush.xpose.msra.mxu0 0.0
      %4006 = vmatpush.xpose.msra.mxu0 0.0
      %4007 = vmatpush.xpose.msra.mxu0 %v3991
      %4008 = vmatpush.xpose.msra.mxu0 %v3989
      %4009 = vmatmul.f32.gmra.mxu0 %v3985
      %v4010 = vpop.f32.mrf.mxu0
      %v4011 = vadd.f32 0.0, %v4010
      %4012 = vmatmul.f32.gmra.mxu0 %v3987
      %v4013 = vpop.f32.mrf.mxu0
      %v4014 = vadd.f32 0.0, %v4013
      %4015 = vdwg.mxu0
      %4016 = vrot.lane.b32.xlu0 %v2490, 96
      %v4017 = vpop.permute.xlu0 %4016
      %4018 = vrot.lane.b32.xlu0 %v2493, 96
      %v4019 = vpop.permute.xlu0 %4018
      %v4020 = vsel %vm2759, %v2490, 0
      %v4022 = vsel %vm2759, %v2493, 0
      %v4024 = vsel %vm2759, %v4017, 0
      %v4026 = vsel %vm2759, %v4019, 0
      %4028 = vmatpush.xpose.msra.mxu0 0.0
      %4029 = vmatpush.xpose.msra.mxu0 0.0
      %4030 = vmatpush.xpose.msra.mxu0 0.0
      %4031 = vmatpush.xpose.msra.mxu0 0.0
      %4032 = vmatpush.xpose.msra.mxu0 0.0
      %4033 = vmatpush.xpose.msra.mxu0 0.0
      %4034 = vmatpush.xpose.msra.mxu0 0.0
      %4035 = vmatpush.xpose.msra.mxu0 0.0
      %4036 = vmatpush.xpose.msra.mxu0 0.0
      %4037 = vmatpush.xpose.msra.mxu0 0.0
      %4038 = vmatpush.xpose.msra.mxu0 0.0
      %4039 = vmatpush.xpose.msra.mxu0 0.0
      %4040 = vmatpush.xpose.msra.mxu0 0.0
      %4041 = vmatpush.xpose.msra.mxu0 0.0
      %4042 = vmatpush.xpose.msra.mxu0 %v4026
      %4043 = vmatpush.xpose.msra.mxu0 %v4024
      %4044 = vmatmul.f32.gmra.mxu0 %v4020
      %v4045 = vpop.f32.mrf.mxu0
      %v4046 = vadd.f32 0.0, %v4045
      %4047 = vmatmul.f32.gmra.mxu0 %v4022
      %v4048 = vpop.f32.mrf.mxu0
      %v4049 = vadd.f32 0.0, %v4048
      %4050 = vdwg.mxu0
      %4051 = vrot.lane.b32.xlu0 %v2600, 96
      %v4052 = vpop.permute.xlu0 %4051
      %4053 = vrot.lane.b32.xlu0 %v2602, 96
      %v4054 = vpop.permute.xlu0 %4053
      %v4055 = vsel %vm2759, %v2600, 0
      %v4057 = vsel %vm2759, %v2602, 0
      %v4059 = vsel %vm2759, %v4052, 0
      %v4061 = vsel %vm2759, %v4054, 0
      %4063 = vmatpush.xpose.msra.mxu0 0.0
      %4064 = vmatpush.xpose.msra.mxu0 0.0
      %4065 = vmatpush.xpose.msra.mxu0 0.0
      %4066 = vmatpush.xpose.msra.mxu0 0.0
      %4067 = vmatpush.xpose.msra.mxu0 0.0
      %4068 = vmatpush.xpose.msra.mxu0 0.0
      %4069 = vmatpush.xpose.msra.mxu0 0.0
      %4070 = vmatpush.xpose.msra.mxu0 0.0
      %4071 = vmatpush.xpose.msra.mxu0 0.0
      %4072 = vmatpush.xpose.msra.mxu0 0.0
      %4073 = vmatpush.xpose.msra.mxu0 0.0
      %4074 = vmatpush.xpose.msra.mxu0 0.0
      %4075 = vmatpush.xpose.msra.mxu0 0.0
      %4076 = vmatpush.xpose.msra.mxu0 0.0
      %4077 = vmatpush.xpose.msra.mxu0 %v4061
      %4078 = vmatpush.xpose.msra.mxu0 %v4059
      %4079 = vmatmul.f32.gmra.mxu0 %v4055
      %v4080 = vpop.f32.mrf.mxu0
      %v4081 = vadd.f32 0.0, %v4080
      %4082 = vmatmul.f32.gmra.mxu0 %v4057
      %v4083 = vpop.f32.mrf.mxu0
      %v4084 = vadd.f32 0.0, %v4083
      %4085 = vdwg.mxu0
      %4086 = vrot.lane.b32.xlu0 %v2664, 96
      %v4087 = vpop.permute.xlu0 %4086
      %4088 = vrot.lane.b32.xlu0 %v2666, 96
      %v4089 = vpop.permute.xlu0 %4088
      %v4090 = vsel %vm2759, %v2664, 0
      %v4092 = vsel %vm2759, %v2666, 0
      %v4094 = vsel %vm2759, %v4087, 0
      %v4096 = vsel %vm2759, %v4089, 0
      %4098 = vmatpush.xpose.msra.mxu0 0.0
      %4099 = vmatpush.xpose.msra.mxu0 0.0
      %4100 = vmatpush.xpose.msra.mxu0 0.0
      %4101 = vmatpush.xpose.msra.mxu0 0.0
      %4102 = vmatpush.xpose.msra.mxu0 0.0
      %4103 = vmatpush.xpose.msra.mxu0 0.0
      %4104 = vmatpush.xpose.msra.mxu0 0.0
      %4105 = vmatpush.xpose.msra.mxu0 0.0
      %4106 = vmatpush.xpose.msra.mxu0 0.0
      %4107 = vmatpush.xpose.msra.mxu0 0.0
      %4108 = vmatpush.xpose.msra.mxu0 0.0
      %4109 = vmatpush.xpose.msra.mxu0 0.0
      %4110 = vmatpush.xpose.msra.mxu0 0.0
      %4111 = vmatpush.xpose.msra.mxu0 0.0
      %4112 = vmatpush.xpose.msra.mxu0 %v4096
      %4113 = vmatpush.xpose.msra.mxu0 %v4094
      %4114 = vmatmul.f32.gmra.mxu0 %v4090
      %v4115 = vpop.f32.mrf.mxu0
      %v4116 = vadd.f32 0.0, %v4115
      %4117 = vmatmul.f32.gmra.mxu0 %v4092
      %v4118 = vpop.f32.mrf.mxu0
      %v4119 = vadd.f32 0.0, %v4118
      %4120 = vdwg.mxu0
      %4121 = vrot.lane.b32.xlu0 %v2728, 96
      %v4122 = vpop.permute.xlu0 %4121
      %4123 = vrot.lane.b32.xlu0 %v2730, 96
      %v4124 = vpop.permute.xlu0 %4123
      %v4125 = vsel %vm2759, %v2728, 0
      %v4127 = vsel %vm2759, %v2730, 0
      %v4129 = vsel %vm2759, %v4122, 0
      %v4131 = vsel %vm2759, %v4124, 0
      %4133 = vmatpush.xpose.msra.mxu0 0.0
      %4134 = vmatpush.xpose.msra.mxu0 0.0
      %4135 = vmatpush.xpose.msra.mxu0 0.0
      %4136 = vmatpush.xpose.msra.mxu0 0.0
      %4137 = vmatpush.xpose.msra.mxu0 0.0
      %4138 = vmatpush.xpose.msra.mxu0 0.0
      %4139 = vmatpush.xpose.msra.mxu0 0.0
      %4140 = vmatpush.xpose.msra.mxu0 0.0
      %4141 = vmatpush.xpose.msra.mxu0 0.0
      %4142 = vmatpush.xpose.msra.mxu0 0.0
      %4143 = vmatpush.xpose.msra.mxu0 0.0
      %4144 = vmatpush.xpose.msra.mxu0 0.0
      %4145 = vmatpush.xpose.msra.mxu0 0.0
      %4146 = vmatpush.xpose.msra.mxu0 0.0
      %4147 = vmatpush.xpose.msra.mxu0 %v4131
      %4148 = vmatpush.xpose.msra.mxu0 %v4129
      %4149 = vmatmul.f32.gmra.mxu0 %v4125
      %v4150 = vpop.f32.mrf.mxu0
      %v4151 = vadd.f32 0.0, %v4150
      %4152 = vmatmul.f32.gmra.mxu0 %v4127
      %v4153 = vpop.f32.mrf.mxu0
      %v4154 = vadd.f32 0.0, %v4153
      %4155 = vdwg.mxu0
      %4156 = vrot.lane.b32.xlu0 %v2496, 96
      %v4157 = vpop.permute.xlu0 %4156
      %4158 = vrot.lane.b32.xlu0 %v2499, 96
      %v4159 = vpop.permute.xlu0 %4158
      %v4160 = vsel %vm2759, %v2496, 0
      %v4162 = vsel %vm2759, %v2499, 0
      %v4164 = vsel %vm2759, %v4157, 0
      %v4166 = vsel %vm2759, %v4159, 0
      %4168 = vmatpush.xpose.msra.mxu0 0.0
      %4169 = vmatpush.xpose.msra.mxu0 0.0
      %4170 = vmatpush.xpose.msra.mxu0 0.0
      %4171 = vmatpush.xpose.msra.mxu0 0.0
      %4172 = vmatpush.xpose.msra.mxu0 0.0
      %4173 = vmatpush.xpose.msra.mxu0 0.0
      %4174 = vmatpush.xpose.msra.mxu0 0.0
      %4175 = vmatpush.xpose.msra.mxu0 0.0
      %4176 = vmatpush.xpose.msra.mxu0 0.0
      %4177 = vmatpush.xpose.msra.mxu0 0.0
      %4178 = vmatpush.xpose.msra.mxu0 0.0
      %4179 = vmatpush.xpose.msra.mxu0 0.0
      %4180 = vmatpush.xpose.msra.mxu0 0.0
      %4181 = vmatpush.xpose.msra.mxu0 0.0
      %4182 = vmatpush.xpose.msra.mxu0 %v4166
      %4183 = vmatpush.xpose.msra.mxu0 %v4164
      %4184 = vmatmul.f32.gmra.mxu0 %v4160
      %v4185 = vpop.f32.mrf.mxu0
      %v4186 = vadd.f32 0.0, %v4185
      %4187 = vmatmul.f32.gmra.mxu0 %v4162
      %v4188 = vpop.f32.mrf.mxu0
      %v4189 = vadd.f32 0.0, %v4188
      %4190 = vdwg.mxu0
      %4191 = vrot.lane.b32.xlu0 %v2604, 96
      %v4192 = vpop.permute.xlu0 %4191
      %4193 = vrot.lane.b32.xlu0 %v2606, 96
      %v4194 = vpop.permute.xlu0 %4193
      %v4195 = vsel %vm2759, %v2604, 0
      %v4197 = vsel %vm2759, %v2606, 0
      %v4199 = vsel %vm2759, %v4192, 0
      %v4201 = vsel %vm2759, %v4194, 0
      %4203 = vmatpush.xpose.msra.mxu0 0.0
      %4204 = vmatpush.xpose.msra.mxu0 0.0
      %4205 = vmatpush.xpose.msra.mxu0 0.0
      %4206 = vmatpush.xpose.msra.mxu0 0.0
      %4207 = vmatpush.xpose.msra.mxu0 0.0
      %4208 = vmatpush.xpose.msra.mxu0 0.0
      %4209 = vmatpush.xpose.msra.mxu0 0.0
      %4210 = vmatpush.xpose.msra.mxu0 0.0
      %4211 = vmatpush.xpose.msra.mxu0 0.0
      %4212 = vmatpush.xpose.msra.mxu0 0.0
      %4213 = vmatpush.xpose.msra.mxu0 0.0
      %4214 = vmatpush.xpose.msra.mxu0 0.0
      %4215 = vmatpush.xpose.msra.mxu0 0.0
      %4216 = vmatpush.xpose.msra.mxu0 0.0
      %4217 = vmatpush.xpose.msra.mxu0 %v4201
      %4218 = vmatpush.xpose.msra.mxu0 %v4199
      %4219 = vmatmul.f32.gmra.mxu0 %v4195
      %v4220 = vpop.f32.mrf.mxu0
      %v4221 = vadd.f32 0.0, %v4220
      %4222 = vmatmul.f32.gmra.mxu0 %v4197
      %v4223 = vpop.f32.mrf.mxu0
      %v4224 = vadd.f32 0.0, %v4223
      %4225 = vdwg.mxu0
      %4226 = vrot.lane.b32.xlu0 %v2668, 96
      %v4227 = vpop.permute.xlu0 %4226
      %4228 = vrot.lane.b32.xlu0 %v2670, 96
      %v4229 = vpop.permute.xlu0 %4228
      %v4230 = vsel %vm2759, %v2668, 0
      %v4232 = vsel %vm2759, %v2670, 0
      %v4234 = vsel %vm2759, %v4227, 0
      %v4236 = vsel %vm2759, %v4229, 0
      %4238 = vmatpush.xpose.msra.mxu0 0.0
      %4239 = vmatpush.xpose.msra.mxu0 0.0
      %4240 = vmatpush.xpose.msra.mxu0 0.0
      %4241 = vmatpush.xpose.msra.mxu0 0.0
      %4242 = vmatpush.xpose.msra.mxu0 0.0
      %4243 = vmatpush.xpose.msra.mxu0 0.0
      %4244 = vmatpush.xpose.msra.mxu0 0.0
      %4245 = vmatpush.xpose.msra.mxu0 0.0
      %4246 = vmatpush.xpose.msra.mxu0 0.0
      %4247 = vmatpush.xpose.msra.mxu0 0.0
      %4248 = vmatpush.xpose.msra.mxu0 0.0
      %4249 = vmatpush.xpose.msra.mxu0 0.0
      %4250 = vmatpush.xpose.msra.mxu0 0.0
      %4251 = vmatpush.xpose.msra.mxu0 0.0
      %4252 = vmatpush.xpose.msra.mxu0 %v4236
      %4253 = vmatpush.xpose.msra.mxu0 %v4234
      %4254 = vmatmul.f32.gmra.mxu0 %v4230
      %v4255 = vpop.f32.mrf.mxu0
      %v4256 = vadd.f32 0.0, %v4255
      %4257 = vmatmul.f32.gmra.mxu0 %v4232
      %v4258 = vpop.f32.mrf.mxu0
      %v4259 = vadd.f32 0.0, %v4258
      %4260 = vdwg.mxu0
      %4261 = vrot.lane.b32.xlu0 %v2732, 96
      %v4262 = vpop.permute.xlu0 %4261
      %4263 = vrot.lane.b32.xlu0 %v2734, 96
      %v4264 = vpop.permute.xlu0 %4263
      %v4265 = vsel %vm2759, %v2732, 0
      %v4267 = vsel %vm2759, %v2734, 0
      %v4269 = vsel %vm2759, %v4262, 0
      %v4271 = vsel %vm2759, %v4264, 0
      %4273 = vmatpush.xpose.msra.mxu0 0.0
      %4274 = vmatpush.xpose.msra.mxu0 0.0
      %4275 = vmatpush.xpose.msra.mxu0 0.0
      %4276 = vmatpush.xpose.msra.mxu0 0.0
      %4277 = vmatpush.xpose.msra.mxu0 0.0
      %4278 = vmatpush.xpose.msra.mxu0 0.0
      %4279 = vmatpush.xpose.msra.mxu0 0.0
      %4280 = vmatpush.xpose.msra.mxu0 0.0
      %4281 = vmatpush.xpose.msra.mxu0 0.0
      %4282 = vmatpush.xpose.msra.mxu0 0.0
      %4283 = vmatpush.xpose.msra.mxu0 0.0
      %4284 = vmatpush.xpose.msra.mxu0 0.0
      %4285 = vmatpush.xpose.msra.mxu0 0.0
      %4286 = vmatpush.xpose.msra.mxu0 0.0
      %4287 = vmatpush.xpose.msra.mxu0 %v4271
      %4288 = vmatpush.xpose.msra.mxu0 %v4269
      %4289 = vmatmul.f32.gmra.mxu0 %v4265
      %v4290 = vpop.f32.mrf.mxu0
      %v4291 = vadd.f32 0.0, %v4290
      %4292 = vmatmul.f32.gmra.mxu0 %v4267
      %v4293 = vpop.f32.mrf.mxu0
      %v4294 = vadd.f32 0.0, %v4293
      %4295 = vdwg.mxu0
      %4296 = vrot.lane.b32.xlu0 %v2502, 96
      %v4297 = vpop.permute.xlu0 %4296
      %4298 = vrot.lane.b32.xlu0 %v2505, 96
      %v4299 = vpop.permute.xlu0 %4298
      %v4300 = vsel %vm2759, %v2502, 0
      %v4302 = vsel %vm2759, %v2505, 0
      %v4304 = vsel %vm2759, %v4297, 0
      %v4306 = vsel %vm2759, %v4299, 0
      %4308 = vmatpush.xpose.msra.mxu0 0.0
      %4309 = vmatpush.xpose.msra.mxu0 0.0
      %4310 = vmatpush.xpose.msra.mxu0 0.0
      %4311 = vmatpush.xpose.msra.mxu0 0.0
      %4312 = vmatpush.xpose.msra.mxu0 0.0
      %4313 = vmatpush.xpose.msra.mxu0 0.0
      %4314 = vmatpush.xpose.msra.mxu0 0.0
      %4315 = vmatpush.xpose.msra.mxu0 0.0
      %4316 = vmatpush.xpose.msra.mxu0 0.0
      %4317 = vmatpush.xpose.msra.mxu0 0.0
      %4318 = vmatpush.xpose.msra.mxu0 0.0
      %4319 = vmatpush.xpose.msra.mxu0 0.0
      %4320 = vmatpush.xpose.msra.mxu0 0.0
      %4321 = vmatpush.xpose.msra.mxu0 0.0
      %4322 = vmatpush.xpose.msra.mxu0 %v4306
      %4323 = vmatpush.xpose.msra.mxu0 %v4304
      %4324 = vmatmul.f32.gmra.mxu0 %v4300
      %v4325 = vpop.f32.mrf.mxu0
      %v4326 = vadd.f32 0.0, %v4325
      %4327 = vmatmul.f32.gmra.mxu0 %v4302
      %v4328 = vpop.f32.mrf.mxu0
      %v4329 = vadd.f32 0.0, %v4328
      %4330 = vdwg.mxu0
      %4331 = vrot.lane.b32.xlu0 %v2608, 96
      %v4332 = vpop.permute.xlu0 %4331
      %4333 = vrot.lane.b32.xlu0 %v2610, 96
      %v4334 = vpop.permute.xlu0 %4333
      %v4335 = vsel %vm2759, %v2608, 0
      %v4337 = vsel %vm2759, %v2610, 0
      %v4339 = vsel %vm2759, %v4332, 0
      %v4341 = vsel %vm2759, %v4334, 0
      %4343 = vmatpush.xpose.msra.mxu0 0.0
      %4344 = vmatpush.xpose.msra.mxu0 0.0
      %4345 = vmatpush.xpose.msra.mxu0 0.0
      %4346 = vmatpush.xpose.msra.mxu0 0.0
      %4347 = vmatpush.xpose.msra.mxu0 0.0
      %4348 = vmatpush.xpose.msra.mxu0 0.0
      %4349 = vmatpush.xpose.msra.mxu0 0.0
      %4350 = vmatpush.xpose.msra.mxu0 0.0
      %4351 = vmatpush.xpose.msra.mxu0 0.0
      %4352 = vmatpush.xpose.msra.mxu0 0.0
      %4353 = vmatpush.xpose.msra.mxu0 0.0
      %4354 = vmatpush.xpose.msra.mxu0 0.0
      %4355 = vmatpush.xpose.msra.mxu0 0.0
      %4356 = vmatpush.xpose.msra.mxu0 0.0
      %4357 = vmatpush.xpose.msra.mxu0 %v4341
      %4358 = vmatpush.xpose.msra.mxu0 %v4339
      %4359 = vmatmul.f32.gmra.mxu0 %v4335
      %v4360 = vpop.f32.mrf.mxu0
      %v4361 = vadd.f32 0.0, %v4360
      %4362 = vmatmul.f32.gmra.mxu0 %v4337
      %v4363 = vpop.f32.mrf.mxu0
      %v4364 = vadd.f32 0.0, %v4363
      %4365 = vdwg.mxu0
      %4366 = vrot.lane.b32.xlu0 %v2672, 96
      %v4367 = vpop.permute.xlu0 %4366
      %4368 = vrot.lane.b32.xlu0 %v2674, 96
      %v4369 = vpop.permute.xlu0 %4368
      %v4370 = vsel %vm2759, %v2672, 0
      %v4372 = vsel %vm2759, %v2674, 0
      %v4374 = vsel %vm2759, %v4367, 0
      %v4376 = vsel %vm2759, %v4369, 0
      %4378 = vmatpush.xpose.msra.mxu0 0.0
      %4379 = vmatpush.xpose.msra.mxu0 0.0
      %4380 = vmatpush.xpose.msra.mxu0 0.0
      %4381 = vmatpush.xpose.msra.mxu0 0.0
      %4382 = vmatpush.xpose.msra.mxu0 0.0
      %4383 = vmatpush.xpose.msra.mxu0 0.0
      %4384 = vmatpush.xpose.msra.mxu0 0.0
      %4385 = vmatpush.xpose.msra.mxu0 0.0
      %4386 = vmatpush.xpose.msra.mxu0 0.0
      %4387 = vmatpush.xpose.msra.mxu0 0.0
      %4388 = vmatpush.xpose.msra.mxu0 0.0
      %4389 = vmatpush.xpose.msra.mxu0 0.0
      %4390 = vmatpush.xpose.msra.mxu0 0.0
      %4391 = vmatpush.xpose.msra.mxu0 0.0
      %4392 = vmatpush.xpose.msra.mxu0 %v4376
      %4393 = vmatpush.xpose.msra.mxu0 %v4374
      %4394 = vmatmul.f32.gmra.mxu0 %v4370
      %v4395 = vpop.f32.mrf.mxu0
      %v4396 = vadd.f32 0.0, %v4395
      %4397 = vmatmul.f32.gmra.mxu0 %v4372
      %v4398 = vpop.f32.mrf.mxu0
      %v4399 = vadd.f32 0.0, %v4398
      %4400 = vdwg.mxu0
      %4401 = vrot.lane.b32.xlu0 %v2736, 96
      %v4402 = vpop.permute.xlu0 %4401
      %4403 = vrot.lane.b32.xlu0 %v2738, 96
      %v4404 = vpop.permute.xlu0 %4403
      %v4405 = vsel %vm2759, %v2736, 0
      %v4407 = vsel %vm2759, %v2738, 0
      %v4409 = vsel %vm2759, %v4402, 0
      %v4411 = vsel %vm2759, %v4404, 0
      %4413 = vmatpush.xpose.msra.mxu0 0.0
      %4414 = vmatpush.xpose.msra.mxu0 0.0
      %4415 = vmatpush.xpose.msra.mxu0 0.0
      %4416 = vmatpush.xpose.msra.mxu0 0.0
      %4417 = vmatpush.xpose.msra.mxu0 0.0
      %4418 = vmatpush.xpose.msra.mxu0 0.0
      %4419 = vmatpush.xpose.msra.mxu0 0.0
      %4420 = vmatpush.xpose.msra.mxu0 0.0
      %4421 = vmatpush.xpose.msra.mxu0 0.0
      %4422 = vmatpush.xpose.msra.mxu0 0.0
      %4423 = vmatpush.xpose.msra.mxu0 0.0
      %4424 = vmatpush.xpose.msra.mxu0 0.0
      %4425 = vmatpush.xpose.msra.mxu0 0.0
      %4426 = vmatpush.xpose.msra.mxu0 0.0
      %4427 = vmatpush.xpose.msra.mxu0 %v4411
      %4428 = vmatpush.xpose.msra.mxu0 %v4409
      %4429 = vmatmul.f32.gmra.mxu0 %v4405
      %v4430 = vpop.f32.mrf.mxu0
      %v4431 = vadd.f32 0.0, %v4430
      %4432 = vmatmul.f32.gmra.mxu0 %v4407
      %v4433 = vpop.f32.mrf.mxu0
      %v4434 = vadd.f32 0.0, %v4433
      %4435 = vdwg.mxu0
      %4436 = vrot.lane.b32.xlu0 %v2508, 96
      %v4437 = vpop.permute.xlu0 %4436
      %4438 = vrot.lane.b32.xlu0 %v2511, 96
      %v4439 = vpop.permute.xlu0 %4438
      %v4440 = vsel %vm2759, %v2508, 0
      %v4442 = vsel %vm2759, %v2511, 0
      %v4444 = vsel %vm2759, %v4437, 0
      %v4446 = vsel %vm2759, %v4439, 0
      %4448 = vmatpush.xpose.msra.mxu0 0.0
      %4449 = vmatpush.xpose.msra.mxu0 0.0
      %4450 = vmatpush.xpose.msra.mxu0 0.0
      %4451 = vmatpush.xpose.msra.mxu0 0.0
      %4452 = vmatpush.xpose.msra.mxu0 0.0
      %4453 = vmatpush.xpose.msra.mxu0 0.0
      %4454 = vmatpush.xpose.msra.mxu0 0.0
      %4455 = vmatpush.xpose.msra.mxu0 0.0
      %4456 = vmatpush.xpose.msra.mxu0 0.0
      %4457 = vmatpush.xpose.msra.mxu0 0.0
      %4458 = vmatpush.xpose.msra.mxu0 0.0
      %4459 = vmatpush.xpose.msra.mxu0 0.0
      %4460 = vmatpush.xpose.msra.mxu0 0.0
      %4461 = vmatpush.xpose.msra.mxu0 0.0
      %4462 = vmatpush.xpose.msra.mxu0 %v4446
      %4463 = vmatpush.xpose.msra.mxu0 %v4444
      %4464 = vmatmul.f32.gmra.mxu0 %v4440
      %v4465 = vpop.f32.mrf.mxu0
      %v4466 = vadd.f32 0.0, %v4465
      %4467 = vmatmul.f32.gmra.mxu0 %v4442
      %v4468 = vpop.f32.mrf.mxu0
      %v4469 = vadd.f32 0.0, %v4468
      %4470 = vdwg.mxu0
      %4471 = vrot.lane.b32.xlu0 %v2612, 96
      %v4472 = vpop.permute.xlu0 %4471
      %4473 = vrot.lane.b32.xlu0 %v2614, 96
      %v4474 = vpop.permute.xlu0 %4473
      %v4475 = vsel %vm2759, %v2612, 0
      %v4477 = vsel %vm2759, %v2614, 0
      %v4479 = vsel %vm2759, %v4472, 0
      %v4481 = vsel %vm2759, %v4474, 0
      %4483 = vmatpush.xpose.msra.mxu0 0.0
      %4484 = vmatpush.xpose.msra.mxu0 0.0
      %4485 = vmatpush.xpose.msra.mxu0 0.0
      %4486 = vmatpush.xpose.msra.mxu0 0.0
      %4487 = vmatpush.xpose.msra.mxu0 0.0
      %4488 = vmatpush.xpose.msra.mxu0 0.0
      %4489 = vmatpush.xpose.msra.mxu0 0.0
      %4490 = vmatpush.xpose.msra.mxu0 0.0
      %4491 = vmatpush.xpose.msra.mxu0 0.0
      %4492 = vmatpush.xpose.msra.mxu0 0.0
      %4493 = vmatpush.xpose.msra.mxu0 0.0
      %4494 = vmatpush.xpose.msra.mxu0 0.0
      %4495 = vmatpush.xpose.msra.mxu0 0.0
      %4496 = vmatpush.xpose.msra.mxu0 0.0
      %4497 = vmatpush.xpose.msra.mxu0 %v4481
      %4498 = vmatpush.xpose.msra.mxu0 %v4479
      %4499 = vmatmul.f32.gmra.mxu0 %v4475
      %v4500 = vpop.f32.mrf.mxu0
      %v4501 = vadd.f32 0.0, %v4500
      %4502 = vmatmul.f32.gmra.mxu0 %v4477
      %v4503 = vpop.f32.mrf.mxu0
      %v4504 = vadd.f32 0.0, %v4503
      %4505 = vdwg.mxu0
      %4506 = vrot.lane.b32.xlu0 %v2676, 96
      %v4507 = vpop.permute.xlu0 %4506
      %4508 = vrot.lane.b32.xlu0 %v2678, 96
      %v4509 = vpop.permute.xlu0 %4508
      %v4510 = vsel %vm2759, %v2676, 0
      %v4512 = vsel %vm2759, %v2678, 0
      %v4514 = vsel %vm2759, %v4507, 0
      %v4516 = vsel %vm2759, %v4509, 0
      %4518 = vmatpush.xpose.msra.mxu0 0.0
      %4519 = vmatpush.xpose.msra.mxu0 0.0
      %4520 = vmatpush.xpose.msra.mxu0 0.0
      %4521 = vmatpush.xpose.msra.mxu0 0.0
      %4522 = vmatpush.xpose.msra.mxu0 0.0
      %4523 = vmatpush.xpose.msra.mxu0 0.0
      %4524 = vmatpush.xpose.msra.mxu0 0.0
      %4525 = vmatpush.xpose.msra.mxu0 0.0
      %4526 = vmatpush.xpose.msra.mxu0 0.0
      %4527 = vmatpush.xpose.msra.mxu0 0.0
      %4528 = vmatpush.xpose.msra.mxu0 0.0
      %4529 = vmatpush.xpose.msra.mxu0 0.0
      %4530 = vmatpush.xpose.msra.mxu0 0.0
      %4531 = vmatpush.xpose.msra.mxu0 0.0
      %4532 = vmatpush.xpose.msra.mxu0 %v4516
      %4533 = vmatpush.xpose.msra.mxu0 %v4514
      %4534 = vmatmul.f32.gmra.mxu0 %v4510
      %v4535 = vpop.f32.mrf.mxu0
      %v4536 = vadd.f32 0.0, %v4535
      %4537 = vmatmul.f32.gmra.mxu0 %v4512
      %v4538 = vpop.f32.mrf.mxu0
      %v4539 = vadd.f32 0.0, %v4538
      %4540 = vdwg.mxu0
      %4541 = vrot.lane.b32.xlu0 %v2740, 96
      %v4542 = vpop.permute.xlu0 %4541
      %4543 = vrot.lane.b32.xlu0 %v2742, 96
      %v4544 = vpop.permute.xlu0 %4543
      %v4545 = vsel %vm2759, %v2740, 0
      %v4547 = vsel %vm2759, %v2742, 0
      %v4549 = vsel %vm2759, %v4542, 0
      %v4551 = vsel %vm2759, %v4544, 0
      %4553 = vmatpush.xpose.msra.mxu0 0.0
      %4554 = vmatpush.xpose.msra.mxu0 0.0
      %4555 = vmatpush.xpose.msra.mxu0 0.0
      %4556 = vmatpush.xpose.msra.mxu0 0.0
      %4557 = vmatpush.xpose.msra.mxu0 0.0
      %4558 = vmatpush.xpose.msra.mxu0 0.0
      %4559 = vmatpush.xpose.msra.mxu0 0.0
      %4560 = vmatpush.xpose.msra.mxu0 0.0
      %4561 = vmatpush.xpose.msra.mxu0 0.0
      %4562 = vmatpush.xpose.msra.mxu0 0.0
      %4563 = vmatpush.xpose.msra.mxu0 0.0
      %4564 = vmatpush.xpose.msra.mxu0 0.0
      %4565 = vmatpush.xpose.msra.mxu0 0.0
      %4566 = vmatpush.xpose.msra.mxu0 0.0
      %4567 = vmatpush.xpose.msra.mxu0 %v4551
      %4568 = vmatpush.xpose.msra.mxu0 %v4549
      %4569 = vmatmul.f32.gmra.mxu0 %v4545
      %v4570 = vpop.f32.mrf.mxu0
      %v4571 = vadd.f32 0.0, %v4570
      %4572 = vmatmul.f32.gmra.mxu0 %v4547
      %v4573 = vpop.f32.mrf.mxu0
      %v4574 = vadd.f32 0.0, %v4573
      %4575 = vdwg.mxu0
      %4576 = vrot.lane.b32.xlu0 %v2514, 96
      %v4577 = vpop.permute.xlu0 %4576
      %4578 = vrot.lane.b32.xlu0 %v2517, 96
      %v4579 = vpop.permute.xlu0 %4578
      %v4580 = vsel %vm2759, %v2514, 0
      %v4582 = vsel %vm2759, %v2517, 0
      %v4584 = vsel %vm2759, %v4577, 0
      %v4586 = vsel %vm2759, %v4579, 0
      %4588 = vmatpush.xpose.msra.mxu0 0.0
      %4589 = vmatpush.xpose.msra.mxu0 0.0
      %4590 = vmatpush.xpose.msra.mxu0 0.0
      %4591 = vmatpush.xpose.msra.mxu0 0.0
      %4592 = vmatpush.xpose.msra.mxu0 0.0
      %4593 = vmatpush.xpose.msra.mxu0 0.0
      %4594 = vmatpush.xpose.msra.mxu0 0.0
      %4595 = vmatpush.xpose.msra.mxu0 0.0
      %4596 = vmatpush.xpose.msra.mxu0 0.0
      %4597 = vmatpush.xpose.msra.mxu0 0.0
      %4598 = vmatpush.xpose.msra.mxu0 0.0
      %4599 = vmatpush.xpose.msra.mxu0 0.0
      %4600 = vmatpush.xpose.msra.mxu0 0.0
      %4601 = vmatpush.xpose.msra.mxu0 0.0
      %4602 = vmatpush.xpose.msra.mxu0 %v4586
      %4603 = vmatpush.xpose.msra.mxu0 %v4584
      %4604 = vmatmul.f32.gmra.mxu0 %v4580
      %v4605 = vpop.f32.mrf.mxu0
      %v4606 = vadd.f32 0.0, %v4605
      %4607 = vmatmul.f32.gmra.mxu0 %v4582
      %v4608 = vpop.f32.mrf.mxu0
      %v4609 = vadd.f32 0.0, %v4608
      %4610 = vdwg.mxu0
      %4611 = vrot.lane.b32.xlu0 %v2616, 96
      %v4612 = vpop.permute.xlu0 %4611
      %4613 = vrot.lane.b32.xlu0 %v2618, 96
      %v4614 = vpop.permute.xlu0 %4613
      %v4615 = vsel %vm2759, %v2616, 0
      %v4617 = vsel %vm2759, %v2618, 0
      %v4619 = vsel %vm2759, %v4612, 0
      %v4621 = vsel %vm2759, %v4614, 0
      %4623 = vmatpush.xpose.msra.mxu0 0.0
      %4624 = vmatpush.xpose.msra.mxu0 0.0
      %4625 = vmatpush.xpose.msra.mxu0 0.0
      %4626 = vmatpush.xpose.msra.mxu0 0.0
      %4627 = vmatpush.xpose.msra.mxu0 0.0
      %4628 = vmatpush.xpose.msra.mxu0 0.0
      %4629 = vmatpush.xpose.msra.mxu0 0.0
      %4630 = vmatpush.xpose.msra.mxu0 0.0
      %4631 = vmatpush.xpose.msra.mxu0 0.0
      %4632 = vmatpush.xpose.msra.mxu0 0.0
      %4633 = vmatpush.xpose.msra.mxu0 0.0
      %4634 = vmatpush.xpose.msra.mxu0 0.0
      %4635 = vmatpush.xpose.msra.mxu0 0.0
      %4636 = vmatpush.xpose.msra.mxu0 0.0
      %4637 = vmatpush.xpose.msra.mxu0 %v4621
      %4638 = vmatpush.xpose.msra.mxu0 %v4619
      %4639 = vmatmul.f32.gmra.mxu0 %v4615
      %v4640 = vpop.f32.mrf.mxu0
      %v4641 = vadd.f32 0.0, %v4640
      %4642 = vmatmul.f32.gmra.mxu0 %v4617
      %v4643 = vpop.f32.mrf.mxu0
      %v4644 = vadd.f32 0.0, %v4643
      %4645 = vdwg.mxu0
      %4646 = vrot.lane.b32.xlu0 %v2680, 96
      %v4647 = vpop.permute.xlu0 %4646
      %4648 = vrot.lane.b32.xlu0 %v2682, 96
      %v4649 = vpop.permute.xlu0 %4648
      %v4650 = vsel %vm2759, %v2680, 0
      %v4652 = vsel %vm2759, %v2682, 0
      %v4654 = vsel %vm2759, %v4647, 0
      %v4656 = vsel %vm2759, %v4649, 0
      %4658 = vmatpush.xpose.msra.mxu0 0.0
      %4659 = vmatpush.xpose.msra.mxu0 0.0
      %4660 = vmatpush.xpose.msra.mxu0 0.0
      %4661 = vmatpush.xpose.msra.mxu0 0.0
      %4662 = vmatpush.xpose.msra.mxu0 0.0
      %4663 = vmatpush.xpose.msra.mxu0 0.0
      %4664 = vmatpush.xpose.msra.mxu0 0.0
      %4665 = vmatpush.xpose.msra.mxu0 0.0
      %4666 = vmatpush.xpose.msra.mxu0 0.0
      %4667 = vmatpush.xpose.msra.mxu0 0.0
      %4668 = vmatpush.xpose.msra.mxu0 0.0
      %4669 = vmatpush.xpose.msra.mxu0 0.0
      %4670 = vmatpush.xpose.msra.mxu0 0.0
      %4671 = vmatpush.xpose.msra.mxu0 0.0
      %4672 = vmatpush.xpose.msra.mxu0 %v4656
      %4673 = vmatpush.xpose.msra.mxu0 %v4654
      %4674 = vmatmul.f32.gmra.mxu0 %v4650
      %v4675 = vpop.f32.mrf.mxu0
      %v4676 = vadd.f32 0.0, %v4675
      %4677 = vmatmul.f32.gmra.mxu0 %v4652
      %v4678 = vpop.f32.mrf.mxu0
      %v4679 = vadd.f32 0.0, %v4678
      %4680 = vdwg.mxu0
      %4681 = vrot.lane.b32.xlu0 %v2744, 96
      %v4682 = vpop.permute.xlu0 %4681
      %4683 = vrot.lane.b32.xlu0 %v2746, 96
      %v4684 = vpop.permute.xlu0 %4683
      %v4685 = vsel %vm2759, %v2744, 0
      %v4687 = vsel %vm2759, %v2746, 0
      %v4689 = vsel %vm2759, %v4682, 0
      %v4691 = vsel %vm2759, %v4684, 0
      %4693 = vmatpush.xpose.msra.mxu0 0.0
      %4694 = vmatpush.xpose.msra.mxu0 0.0
      %4695 = vmatpush.xpose.msra.mxu0 0.0
      %4696 = vmatpush.xpose.msra.mxu0 0.0
      %4697 = vmatpush.xpose.msra.mxu0 0.0
      %4698 = vmatpush.xpose.msra.mxu0 0.0
      %4699 = vmatpush.xpose.msra.mxu0 0.0
      %4700 = vmatpush.xpose.msra.mxu0 0.0
      %4701 = vmatpush.xpose.msra.mxu0 0.0
      %4702 = vmatpush.xpose.msra.mxu0 0.0
      %4703 = vmatpush.xpose.msra.mxu0 0.0
      %4704 = vmatpush.xpose.msra.mxu0 0.0
      %4705 = vmatpush.xpose.msra.mxu0 0.0
      %4706 = vmatpush.xpose.msra.mxu0 0.0
      %4707 = vmatpush.xpose.msra.mxu0 %v4691
      %4708 = vmatpush.xpose.msra.mxu0 %v4689
      %4709 = vmatmul.f32.gmra.mxu0 %v4685
      %v4710 = vpop.f32.mrf.mxu0
      %v4711 = vadd.f32 0.0, %v4710
      %4712 = vmatmul.f32.gmra.mxu0 %v4687
      %v4713 = vpop.f32.mrf.mxu0
      %v4714 = vadd.f32 0.0, %v4713
      %4715 = vdwg.mxu0
      %4716 = vrot.lane.b32.xlu0 %v2520, 96
      %v4717 = vpop.permute.xlu0 %4716
      %4718 = vrot.lane.b32.xlu0 %v2523, 96
      %v4719 = vpop.permute.xlu0 %4718
      %v4720 = vsel %vm2759, %v2520, 0
      %v4722 = vsel %vm2759, %v2523, 0
      %v4724 = vsel %vm2759, %v4717, 0
      %v4726 = vsel %vm2759, %v4719, 0
      %4728 = vmatpush.xpose.msra.mxu0 0.0
      %4729 = vmatpush.xpose.msra.mxu0 0.0
      %4730 = vmatpush.xpose.msra.mxu0 0.0
      %4731 = vmatpush.xpose.msra.mxu0 0.0
      %4732 = vmatpush.xpose.msra.mxu0 0.0
      %4733 = vmatpush.xpose.msra.mxu0 0.0
      %4734 = vmatpush.xpose.msra.mxu0 0.0
      %4735 = vmatpush.xpose.msra.mxu0 0.0
      %4736 = vmatpush.xpose.msra.mxu0 0.0
      %4737 = vmatpush.xpose.msra.mxu0 0.0
      %4738 = vmatpush.xpose.msra.mxu0 0.0
      %4739 = vmatpush.xpose.msra.mxu0 0.0
      %4740 = vmatpush.xpose.msra.mxu0 0.0
      %4741 = vmatpush.xpose.msra.mxu0 0.0
      %4742 = vmatpush.xpose.msra.mxu0 %v4726
      %4743 = vmatpush.xpose.msra.mxu0 %v4724
      %4744 = vmatmul.f32.gmra.mxu0 %v4720
      %v4745 = vpop.f32.mrf.mxu0
      %v4746 = vadd.f32 0.0, %v4745
      %4747 = vmatmul.f32.gmra.mxu0 %v4722
      %v4748 = vpop.f32.mrf.mxu0
      %v4749 = vadd.f32 0.0, %v4748
      %4750 = vdwg.mxu0
      %4751 = vrot.lane.b32.xlu0 %v2620, 96
      %v4752 = vpop.permute.xlu0 %4751
      %4753 = vrot.lane.b32.xlu0 %v2622, 96
      %v4754 = vpop.permute.xlu0 %4753
      %v4755 = vsel %vm2759, %v2620, 0
      %v4757 = vsel %vm2759, %v2622, 0
      %v4759 = vsel %vm2759, %v4752, 0
      %v4761 = vsel %vm2759, %v4754, 0
      %4763 = vmatpush.xpose.msra.mxu0 0.0
      %4764 = vmatpush.xpose.msra.mxu0 0.0
      %4765 = vmatpush.xpose.msra.mxu0 0.0
      %4766 = vmatpush.xpose.msra.mxu0 0.0
      %4767 = vmatpush.xpose.msra.mxu0 0.0
      %4768 = vmatpush.xpose.msra.mxu0 0.0
      %4769 = vmatpush.xpose.msra.mxu0 0.0
      %4770 = vmatpush.xpose.msra.mxu0 0.0
      %4771 = vmatpush.xpose.msra.mxu0 0.0
      %4772 = vmatpush.xpose.msra.mxu0 0.0
      %4773 = vmatpush.xpose.msra.mxu0 0.0
      %4774 = vmatpush.xpose.msra.mxu0 0.0
      %4775 = vmatpush.xpose.msra.mxu0 0.0
      %4776 = vmatpush.xpose.msra.mxu0 0.0
      %4777 = vmatpush.xpose.msra.mxu0 %v4761
      %4778 = vmatpush.xpose.msra.mxu0 %v4759
      %4779 = vmatmul.f32.gmra.mxu0 %v4755
      %v4780 = vpop.f32.mrf.mxu0
      %v4781 = vadd.f32 0.0, %v4780
      %4782 = vmatmul.f32.gmra.mxu0 %v4757
      %v4783 = vpop.f32.mrf.mxu0
      %v4784 = vadd.f32 0.0, %v4783
      %4785 = vdwg.mxu0
      %4786 = vrot.lane.b32.xlu0 %v2684, 96
      %v4787 = vpop.permute.xlu0 %4786
      %4788 = vrot.lane.b32.xlu0 %v2686, 96
      %v4789 = vpop.permute.xlu0 %4788
      %v4790 = vsel %vm2759, %v2684, 0
      %v4792 = vsel %vm2759, %v2686, 0
      %v4794 = vsel %vm2759, %v4787, 0
      %v4796 = vsel %vm2759, %v4789, 0
      %4798 = vmatpush.xpose.msra.mxu0 0.0
      %4799 = vmatpush.xpose.msra.mxu0 0.0
      %4800 = vmatpush.xpose.msra.mxu0 0.0
      %4801 = vmatpush.xpose.msra.mxu0 0.0
      %4802 = vmatpush.xpose.msra.mxu0 0.0
      %4803 = vmatpush.xpose.msra.mxu0 0.0
      %4804 = vmatpush.xpose.msra.mxu0 0.0
      %4805 = vmatpush.xpose.msra.mxu0 0.0
      %4806 = vmatpush.xpose.msra.mxu0 0.0
      %4807 = vmatpush.xpose.msra.mxu0 0.0
      %4808 = vmatpush.xpose.msra.mxu0 0.0
      %4809 = vmatpush.xpose.msra.mxu0 0.0
      %4810 = vmatpush.xpose.msra.mxu0 0.0
      %4811 = vmatpush.xpose.msra.mxu0 0.0
      %4812 = vmatpush.xpose.msra.mxu0 %v4796
      %4813 = vmatpush.xpose.msra.mxu0 %v4794
      %4814 = vmatmul.f32.gmra.mxu0 %v4790
      %v4815 = vpop.f32.mrf.mxu0
      %v4816 = vadd.f32 0.0, %v4815
      %4817 = vmatmul.f32.gmra.mxu0 %v4792
      %v4818 = vpop.f32.mrf.mxu0
      %v4819 = vadd.f32 0.0, %v4818
      %4820 = vdwg.mxu0
      %4821 = vrot.lane.b32.xlu0 %v2748, 96
      %v4822 = vpop.permute.xlu0 %4821
      %4823 = vrot.lane.b32.xlu0 %v2750, 96
      %v4824 = vpop.permute.xlu0 %4823
      %v4825 = vsel %vm2759, %v2748, 0
      %v4827 = vsel %vm2759, %v2750, 0
      %v4829 = vsel %vm2759, %v4822, 0
      %v4831 = vsel %vm2759, %v4824, 0
      %4833 = vmatpush.xpose.msra.mxu0 0.0
      %4834 = vmatpush.xpose.msra.mxu0 0.0
      %4835 = vmatpush.xpose.msra.mxu0 0.0
      %4836 = vmatpush.xpose.msra.mxu0 0.0
      %4837 = vmatpush.xpose.msra.mxu0 0.0
      %4838 = vmatpush.xpose.msra.mxu0 0.0
      %4839 = vmatpush.xpose.msra.mxu0 0.0
      %4840 = vmatpush.xpose.msra.mxu0 0.0
      %4841 = vmatpush.xpose.msra.mxu0 0.0
      %4842 = vmatpush.xpose.msra.mxu0 0.0
      %4843 = vmatpush.xpose.msra.mxu0 0.0
      %4844 = vmatpush.xpose.msra.mxu0 0.0
      %4845 = vmatpush.xpose.msra.mxu0 0.0
      %4846 = vmatpush.xpose.msra.mxu0 0.0
      %4847 = vmatpush.xpose.msra.mxu0 %v4831
      %4848 = vmatpush.xpose.msra.mxu0 %v4829
      %4849 = vmatmul.f32.gmra.mxu0 %v4825
      %v4850 = vpop.f32.mrf.mxu0
      %v4851 = vadd.f32 0.0, %v4850
      %4852 = vmatmul.f32.gmra.mxu0 %v4827
      %v4853 = vpop.f32.mrf.mxu0
      %v4854 = vadd.f32 0.0, %v4853
      %4855 = vdwg.mxu0
      %4856 = vrot.lane.b32.xlu0 %v2526, 96
      %v4857 = vpop.permute.xlu0 %4856
      %4858 = vrot.lane.b32.xlu0 %v2529, 96
      %v4859 = vpop.permute.xlu0 %4858
      %v4860 = vsel %vm2759, %v2526, 0
      %v4862 = vsel %vm2759, %v2529, 0
      %v4864 = vsel %vm2759, %v4857, 0
      %v4866 = vsel %vm2759, %v4859, 0
      %4868 = vmatpush.xpose.msra.mxu0 0.0
      %4869 = vmatpush.xpose.msra.mxu0 0.0
      %4870 = vmatpush.xpose.msra.mxu0 0.0
      %4871 = vmatpush.xpose.msra.mxu0 0.0
      %4872 = vmatpush.xpose.msra.mxu0 0.0
      %4873 = vmatpush.xpose.msra.mxu0 0.0
      %4874 = vmatpush.xpose.msra.mxu0 0.0
      %4875 = vmatpush.xpose.msra.mxu0 0.0
      %4876 = vmatpush.xpose.msra.mxu0 0.0
      %4877 = vmatpush.xpose.msra.mxu0 0.0
      %4878 = vmatpush.xpose.msra.mxu0 0.0
      %4879 = vmatpush.xpose.msra.mxu0 0.0
      %4880 = vmatpush.xpose.msra.mxu0 0.0
      %4881 = vmatpush.xpose.msra.mxu0 0.0
      %4882 = vmatpush.xpose.msra.mxu0 %v4866
      %4883 = vmatpush.xpose.msra.mxu0 %v4864
      %4884 = vmatmul.f32.gmra.mxu0 %v4860
      %v4885 = vpop.f32.mrf.mxu0
      %v4886 = vadd.f32 0.0, %v4885
      %4887 = vmatmul.f32.gmra.mxu0 %v4862
      %v4888 = vpop.f32.mrf.mxu0
      %v4889 = vadd.f32 0.0, %v4888
      %4890 = vdwg.mxu0
      %4891 = vrot.lane.b32.xlu0 %v2624, 96
      %v4892 = vpop.permute.xlu0 %4891
      %4893 = vrot.lane.b32.xlu0 %v2626, 96
      %v4894 = vpop.permute.xlu0 %4893
      %v4895 = vsel %vm2759, %v2624, 0
      %v4897 = vsel %vm2759, %v2626, 0
      %v4899 = vsel %vm2759, %v4892, 0
      %v4901 = vsel %vm2759, %v4894, 0
      %4903 = vmatpush.xpose.msra.mxu0 0.0
      %4904 = vmatpush.xpose.msra.mxu0 0.0
      %4905 = vmatpush.xpose.msra.mxu0 0.0
      %4906 = vmatpush.xpose.msra.mxu0 0.0
      %4907 = vmatpush.xpose.msra.mxu0 0.0
      %4908 = vmatpush.xpose.msra.mxu0 0.0
      %4909 = vmatpush.xpose.msra.mxu0 0.0
      %4910 = vmatpush.xpose.msra.mxu0 0.0
      %4911 = vmatpush.xpose.msra.mxu0 0.0
      %4912 = vmatpush.xpose.msra.mxu0 0.0
      %4913 = vmatpush.xpose.msra.mxu0 0.0
      %4914 = vmatpush.xpose.msra.mxu0 0.0
      %4915 = vmatpush.xpose.msra.mxu0 0.0
      %4916 = vmatpush.xpose.msra.mxu0 0.0
      %4917 = vmatpush.xpose.msra.mxu0 %v4901
      %4918 = vmatpush.xpose.msra.mxu0 %v4899
      %4919 = vmatmul.f32.gmra.mxu0 %v4895
      %v4920 = vpop.f32.mrf.mxu0
      %v4921 = vadd.f32 0.0, %v4920
      %4922 = vmatmul.f32.gmra.mxu0 %v4897
      %v4923 = vpop.f32.mrf.mxu0
      %v4924 = vadd.f32 0.0, %v4923
      %4925 = vdwg.mxu0
      %4926 = vrot.lane.b32.xlu0 %v2688, 96
      %v4927 = vpop.permute.xlu0 %4926
      %4928 = vrot.lane.b32.xlu0 %v2690, 96
      %v4929 = vpop.permute.xlu0 %4928
      %v4930 = vsel %vm2759, %v2688, 0
      %v4932 = vsel %vm2759, %v2690, 0
      %v4934 = vsel %vm2759, %v4927, 0
      %v4936 = vsel %vm2759, %v4929, 0
      %4938 = vmatpush.xpose.msra.mxu0 0.0
      %4939 = vmatpush.xpose.msra.mxu0 0.0
      %4940 = vmatpush.xpose.msra.mxu0 0.0
      %4941 = vmatpush.xpose.msra.mxu0 0.0
      %4942 = vmatpush.xpose.msra.mxu0 0.0
      %4943 = vmatpush.xpose.msra.mxu0 0.0
      %4944 = vmatpush.xpose.msra.mxu0 0.0
      %4945 = vmatpush.xpose.msra.mxu0 0.0
      %4946 = vmatpush.xpose.msra.mxu0 0.0
      %4947 = vmatpush.xpose.msra.mxu0 0.0
      %4948 = vmatpush.xpose.msra.mxu0 0.0
      %4949 = vmatpush.xpose.msra.mxu0 0.0
      %4950 = vmatpush.xpose.msra.mxu0 0.0
      %4951 = vmatpush.xpose.msra.mxu0 0.0
      %4952 = vmatpush.xpose.msra.mxu0 %v4936
      %4953 = vmatpush.xpose.msra.mxu0 %v4934
      %4954 = vmatmul.f32.gmra.mxu0 %v4930
      %v4955 = vpop.f32.mrf.mxu0
      %v4956 = vadd.f32 0.0, %v4955
      %4957 = vmatmul.f32.gmra.mxu0 %v4932
      %v4958 = vpop.f32.mrf.mxu0
      %v4959 = vadd.f32 0.0, %v4958
      %4960 = vdwg.mxu0
      %4961 = vrot.lane.b32.xlu0 %v2752, 96
      %v4962 = vpop.permute.xlu0 %4961
      %4963 = vrot.lane.b32.xlu0 %v2754, 96
      %v4964 = vpop.permute.xlu0 %4963
      %v4965 = vsel %vm2759, %v2752, 0
      %v4967 = vsel %vm2759, %v2754, 0
      %v4969 = vsel %vm2759, %v4962, 0
      %v4971 = vsel %vm2759, %v4964, 0
      %4973 = vmatpush.xpose.msra.mxu0 0.0
      %4974 = vmatpush.xpose.msra.mxu0 0.0
      %4975 = vmatpush.xpose.msra.mxu0 0.0
      %4976 = vmatpush.xpose.msra.mxu0 0.0
      %4977 = vmatpush.xpose.msra.mxu0 0.0
      %4978 = vmatpush.xpose.msra.mxu0 0.0
      %4979 = vmatpush.xpose.msra.mxu0 0.0
      %4980 = vmatpush.xpose.msra.mxu0 0.0
      %4981 = vmatpush.xpose.msra.mxu0 0.0
      %4982 = vmatpush.xpose.msra.mxu0 0.0
      %4983 = vmatpush.xpose.msra.mxu0 0.0
      %4984 = vmatpush.xpose.msra.mxu0 0.0
      %4985 = vmatpush.xpose.msra.mxu0 0.0
      %4986 = vmatpush.xpose.msra.mxu0 0.0
      %4987 = vmatpush.xpose.msra.mxu0 %v4971
      %4988 = vmatpush.xpose.msra.mxu0 %v4969
      %4989 = vmatmul.f32.gmra.mxu0 %v4965
      %v4990 = vpop.f32.mrf.mxu0
      %v4991 = vadd.f32 0.0, %v4990
      %4992 = vmatmul.f32.gmra.mxu0 %v4967
      %v4993 = vpop.f32.mrf.mxu0
      %v4994 = vadd.f32 0.0, %v4993
      %4995 = vdwg.mxu0
      %vm4996 = vcmask 130048
      %v4997 = vsel %vm4996, %v2786, -inf
      %4998 = vmax.xlane.f32.xlu0 %v4997
      %v4999 = vpop.xlane.xlu0 %4998
      %v5000 = vsel %vm4996, %v2789, -inf
      %5001 = vmax.xlane.f32.xlu0 %v5000
      %v5002 = vpop.xlane.xlu0 %5001
      %v5003 = vsel %vm4996, %v2821, -inf
      %5004 = vmax.xlane.f32.xlu0 %v5003
      %v5005 = vpop.xlane.xlu0 %5004
      %v5006 = vsel %vm4996, %v2824, -inf
      %5007 = vmax.xlane.f32.xlu0 %v5006
      %v5008 = vpop.xlane.xlu0 %5007
      %v5009 = vsel %vm4996, %v2856, -inf
      %5010 = vmax.xlane.f32.xlu0 %v5009
      %v5011 = vpop.xlane.xlu0 %5010
      %v5012 = vsel %vm4996, %v2859, -inf
      %5013 = vmax.xlane.f32.xlu0 %v5012
      %v5014 = vpop.xlane.xlu0 %5013
      %v5015 = vsel %vm4996, %v2891, -inf
      %5016 = vmax.xlane.f32.xlu0 %v5015
      %v5017 = vpop.xlane.xlu0 %5016
      %v5018 = vsel %vm4996, %v2894, -inf
      %5019 = vmax.xlane.f32.xlu0 %v5018
      %v5020 = vpop.xlane.xlu0 %5019
      %v5021 = vsel %vm4996, %v2926, -inf
      %5022 = vmax.xlane.f32.xlu0 %v5021
      %v5023 = vpop.xlane.xlu0 %5022
      %v5024 = vsel %vm4996, %v2929, -inf
      %5025 = vmax.xlane.f32.xlu0 %v5024
      %v5026 = vpop.xlane.xlu0 %5025
      %v5027 = vsel %vm4996, %v2961, -inf
      %5028 = vmax.xlane.f32.xlu0 %v5027
      %v5029 = vpop.xlane.xlu0 %5028
      %v5030 = vsel %vm4996, %v2964, -inf
      %5031 = vmax.xlane.f32.xlu0 %v5030
      %v5032 = vpop.xlane.xlu0 %5031
      %v5033 = vsel %vm4996, %v2996, -inf
      %5034 = vmax.xlane.f32.xlu0 %v5033
      %v5035 = vpop.xlane.xlu0 %5034
      %v5036 = vsel %vm4996, %v2999, -inf
      %5037 = vmax.xlane.f32.xlu0 %v5036
      %v5038 = vpop.xlane.xlu0 %5037
      %v5039 = vsel %vm4996, %v3031, -inf
      %5040 = vmax.xlane.f32.xlu0 %v5039
      %v5041 = vpop.xlane.xlu0 %5040
      %v5042 = vsel %vm4996, %v3034, -inf
      %5043 = vmax.xlane.f32.xlu0 %v5042
      %v5044 = vpop.xlane.xlu0 %5043
      %v5045 = vsel %vm4996, %v3066, -inf
      %5046 = vmax.xlane.f32.xlu0 %v5045
      %v5047 = vpop.xlane.xlu0 %5046
      %v5048 = vsel %vm4996, %v3069, -inf
      %5049 = vmax.xlane.f32.xlu0 %v5048
      %v5050 = vpop.xlane.xlu0 %5049
      %v5051 = vsel %vm4996, %v3101, -inf
      %5052 = vmax.xlane.f32.xlu0 %v5051
      %v5053 = vpop.xlane.xlu0 %5052
      %v5054 = vsel %vm4996, %v3104, -inf
      %5055 = vmax.xlane.f32.xlu0 %v5054
      %v5056 = vpop.xlane.xlu0 %5055
      %v5057 = vsel %vm4996, %v3136, -inf
      %5058 = vmax.xlane.f32.xlu0 %v5057
      %v5059 = vpop.xlane.xlu0 %5058
      %v5060 = vsel %vm4996, %v3139, -inf
      %5061 = vmax.xlane.f32.xlu0 %v5060
      %v5062 = vpop.xlane.xlu0 %5061
      %v5063 = vsel %vm4996, %v3171, -inf
      %5064 = vmax.xlane.f32.xlu0 %v5063
      %v5065 = vpop.xlane.xlu0 %5064
      %v5066 = vsel %vm4996, %v3174, -inf
      %5067 = vmax.xlane.f32.xlu0 %v5066
      %v5068 = vpop.xlane.xlu0 %5067
      %v5069 = vsel %vm4996, %v3206, -inf
      %5070 = vmax.xlane.f32.xlu0 %v5069
      %v5071 = vpop.xlane.xlu0 %5070
      %v5072 = vsel %vm4996, %v3209, -inf
      %5073 = vmax.xlane.f32.xlu0 %v5072
      %v5074 = vpop.xlane.xlu0 %5073
      %v5075 = vsel %vm4996, %v3241, -inf
      %5076 = vmax.xlane.f32.xlu0 %v5075
      %v5077 = vpop.xlane.xlu0 %5076
      %v5078 = vsel %vm4996, %v3244, -inf
      %5079 = vmax.xlane.f32.xlu0 %v5078
      %v5080 = vpop.xlane.xlu0 %5079
      %v5081 = vsel %vm4996, %v3276, -inf
      %5082 = vmax.xlane.f32.xlu0 %v5081
      %v5083 = vpop.xlane.xlu0 %5082
      %v5084 = vsel %vm4996, %v3279, -inf
      %5085 = vmax.xlane.f32.xlu0 %v5084
      %v5086 = vpop.xlane.xlu0 %5085
      %v5087 = vsel %vm4996, %v3311, -inf
      %5088 = vmax.xlane.f32.xlu0 %v5087
      %v5089 = vpop.xlane.xlu0 %5088
      %v5090 = vsel %vm4996, %v3314, -inf
      %5091 = vmax.xlane.f32.xlu0 %v5090
      %v5092 = vpop.xlane.xlu0 %5091
      %v5093 = vsel %vm4996, %v3346, -inf
      %5094 = vmax.xlane.f32.xlu0 %v5093
      %v5095 = vpop.xlane.xlu0 %5094
      %v5096 = vsel %vm4996, %v3349, -inf
      %5097 = vmax.xlane.f32.xlu0 %v5096
      %v5098 = vpop.xlane.xlu0 %5097
      %v5099 = vsel %vm4996, %v3381, -inf
      %5100 = vmax.xlane.f32.xlu0 %v5099
      %v5101 = vpop.xlane.xlu0 %5100
      %v5102 = vsel %vm4996, %v3384, -inf
      %5103 = vmax.xlane.f32.xlu0 %v5102
      %v5104 = vpop.xlane.xlu0 %5103
      %v5105 = vsel %vm4996, %v3416, -inf
      %5106 = vmax.xlane.f32.xlu0 %v5105
      %v5107 = vpop.xlane.xlu0 %5106
      %v5108 = vsel %vm4996, %v3419, -inf
      %5109 = vmax.xlane.f32.xlu0 %v5108
      %v5110 = vpop.xlane.xlu0 %5109
      %v5111 = vsel %vm4996, %v3451, -inf
      %5112 = vmax.xlane.f32.xlu0 %v5111
      %v5113 = vpop.xlane.xlu0 %5112
      %v5114 = vsel %vm4996, %v3454, -inf
      %5115 = vmax.xlane.f32.xlu0 %v5114
      %v5116 = vpop.xlane.xlu0 %5115
      %v5117 = vsel %vm4996, %v3486, -inf
      %5118 = vmax.xlane.f32.xlu0 %v5117
      %v5119 = vpop.xlane.xlu0 %5118
      %v5120 = vsel %vm4996, %v3489, -inf
      %5121 = vmax.xlane.f32.xlu0 %v5120
      %v5122 = vpop.xlane.xlu0 %5121
      %v5123 = vsel %vm4996, %v3521, -inf
      %5124 = vmax.xlane.f32.xlu0 %v5123
      %v5125 = vpop.xlane.xlu0 %5124
      %v5126 = vsel %vm4996, %v3524, -inf
      %5127 = vmax.xlane.f32.xlu0 %v5126
      %v5128 = vpop.xlane.xlu0 %5127
      %v5129 = vsel %vm4996, %v3556, -inf
      %5130 = vmax.xlane.f32.xlu0 %v5129
      %v5131 = vpop.xlane.xlu0 %5130
      %v5132 = vsel %vm4996, %v3559, -inf
      %5133 = vmax.xlane.f32.xlu0 %v5132
      %v5134 = vpop.xlane.xlu0 %5133
      %v5135 = vsel %vm4996, %v3591, -inf
      %5136 = vmax.xlane.f32.xlu0 %v5135
      %v5137 = vpop.xlane.xlu0 %5136
      %v5138 = vsel %vm4996, %v3594, -inf
      %5139 = vmax.xlane.f32.xlu0 %v5138
      %v5140 = vpop.xlane.xlu0 %5139
      %v5141 = vsel %vm4996, %v3626, -inf
      %5142 = vmax.xlane.f32.xlu0 %v5141
      %v5143 = vpop.xlane.xlu0 %5142
      %v5144 = vsel %vm4996, %v3629, -inf
      %5145 = vmax.xlane.f32.xlu0 %v5144
      %v5146 = vpop.xlane.xlu0 %5145
      %v5147 = vsel %vm4996, %v3661, -inf
      %5148 = vmax.xlane.f32.xlu0 %v5147
      %v5149 = vpop.xlane.xlu0 %5148
      %v5150 = vsel %vm4996, %v3664, -inf
      %5151 = vmax.xlane.f32.xlu0 %v5150
      %v5152 = vpop.xlane.xlu0 %5151
      %v5153 = vsel %vm4996, %v3696, -inf
      %5154 = vmax.xlane.f32.xlu0 %v5153
      %v5155 = vpop.xlane.xlu0 %5154
      %v5156 = vsel %vm4996, %v3699, -inf
      %5157 = vmax.xlane.f32.xlu0 %v5156
      %v5158 = vpop.xlane.xlu0 %5157
      %v5159 = vsel %vm4996, %v3731, -inf
      %5160 = vmax.xlane.f32.xlu0 %v5159
      %v5161 = vpop.xlane.xlu0 %5160
      %v5162 = vsel %vm4996, %v3734, -inf
      %5163 = vmax.xlane.f32.xlu0 %v5162
      %v5164 = vpop.xlane.xlu0 %5163
      %v5165 = vsel %vm4996, %v3766, -inf
      %5166 = vmax.xlane.f32.xlu0 %v5165
      %v5167 = vpop.xlane.xlu0 %5166
      %v5168 = vsel %vm4996, %v3769, -inf
      %5169 = vmax.xlane.f32.xlu0 %v5168
      %v5170 = vpop.xlane.xlu0 %5169
      %v5171 = vsel %vm4996, %v3801, -inf
      %5172 = vmax.xlane.f32.xlu0 %v5171
      %v5173 = vpop.xlane.xlu0 %5172
      %v5174 = vsel %vm4996, %v3804, -inf
      %5175 = vmax.xlane.f32.xlu0 %v5174
      %v5176 = vpop.xlane.xlu0 %5175
      %v5177 = vsel %vm4996, %v3836, -inf
      %5178 = vmax.xlane.f32.xlu0 %v5177
      %v5179 = vpop.xlane.xlu0 %5178
      %v5180 = vsel %vm4996, %v3839, -inf
      %5181 = vmax.xlane.f32.xlu0 %v5180
      %v5182 = vpop.xlane.xlu0 %5181
      %v5183 = vsel %vm4996, %v3871, -inf
      %5184 = vmax.xlane.f32.xlu0 %v5183
      %v5185 = vpop.xlane.xlu0 %5184
      %v5186 = vsel %vm4996, %v3874, -inf
      %5187 = vmax.xlane.f32.xlu0 %v5186
      %v5188 = vpop.xlane.xlu0 %5187
      %v5189 = vsel %vm4996, %v3906, -inf
      %5190 = vmax.xlane.f32.xlu0 %v5189
      %v5191 = vpop.xlane.xlu0 %5190
      %v5192 = vsel %vm4996, %v3909, -inf
      %5193 = vmax.xlane.f32.xlu0 %v5192
      %v5194 = vpop.xlane.xlu0 %5193
      %v5195 = vsel %vm4996, %v3941, -inf
      %5196 = vmax.xlane.f32.xlu0 %v5195
      %v5197 = vpop.xlane.xlu0 %5196
      %v5198 = vsel %vm4996, %v3944, -inf
      %5199 = vmax.xlane.f32.xlu0 %v5198
      %v5200 = vpop.xlane.xlu0 %5199
      %v5201 = vsel %vm4996, %v3976, -inf
      %5202 = vmax.xlane.f32.xlu0 %v5201
      %v5203 = vpop.xlane.xlu0 %5202
      %v5204 = vsel %vm4996, %v3979, -inf
      %5205 = vmax.xlane.f32.xlu0 %v5204
      %v5206 = vpop.xlane.xlu0 %5205
      %v5207 = vsel %vm4996, %v4011, -inf
      %5208 = vmax.xlane.f32.xlu0 %v5207
      %v5209 = vpop.xlane.xlu0 %5208
      %v5210 = vsel %vm4996, %v4014, -inf
      %5211 = vmax.xlane.f32.xlu0 %v5210
      %v5212 = vpop.xlane.xlu0 %5211
      %v5213 = vsel %vm4996, %v4046, -inf
      %5214 = vmax.xlane.f32.xlu0 %v5213
      %v5215 = vpop.xlane.xlu0 %5214
      %v5216 = vsel %vm4996, %v4049, -inf
      %5217 = vmax.xlane.f32.xlu0 %v5216
      %v5218 = vpop.xlane.xlu0 %5217
      %v5219 = vsel %vm4996, %v4081, -inf
      %5220 = vmax.xlane.f32.xlu0 %v5219
      %v5221 = vpop.xlane.xlu0 %5220
      %v5222 = vsel %vm4996, %v4084, -inf
      %5223 = vmax.xlane.f32.xlu0 %v5222
      %v5224 = vpop.xlane.xlu0 %5223
      %v5225 = vsel %vm4996, %v4116, -inf
      %5226 = vmax.xlane.f32.xlu0 %v5225
      %v5227 = vpop.xlane.xlu0 %5226
      %v5228 = vsel %vm4996, %v4119, -inf
      %5229 = vmax.xlane.f32.xlu0 %v5228
      %v5230 = vpop.xlane.xlu0 %5229
      %v5231 = vsel %vm4996, %v4151, -inf
      %5232 = vmax.xlane.f32.xlu0 %v5231
      %v5233 = vpop.xlane.xlu0 %5232
      %v5234 = vsel %vm4996, %v4154, -inf
      %5235 = vmax.xlane.f32.xlu0 %v5234
      %v5236 = vpop.xlane.xlu0 %5235
      %v5237 = vsel %vm4996, %v4186, -inf
      %5238 = vmax.xlane.f32.xlu0 %v5237
      %v5239 = vpop.xlane.xlu0 %5238
      %v5240 = vsel %vm4996, %v4189, -inf
      %5241 = vmax.xlane.f32.xlu0 %v5240
      %v5242 = vpop.xlane.xlu0 %5241
      %v5243 = vsel %vm4996, %v4221, -inf
      %5244 = vmax.xlane.f32.xlu0 %v5243
      %v5245 = vpop.xlane.xlu0 %5244
      %v5246 = vsel %vm4996, %v4224, -inf
      %5247 = vmax.xlane.f32.xlu0 %v5246
      %v5248 = vpop.xlane.xlu0 %5247
      %v5249 = vsel %vm4996, %v4256, -inf
      %5250 = vmax.xlane.f32.xlu0 %v5249
      %v5251 = vpop.xlane.xlu0 %5250
      %v5252 = vsel %vm4996, %v4259, -inf
      %5253 = vmax.xlane.f32.xlu0 %v5252
      %v5254 = vpop.xlane.xlu0 %5253
      %v5255 = vsel %vm4996, %v4291, -inf
      %5256 = vmax.xlane.f32.xlu0 %v5255
      %v5257 = vpop.xlane.xlu0 %5256
      %v5258 = vsel %vm4996, %v4294, -inf
      %5259 = vmax.xlane.f32.xlu0 %v5258
      %v5260 = vpop.xlane.xlu0 %5259
      %v5261 = vsel %vm4996, %v4326, -inf
      %5262 = vmax.xlane.f32.xlu0 %v5261
      %v5263 = vpop.xlane.xlu0 %5262
      %v5264 = vsel %vm4996, %v4329, -inf
      %5265 = vmax.xlane.f32.xlu0 %v5264
      %v5266 = vpop.xlane.xlu0 %5265
      %v5267 = vsel %vm4996, %v4361, -inf
      %5268 = vmax.xlane.f32.xlu0 %v5267
      %v5269 = vpop.xlane.xlu0 %5268
      %v5270 = vsel %vm4996, %v4364, -inf
      %5271 = vmax.xlane.f32.xlu0 %v5270
      %v5272 = vpop.xlane.xlu0 %5271
      %v5273 = vsel %vm4996, %v4396, -inf
      %5274 = vmax.xlane.f32.xlu0 %v5273
      %v5275 = vpop.xlane.xlu0 %5274
      %v5276 = vsel %vm4996, %v4399, -inf
      %5277 = vmax.xlane.f32.xlu0 %v5276
      %v5278 = vpop.xlane.xlu0 %5277
      %v5279 = vsel %vm4996, %v4431, -inf
      %5280 = vmax.xlane.f32.xlu0 %v5279
      %v5281 = vpop.xlane.xlu0 %5280
      %v5282 = vsel %vm4996, %v4434, -inf
      %5283 = vmax.xlane.f32.xlu0 %v5282
      %v5284 = vpop.xlane.xlu0 %5283
      %v5285 = vsel %vm4996, %v4466, -inf
      %5286 = vmax.xlane.f32.xlu0 %v5285
      %v5287 = vpop.xlane.xlu0 %5286
      %v5288 = vsel %vm4996, %v4469, -inf
      %5289 = vmax.xlane.f32.xlu0 %v5288
      %v5290 = vpop.xlane.xlu0 %5289
      %v5291 = vsel %vm4996, %v4501, -inf
      %5292 = vmax.xlane.f32.xlu0 %v5291
      %v5293 = vpop.xlane.xlu0 %5292
      %v5294 = vsel %vm4996, %v4504, -inf
      %5295 = vmax.xlane.f32.xlu0 %v5294
      %v5296 = vpop.xlane.xlu0 %5295
      %v5297 = vsel %vm4996, %v4536, -inf
      %5298 = vmax.xlane.f32.xlu0 %v5297
      %v5299 = vpop.xlane.xlu0 %5298
      %v5300 = vsel %vm4996, %v4539, -inf
      %5301 = vmax.xlane.f32.xlu0 %v5300
      %v5302 = vpop.xlane.xlu0 %5301
      %v5303 = vsel %vm4996, %v4571, -inf
      %5304 = vmax.xlane.f32.xlu0 %v5303
      %v5305 = vpop.xlane.xlu0 %5304
      %v5306 = vsel %vm4996, %v4574, -inf
      %5307 = vmax.xlane.f32.xlu0 %v5306
      %v5308 = vpop.xlane.xlu0 %5307
      %v5309 = vsel %vm4996, %v4606, -inf
      %5310 = vmax.xlane.f32.xlu0 %v5309
      %v5311 = vpop.xlane.xlu0 %5310
      %v5312 = vsel %vm4996, %v4609, -inf
      %5313 = vmax.xlane.f32.xlu0 %v5312
      %v5314 = vpop.xlane.xlu0 %5313
      %v5315 = vsel %vm4996, %v4641, -inf
      %5316 = vmax.xlane.f32.xlu0 %v5315
      %v5317 = vpop.xlane.xlu0 %5316
      %v5318 = vsel %vm4996, %v4644, -inf
      %5319 = vmax.xlane.f32.xlu0 %v5318
      %v5320 = vpop.xlane.xlu0 %5319
      %v5321 = vsel %vm4996, %v4676, -inf
      %5322 = vmax.xlane.f32.xlu0 %v5321
      %v5323 = vpop.xlane.xlu0 %5322
      %v5324 = vsel %vm4996, %v4679, -inf
      %5325 = vmax.xlane.f32.xlu0 %v5324
      %v5326 = vpop.xlane.xlu0 %5325
      %v5327 = vsel %vm4996, %v4711, -inf
      %5328 = vmax.xlane.f32.xlu0 %v5327
      %v5329 = vpop.xlane.xlu0 %5328
      %v5330 = vsel %vm4996, %v4714, -inf
      %5331 = vmax.xlane.f32.xlu0 %v5330
      %v5332 = vpop.xlane.xlu0 %5331
      %v5333 = vsel %vm4996, %v4746, -inf
      %5334 = vmax.xlane.f32.xlu0 %v5333
      %v5335 = vpop.xlane.xlu0 %5334
      %v5336 = vsel %vm4996, %v4749, -inf
      %5337 = vmax.xlane.f32.xlu0 %v5336
      %v5338 = vpop.xlane.xlu0 %5337
      %v5339 = vsel %vm4996, %v4781, -inf
      %5340 = vmax.xlane.f32.xlu0 %v5339
      %v5341 = vpop.xlane.xlu0 %5340
      %v5342 = vsel %vm4996, %v4784, -inf
      %5343 = vmax.xlane.f32.xlu0 %v5342
      %v5344 = vpop.xlane.xlu0 %5343
      %v5345 = vsel %vm4996, %v4816, -inf
      %5346 = vmax.xlane.f32.xlu0 %v5345
      %v5347 = vpop.xlane.xlu0 %5346
      %v5348 = vsel %vm4996, %v4819, -inf
      %5349 = vmax.xlane.f32.xlu0 %v5348
      %v5350 = vpop.xlane.xlu0 %5349
      %v5351 = vsel %vm4996, %v4851, -inf
      %5352 = vmax.xlane.f32.xlu0 %v5351
      %v5353 = vpop.xlane.xlu0 %5352
      %v5354 = vsel %vm4996, %v4854, -inf
      %5355 = vmax.xlane.f32.xlu0 %v5354
      %v5356 = vpop.xlane.xlu0 %5355
      %v5357 = vsel %vm4996, %v4886, -inf
      %5358 = vmax.xlane.f32.xlu0 %v5357
      %v5359 = vpop.xlane.xlu0 %5358
      %v5360 = vsel %vm4996, %v4889, -inf
      %5361 = vmax.xlane.f32.xlu0 %v5360
      %v5362 = vpop.xlane.xlu0 %5361
      %v5363 = vsel %vm4996, %v4921, -inf
      %5364 = vmax.xlane.f32.xlu0 %v5363
      %v5365 = vpop.xlane.xlu0 %5364
      %v5366 = vsel %vm4996, %v4924, -inf
      %5367 = vmax.xlane.f32.xlu0 %v5366
      %v5368 = vpop.xlane.xlu0 %5367
      %v5369 = vsel %vm4996, %v4956, -inf
      %5370 = vmax.xlane.f32.xlu0 %v5369
      %v5371 = vpop.xlane.xlu0 %5370
      %v5372 = vsel %vm4996, %v4959, -inf
      %5373 = vmax.xlane.f32.xlu0 %v5372
      %v5374 = vpop.xlane.xlu0 %5373
      %v5375 = vsel %vm4996, %v4991, -inf
      %5376 = vmax.xlane.f32.xlu0 %v5375
      %v5377 = vpop.xlane.xlu0 %5376
      %v5378 = vsel %vm4996, %v4994, -inf
      %5379 = vmax.xlane.f32.xlu0 %v5378
      %v5380 = vpop.xlane.xlu0 %5379
      %v5381 = vsub.f32 %v2786, %v4999
      %v5382 = vsub.f32 %v2789, %v5002
      %v5383 = vsub.f32 %v2821, %v5005
      %v5384 = vsub.f32 %v2824, %v5008
      %v5385 = vsub.f32 %v2856, %v5011
      %v5386 = vsub.f32 %v2859, %v5014
      %v5387 = vsub.f32 %v2891, %v5017
      %v5388 = vsub.f32 %v2894, %v5020
      %v5389 = vsub.f32 %v2926, %v5023
      %v5390 = vsub.f32 %v2929, %v5026
      %v5391 = vsub.f32 %v2961, %v5029
      %v5392 = vsub.f32 %v2964, %v5032
      %v5393 = vsub.f32 %v2996, %v5035
      %v5394 = vsub.f32 %v2999, %v5038
      %v5395 = vsub.f32 %v3031, %v5041
      %v5396 = vsub.f32 %v3034, %v5044
      %v5397 = vsub.f32 %v3066, %v5047
      %v5398 = vsub.f32 %v3069, %v5050
      %v5399 = vsub.f32 %v3101, %v5053
      %v5400 = vsub.f32 %v3104, %v5056
      %v5401 = vsub.f32 %v3136, %v5059
      %v5402 = vsub.f32 %v3139, %v5062
      %v5403 = vsub.f32 %v3171, %v5065
      %v5404 = vsub.f32 %v3174, %v5068
      %v5405 = vsub.f32 %v3206, %v5071
      %v5406 = vsub.f32 %v3209, %v5074
      %v5407 = vsub.f32 %v3241, %v5077
      %v5408 = vsub.f32 %v3244, %v5080
      %v5409 = vsub.f32 %v3276, %v5083
      %v5410 = vsub.f32 %v3279, %v5086
      %v5411 = vsub.f32 %v3311, %v5089
      %v5412 = vsub.f32 %v3314, %v5092
      %v5413 = vsub.f32 %v3346, %v5095
      %v5414 = vsub.f32 %v3349, %v5098
      %v5415 = vsub.f32 %v3381, %v5101
      %v5416 = vsub.f32 %v3384, %v5104
      %v5417 = vsub.f32 %v3416, %v5107
      %v5418 = vsub.f32 %v3419, %v5110
      %v5419 = vsub.f32 %v3451, %v5113
      %v5420 = vsub.f32 %v3454, %v5116
      %v5421 = vsub.f32 %v3486, %v5119
      %v5422 = vsub.f32 %v3489, %v5122
      %v5423 = vsub.f32 %v3521, %v5125
      %v5424 = vsub.f32 %v3524, %v5128
      %v5425 = vsub.f32 %v3556, %v5131
      %v5426 = vsub.f32 %v3559, %v5134
      %v5427 = vsub.f32 %v3591, %v5137
      %v5428 = vsub.f32 %v3594, %v5140
      %v5429 = vsub.f32 %v3626, %v5143
      %v5430 = vsub.f32 %v3629, %v5146
      %v5431 = vsub.f32 %v3661, %v5149
      %v5432 = vsub.f32 %v3664, %v5152
      %v5433 = vsub.f32 %v3696, %v5155
      %v5434 = vsub.f32 %v3699, %v5158
      %v5435 = vsub.f32 %v3731, %v5161
      %v5436 = vsub.f32 %v3734, %v5164
      %v5437 = vsub.f32 %v3766, %v5167
      %v5438 = vsub.f32 %v3769, %v5170
      %v5439 = vsub.f32 %v3801, %v5173
      %v5440 = vsub.f32 %v3804, %v5176
      %v5441 = vsub.f32 %v3836, %v5179
      %v5442 = vsub.f32 %v3839, %v5182
      %v5443 = vsub.f32 %v3871, %v5185
      %v5444 = vsub.f32 %v3874, %v5188
      %v5445 = vsub.f32 %v3906, %v5191
      %v5446 = vsub.f32 %v3909, %v5194
      %v5447 = vsub.f32 %v3941, %v5197
      %v5448 = vsub.f32 %v3944, %v5200
      %v5449 = vsub.f32 %v3976, %v5203
      %v5450 = vsub.f32 %v3979, %v5206
      %v5451 = vsub.f32 %v4011, %v5209
      %v5452 = vsub.f32 %v4014, %v5212
      %v5453 = vsub.f32 %v4046, %v5215
      %v5454 = vsub.f32 %v4049, %v5218
      %v5455 = vsub.f32 %v4081, %v5221
      %v5456 = vsub.f32 %v4084, %v5224
      %v5457 = vsub.f32 %v4116, %v5227
      %v5458 = vsub.f32 %v4119, %v5230
      %v5459 = vsub.f32 %v4151, %v5233
      %v5460 = vsub.f32 %v4154, %v5236
      %v5461 = vsub.f32 %v4186, %v5239
      %v5462 = vsub.f32 %v4189, %v5242
      %v5463 = vsub.f32 %v4221, %v5245
      %v5464 = vsub.f32 %v4224, %v5248
      %v5465 = vsub.f32 %v4256, %v5251
      %v5466 = vsub.f32 %v4259, %v5254
      %v5467 = vsub.f32 %v4291, %v5257
      %v5468 = vsub.f32 %v4294, %v5260
      %v5469 = vsub.f32 %v4326, %v5263
      %v5470 = vsub.f32 %v4329, %v5266
      %v5471 = vsub.f32 %v4361, %v5269
      %v5472 = vsub.f32 %v4364, %v5272
      %v5473 = vsub.f32 %v4396, %v5275
      %v5474 = vsub.f32 %v4399, %v5278
      %v5475 = vsub.f32 %v4431, %v5281
      %v5476 = vsub.f32 %v4434, %v5284
      %v5477 = vsub.f32 %v4466, %v5287
      %v5478 = vsub.f32 %v4469, %v5290
      %v5479 = vsub.f32 %v4501, %v5293
      %v5480 = vsub.f32 %v4504, %v5296
      %v5481 = vsub.f32 %v4536, %v5299
      %v5482 = vsub.f32 %v4539, %v5302
      %v5483 = vsub.f32 %v4571, %v5305
      %v5484 = vsub.f32 %v4574, %v5308
      %v5485 = vsub.f32 %v4606, %v5311
      %v5486 = vsub.f32 %v4609, %v5314
      %v5487 = vsub.f32 %v4641, %v5317
      %v5488 = vsub.f32 %v4644, %v5320
      %v5489 = vsub.f32 %v4676, %v5323
      %v5490 = vsub.f32 %v4679, %v5326
      %v5491 = vsub.f32 %v4711, %v5329
      %v5492 = vsub.f32 %v4714, %v5332
      %v5493 = vsub.f32 %v4746, %v5335
      %v5494 = vsub.f32 %v4749, %v5338
      %v5495 = vsub.f32 %v4781, %v5341
      %v5496 = vsub.f32 %v4784, %v5344
      %v5497 = vsub.f32 %v4816, %v5347
      %v5498 = vsub.f32 %v4819, %v5350
      %v5499 = vsub.f32 %v4851, %v5353
      %v5500 = vsub.f32 %v4854, %v5356
      %v5501 = vsub.f32 %v4886, %v5359
      %v5502 = vsub.f32 %v4889, %v5362
      %v5503 = vsub.f32 %v4921, %v5365
      %v5504 = vsub.f32 %v4924, %v5368
      %v5505 = vsub.f32 %v4956, %v5371
      %v5506 = vsub.f32 %v4959, %v5374
      %v5507 = vsub.f32 %v4991, %v5377
      %v5508 = vsub.f32 %v4994, %v5380
      %v5509 = vmul.f32 %v5381, 1.442695
      %v5510 = vpow.pop %v5509
      %v5511 = vmul.f32 %v5382, 1.442695
      %v5512 = vpow.pop %v5511
      %v5513 = vmul.f32 %v5383, 1.442695
      %v5514 = vpow.pop %v5513
      %v5515 = vmul.f32 %v5384, 1.442695
      %v5516 = vpow.pop %v5515
      %v5517 = vmul.f32 %v5385, 1.442695
      %v5518 = vpow.pop %v5517
      %v5519 = vmul.f32 %v5386, 1.442695
      %v5520 = vpow.pop %v5519
      %v5521 = vmul.f32 %v5387, 1.442695
      %v5522 = vpow.pop %v5521
      %v5523 = vmul.f32 %v5388, 1.442695
      %v5524 = vpow.pop %v5523
      %v5525 = vmul.f32 %v5389, 1.442695
      %v5526 = vpow.pop %v5525
      %v5527 = vmul.f32 %v5390, 1.442695
      %v5528 = vpow.pop %v5527
      %v5529 = vmul.f32 %v5391, 1.442695
      %v5530 = vpow.pop %v5529
      %v5531 = vmul.f32 %v5392, 1.442695
      %v5532 = vpow.pop %v5531
      %v5533 = vmul.f32 %v5393, 1.442695
      %v5534 = vpow.pop %v5533
      %v5535 = vmul.f32 %v5394, 1.442695
      %v5536 = vpow.pop %v5535
      %v5537 = vmul.f32 %v5395, 1.442695
      %v5538 = vpow.pop %v5537
      %v5539 = vmul.f32 %v5396, 1.442695
      %v5540 = vpow.pop %v5539
      %v5541 = vmul.f32 %v5397, 1.442695
      %v5542 = vpow.pop %v5541
      %v5543 = vmul.f32 %v5398, 1.442695
      %v5544 = vpow.pop %v5543
      %v5545 = vmul.f32 %v5399, 1.442695
      %v5546 = vpow.pop %v5545
      %v5547 = vmul.f32 %v5400, 1.442695
      %v5548 = vpow.pop %v5547
      %v5549 = vmul.f32 %v5401, 1.442695
      %v5550 = vpow.pop %v5549
      %v5551 = vmul.f32 %v5402, 1.442695
      %v5552 = vpow.pop %v5551
      %v5553 = vmul.f32 %v5403, 1.442695
      %v5554 = vpow.pop %v5553
      %v5555 = vmul.f32 %v5404, 1.442695
      %v5556 = vpow.pop %v5555
      %v5557 = vmul.f32 %v5405, 1.442695
      %v5558 = vpow.pop %v5557
      %v5559 = vmul.f32 %v5406, 1.442695
      %v5560 = vpow.pop %v5559
      %v5561 = vmul.f32 %v5407, 1.442695
      %v5562 = vpow.pop %v5561
      %v5563 = vmul.f32 %v5408, 1.442695
      %v5564 = vpow.pop %v5563
      %v5565 = vmul.f32 %v5409, 1.442695
      %v5566 = vpow.pop %v5565
      %v5567 = vmul.f32 %v5410, 1.442695
      %v5568 = vpow.pop %v5567
      %v5569 = vmul.f32 %v5411, 1.442695
      %v5570 = vpow.pop %v5569
      %v5571 = vmul.f32 %v5412, 1.442695
      %v5572 = vpow.pop %v5571
      %v5573 = vmul.f32 %v5413, 1.442695
      %v5574 = vpow.pop %v5573
      %v5575 = vmul.f32 %v5414, 1.442695
      %v5576 = vpow.pop %v5575
      %v5577 = vmul.f32 %v5415, 1.442695
      %v5578 = vpow.pop %v5577
      %v5579 = vmul.f32 %v5416, 1.442695
      %v5580 = vpow.pop %v5579
      %v5581 = vmul.f32 %v5417, 1.442695
      %v5582 = vpow.pop %v5581
      %v5583 = vmul.f32 %v5418, 1.442695
      %v5584 = vpow.pop %v5583
      %v5585 = vmul.f32 %v5419, 1.442695
      %v5586 = vpow.pop %v5585
      %v5587 = vmul.f32 %v5420, 1.442695
      %v5588 = vpow.pop %v5587
      %v5589 = vmul.f32 %v5421, 1.442695
      %v5590 = vpow.pop %v5589
      %v5591 = vmul.f32 %v5422, 1.442695
      %v5592 = vpow.pop %v5591
      %v5593 = vmul.f32 %v5423, 1.442695
      %v5594 = vpow.pop %v5593
      %v5595 = vmul.f32 %v5424, 1.442695
      %v5596 = vpow.pop %v5595
      %v5597 = vmul.f32 %v5425, 1.442695
      %v5598 = vpow.pop %v5597
      %v5599 = vmul.f32 %v5426, 1.442695
      %v5600 = vpow.pop %v5599
      %v5601 = vmul.f32 %v5427, 1.442695
      %v5602 = vpow.pop %v5601
      %v5603 = vmul.f32 %v5428, 1.442695
      %v5604 = vpow.pop %v5603
      %v5605 = vmul.f32 %v5429, 1.442695
      %v5606 = vpow.pop %v5605
      %v5607 = vmul.f32 %v5430, 1.442695
      %v5608 = vpow.pop %v5607
      %v5609 = vmul.f32 %v5431, 1.442695
      %v5610 = vpow.pop %v5609
      %v5611 = vmul.f32 %v5432, 1.442695
      %v5612 = vpow.pop %v5611
      %v5613 = vmul.f32 %v5433, 1.442695
      %v5614 = vpow.pop %v5613
      %v5615 = vmul.f32 %v5434, 1.442695
      %v5616 = vpow.pop %v5615
      %v5617 = vmul.f32 %v5435, 1.442695
      %v5618 = vpow.pop %v5617
      %v5619 = vmul.f32 %v5436, 1.442695
      %v5620 = vpow.pop %v5619
      %v5621 = vmul.f32 %v5437, 1.442695
      %v5622 = vpow.pop %v5621
      %v5623 = vmul.f32 %v5438, 1.442695
      %v5624 = vpow.pop %v5623
      %v5625 = vmul.f32 %v5439, 1.442695
      %v5626 = vpow.pop %v5625
      %v5627 = vmul.f32 %v5440, 1.442695
      %v5628 = vpow.pop %v5627
      %v5629 = vmul.f32 %v5441, 1.442695
      %v5630 = vpow.pop %v5629
      %v5631 = vmul.f32 %v5442, 1.442695
      %v5632 = vpow.pop %v5631
      %v5633 = vmul.f32 %v5443, 1.442695
      %v5634 = vpow.pop %v5633
      %v5635 = vmul.f32 %v5444, 1.442695
      %v5636 = vpow.pop %v5635
      %v5637 = vmul.f32 %v5445, 1.442695
      %v5638 = vpow.pop %v5637
      %v5639 = vmul.f32 %v5446, 1.442695
      %v5640 = vpow.pop %v5639
      %v5641 = vmul.f32 %v5447, 1.442695
      %v5642 = vpow.pop %v5641
      %v5643 = vmul.f32 %v5448, 1.442695
      %v5644 = vpow.pop %v5643
      %v5645 = vmul.f32 %v5449, 1.442695
      %v5646 = vpow.pop %v5645
      %v5647 = vmul.f32 %v5450, 1.442695
      %v5648 = vpow.pop %v5647
      %v5649 = vmul.f32 %v5451, 1.442695
      %v5650 = vpow.pop %v5649
      %v5651 = vmul.f32 %v5452, 1.442695
      %v5652 = vpow.pop %v5651
      %v5653 = vmul.f32 %v5453, 1.442695
      %v5654 = vpow.pop %v5653
      %v5655 = vmul.f32 %v5454, 1.442695
      %v5656 = vpow.pop %v5655
      %v5657 = vmul.f32 %v5455, 1.442695
      %v5658 = vpow.pop %v5657
      %v5659 = vmul.f32 %v5456, 1.442695
      %v5660 = vpow.pop %v5659
      %v5661 = vmul.f32 %v5457, 1.442695
      %v5662 = vpow.pop %v5661
      %v5663 = vmul.f32 %v5458, 1.442695
      %v5664 = vpow.pop %v5663
      %v5665 = vmul.f32 %v5459, 1.442695
      %v5666 = vpow.pop %v5665
      %v5667 = vmul.f32 %v5460, 1.442695
      %v5668 = vpow.pop %v5667
      %v5669 = vmul.f32 %v5461, 1.442695
      %v5670 = vpow.pop %v5669
      %v5671 = vmul.f32 %v5462, 1.442695
      %v5672 = vpow.pop %v5671
      %v5673 = vmul.f32 %v5463, 1.442695
      %v5674 = vpow.pop %v5673
      %v5675 = vmul.f32 %v5464, 1.442695
      %v5676 = vpow.pop %v5675
      %v5677 = vmul.f32 %v5465, 1.442695
      %v5678 = vpow.pop %v5677
      %v5679 = vmul.f32 %v5466, 1.442695
      %v5680 = vpow.pop %v5679
      %v5681 = vmul.f32 %v5467, 1.442695
      %v5682 = vpow.pop %v5681
      %v5683 = vmul.f32 %v5468, 1.442695
      %v5684 = vpow.pop %v5683
      %v5685 = vmul.f32 %v5469, 1.442695
      %v5686 = vpow.pop %v5685
      %v5687 = vmul.f32 %v5470, 1.442695
      %v5688 = vpow.pop %v5687
      %v5689 = vmul.f32 %v5471, 1.442695
      %v5690 = vpow.pop %v5689
      %v5691 = vmul.f32 %v5472, 1.442695
      %v5692 = vpow.pop %v5691
      %v5693 = vmul.f32 %v5473, 1.442695
      %v5694 = vpow.pop %v5693
      %v5695 = vmul.f32 %v5474, 1.442695
      %v5696 = vpow.pop %v5695
      %v5697 = vmul.f32 %v5475, 1.442695
      %v5698 = vpow.pop %v5697
      %v5699 = vmul.f32 %v5476, 1.442695
      %v5700 = vpow.pop %v5699
      %v5701 = vmul.f32 %v5477, 1.442695
      %v5702 = vpow.pop %v5701
      %v5703 = vmul.f32 %v5478, 1.442695
      %v5704 = vpow.pop %v5703
      %v5705 = vmul.f32 %v5479, 1.442695
      %v5706 = vpow.pop %v5705
      %v5707 = vmul.f32 %v5480, 1.442695
      %v5708 = vpow.pop %v5707
      %v5709 = vmul.f32 %v5481, 1.442695
      %v5710 = vpow.pop %v5709
      %v5711 = vmul.f32 %v5482, 1.442695
      %v5712 = vpow.pop %v5711
      %v5713 = vmul.f32 %v5483, 1.442695
      %v5714 = vpow.pop %v5713
      %v5715 = vmul.f32 %v5484, 1.442695
      %v5716 = vpow.pop %v5715
      %v5717 = vmul.f32 %v5485, 1.442695
      %v5718 = vpow.pop %v5717
      %v5719 = vmul.f32 %v5486, 1.442695
      %v5720 = vpow.pop %v5719
      %v5721 = vmul.f32 %v5487, 1.442695
      %v5722 = vpow.pop %v5721
      %v5723 = vmul.f32 %v5488, 1.442695
      %v5724 = vpow.pop %v5723
      %v5725 = vmul.f32 %v5489, 1.442695
      %v5726 = vpow.pop %v5725
      %v5727 = vmul.f32 %v5490, 1.442695
      %v5728 = vpow.pop %v5727
      %v5729 = vmul.f32 %v5491, 1.442695
      %v5730 = vpow.pop %v5729
      %v5731 = vmul.f32 %v5492, 1.442695
      %v5732 = vpow.pop %v5731
      %v5733 = vmul.f32 %v5493, 1.442695
      %v5734 = vpow.pop %v5733
      %v5735 = vmul.f32 %v5494, 1.442695
      %v5736 = vpow.pop %v5735
      %v5737 = vmul.f32 %v5495, 1.442695
      %v5738 = vpow.pop %v5737
      %v5739 = vmul.f32 %v5496, 1.442695
      %v5740 = vpow.pop %v5739
      %v5741 = vmul.f32 %v5497, 1.442695
      %v5742 = vpow.pop %v5741
      %v5743 = vmul.f32 %v5498, 1.442695
      %v5744 = vpow.pop %v5743
      %v5745 = vmul.f32 %v5499, 1.442695
      %v5746 = vpow.pop %v5745
      %v5747 = vmul.f32 %v5500, 1.442695
      %v5748 = vpow.pop %v5747
      %v5749 = vmul.f32 %v5501, 1.442695
      %v5750 = vpow.pop %v5749
      %v5751 = vmul.f32 %v5502, 1.442695
      %v5752 = vpow.pop %v5751
      %v5753 = vmul.f32 %v5503, 1.442695
      %v5754 = vpow.pop %v5753
      %v5755 = vmul.f32 %v5504, 1.442695
      %v5756 = vpow.pop %v5755
      %v5757 = vmul.f32 %v5505, 1.442695
      %v5758 = vpow.pop %v5757
      %v5759 = vmul.f32 %v5506, 1.442695
      %v5760 = vpow.pop %v5759
      %v5761 = vmul.f32 %v5507, 1.442695
      %v5762 = vpow.pop %v5761
      %v5763 = vmul.f32 %v5508, 1.442695
      %v5764 = vpow.pop %v5763
      %v5765 = vsel %vm4996, %v5510, 0.0
      %5766 = vadd.xlane.f32.xlu0 %v5765
      %v5767 = vpop.xlane.xlu0 %5766
      %v5768 = vsel %vm4996, %v5512, 0.0
      %5769 = vadd.xlane.f32.xlu0 %v5768
      %v5770 = vpop.xlane.xlu0 %5769
      %v5771 = vsel %vm4996, %v5514, 0.0
      %5772 = vadd.xlane.f32.xlu0 %v5771
      %v5773 = vpop.xlane.xlu0 %5772
      %v5774 = vsel %vm4996, %v5516, 0.0
      %5775 = vadd.xlane.f32.xlu0 %v5774
      %v5776 = vpop.xlane.xlu0 %5775
      %v5777 = vsel %vm4996, %v5518, 0.0
      %5778 = vadd.xlane.f32.xlu0 %v5777
      %v5779 = vpop.xlane.xlu0 %5778
      %v5780 = vsel %vm4996, %v5520, 0.0
      %5781 = vadd.xlane.f32.xlu0 %v5780
      %v5782 = vpop.xlane.xlu0 %5781
      %v5783 = vsel %vm4996, %v5522, 0.0
      %5784 = vadd.xlane.f32.xlu0 %v5783
      %v5785 = vpop.xlane.xlu0 %5784
      %v5786 = vsel %vm4996, %v5524, 0.0
      %5787 = vadd.xlane.f32.xlu0 %v5786
      %v5788 = vpop.xlane.xlu0 %5787
      %v5789 = vsel %vm4996, %v5526, 0.0
      %5790 = vadd.xlane.f32.xlu0 %v5789
      %v5791 = vpop.xlane.xlu0 %5790
      %v5792 = vsel %vm4996, %v5528, 0.0
      %5793 = vadd.xlane.f32.xlu0 %v5792
      %v5794 = vpop.xlane.xlu0 %5793
      %v5795 = vsel %vm4996, %v5530, 0.0
      %5796 = vadd.xlane.f32.xlu0 %v5795
      %v5797 = vpop.xlane.xlu0 %5796
      %v5798 = vsel %vm4996, %v5532, 0.0
      %5799 = vadd.xlane.f32.xlu0 %v5798
      %v5800 = vpop.xlane.xlu0 %5799
      %v5801 = vsel %vm4996, %v5534, 0.0
      %5802 = vadd.xlane.f32.xlu0 %v5801
      %v5803 = vpop.xlane.xlu0 %5802
      %v5804 = vsel %vm4996, %v5536, 0.0
      %5805 = vadd.xlane.f32.xlu0 %v5804
      %v5806 = vpop.xlane.xlu0 %5805
      %v5807 = vsel %vm4996, %v5538, 0.0
      %5808 = vadd.xlane.f32.xlu0 %v5807
      %v5809 = vpop.xlane.xlu0 %5808
      %v5810 = vsel %vm4996, %v5540, 0.0
      %5811 = vadd.xlane.f32.xlu0 %v5810
      %v5812 = vpop.xlane.xlu0 %5811
      %v5813 = vsel %vm4996, %v5542, 0.0
      %5814 = vadd.xlane.f32.xlu0 %v5813
      %v5815 = vpop.xlane.xlu0 %5814
      %v5816 = vsel %vm4996, %v5544, 0.0
      %5817 = vadd.xlane.f32.xlu0 %v5816
      %v5818 = vpop.xlane.xlu0 %5817
      %v5819 = vsel %vm4996, %v5546, 0.0
      %5820 = vadd.xlane.f32.xlu0 %v5819
      %v5821 = vpop.xlane.xlu0 %5820
      %v5822 = vsel %vm4996, %v5548, 0.0
      %5823 = vadd.xlane.f32.xlu0 %v5822
      %v5824 = vpop.xlane.xlu0 %5823
      %v5825 = vsel %vm4996, %v5550, 0.0
      %5826 = vadd.xlane.f32.xlu0 %v5825
      %v5827 = vpop.xlane.xlu0 %5826
      %v5828 = vsel %vm4996, %v5552, 0.0
      %5829 = vadd.xlane.f32.xlu0 %v5828
      %v5830 = vpop.xlane.xlu0 %5829
      %v5831 = vsel %vm4996, %v5554, 0.0
      %5832 = vadd.xlane.f32.xlu0 %v5831
      %v5833 = vpop.xlane.xlu0 %5832
      %v5834 = vsel %vm4996, %v5556, 0.0
      %5835 = vadd.xlane.f32.xlu0 %v5834
      %v5836 = vpop.xlane.xlu0 %5835
      %v5837 = vsel %vm4996, %v5558, 0.0
      %5838 = vadd.xlane.f32.xlu0 %v5837
      %v5839 = vpop.xlane.xlu0 %5838
      %v5840 = vsel %vm4996, %v5560, 0.0
      %5841 = vadd.xlane.f32.xlu0 %v5840
      %v5842 = vpop.xlane.xlu0 %5841
      %v5843 = vsel %vm4996, %v5562, 0.0
      %5844 = vadd.xlane.f32.xlu0 %v5843
      %v5845 = vpop.xlane.xlu0 %5844
      %v5846 = vsel %vm4996, %v5564, 0.0
      %5847 = vadd.xlane.f32.xlu0 %v5846
      %v5848 = vpop.xlane.xlu0 %5847
      %v5849 = vsel %vm4996, %v5566, 0.0
      %5850 = vadd.xlane.f32.xlu0 %v5849
      %v5851 = vpop.xlane.xlu0 %5850
      %v5852 = vsel %vm4996, %v5568, 0.0
      %5853 = vadd.xlane.f32.xlu0 %v5852
      %v5854 = vpop.xlane.xlu0 %5853
      %v5855 = vsel %vm4996, %v5570, 0.0
      %5856 = vadd.xlane.f32.xlu0 %v5855
      %v5857 = vpop.xlane.xlu0 %5856
      %v5858 = vsel %vm4996, %v5572, 0.0
      %5859 = vadd.xlane.f32.xlu0 %v5858
      %v5860 = vpop.xlane.xlu0 %5859
      %v5861 = vsel %vm4996, %v5574, 0.0
      %5862 = vadd.xlane.f32.xlu0 %v5861
      %v5863 = vpop.xlane.xlu0 %5862
      %v5864 = vsel %vm4996, %v5576, 0.0
      %5865 = vadd.xlane.f32.xlu0 %v5864
      %v5866 = vpop.xlane.xlu0 %5865
      %v5867 = vsel %vm4996, %v5578, 0.0
      %5868 = vadd.xlane.f32.xlu0 %v5867
      %v5869 = vpop.xlane.xlu0 %5868
      %v5870 = vsel %vm4996, %v5580, 0.0
      %5871 = vadd.xlane.f32.xlu0 %v5870
      %v5872 = vpop.xlane.xlu0 %5871
      %v5873 = vsel %vm4996, %v5582, 0.0
      %5874 = vadd.xlane.f32.xlu0 %v5873
      %v5875 = vpop.xlane.xlu0 %5874
      %v5876 = vsel %vm4996, %v5584, 0.0
      %5877 = vadd.xlane.f32.xlu0 %v5876
      %v5878 = vpop.xlane.xlu0 %5877
      %v5879 = vsel %vm4996, %v5586, 0.0
      %5880 = vadd.xlane.f32.xlu0 %v5879
      %v5881 = vpop.xlane.xlu0 %5880
      %v5882 = vsel %vm4996, %v5588, 0.0
      %5883 = vadd.xlane.f32.xlu0 %v5882
      %v5884 = vpop.xlane.xlu0 %5883
      %v5885 = vsel %vm4996, %v5590, 0.0
      %5886 = vadd.xlane.f32.xlu0 %v5885
      %v5887 = vpop.xlane.xlu0 %5886
      %v5888 = vsel %vm4996, %v5592, 0.0
      %5889 = vadd.xlane.f32.xlu0 %v5888
      %v5890 = vpop.xlane.xlu0 %5889
      %v5891 = vsel %vm4996, %v5594, 0.0
      %5892 = vadd.xlane.f32.xlu0 %v5891
      %v5893 = vpop.xlane.xlu0 %5892
      %v5894 = vsel %vm4996, %v5596, 0.0
      %5895 = vadd.xlane.f32.xlu0 %v5894
      %v5896 = vpop.xlane.xlu0 %5895
      %v5897 = vsel %vm4996, %v5598, 0.0
      %5898 = vadd.xlane.f32.xlu0 %v5897
      %v5899 = vpop.xlane.xlu0 %5898
      %v5900 = vsel %vm4996, %v5600, 0.0
      %5901 = vadd.xlane.f32.xlu0 %v5900
      %v5902 = vpop.xlane.xlu0 %5901
      %v5903 = vsel %vm4996, %v5602, 0.0
      %5904 = vadd.xlane.f32.xlu0 %v5903
      %v5905 = vpop.xlane.xlu0 %5904
      %v5906 = vsel %vm4996, %v5604, 0.0
      %5907 = vadd.xlane.f32.xlu0 %v5906
      %v5908 = vpop.xlane.xlu0 %5907
      %v5909 = vsel %vm4996, %v5606, 0.0
      %5910 = vadd.xlane.f32.xlu0 %v5909
      %v5911 = vpop.xlane.xlu0 %5910
      %v5912 = vsel %vm4996, %v5608, 0.0
      %5913 = vadd.xlane.f32.xlu0 %v5912
      %v5914 = vpop.xlane.xlu0 %5913
      %v5915 = vsel %vm4996, %v5610, 0.0
      %5916 = vadd.xlane.f32.xlu0 %v5915
      %v5917 = vpop.xlane.xlu0 %5916
      %v5918 = vsel %vm4996, %v5612, 0.0
      %5919 = vadd.xlane.f32.xlu0 %v5918
      %v5920 = vpop.xlane.xlu0 %5919
      %v5921 = vsel %vm4996, %v5614, 0.0
      %5922 = vadd.xlane.f32.xlu0 %v5921
      %v5923 = vpop.xlane.xlu0 %5922
      %v5924 = vsel %vm4996, %v5616, 0.0
      %5925 = vadd.xlane.f32.xlu0 %v5924
      %v5926 = vpop.xlane.xlu0 %5925
      %v5927 = vsel %vm4996, %v5618, 0.0
      %5928 = vadd.xlane.f32.xlu0 %v5927
      %v5929 = vpop.xlane.xlu0 %5928
      %v5930 = vsel %vm4996, %v5620, 0.0
      %5931 = vadd.xlane.f32.xlu0 %v5930
      %v5932 = vpop.xlane.xlu0 %5931
      %v5933 = vsel %vm4996, %v5622, 0.0
      %5934 = vadd.xlane.f32.xlu0 %v5933
      %v5935 = vpop.xlane.xlu0 %5934
      %v5936 = vsel %vm4996, %v5624, 0.0
      %5937 = vadd.xlane.f32.xlu0 %v5936
      %v5938 = vpop.xlane.xlu0 %5937
      %v5939 = vsel %vm4996, %v5626, 0.0
      %5940 = vadd.xlane.f32.xlu0 %v5939
      %v5941 = vpop.xlane.xlu0 %5940
      %v5942 = vsel %vm4996, %v5628, 0.0
      %5943 = vadd.xlane.f32.xlu0 %v5942
      %v5944 = vpop.xlane.xlu0 %5943
      %v5945 = vsel %vm4996, %v5630, 0.0
      %5946 = vadd.xlane.f32.xlu0 %v5945
      %v5947 = vpop.xlane.xlu0 %5946
      %v5948 = vsel %vm4996, %v5632, 0.0
      %5949 = vadd.xlane.f32.xlu0 %v5948
      %v5950 = vpop.xlane.xlu0 %5949
      %v5951 = vsel %vm4996, %v5634, 0.0
      %5952 = vadd.xlane.f32.xlu0 %v5951
      %v5953 = vpop.xlane.xlu0 %5952
      %v5954 = vsel %vm4996, %v5636, 0.0
      %5955 = vadd.xlane.f32.xlu0 %v5954
      %v5956 = vpop.xlane.xlu0 %5955
      %v5957 = vsel %vm4996, %v5638, 0.0
      %5958 = vadd.xlane.f32.xlu0 %v5957
      %v5959 = vpop.xlane.xlu0 %5958
      %v5960 = vsel %vm4996, %v5640, 0.0
      %5961 = vadd.xlane.f32.xlu0 %v5960
      %v5962 = vpop.xlane.xlu0 %5961
      %v5963 = vsel %vm4996, %v5642, 0.0
      %5964 = vadd.xlane.f32.xlu0 %v5963
      %v5965 = vpop.xlane.xlu0 %5964
      %v5966 = vsel %vm4996, %v5644, 0.0
      %5967 = vadd.xlane.f32.xlu0 %v5966
      %v5968 = vpop.xlane.xlu0 %5967
      %v5969 = vsel %vm4996, %v5646, 0.0
      %5970 = vadd.xlane.f32.xlu0 %v5969
      %v5971 = vpop.xlane.xlu0 %5970
      %v5972 = vsel %vm4996, %v5648, 0.0
      %5973 = vadd.xlane.f32.xlu0 %v5972
      %v5974 = vpop.xlane.xlu0 %5973
      %v5975 = vsel %vm4996, %v5650, 0.0
      %5976 = vadd.xlane.f32.xlu0 %v5975
      %v5977 = vpop.xlane.xlu0 %5976
      %v5978 = vsel %vm4996, %v5652, 0.0
      %5979 = vadd.xlane.f32.xlu0 %v5978
      %v5980 = vpop.xlane.xlu0 %5979
      %v5981 = vsel %vm4996, %v5654, 0.0
      %5982 = vadd.xlane.f32.xlu0 %v5981
      %v5983 = vpop.xlane.xlu0 %5982
      %v5984 = vsel %vm4996, %v5656, 0.0
      %5985 = vadd.xlane.f32.xlu0 %v5984
      %v5986 = vpop.xlane.xlu0 %5985
      %v5987 = vsel %vm4996, %v5658, 0.0
      %5988 = vadd.xlane.f32.xlu0 %v5987
      %v5989 = vpop.xlane.xlu0 %5988
      %v5990 = vsel %vm4996, %v5660, 0.0
      %5991 = vadd.xlane.f32.xlu0 %v5990
      %v5992 = vpop.xlane.xlu0 %5991
      %v5993 = vsel %vm4996, %v5662, 0.0
      %5994 = vadd.xlane.f32.xlu0 %v5993
      %v5995 = vpop.xlane.xlu0 %5994
      %v5996 = vsel %vm4996, %v5664, 0.0
      %5997 = vadd.xlane.f32.xlu0 %v5996
      %v5998 = vpop.xlane.xlu0 %5997
      %v5999 = vsel %vm4996, %v5666, 0.0
      %6000 = vadd.xlane.f32.xlu0 %v5999
      %v6001 = vpop.xlane.xlu0 %6000
      %v6002 = vsel %vm4996, %v5668, 0.0
      %6003 = vadd.xlane.f32.xlu0 %v6002
      %v6004 = vpop.xlane.xlu0 %6003
      %v6005 = vsel %vm4996, %v5670, 0.0
      %6006 = vadd.xlane.f32.xlu0 %v6005
      %v6007 = vpop.xlane.xlu0 %6006
      %v6008 = vsel %vm4996, %v5672, 0.0
      %6009 = vadd.xlane.f32.xlu0 %v6008
      %v6010 = vpop.xlane.xlu0 %6009
      %v6011 = vsel %vm4996, %v5674, 0.0
      %6012 = vadd.xlane.f32.xlu0 %v6011
      %v6013 = vpop.xlane.xlu0 %6012
      %v6014 = vsel %vm4996, %v5676, 0.0
      %6015 = vadd.xlane.f32.xlu0 %v6014
      %v6016 = vpop.xlane.xlu0 %6015
      %v6017 = vsel %vm4996, %v5678, 0.0
      %6018 = vadd.xlane.f32.xlu0 %v6017
      %v6019 = vpop.xlane.xlu0 %6018
      %v6020 = vsel %vm4996, %v5680, 0.0
      %6021 = vadd.xlane.f32.xlu0 %v6020
      %v6022 = vpop.xlane.xlu0 %6021
      %v6023 = vsel %vm4996, %v5682, 0.0
      %6024 = vadd.xlane.f32.xlu0 %v6023
      %v6025 = vpop.xlane.xlu0 %6024
      %v6026 = vsel %vm4996, %v5684, 0.0
      %6027 = vadd.xlane.f32.xlu0 %v6026
      %v6028 = vpop.xlane.xlu0 %6027
      %v6029 = vsel %vm4996, %v5686, 0.0
      %6030 = vadd.xlane.f32.xlu0 %v6029
      %v6031 = vpop.xlane.xlu0 %6030
      %v6032 = vsel %vm4996, %v5688, 0.0
      %6033 = vadd.xlane.f32.xlu0 %v6032
      %v6034 = vpop.xlane.xlu0 %6033
      %v6035 = vsel %vm4996, %v5690, 0.0
      %6036 = vadd.xlane.f32.xlu0 %v6035
      %v6037 = vpop.xlane.xlu0 %6036
      %v6038 = vsel %vm4996, %v5692, 0.0
      %6039 = vadd.xlane.f32.xlu0 %v6038
      %v6040 = vpop.xlane.xlu0 %6039
      %v6041 = vsel %vm4996, %v5694, 0.0
      %6042 = vadd.xlane.f32.xlu0 %v6041
      %v6043 = vpop.xlane.xlu0 %6042
      %v6044 = vsel %vm4996, %v5696, 0.0
      %6045 = vadd.xlane.f32.xlu0 %v6044
      %v6046 = vpop.xlane.xlu0 %6045
      %v6047 = vsel %vm4996, %v5698, 0.0
      %6048 = vadd.xlane.f32.xlu0 %v6047
      %v6049 = vpop.xlane.xlu0 %6048
      %v6050 = vsel %vm4996, %v5700, 0.0
      %6051 = vadd.xlane.f32.xlu0 %v6050
      %v6052 = vpop.xlane.xlu0 %6051
      %v6053 = vsel %vm4996, %v5702, 0.0
      %6054 = vadd.xlane.f32.xlu0 %v6053
      %v6055 = vpop.xlane.xlu0 %6054
      %v6056 = vsel %vm4996, %v5704, 0.0
      %6057 = vadd.xlane.f32.xlu0 %v6056
      %v6058 = vpop.xlane.xlu0 %6057
      %v6059 = vsel %vm4996, %v5706, 0.0
      %6060 = vadd.xlane.f32.xlu0 %v6059
      %v6061 = vpop.xlane.xlu0 %6060
      %v6062 = vsel %vm4996, %v5708, 0.0
      %6063 = vadd.xlane.f32.xlu0 %v6062
      %v6064 = vpop.xlane.xlu0 %6063
      %v6065 = vsel %vm4996, %v5710, 0.0
      %6066 = vadd.xlane.f32.xlu0 %v6065
      %v6067 = vpop.xlane.xlu0 %6066
      %v6068 = vsel %vm4996, %v5712, 0.0
      %6069 = vadd.xlane.f32.xlu0 %v6068
      %v6070 = vpop.xlane.xlu0 %6069
      %v6071 = vsel %vm4996, %v5714, 0.0
      %6072 = vadd.xlane.f32.xlu0 %v6071
      %v6073 = vpop.xlane.xlu0 %6072
      %v6074 = vsel %vm4996, %v5716, 0.0
      %6075 = vadd.xlane.f32.xlu0 %v6074
      %v6076 = vpop.xlane.xlu0 %6075
      %v6077 = vsel %vm4996, %v5718, 0.0
      %6078 = vadd.xlane.f32.xlu0 %v6077
      %v6079 = vpop.xlane.xlu0 %6078
      %v6080 = vsel %vm4996, %v5720, 0.0
      %6081 = vadd.xlane.f32.xlu0 %v6080
      %v6082 = vpop.xlane.xlu0 %6081
      %v6083 = vsel %vm4996, %v5722, 0.0
      %6084 = vadd.xlane.f32.xlu0 %v6083
      %v6085 = vpop.xlane.xlu0 %6084
      %v6086 = vsel %vm4996, %v5724, 0.0
      %6087 = vadd.xlane.f32.xlu0 %v6086
      %v6088 = vpop.xlane.xlu0 %6087
      %v6089 = vsel %vm4996, %v5726, 0.0
      %6090 = vadd.xlane.f32.xlu0 %v6089
      %v6091 = vpop.xlane.xlu0 %6090
      %v6092 = vsel %vm4996, %v5728, 0.0
      %6093 = vadd.xlane.f32.xlu0 %v6092
      %v6094 = vpop.xlane.xlu0 %6093
      %v6095 = vsel %vm4996, %v5730, 0.0
      %6096 = vadd.xlane.f32.xlu0 %v6095
      %v6097 = vpop.xlane.xlu0 %6096
      %v6098 = vsel %vm4996, %v5732, 0.0
      %6099 = vadd.xlane.f32.xlu0 %v6098
      %v6100 = vpop.xlane.xlu0 %6099
      %v6101 = vsel %vm4996, %v5734, 0.0
      %6102 = vadd.xlane.f32.xlu0 %v6101
      %v6103 = vpop.xlane.xlu0 %6102
      %v6104 = vsel %vm4996, %v5736, 0.0
      %6105 = vadd.xlane.f32.xlu0 %v6104
      %v6106 = vpop.xlane.xlu0 %6105
      %v6107 = vsel %vm4996, %v5738, 0.0
      %6108 = vadd.xlane.f32.xlu0 %v6107
      %v6109 = vpop.xlane.xlu0 %6108
      %v6110 = vsel %vm4996, %v5740, 0.0
      %6111 = vadd.xlane.f32.xlu0 %v6110
      %v6112 = vpop.xlane.xlu0 %6111
      %v6113 = vsel %vm4996, %v5742, 0.0
      %6114 = vadd.xlane.f32.xlu0 %v6113
      %v6115 = vpop.xlane.xlu0 %6114
      %v6116 = vsel %vm4996, %v5744, 0.0
      %6117 = vadd.xlane.f32.xlu0 %v6116
      %v6118 = vpop.xlane.xlu0 %6117
      %v6119 = vsel %vm4996, %v5746, 0.0
      %6120 = vadd.xlane.f32.xlu0 %v6119
      %v6121 = vpop.xlane.xlu0 %6120
      %v6122 = vsel %vm4996, %v5748, 0.0
      %6123 = vadd.xlane.f32.xlu0 %v6122
      %v6124 = vpop.xlane.xlu0 %6123
      %v6125 = vsel %vm4996, %v5750, 0.0
      %6126 = vadd.xlane.f32.xlu0 %v6125
      %v6127 = vpop.xlane.xlu0 %6126
      %v6128 = vsel %vm4996, %v5752, 0.0
      %6129 = vadd.xlane.f32.xlu0 %v6128
      %v6130 = vpop.xlane.xlu0 %6129
      %v6131 = vsel %vm4996, %v5754, 0.0
      %6132 = vadd.xlane.f32.xlu0 %v6131
      %v6133 = vpop.xlane.xlu0 %6132
      %v6134 = vsel %vm4996, %v5756, 0.0
      %6135 = vadd.xlane.f32.xlu0 %v6134
      %v6136 = vpop.xlane.xlu0 %6135
      %v6137 = vsel %vm4996, %v5758, 0.0
      %6138 = vadd.xlane.f32.xlu0 %v6137
      %v6139 = vpop.xlane.xlu0 %6138
      %v6140 = vsel %vm4996, %v5760, 0.0
      %6141 = vadd.xlane.f32.xlu0 %v6140
      %v6142 = vpop.xlane.xlu0 %6141
      %v6143 = vsel %vm4996, %v5762, 0.0
      %6144 = vadd.xlane.f32.xlu0 %v6143
      %v6145 = vpop.xlane.xlu0 %6144
      %v6146 = vsel %vm4996, %v5764, 0.0
      %6147 = vadd.xlane.f32.xlu0 %v6146
      %v6148 = vpop.xlane.xlu0 %6147
      %v6149 = vrcp.pop %v5767
      %v6150 = vrcp.pop %v5770
      %v6151 = vrcp.pop %v5773
      %v6152 = vrcp.pop %v5776
      %v6153 = vrcp.pop %v5779
      %v6154 = vrcp.pop %v5782
      %v6155 = vrcp.pop %v5785
      %v6156 = vrcp.pop %v5788
      %v6157 = vrcp.pop %v5791
      %v6158 = vrcp.pop %v5794
      %v6159 = vrcp.pop %v5797
      %v6160 = vrcp.pop %v5800
      %v6161 = vrcp.pop %v5803
      %v6162 = vrcp.pop %v5806
      %v6163 = vrcp.pop %v5809
      %v6164 = vrcp.pop %v5812
      %v6165 = vrcp.pop %v5815
      %v6166 = vrcp.pop %v5818
      %v6167 = vrcp.pop %v5821
      %v6168 = vrcp.pop %v5824
      %v6169 = vrcp.pop %v5827
      %v6170 = vrcp.pop %v5830
      %v6171 = vrcp.pop %v5833
      %v6172 = vrcp.pop %v5836
      %v6173 = vrcp.pop %v5839
      %v6174 = vrcp.pop %v5842
      %v6175 = vrcp.pop %v5845
      %v6176 = vrcp.pop %v5848
      %v6177 = vrcp.pop %v5851
      %v6178 = vrcp.pop %v5854
      %v6179 = vrcp.pop %v5857
      %v6180 = vrcp.pop %v5860
      %v6181 = vrcp.pop %v5863
      %v6182 = vrcp.pop %v5866
      %v6183 = vrcp.pop %v5869
      %v6184 = vrcp.pop %v5872
      %v6185 = vrcp.pop %v5875
      %v6186 = vrcp.pop %v5878
      %v6187 = vrcp.pop %v5881
      %v6188 = vrcp.pop %v5884
      %v6189 = vrcp.pop %v5887
      %v6190 = vrcp.pop %v5890
      %v6191 = vrcp.pop %v5893
      %v6192 = vrcp.pop %v5896
      %v6193 = vrcp.pop %v5899
      %v6194 = vrcp.pop %v5902
      %v6195 = vrcp.pop %v5905
      %v6196 = vrcp.pop %v5908
      %v6197 = vrcp.pop %v5911
      %v6198 = vrcp.pop %v5914
      %v6199 = vrcp.pop %v5917
      %v6200 = vrcp.pop %v5920
      %v6201 = vrcp.pop %v5923
      %v6202 = vrcp.pop %v5926
      %v6203 = vrcp.pop %v5929
      %v6204 = vrcp.pop %v5932
      %v6205 = vrcp.pop %v5935
      %v6206 = vrcp.pop %v5938
      %v6207 = vrcp.pop %v5941
      %v6208 = vrcp.pop %v5944
      %v6209 = vrcp.pop %v5947
      %v6210 = vrcp.pop %v5950
      %v6211 = vrcp.pop %v5953
      %v6212 = vrcp.pop %v5956
      %v6213 = vrcp.pop %v5959
      %v6214 = vrcp.pop %v5962
      %v6215 = vrcp.pop %v5965
      %v6216 = vrcp.pop %v5968
      %v6217 = vrcp.pop %v5971
      %v6218 = vrcp.pop %v5974
      %v6219 = vrcp.pop %v5977
      %v6220 = vrcp.pop %v5980
      %v6221 = vrcp.pop %v5983
      %v6222 = vrcp.pop %v5986
      %v6223 = vrcp.pop %v5989
      %v6224 = vrcp.pop %v5992
      %v6225 = vrcp.pop %v5995
      %v6226 = vrcp.pop %v5998
      %v6227 = vrcp.pop %v6001
      %v6228 = vrcp.pop %v6004
      %v6229 = vrcp.pop %v6007
      %v6230 = vrcp.pop %v6010
      %v6231 = vrcp.pop %v6013
      %v6232 = vrcp.pop %v6016
      %v6233 = vrcp.pop %v6019
      %v6234 = vrcp.pop %v6022
      %v6235 = vrcp.pop %v6025
      %v6236 = vrcp.pop %v6028
      %v6237 = vrcp.pop %v6031
      %v6238 = vrcp.pop %v6034
      %v6239 = vrcp.pop %v6037
      %v6240 = vrcp.pop %v6040
      %v6241 = vrcp.pop %v6043
      %v6242 = vrcp.pop %v6046
      %v6243 = vrcp.pop %v6049
      %v6244 = vrcp.pop %v6052
      %v6245 = vrcp.pop %v6055
      %v6246 = vrcp.pop %v6058
      %v6247 = vrcp.pop %v6061
      %v6248 = vrcp.pop %v6064
      %v6249 = vrcp.pop %v6067
      %v6250 = vrcp.pop %v6070
      %v6251 = vrcp.pop %v6073
      %v6252 = vrcp.pop %v6076
      %v6253 = vrcp.pop %v6079
      %v6254 = vrcp.pop %v6082
      %v6255 = vrcp.pop %v6085
      %v6256 = vrcp.pop %v6088
      %v6257 = vrcp.pop %v6091
      %v6258 = vrcp.pop %v6094
      %v6259 = vrcp.pop %v6097
      %v6260 = vrcp.pop %v6100
      %v6261 = vrcp.pop %v6103
      %v6262 = vrcp.pop %v6106
      %v6263 = vrcp.pop %v6109
      %v6264 = vrcp.pop %v6112
      %v6265 = vrcp.pop %v6115
      %v6266 = vrcp.pop %v6118
      %v6267 = vrcp.pop %v6121
      %v6268 = vrcp.pop %v6124
      %v6269 = vrcp.pop %v6127
      %v6270 = vrcp.pop %v6130
      %v6271 = vrcp.pop %v6133
      %v6272 = vrcp.pop %v6136
      %v6273 = vrcp.pop %v6139
      %v6274 = vrcp.pop %v6142
      %v6275 = vrcp.pop %v6145
      %v6276 = vrcp.pop %v6148
      %v6277 = vmul.f32 %v5767, %v6149
      %v6278 = vmul.f32 %v5770, %v6150
      %v6279 = vmul.f32 %v5773, %v6151
      %v6280 = vmul.f32 %v5776, %v6152
      %v6281 = vmul.f32 %v5779, %v6153
      %v6282 = vmul.f32 %v5782, %v6154
      %v6283 = vmul.f32 %v5785, %v6155
      %v6284 = vmul.f32 %v5788, %v6156
      %v6285 = vmul.f32 %v5791, %v6157
      %v6286 = vmul.f32 %v5794, %v6158
      %v6287 = vmul.f32 %v5797, %v6159
      %v6288 = vmul.f32 %v5800, %v6160
      %v6289 = vmul.f32 %v5803, %v6161
      %v6290 = vmul.f32 %v5806, %v6162
      %v6291 = vmul.f32 %v5809, %v6163
      %v6292 = vmul.f32 %v5812, %v6164
      %v6293 = vmul.f32 %v5815, %v6165
      %v6294 = vmul.f32 %v5818, %v6166
      %v6295 = vmul.f32 %v5821, %v6167
      %v6296 = vmul.f32 %v5824, %v6168
      %v6297 = vmul.f32 %v5827, %v6169
      %v6298 = vmul.f32 %v5830, %v6170
      %v6299 = vmul.f32 %v5833, %v6171
      %v6300 = vmul.f32 %v5836, %v6172
      %v6301 = vmul.f32 %v5839, %v6173
      %v6302 = vmul.f32 %v5842, %v6174
      %v6303 = vmul.f32 %v5845, %v6175
      %v6304 = vmul.f32 %v5848, %v6176
      %v6305 = vmul.f32 %v5851, %v6177
      %v6306 = vmul.f32 %v5854, %v6178
      %v6307 = vmul.f32 %v5857, %v6179
      %v6308 = vmul.f32 %v5860, %v6180
      %v6309 = vmul.f32 %v5863, %v6181
      %v6310 = vmul.f32 %v5866, %v6182
      %v6311 = vmul.f32 %v5869, %v6183
      %v6312 = vmul.f32 %v5872, %v6184
      %v6313 = vmul.f32 %v5875, %v6185
      %v6314 = vmul.f32 %v5878, %v6186
      %v6315 = vmul.f32 %v5881, %v6187
      %v6316 = vmul.f32 %v5884, %v6188
      %v6317 = vmul.f32 %v5887, %v6189
      %v6318 = vmul.f32 %v5890, %v6190
      %v6319 = vmul.f32 %v5893, %v6191
      %v6320 = vmul.f32 %v5896, %v6192
      %v6321 = vmul.f32 %v5899, %v6193
      %v6322 = vmul.f32 %v5902, %v6194
      %v6323 = vmul.f32 %v5905, %v6195
      %v6324 = vmul.f32 %v5908, %v6196
      %v6325 = vmul.f32 %v5911, %v6197
      %v6326 = vmul.f32 %v5914, %v6198
      %v6327 = vmul.f32 %v5917, %v6199
      %v6328 = vmul.f32 %v5920, %v6200
      %v6329 = vmul.f32 %v5923, %v6201
      %v6330 = vmul.f32 %v5926, %v6202
      %v6331 = vmul.f32 %v5929, %v6203
      %v6332 = vmul.f32 %v5932, %v6204
      %v6333 = vmul.f32 %v5935, %v6205
      %v6334 = vmul.f32 %v5938, %v6206
      %v6335 = vmul.f32 %v5941, %v6207
      %v6336 = vmul.f32 %v5944, %v6208
      %v6337 = vmul.f32 %v5947, %v6209
      %v6338 = vmul.f32 %v5950, %v6210
      %v6339 = vmul.f32 %v5953, %v6211
      %v6340 = vmul.f32 %v5956, %v6212
      %v6341 = vmul.f32 %v5959, %v6213
      %v6342 = vmul.f32 %v5962, %v6214
      %v6343 = vmul.f32 %v5965, %v6215
      %v6344 = vmul.f32 %v5968, %v6216
      %v6345 = vmul.f32 %v5971, %v6217
      %v6346 = vmul.f32 %v5974, %v6218
      %v6347 = vmul.f32 %v5977, %v6219
      %v6348 = vmul.f32 %v5980, %v6220
      %v6349 = vmul.f32 %v5983, %v6221
      %v6350 = vmul.f32 %v5986, %v6222
      %v6351 = vmul.f32 %v5989, %v6223
      %v6352 = vmul.f32 %v5992, %v6224
      %v6353 = vmul.f32 %v5995, %v6225
      %v6354 = vmul.f32 %v5998, %v6226
      %v6355 = vmul.f32 %v6001, %v6227
      %v6356 = vmul.f32 %v6004, %v6228
      %v6357 = vmul.f32 %v6007, %v6229
      %v6358 = vmul.f32 %v6010, %v6230
      %v6359 = vmul.f32 %v6013, %v6231
      %v6360 = vmul.f32 %v6016, %v6232
      %v6361 = vmul.f32 %v6019, %v6233
      %v6362 = vmul.f32 %v6022, %v6234
      %v6363 = vmul.f32 %v6025, %v6235
      %v6364 = vmul.f32 %v6028, %v6236
      %v6365 = vmul.f32 %v6031, %v6237
      %v6366 = vmul.f32 %v6034, %v6238
      %v6367 = vmul.f32 %v6037, %v6239
      %v6368 = vmul.f32 %v6040, %v6240
      %v6369 = vmul.f32 %v6043, %v6241
      %v6370 = vmul.f32 %v6046, %v6242
      %v6371 = vmul.f32 %v6049, %v6243
      %v6372 = vmul.f32 %v6052, %v6244
      %v6373 = vmul.f32 %v6055, %v6245
      %v6374 = vmul.f32 %v6058, %v6246
      %v6375 = vmul.f32 %v6061, %v6247
      %v6376 = vmul.f32 %v6064, %v6248
      %v6377 = vmul.f32 %v6067, %v6249
      %v6378 = vmul.f32 %v6070, %v6250
      %v6379 = vmul.f32 %v6073, %v6251
      %v6380 = vmul.f32 %v6076, %v6252
      %v6381 = vmul.f32 %v6079, %v6253
      %v6382 = vmul.f32 %v6082, %v6254
      %v6383 = vmul.f32 %v6085, %v6255
      %v6384 = vmul.f32 %v6088, %v6256
      %v6385 = vmul.f32 %v6091, %v6257
      %v6386 = vmul.f32 %v6094, %v6258
      %v6387 = vmul.f32 %v6097, %v6259
      %v6388 = vmul.f32 %v6100, %v6260
      %v6389 = vmul.f32 %v6103, %v6261
      %v6390 = vmul.f32 %v6106, %v6262
      %v6391 = vmul.f32 %v6109, %v6263
      %v6392 = vmul.f32 %v6112, %v6264
      %v6393 = vmul.f32 %v6115, %v6265
      %v6394 = vmul.f32 %v6118, %v6266
      %v6395 = vmul.f32 %v6121, %v6267
      %v6396 = vmul.f32 %v6124, %v6268
      %v6397 = vmul.f32 %v6127, %v6269
      %v6398 = vmul.f32 %v6130, %v6270
      %v6399 = vmul.f32 %v6133, %v6271
      %v6400 = vmul.f32 %v6136, %v6272
      %v6401 = vmul.f32 %v6139, %v6273
      %v6402 = vmul.f32 %v6142, %v6274
      %v6403 = vmul.f32 %v6145, %v6275
      %v6404 = vmul.f32 %v6148, %v6276
      %v6405 = vsub.f32 2.0, %v6277
      %v6406 = vsub.f32 2.0, %v6278
      %v6407 = vsub.f32 2.0, %v6279
      %v6408 = vsub.f32 2.0, %v6280
      %v6409 = vsub.f32 2.0, %v6281
      %v6410 = vsub.f32 2.0, %v6282
      %v6411 = vsub.f32 2.0, %v6283
      %v6412 = vsub.f32 2.0, %v6284
      %v6413 = vsub.f32 2.0, %v6285
      %v6414 = vsub.f32 2.0, %v6286
      %v6415 = vsub.f32 2.0, %v6287
      %v6416 = vsub.f32 2.0, %v6288
      %v6417 = vsub.f32 2.0, %v6289
      %v6418 = vsub.f32 2.0, %v6290
      %v6419 = vsub.f32 2.0, %v6291
      %v6420 = vsub.f32 2.0, %v6292
      %v6421 = vsub.f32 2.0, %v6293
      %v6422 = vsub.f32 2.0, %v6294
      %v6423 = vsub.f32 2.0, %v6295
      %v6424 = vsub.f32 2.0, %v6296
      %v6425 = vsub.f32 2.0, %v6297
      %v6426 = vsub.f32 2.0, %v6298
      %v6427 = vsub.f32 2.0, %v6299
      %v6428 = vsub.f32 2.0, %v6300
      %v6429 = vsub.f32 2.0, %v6301
      %v6430 = vsub.f32 2.0, %v6302
      %v6431 = vsub.f32 2.0, %v6303
      %v6432 = vsub.f32 2.0, %v6304
      %v6433 = vsub.f32 2.0, %v6305
      %v6434 = vsub.f32 2.0, %v6306
      %v6435 = vsub.f32 2.0, %v6307
      %v6436 = vsub.f32 2.0, %v6308
      %v6437 = vsub.f32 2.0, %v6309
      %v6438 = vsub.f32 2.0, %v6310
      %v6439 = vsub.f32 2.0, %v6311
      %v6440 = vsub.f32 2.0, %v6312
      %v6441 = vsub.f32 2.0, %v6313
      %v6442 = vsub.f32 2.0, %v6314
      %v6443 = vsub.f32 2.0, %v6315
      %v6444 = vsub.f32 2.0, %v6316
      %v6445 = vsub.f32 2.0, %v6317
      %v6446 = vsub.f32 2.0, %v6318
      %v6447 = vsub.f32 2.0, %v6319
      %v6448 = vsub.f32 2.0, %v6320
      %v6449 = vsub.f32 2.0, %v6321
      %v6450 = vsub.f32 2.0, %v6322
      %v6451 = vsub.f32 2.0, %v6323
      %v6452 = vsub.f32 2.0, %v6324
      %v6453 = vsub.f32 2.0, %v6325
      %v6454 = vsub.f32 2.0, %v6326
      %v6455 = vsub.f32 2.0, %v6327
      %v6456 = vsub.f32 2.0, %v6328
      %v6457 = vsub.f32 2.0, %v6329
      %v6458 = vsub.f32 2.0, %v6330
      %v6459 = vsub.f32 2.0, %v6331
      %v6460 = vsub.f32 2.0, %v6332
      %v6461 = vsub.f32 2.0, %v6333
      %v6462 = vsub.f32 2.0, %v6334
      %v6463 = vsub.f32 2.0, %v6335
      %v6464 = vsub.f32 2.0, %v6336
      %v6465 = vsub.f32 2.0, %v6337
      %v6466 = vsub.f32 2.0, %v6338
      %v6467 = vsub.f32 2.0, %v6339
      %v6468 = vsub.f32 2.0, %v6340
      %v6469 = vsub.f32 2.0, %v6341
      %v6470 = vsub.f32 2.0, %v6342
      %v6471 = vsub.f32 2.0, %v6343
      %v6472 = vsub.f32 2.0, %v6344
      %v6473 = vsub.f32 2.0, %v6345
      %v6474 = vsub.f32 2.0, %v6346
      %v6475 = vsub.f32 2.0, %v6347
      %v6476 = vsub.f32 2.0, %v6348
      %v6477 = vsub.f32 2.0, %v6349
      %v6478 = vsub.f32 2.0, %v6350
      %v6479 = vsub.f32 2.0, %v6351
      %v6480 = vsub.f32 2.0, %v6352
      %v6481 = vsub.f32 2.0, %v6353
      %v6482 = vsub.f32 2.0, %v6354
      %v6483 = vsub.f32 2.0, %v6355
      %v6484 = vsub.f32 2.0, %v6356
      %v6485 = vsub.f32 2.0, %v6357
      %v6486 = vsub.f32 2.0, %v6358
      %v6487 = vsub.f32 2.0, %v6359
      %v6488 = vsub.f32 2.0, %v6360
      %v6489 = vsub.f32 2.0, %v6361
      %v6490 = vsub.f32 2.0, %v6362
      %v6491 = vsub.f32 2.0, %v6363
      %v6492 = vsub.f32 2.0, %v6364
      %v6493 = vsub.f32 2.0, %v6365
      %v6494 = vsub.f32 2.0, %v6366
      %v6495 = vsub.f32 2.0, %v6367
      %v6496 = vsub.f32 2.0, %v6368
      %v6497 = vsub.f32 2.0, %v6369
      %v6498 = vsub.f32 2.0, %v6370
      %v6499 = vsub.f32 2.0, %v6371
      %v6500 = vsub.f32 2.0, %v6372
      %v6501 = vsub.f32 2.0, %v6373
      %v6502 = vsub.f32 2.0, %v6374
      %v6503 = vsub.f32 2.0, %v6375
      %v6504 = vsub.f32 2.0, %v6376
      %v6505 = vsub.f32 2.0, %v6377
      %v6506 = vsub.f32 2.0, %v6378
      %v6507 = vsub.f32 2.0, %v6379
      %v6508 = vsub.f32 2.0, %v6380
      %v6509 = vsub.f32 2.0, %v6381
      %v6510 = vsub.f32 2.0, %v6382
      %v6511 = vsub.f32 2.0, %v6383
      %v6512 = vsub.f32 2.0, %v6384
      %v6513 = vsub.f32 2.0, %v6385
      %v6514 = vsub.f32 2.0, %v6386
      %v6515 = vsub.f32 2.0, %v6387
      %v6516 = vsub.f32 2.0, %v6388
      %v6517 = vsub.f32 2.0, %v6389
      %v6518 = vsub.f32 2.0, %v6390
      %v6519 = vsub.f32 2.0, %v6391
      %v6520 = vsub.f32 2.0, %v6392
      %v6521 = vsub.f32 2.0, %v6393
      %v6522 = vsub.f32 2.0, %v6394
      %v6523 = vsub.f32 2.0, %v6395
      %v6524 = vsub.f32 2.0, %v6396
      %v6525 = vsub.f32 2.0, %v6397
      %v6526 = vsub.f32 2.0, %v6398
      %v6527 = vsub.f32 2.0, %v6399
      %v6528 = vsub.f32 2.0, %v6400
      %v6529 = vsub.f32 2.0, %v6401
      %v6530 = vsub.f32 2.0, %v6402
      %v6531 = vsub.f32 2.0, %v6403
      %v6532 = vsub.f32 2.0, %v6404
      %v6533 = vmul.f32 %v6149, %v6405
      %v6534 = vmul.f32 %v6150, %v6406
      %v6535 = vmul.f32 %v6151, %v6407
      %v6536 = vmul.f32 %v6152, %v6408
      %v6537 = vmul.f32 %v6153, %v6409
      %v6538 = vmul.f32 %v6154, %v6410
      %v6539 = vmul.f32 %v6155, %v6411
      %v6540 = vmul.f32 %v6156, %v6412
      %v6541 = vmul.f32 %v6157, %v6413
      %v6542 = vmul.f32 %v6158, %v6414
      %v6543 = vmul.f32 %v6159, %v6415
      %v6544 = vmul.f32 %v6160, %v6416
      %v6545 = vmul.f32 %v6161, %v6417
      %v6546 = vmul.f32 %v6162, %v6418
      %v6547 = vmul.f32 %v6163, %v6419
      %v6548 = vmul.f32 %v6164, %v6420
      %v6549 = vmul.f32 %v6165, %v6421
      %v6550 = vmul.f32 %v6166, %v6422
      %v6551 = vmul.f32 %v6167, %v6423
      %v6552 = vmul.f32 %v6168, %v6424
      %v6553 = vmul.f32 %v6169, %v6425
      %v6554 = vmul.f32 %v6170, %v6426
      %v6555 = vmul.f32 %v6171, %v6427
      %v6556 = vmul.f32 %v6172, %v6428
      %v6557 = vmul.f32 %v6173, %v6429
      %v6558 = vmul.f32 %v6174, %v6430
      %v6559 = vmul.f32 %v6175, %v6431
      %v6560 = vmul.f32 %v6176, %v6432
      %v6561 = vmul.f32 %v6177, %v6433
      %v6562 = vmul.f32 %v6178, %v6434
      %v6563 = vmul.f32 %v6179, %v6435
      %v6564 = vmul.f32 %v6180, %v6436
      %v6565 = vmul.f32 %v6181, %v6437
      %v6566 = vmul.f32 %v6182, %v6438
      %v6567 = vmul.f32 %v6183, %v6439
      %v6568 = vmul.f32 %v6184, %v6440
      %v6569 = vmul.f32 %v6185, %v6441
      %v6570 = vmul.f32 %v6186, %v6442
      %v6571 = vmul.f32 %v6187, %v6443
      %v6572 = vmul.f32 %v6188, %v6444
      %v6573 = vmul.f32 %v6189, %v6445
      %v6574 = vmul.f32 %v6190, %v6446
      %v6575 = vmul.f32 %v6191, %v6447
      %v6576 = vmul.f32 %v6192, %v6448
      %v6577 = vmul.f32 %v6193, %v6449
      %v6578 = vmul.f32 %v6194, %v6450
      %v6579 = vmul.f32 %v6195, %v6451
      %v6580 = vmul.f32 %v6196, %v6452
      %v6581 = vmul.f32 %v6197, %v6453
      %v6582 = vmul.f32 %v6198, %v6454
      %v6583 = vmul.f32 %v6199, %v6455
      %v6584 = vmul.f32 %v6200, %v6456
      %v6585 = vmul.f32 %v6201, %v6457
      %v6586 = vmul.f32 %v6202, %v6458
      %v6587 = vmul.f32 %v6203, %v6459
      %v6588 = vmul.f32 %v6204, %v6460
      %v6589 = vmul.f32 %v6205, %v6461
      %v6590 = vmul.f32 %v6206, %v6462
      %v6591 = vmul.f32 %v6207, %v6463
      %v6592 = vmul.f32 %v6208, %v6464
      %v6593 = vmul.f32 %v6209, %v6465
      %v6594 = vmul.f32 %v6210, %v6466
      %v6595 = vmul.f32 %v6211, %v6467
      %v6596 = vmul.f32 %v6212, %v6468
      %v6597 = vmul.f32 %v6213, %v6469
      %v6598 = vmul.f32 %v6214, %v6470
      %v6599 = vmul.f32 %v6215, %v6471
      %v6600 = vmul.f32 %v6216, %v6472
      %v6601 = vmul.f32 %v6217, %v6473
      %v6602 = vmul.f32 %v6218, %v6474
      %v6603 = vmul.f32 %v6219, %v6475
      %v6604 = vmul.f32 %v6220, %v6476
      %v6605 = vmul.f32 %v6221, %v6477
      %v6606 = vmul.f32 %v6222, %v6478
      %v6607 = vmul.f32 %v6223, %v6479
      %v6608 = vmul.f32 %v6224, %v6480
      %v6609 = vmul.f32 %v6225, %v6481
      %v6610 = vmul.f32 %v6226, %v6482
      %v6611 = vmul.f32 %v6227, %v6483
      %v6612 = vmul.f32 %v6228, %v6484
      %v6613 = vmul.f32 %v6229, %v6485
      %v6614 = vmul.f32 %v6230, %v6486
      %v6615 = vmul.f32 %v6231, %v6487
      %v6616 = vmul.f32 %v6232, %v6488
      %v6617 = vmul.f32 %v6233, %v6489
      %v6618 = vmul.f32 %v6234, %v6490
      %v6619 = vmul.f32 %v6235, %v6491
      %v6620 = vmul.f32 %v6236, %v6492
      %v6621 = vmul.f32 %v6237, %v6493
      %v6622 = vmul.f32 %v6238, %v6494
      %v6623 = vmul.f32 %v6239, %v6495
      %v6624 = vmul.f32 %v6240, %v6496
      %v6625 = vmul.f32 %v6241, %v6497
      %v6626 = vmul.f32 %v6242, %v6498
      %v6627 = vmul.f32 %v6243, %v6499
      %v6628 = vmul.f32 %v6244, %v6500
      %v6629 = vmul.f32 %v6245, %v6501
      %v6630 = vmul.f32 %v6246, %v6502
      %v6631 = vmul.f32 %v6247, %v6503
      %v6632 = vmul.f32 %v6248, %v6504
      %v6633 = vmul.f32 %v6249, %v6505
      %v6634 = vmul.f32 %v6250, %v6506
      %v6635 = vmul.f32 %v6251, %v6507
      %v6636 = vmul.f32 %v6252, %v6508
      %v6637 = vmul.f32 %v6253, %v6509
      %v6638 = vmul.f32 %v6254, %v6510
      %v6639 = vmul.f32 %v6255, %v6511
      %v6640 = vmul.f32 %v6256, %v6512
      %v6641 = vmul.f32 %v6257, %v6513
      %v6642 = vmul.f32 %v6258, %v6514
      %v6643 = vmul.f32 %v6259, %v6515
      %v6644 = vmul.f32 %v6260, %v6516
      %v6645 = vmul.f32 %v6261, %v6517
      %v6646 = vmul.f32 %v6262, %v6518
      %v6647 = vmul.f32 %v6263, %v6519
      %v6648 = vmul.f32 %v6264, %v6520
      %v6649 = vmul.f32 %v6265, %v6521
      %v6650 = vmul.f32 %v6266, %v6522
      %v6651 = vmul.f32 %v6267, %v6523
      %v6652 = vmul.f32 %v6268, %v6524
      %v6653 = vmul.f32 %v6269, %v6525
      %v6654 = vmul.f32 %v6270, %v6526
      %v6655 = vmul.f32 %v6271, %v6527
      %v6656 = vmul.f32 %v6272, %v6528
      %v6657 = vmul.f32 %v6273, %v6529
      %v6658 = vmul.f32 %v6274, %v6530
      %v6659 = vmul.f32 %v6275, %v6531
      %v6660 = vmul.f32 %v6276, %v6532
      %v6661 = vmul.f32 %v5510, %v6533
      %v6662 = vmul.f32 %v5512, %v6534
      %v6663 = vmul.f32 %v5514, %v6535
      %v6664 = vmul.f32 %v5516, %v6536
      %v6665 = vmul.f32 %v5518, %v6537
      %v6666 = vmul.f32 %v5520, %v6538
      %v6667 = vmul.f32 %v5522, %v6539
      %v6668 = vmul.f32 %v5524, %v6540
      %v6669 = vmul.f32 %v5526, %v6541
      %v6670 = vmul.f32 %v5528, %v6542
      %v6671 = vmul.f32 %v5530, %v6543
      %v6672 = vmul.f32 %v5532, %v6544
      %v6673 = vmul.f32 %v5534, %v6545
      %v6674 = vmul.f32 %v5536, %v6546
      %v6675 = vmul.f32 %v5538, %v6547
      %v6676 = vmul.f32 %v5540, %v6548
      %v6677 = vmul.f32 %v5542, %v6549
      %v6678 = vmul.f32 %v5544, %v6550
      %v6679 = vmul.f32 %v5546, %v6551
      %v6680 = vmul.f32 %v5548, %v6552
      %v6681 = vmul.f32 %v5550, %v6553
      %v6682 = vmul.f32 %v5552, %v6554
      %v6683 = vmul.f32 %v5554, %v6555
      %v6684 = vmul.f32 %v5556, %v6556
      %v6685 = vmul.f32 %v5558, %v6557
      %v6686 = vmul.f32 %v5560, %v6558
      %v6687 = vmul.f32 %v5562, %v6559
      %v6688 = vmul.f32 %v5564, %v6560
      %v6689 = vmul.f32 %v5566, %v6561
      %v6690 = vmul.f32 %v5568, %v6562
      %v6691 = vmul.f32 %v5570, %v6563
      %v6692 = vmul.f32 %v5572, %v6564
      %v6693 = vmul.f32 %v5574, %v6565
      %v6694 = vmul.f32 %v5576, %v6566
      %v6695 = vmul.f32 %v5578, %v6567
      %v6696 = vmul.f32 %v5580, %v6568
      %v6697 = vmul.f32 %v5582, %v6569
      %v6698 = vmul.f32 %v5584, %v6570
      %v6699 = vmul.f32 %v5586, %v6571
      %v6700 = vmul.f32 %v5588, %v6572
      %v6701 = vmul.f32 %v5590, %v6573
      %v6702 = vmul.f32 %v5592, %v6574
      %v6703 = vmul.f32 %v5594, %v6575
      %v6704 = vmul.f32 %v5596, %v6576
      %v6705 = vmul.f32 %v5598, %v6577
      %v6706 = vmul.f32 %v5600, %v6578
      %v6707 = vmul.f32 %v5602, %v6579
      %v6708 = vmul.f32 %v5604, %v6580
      %v6709 = vmul.f32 %v5606, %v6581
      %v6710 = vmul.f32 %v5608, %v6582
      %v6711 = vmul.f32 %v5610, %v6583
      %v6712 = vmul.f32 %v5612, %v6584
      %v6713 = vmul.f32 %v5614, %v6585
      %v6714 = vmul.f32 %v5616, %v6586
      %v6715 = vmul.f32 %v5618, %v6587
      %v6716 = vmul.f32 %v5620, %v6588
      %v6717 = vmul.f32 %v5622, %v6589
      %v6718 = vmul.f32 %v5624, %v6590
      %v6719 = vmul.f32 %v5626, %v6591
      %v6720 = vmul.f32 %v5628, %v6592
      %v6721 = vmul.f32 %v5630, %v6593
      %v6722 = vmul.f32 %v5632, %v6594
      %v6723 = vmul.f32 %v5634, %v6595
      %v6724 = vmul.f32 %v5636, %v6596
      %v6725 = vmul.f32 %v5638, %v6597
      %v6726 = vmul.f32 %v5640, %v6598
      %v6727 = vmul.f32 %v5642, %v6599
      %v6728 = vmul.f32 %v5644, %v6600
      %v6729 = vmul.f32 %v5646, %v6601
      %v6730 = vmul.f32 %v5648, %v6602
      %v6731 = vmul.f32 %v5650, %v6603
      %v6732 = vmul.f32 %v5652, %v6604
      %v6733 = vmul.f32 %v5654, %v6605
      %v6734 = vmul.f32 %v5656, %v6606
      %v6735 = vmul.f32 %v5658, %v6607
      %v6736 = vmul.f32 %v5660, %v6608
      %v6737 = vmul.f32 %v5662, %v6609
      %v6738 = vmul.f32 %v5664, %v6610
      %v6739 = vmul.f32 %v5666, %v6611
      %v6740 = vmul.f32 %v5668, %v6612
      %v6741 = vmul.f32 %v5670, %v6613
      %v6742 = vmul.f32 %v5672, %v6614
      %v6743 = vmul.f32 %v5674, %v6615
      %v6744 = vmul.f32 %v5676, %v6616
      %v6745 = vmul.f32 %v5678, %v6617
      %v6746 = vmul.f32 %v5680, %v6618
      %v6747 = vmul.f32 %v5682, %v6619
      %v6748 = vmul.f32 %v5684, %v6620
      %v6749 = vmul.f32 %v5686, %v6621
      %v6750 = vmul.f32 %v5688, %v6622
      %v6751 = vmul.f32 %v5690, %v6623
      %v6752 = vmul.f32 %v5692, %v6624
      %v6753 = vmul.f32 %v5694, %v6625
      %v6754 = vmul.f32 %v5696, %v6626
      %v6755 = vmul.f32 %v5698, %v6627
      %v6756 = vmul.f32 %v5700, %v6628
      %v6757 = vmul.f32 %v5702, %v6629
      %v6758 = vmul.f32 %v5704, %v6630
      %v6759 = vmul.f32 %v5706, %v6631
      %v6760 = vmul.f32 %v5708, %v6632
      %v6761 = vmul.f32 %v5710, %v6633
      %v6762 = vmul.f32 %v5712, %v6634
      %v6763 = vmul.f32 %v5714, %v6635
      %v6764 = vmul.f32 %v5716, %v6636
      %v6765 = vmul.f32 %v5718, %v6637
      %v6766 = vmul.f32 %v5720, %v6638
      %v6767 = vmul.f32 %v5722, %v6639
      %v6768 = vmul.f32 %v5724, %v6640
      %v6769 = vmul.f32 %v5726, %v6641
      %v6770 = vmul.f32 %v5728, %v6642
      %v6771 = vmul.f32 %v5730, %v6643
      %v6772 = vmul.f32 %v5732, %v6644
      %v6773 = vmul.f32 %v5734, %v6645
      %v6774 = vmul.f32 %v5736, %v6646
      %v6775 = vmul.f32 %v5738, %v6647
      %v6776 = vmul.f32 %v5740, %v6648
      %v6777 = vmul.f32 %v5742, %v6649
      %v6778 = vmul.f32 %v5744, %v6650
      %v6779 = vmul.f32 %v5746, %v6651
      %v6780 = vmul.f32 %v5748, %v6652
      %v6781 = vmul.f32 %v5750, %v6653
      %v6782 = vmul.f32 %v5752, %v6654
      %v6783 = vmul.f32 %v5754, %v6655
      %v6784 = vmul.f32 %v5756, %v6656
      %v6785 = vmul.f32 %v5758, %v6657
      %v6786 = vmul.f32 %v5760, %v6658
      %v6787 = vmul.f32 %v5762, %v6659
      %v6788 = vmul.f32 %v5764, %v6660
      %6789 = vrot.lane.b32.xlu0 %v2436, 64
      %v6790 = vpop.permute.xlu0 %6789
      %6791 = vrot.lane.b32.xlu0 %v2439, 64
      %v6792 = vpop.permute.xlu0 %6791
      %v6796 = vsel %vm4996, %v6661, 0
      %v6799 = vsel %vm4996, %v6662, 0
      %6801 = vmatpush.msra.mxu0 0.0
      %6802 = vmatpush.msra.mxu0 0.0
      %6803 = vmatpush.msra.mxu0 0.0
      %6804 = vmatpush.msra.mxu0 0.0
      %6805 = vmatpush.msra.mxu0 0.0
      %6806 = vmatpush.msra.mxu0 0.0
      %6807 = vmatpush.msra.mxu0 0.0
      %6808 = vmatpush.msra.mxu0 0.0
      %6809 = vmatpush.msra.mxu0 0.0
      %6810 = vmatpush.msra.mxu0 0.0
      %6811 = vmatpush.msra.mxu0 0.0
      %6812 = vmatpush.msra.mxu0 0.0
      %6813 = vmatpush.msra.mxu0 0.0
      %6814 = vmatpush.msra.mxu0 0.0
      %6815 = vmatpush.msra.mxu0 %v6792
      %6816 = vmatpush.msra.mxu0 %v6790
      %6817 = vmatmul.f32.gmra.mxu0 %v6796
      %v6818 = vpop.f32.mrf.mxu0
      %v6819 = vadd.f32 0.0, %v6818
      %6820 = vmatmul.f32.gmra.mxu0 %v6799
      %v6821 = vpop.f32.mrf.mxu0
      %v6822 = vadd.f32 0.0, %v6821
      %6823 = vdwg.mxu0
      %6824 = vrot.lane.b32.xlu0 %v2564, 64
      %v6825 = vpop.permute.xlu0 %6824
      %6826 = vrot.lane.b32.xlu0 %v2566, 64
      %v6827 = vpop.permute.xlu0 %6826
      %v6831 = vsel %vm4996, %v6663, 0
      %v6834 = vsel %vm4996, %v6664, 0
      %6836 = vmatpush.msra.mxu0 0.0
      %6837 = vmatpush.msra.mxu0 0.0
      %6838 = vmatpush.msra.mxu0 0.0
      %6839 = vmatpush.msra.mxu0 0.0
      %6840 = vmatpush.msra.mxu0 0.0
      %6841 = vmatpush.msra.mxu0 0.0
      %6842 = vmatpush.msra.mxu0 0.0
      %6843 = vmatpush.msra.mxu0 0.0
      %6844 = vmatpush.msra.mxu0 0.0
      %6845 = vmatpush.msra.mxu0 0.0
      %6846 = vmatpush.msra.mxu0 0.0
      %6847 = vmatpush.msra.mxu0 0.0
      %6848 = vmatpush.msra.mxu0 0.0
      %6849 = vmatpush.msra.mxu0 0.0
      %6850 = vmatpush.msra.mxu0 %v6827
      %6851 = vmatpush.msra.mxu0 %v6825
      %6852 = vmatmul.f32.gmra.mxu0 %v6831
      %v6853 = vpop.f32.mrf.mxu0
      %v6854 = vadd.f32 0.0, %v6853
      %6855 = vmatmul.f32.gmra.mxu0 %v6834
      %v6856 = vpop.f32.mrf.mxu0
      %v6857 = vadd.f32 0.0, %v6856
      %6858 = vdwg.mxu0
      %6859 = vrot.lane.b32.xlu0 %v2628, 64
      %v6860 = vpop.permute.xlu0 %6859
      %6861 = vrot.lane.b32.xlu0 %v2630, 64
      %v6862 = vpop.permute.xlu0 %6861
      %v6866 = vsel %vm4996, %v6665, 0
      %v6869 = vsel %vm4996, %v6666, 0
      %6871 = vmatpush.msra.mxu0 0.0
      %6872 = vmatpush.msra.mxu0 0.0
      %6873 = vmatpush.msra.mxu0 0.0
      %6874 = vmatpush.msra.mxu0 0.0
      %6875 = vmatpush.msra.mxu0 0.0
      %6876 = vmatpush.msra.mxu0 0.0
      %6877 = vmatpush.msra.mxu0 0.0
      %6878 = vmatpush.msra.mxu0 0.0
      %6879 = vmatpush.msra.mxu0 0.0
      %6880 = vmatpush.msra.mxu0 0.0
      %6881 = vmatpush.msra.mxu0 0.0
      %6882 = vmatpush.msra.mxu0 0.0
      %6883 = vmatpush.msra.mxu0 0.0
      %6884 = vmatpush.msra.mxu0 0.0
      %6885 = vmatpush.msra.mxu0 %v6862
      %6886 = vmatpush.msra.mxu0 %v6860
      %6887 = vmatmul.f32.gmra.mxu0 %v6866
      %v6888 = vpop.f32.mrf.mxu0
      %v6889 = vadd.f32 0.0, %v6888
      %6890 = vmatmul.f32.gmra.mxu0 %v6869
      %v6891 = vpop.f32.mrf.mxu0
      %v6892 = vadd.f32 0.0, %v6891
      %6893 = vdwg.mxu0
      %6894 = vrot.lane.b32.xlu0 %v2692, 64
      %v6895 = vpop.permute.xlu0 %6894
      %6896 = vrot.lane.b32.xlu0 %v2694, 64
      %v6897 = vpop.permute.xlu0 %6896
      %v6901 = vsel %vm4996, %v6667, 0
      %v6904 = vsel %vm4996, %v6668, 0
      %6906 = vmatpush.msra.mxu0 0.0
      %6907 = vmatpush.msra.mxu0 0.0
      %6908 = vmatpush.msra.mxu0 0.0
      %6909 = vmatpush.msra.mxu0 0.0
      %6910 = vmatpush.msra.mxu0 0.0
      %6911 = vmatpush.msra.mxu0 0.0
      %6912 = vmatpush.msra.mxu0 0.0
      %6913 = vmatpush.msra.mxu0 0.0
      %6914 = vmatpush.msra.mxu0 0.0
      %6915 = vmatpush.msra.mxu0 0.0
      %6916 = vmatpush.msra.mxu0 0.0
      %6917 = vmatpush.msra.mxu0 0.0
      %6918 = vmatpush.msra.mxu0 0.0
      %6919 = vmatpush.msra.mxu0 0.0
      %6920 = vmatpush.msra.mxu0 %v6897
      %6921 = vmatpush.msra.mxu0 %v6895
      %6922 = vmatmul.f32.gmra.mxu0 %v6901
      %v6923 = vpop.f32.mrf.mxu0
      %v6924 = vadd.f32 0.0, %v6923
      %6925 = vmatmul.f32.gmra.mxu0 %v6904
      %v6926 = vpop.f32.mrf.mxu0
      %v6927 = vadd.f32 0.0, %v6926
      %6928 = vdwg.mxu0
      %6929 = vrot.lane.b32.xlu0 %v2442, 64
      %v6930 = vpop.permute.xlu0 %6929
      %6931 = vrot.lane.b32.xlu0 %v2445, 64
      %v6932 = vpop.permute.xlu0 %6931
      %v6936 = vsel %vm4996, %v6669, 0
      %v6939 = vsel %vm4996, %v6670, 0
      %6941 = vmatpush.msra.mxu0 0.0
      %6942 = vmatpush.msra.mxu0 0.0
      %6943 = vmatpush.msra.mxu0 0.0
      %6944 = vmatpush.msra.mxu0 0.0
      %6945 = vmatpush.msra.mxu0 0.0
      %6946 = vmatpush.msra.mxu0 0.0
      %6947 = vmatpush.msra.mxu0 0.0
      %6948 = vmatpush.msra.mxu0 0.0
      %6949 = vmatpush.msra.mxu0 0.0
      %6950 = vmatpush.msra.mxu0 0.0
      %6951 = vmatpush.msra.mxu0 0.0
      %6952 = vmatpush.msra.mxu0 0.0
      %6953 = vmatpush.msra.mxu0 0.0
      %6954 = vmatpush.msra.mxu0 0.0
      %6955 = vmatpush.msra.mxu0 %v6932
      %6956 = vmatpush.msra.mxu0 %v6930
      %6957 = vmatmul.f32.gmra.mxu0 %v6936
      %v6958 = vpop.f32.mrf.mxu0
      %v6959 = vadd.f32 0.0, %v6958
      %6960 = vmatmul.f32.gmra.mxu0 %v6939
      %v6961 = vpop.f32.mrf.mxu0
      %v6962 = vadd.f32 0.0, %v6961
      %6963 = vdwg.mxu0
      %6964 = vrot.lane.b32.xlu0 %v2568, 64
      %v6965 = vpop.permute.xlu0 %6964
      %6966 = vrot.lane.b32.xlu0 %v2570, 64
      %v6967 = vpop.permute.xlu0 %6966
      %v6971 = vsel %vm4996, %v6671, 0
      %v6974 = vsel %vm4996, %v6672, 0
      %6976 = vmatpush.msra.mxu0 0.0
      %6977 = vmatpush.msra.mxu0 0.0
      %6978 = vmatpush.msra.mxu0 0.0
      %6979 = vmatpush.msra.mxu0 0.0
      %6980 = vmatpush.msra.mxu0 0.0
      %6981 = vmatpush.msra.mxu0 0.0
      %6982 = vmatpush.msra.mxu0 0.0
      %6983 = vmatpush.msra.mxu0 0.0
      %6984 = vmatpush.msra.mxu0 0.0
      %6985 = vmatpush.msra.mxu0 0.0
      %6986 = vmatpush.msra.mxu0 0.0
      %6987 = vmatpush.msra.mxu0 0.0
      %6988 = vmatpush.msra.mxu0 0.0
      %6989 = vmatpush.msra.mxu0 0.0
      %6990 = vmatpush.msra.mxu0 %v6967
      %6991 = vmatpush.msra.mxu0 %v6965
      %6992 = vmatmul.f32.gmra.mxu0 %v6971
      %v6993 = vpop.f32.mrf.mxu0
      %v6994 = vadd.f32 0.0, %v6993
      %6995 = vmatmul.f32.gmra.mxu0 %v6974
      %v6996 = vpop.f32.mrf.mxu0
      %v6997 = vadd.f32 0.0, %v6996
      %6998 = vdwg.mxu0
      %6999 = vrot.lane.b32.xlu0 %v2632, 64
      %v7000 = vpop.permute.xlu0 %6999
      %7001 = vrot.lane.b32.xlu0 %v2634, 64
      %v7002 = vpop.permute.xlu0 %7001
      %v7006 = vsel %vm4996, %v6673, 0
      %v7009 = vsel %vm4996, %v6674, 0
      %7011 = vmatpush.msra.mxu0 0.0
      %7012 = vmatpush.msra.mxu0 0.0
      %7013 = vmatpush.msra.mxu0 0.0
      %7014 = vmatpush.msra.mxu0 0.0
      %7015 = vmatpush.msra.mxu0 0.0
      %7016 = vmatpush.msra.mxu0 0.0
      %7017 = vmatpush.msra.mxu0 0.0
      %7018 = vmatpush.msra.mxu0 0.0
      %7019 = vmatpush.msra.mxu0 0.0
      %7020 = vmatpush.msra.mxu0 0.0
      %7021 = vmatpush.msra.mxu0 0.0
      %7022 = vmatpush.msra.mxu0 0.0
      %7023 = vmatpush.msra.mxu0 0.0
      %7024 = vmatpush.msra.mxu0 0.0
      %7025 = vmatpush.msra.mxu0 %v7002
      %7026 = vmatpush.msra.mxu0 %v7000
      %7027 = vmatmul.f32.gmra.mxu0 %v7006
      %v7028 = vpop.f32.mrf.mxu0
      %v7029 = vadd.f32 0.0, %v7028
      %7030 = vmatmul.f32.gmra.mxu0 %v7009
      %v7031 = vpop.f32.mrf.mxu0
      %v7032 = vadd.f32 0.0, %v7031
      %7033 = vdwg.mxu0
      %7034 = vrot.lane.b32.xlu0 %v2696, 64
      %v7035 = vpop.permute.xlu0 %7034
      %7036 = vrot.lane.b32.xlu0 %v2698, 64
      %v7037 = vpop.permute.xlu0 %7036
      %v7041 = vsel %vm4996, %v6675, 0
      %v7044 = vsel %vm4996, %v6676, 0
      %7046 = vmatpush.msra.mxu0 0.0
      %7047 = vmatpush.msra.mxu0 0.0
      %7048 = vmatpush.msra.mxu0 0.0
      %7049 = vmatpush.msra.mxu0 0.0
      %7050 = vmatpush.msra.mxu0 0.0
      %7051 = vmatpush.msra.mxu0 0.0
      %7052 = vmatpush.msra.mxu0 0.0
      %7053 = vmatpush.msra.mxu0 0.0
      %7054 = vmatpush.msra.mxu0 0.0
      %7055 = vmatpush.msra.mxu0 0.0
      %7056 = vmatpush.msra.mxu0 0.0
      %7057 = vmatpush.msra.mxu0 0.0
      %7058 = vmatpush.msra.mxu0 0.0
      %7059 = vmatpush.msra.mxu0 0.0
      %7060 = vmatpush.msra.mxu0 %v7037
      %7061 = vmatpush.msra.mxu0 %v7035
      %7062 = vmatmul.f32.gmra.mxu0 %v7041
      %v7063 = vpop.f32.mrf.mxu0
      %v7064 = vadd.f32 0.0, %v7063
      %7065 = vmatmul.f32.gmra.mxu0 %v7044
      %v7066 = vpop.f32.mrf.mxu0
      %v7067 = vadd.f32 0.0, %v7066
      %7068 = vdwg.mxu0
      %7069 = vrot.lane.b32.xlu0 %v2448, 64
      %v7070 = vpop.permute.xlu0 %7069
      %7071 = vrot.lane.b32.xlu0 %v2451, 64
      %v7072 = vpop.permute.xlu0 %7071
      %v7076 = vsel %vm4996, %v6677, 0
      %v7079 = vsel %vm4996, %v6678, 0
      %7081 = vmatpush.msra.mxu0 0.0
      %7082 = vmatpush.msra.mxu0 0.0
      %7083 = vmatpush.msra.mxu0 0.0
      %7084 = vmatpush.msra.mxu0 0.0
      %7085 = vmatpush.msra.mxu0 0.0
      %7086 = vmatpush.msra.mxu0 0.0
      %7087 = vmatpush.msra.mxu0 0.0
      %7088 = vmatpush.msra.mxu0 0.0
      %7089 = vmatpush.msra.mxu0 0.0
      %7090 = vmatpush.msra.mxu0 0.0
      %7091 = vmatpush.msra.mxu0 0.0
      %7092 = vmatpush.msra.mxu0 0.0
      %7093 = vmatpush.msra.mxu0 0.0
      %7094 = vmatpush.msra.mxu0 0.0
      %7095 = vmatpush.msra.mxu0 %v7072
      %7096 = vmatpush.msra.mxu0 %v7070
      %7097 = vmatmul.f32.gmra.mxu0 %v7076
      %v7098 = vpop.f32.mrf.mxu0
      %v7099 = vadd.f32 0.0, %v7098
      %7100 = vmatmul.f32.gmra.mxu0 %v7079
      %v7101 = vpop.f32.mrf.mxu0
      %v7102 = vadd.f32 0.0, %v7101
      %7103 = vdwg.mxu0
      %7104 = vrot.lane.b32.xlu0 %v2572, 64
      %v7105 = vpop.permute.xlu0 %7104
      %7106 = vrot.lane.b32.xlu0 %v2574, 64
      %v7107 = vpop.permute.xlu0 %7106
      %v7111 = vsel %vm4996, %v6679, 0
      %v7114 = vsel %vm4996, %v6680, 0
      %7116 = vmatpush.msra.mxu0 0.0
      %7117 = vmatpush.msra.mxu0 0.0
      %7118 = vmatpush.msra.mxu0 0.0
      %7119 = vmatpush.msra.mxu0 0.0
      %7120 = vmatpush.msra.mxu0 0.0
      %7121 = vmatpush.msra.mxu0 0.0
      %7122 = vmatpush.msra.mxu0 0.0
      %7123 = vmatpush.msra.mxu0 0.0
      %7124 = vmatpush.msra.mxu0 0.0
      %7125 = vmatpush.msra.mxu0 0.0
      %7126 = vmatpush.msra.mxu0 0.0
      %7127 = vmatpush.msra.mxu0 0.0
      %7128 = vmatpush.msra.mxu0 0.0
      %7129 = vmatpush.msra.mxu0 0.0
      %7130 = vmatpush.msra.mxu0 %v7107
      %7131 = vmatpush.msra.mxu0 %v7105
      %7132 = vmatmul.f32.gmra.mxu0 %v7111
      %v7133 = vpop.f32.mrf.mxu0
      %v7134 = vadd.f32 0.0, %v7133
      %7135 = vmatmul.f32.gmra.mxu0 %v7114
      %v7136 = vpop.f32.mrf.mxu0
      %v7137 = vadd.f32 0.0, %v7136
      %7138 = vdwg.mxu0
      %7139 = vrot.lane.b32.xlu0 %v2636, 64
      %v7140 = vpop.permute.xlu0 %7139
      %7141 = vrot.lane.b32.xlu0 %v2638, 64
      %v7142 = vpop.permute.xlu0 %7141
      %v7146 = vsel %vm4996, %v6681, 0
      %v7149 = vsel %vm4996, %v6682, 0
      %7151 = vmatpush.msra.mxu0 0.0
      %7152 = vmatpush.msra.mxu0 0.0
      %7153 = vmatpush.msra.mxu0 0.0
      %7154 = vmatpush.msra.mxu0 0.0
      %7155 = vmatpush.msra.mxu0 0.0
      %7156 = vmatpush.msra.mxu0 0.0
      %7157 = vmatpush.msra.mxu0 0.0
      %7158 = vmatpush.msra.mxu0 0.0
      %7159 = vmatpush.msra.mxu0 0.0
      %7160 = vmatpush.msra.mxu0 0.0
      %7161 = vmatpush.msra.mxu0 0.0
      %7162 = vmatpush.msra.mxu0 0.0
      %7163 = vmatpush.msra.mxu0 0.0
      %7164 = vmatpush.msra.mxu0 0.0
      %7165 = vmatpush.msra.mxu0 %v7142
      %7166 = vmatpush.msra.mxu0 %v7140
      %7167 = vmatmul.f32.gmra.mxu0 %v7146
      %v7168 = vpop.f32.mrf.mxu0
      %v7169 = vadd.f32 0.0, %v7168
      %7170 = vmatmul.f32.gmra.mxu0 %v7149
      %v7171 = vpop.f32.mrf.mxu0
      %v7172 = vadd.f32 0.0, %v7171
      %7173 = vdwg.mxu0
      %7174 = vrot.lane.b32.xlu0 %v2700, 64
      %v7175 = vpop.permute.xlu0 %7174
      %7176 = vrot.lane.b32.xlu0 %v2702, 64
      %v7177 = vpop.permute.xlu0 %7176
      %v7181 = vsel %vm4996, %v6683, 0
      %v7184 = vsel %vm4996, %v6684, 0
      %7186 = vmatpush.msra.mxu0 0.0
      %7187 = vmatpush.msra.mxu0 0.0
      %7188 = vmatpush.msra.mxu0 0.0
      %7189 = vmatpush.msra.mxu0 0.0
      %7190 = vmatpush.msra.mxu0 0.0
      %7191 = vmatpush.msra.mxu0 0.0
      %7192 = vmatpush.msra.mxu0 0.0
      %7193 = vmatpush.msra.mxu0 0.0
      %7194 = vmatpush.msra.mxu0 0.0
      %7195 = vmatpush.msra.mxu0 0.0
      %7196 = vmatpush.msra.mxu0 0.0
      %7197 = vmatpush.msra.mxu0 0.0
      %7198 = vmatpush.msra.mxu0 0.0
      %7199 = vmatpush.msra.mxu0 0.0
      %7200 = vmatpush.msra.mxu0 %v7177
      %7201 = vmatpush.msra.mxu0 %v7175
      %7202 = vmatmul.f32.gmra.mxu0 %v7181
      %v7203 = vpop.f32.mrf.mxu0
      %v7204 = vadd.f32 0.0, %v7203
      %7205 = vmatmul.f32.gmra.mxu0 %v7184
      %v7206 = vpop.f32.mrf.mxu0
      %v7207 = vadd.f32 0.0, %v7206
      %7208 = vdwg.mxu0
      %7209 = vrot.lane.b32.xlu0 %v2454, 64
      %v7210 = vpop.permute.xlu0 %7209
      %7211 = vrot.lane.b32.xlu0 %v2457, 64
      %v7212 = vpop.permute.xlu0 %7211
      %v7216 = vsel %vm4996, %v6685, 0
      %v7219 = vsel %vm4996, %v6686, 0
      %7221 = vmatpush.msra.mxu0 0.0
      %7222 = vmatpush.msra.mxu0 0.0
      %7223 = vmatpush.msra.mxu0 0.0
      %7224 = vmatpush.msra.mxu0 0.0
      %7225 = vmatpush.msra.mxu0 0.0
      %7226 = vmatpush.msra.mxu0 0.0
      %7227 = vmatpush.msra.mxu0 0.0
      %7228 = vmatpush.msra.mxu0 0.0
      %7229 = vmatpush.msra.mxu0 0.0
      %7230 = vmatpush.msra.mxu0 0.0
      %7231 = vmatpush.msra.mxu0 0.0
      %7232 = vmatpush.msra.mxu0 0.0
      %7233 = vmatpush.msra.mxu0 0.0
      %7234 = vmatpush.msra.mxu0 0.0
      %7235 = vmatpush.msra.mxu0 %v7212
      %7236 = vmatpush.msra.mxu0 %v7210
      %7237 = vmatmul.f32.gmra.mxu0 %v7216
      %v7238 = vpop.f32.mrf.mxu0
      %v7239 = vadd.f32 0.0, %v7238
      %7240 = vmatmul.f32.gmra.mxu0 %v7219
      %v7241 = vpop.f32.mrf.mxu0
      %v7242 = vadd.f32 0.0, %v7241
      %7243 = vdwg.mxu0
      %7244 = vrot.lane.b32.xlu0 %v2576, 64
      %v7245 = vpop.permute.xlu0 %7244
      %7246 = vrot.lane.b32.xlu0 %v2578, 64
      %v7247 = vpop.permute.xlu0 %7246
      %v7251 = vsel %vm4996, %v6687, 0
      %v7254 = vsel %vm4996, %v6688, 0
      %7256 = vmatpush.msra.mxu0 0.0
      %7257 = vmatpush.msra.mxu0 0.0
      %7258 = vmatpush.msra.mxu0 0.0
      %7259 = vmatpush.msra.mxu0 0.0
      %7260 = vmatpush.msra.mxu0 0.0
      %7261 = vmatpush.msra.mxu0 0.0
      %7262 = vmatpush.msra.mxu0 0.0
      %7263 = vmatpush.msra.mxu0 0.0
      %7264 = vmatpush.msra.mxu0 0.0
      %7265 = vmatpush.msra.mxu0 0.0
      %7266 = vmatpush.msra.mxu0 0.0
      %7267 = vmatpush.msra.mxu0 0.0
      %7268 = vmatpush.msra.mxu0 0.0
      %7269 = vmatpush.msra.mxu0 0.0
      %7270 = vmatpush.msra.mxu0 %v7247
      %7271 = vmatpush.msra.mxu0 %v7245
      %7272 = vmatmul.f32.gmra.mxu0 %v7251
      %v7273 = vpop.f32.mrf.mxu0
      %v7274 = vadd.f32 0.0, %v7273
      %7275 = vmatmul.f32.gmra.mxu0 %v7254
      %v7276 = vpop.f32.mrf.mxu0
      %v7277 = vadd.f32 0.0, %v7276
      %7278 = vdwg.mxu0
      %7279 = vrot.lane.b32.xlu0 %v2640, 64
      %v7280 = vpop.permute.xlu0 %7279
      %7281 = vrot.lane.b32.xlu0 %v2642, 64
      %v7282 = vpop.permute.xlu0 %7281
      %v7286 = vsel %vm4996, %v6689, 0
      %v7289 = vsel %vm4996, %v6690, 0
      %7291 = vmatpush.msra.mxu0 0.0
      %7292 = vmatpush.msra.mxu0 0.0
      %7293 = vmatpush.msra.mxu0 0.0
      %7294 = vmatpush.msra.mxu0 0.0
      %7295 = vmatpush.msra.mxu0 0.0
      %7296 = vmatpush.msra.mxu0 0.0
      %7297 = vmatpush.msra.mxu0 0.0
      %7298 = vmatpush.msra.mxu0 0.0
      %7299 = vmatpush.msra.mxu0 0.0
      %7300 = vmatpush.msra.mxu0 0.0
      %7301 = vmatpush.msra.mxu0 0.0
      %7302 = vmatpush.msra.mxu0 0.0
      %7303 = vmatpush.msra.mxu0 0.0
      %7304 = vmatpush.msra.mxu0 0.0
      %7305 = vmatpush.msra.mxu0 %v7282
      %7306 = vmatpush.msra.mxu0 %v7280
      %7307 = vmatmul.f32.gmra.mxu0 %v7286
      %v7308 = vpop.f32.mrf.mxu0
      %v7309 = vadd.f32 0.0, %v7308
      %7310 = vmatmul.f32.gmra.mxu0 %v7289
      %v7311 = vpop.f32.mrf.mxu0
      %v7312 = vadd.f32 0.0, %v7311
      %7313 = vdwg.mxu0
      %7314 = vrot.lane.b32.xlu0 %v2704, 64
      %v7315 = vpop.permute.xlu0 %7314
      %7316 = vrot.lane.b32.xlu0 %v2706, 64
      %v7317 = vpop.permute.xlu0 %7316
      %v7321 = vsel %vm4996, %v6691, 0
      %v7324 = vsel %vm4996, %v6692, 0
      %7326 = vmatpush.msra.mxu0 0.0
      %7327 = vmatpush.msra.mxu0 0.0
      %7328 = vmatpush.msra.mxu0 0.0
      %7329 = vmatpush.msra.mxu0 0.0
      %7330 = vmatpush.msra.mxu0 0.0
      %7331 = vmatpush.msra.mxu0 0.0
      %7332 = vmatpush.msra.mxu0 0.0
      %7333 = vmatpush.msra.mxu0 0.0
      %7334 = vmatpush.msra.mxu0 0.0
      %7335 = vmatpush.msra.mxu0 0.0
      %7336 = vmatpush.msra.mxu0 0.0
      %7337 = vmatpush.msra.mxu0 0.0
      %7338 = vmatpush.msra.mxu0 0.0
      %7339 = vmatpush.msra.mxu0 0.0
      %7340 = vmatpush.msra.mxu0 %v7317
      %7341 = vmatpush.msra.mxu0 %v7315
      %7342 = vmatmul.f32.gmra.mxu0 %v7321
      %v7343 = vpop.f32.mrf.mxu0
      %v7344 = vadd.f32 0.0, %v7343
      %7345 = vmatmul.f32.gmra.mxu0 %v7324
      %v7346 = vpop.f32.mrf.mxu0
      %v7347 = vadd.f32 0.0, %v7346
      %7348 = vdwg.mxu0
      %7349 = vrot.lane.b32.xlu0 %v2460, 64
      %v7350 = vpop.permute.xlu0 %7349
      %7351 = vrot.lane.b32.xlu0 %v2463, 64
      %v7352 = vpop.permute.xlu0 %7351
      %v7356 = vsel %vm4996, %v6693, 0
      %v7359 = vsel %vm4996, %v6694, 0
      %7361 = vmatpush.msra.mxu0 0.0
      %7362 = vmatpush.msra.mxu0 0.0
      %7363 = vmatpush.msra.mxu0 0.0
      %7364 = vmatpush.msra.mxu0 0.0
      %7365 = vmatpush.msra.mxu0 0.0
      %7366 = vmatpush.msra.mxu0 0.0
      %7367 = vmatpush.msra.mxu0 0.0
      %7368 = vmatpush.msra.mxu0 0.0
      %7369 = vmatpush.msra.mxu0 0.0
      %7370 = vmatpush.msra.mxu0 0.0
      %7371 = vmatpush.msra.mxu0 0.0
      %7372 = vmatpush.msra.mxu0 0.0
      %7373 = vmatpush.msra.mxu0 0.0
      %7374 = vmatpush.msra.mxu0 0.0
      %7375 = vmatpush.msra.mxu0 %v7352
      %7376 = vmatpush.msra.mxu0 %v7350
      %7377 = vmatmul.f32.gmra.mxu0 %v7356
      %v7378 = vpop.f32.mrf.mxu0
      %v7379 = vadd.f32 0.0, %v7378
      %7380 = vmatmul.f32.gmra.mxu0 %v7359
      %v7381 = vpop.f32.mrf.mxu0
      %v7382 = vadd.f32 0.0, %v7381
      %7383 = vdwg.mxu0
      %7384 = vrot.lane.b32.xlu0 %v2580, 64
      %v7385 = vpop.permute.xlu0 %7384
      %7386 = vrot.lane.b32.xlu0 %v2582, 64
      %v7387 = vpop.permute.xlu0 %7386
      %v7391 = vsel %vm4996, %v6695, 0
      %v7394 = vsel %vm4996, %v6696, 0
      %7396 = vmatpush.msra.mxu0 0.0
      %7397 = vmatpush.msra.mxu0 0.0
      %7398 = vmatpush.msra.mxu0 0.0
      %7399 = vmatpush.msra.mxu0 0.0
      %7400 = vmatpush.msra.mxu0 0.0
      %7401 = vmatpush.msra.mxu0 0.0
      %7402 = vmatpush.msra.mxu0 0.0
      %7403 = vmatpush.msra.mxu0 0.0
      %7404 = vmatpush.msra.mxu0 0.0
      %7405 = vmatpush.msra.mxu0 0.0
      %7406 = vmatpush.msra.mxu0 0.0
      %7407 = vmatpush.msra.mxu0 0.0
      %7408 = vmatpush.msra.mxu0 0.0
      %7409 = vmatpush.msra.mxu0 0.0
      %7410 = vmatpush.msra.mxu0 %v7387
      %7411 = vmatpush.msra.mxu0 %v7385
      %7412 = vmatmul.f32.gmra.mxu0 %v7391
      %v7413 = vpop.f32.mrf.mxu0
      %v7414 = vadd.f32 0.0, %v7413
      %7415 = vmatmul.f32.gmra.mxu0 %v7394
      %v7416 = vpop.f32.mrf.mxu0
      %v7417 = vadd.f32 0.0, %v7416
      %7418 = vdwg.mxu0
      %7419 = vrot.lane.b32.xlu0 %v2644, 64
      %v7420 = vpop.permute.xlu0 %7419
      %7421 = vrot.lane.b32.xlu0 %v2646, 64
      %v7422 = vpop.permute.xlu0 %7421
      %v7426 = vsel %vm4996, %v6697, 0
      %v7429 = vsel %vm4996, %v6698, 0
      %7431 = vmatpush.msra.mxu0 0.0
      %7432 = vmatpush.msra.mxu0 0.0
      %7433 = vmatpush.msra.mxu0 0.0
      %7434 = vmatpush.msra.mxu0 0.0
      %7435 = vmatpush.msra.mxu0 0.0
      %7436 = vmatpush.msra.mxu0 0.0
      %7437 = vmatpush.msra.mxu0 0.0
      %7438 = vmatpush.msra.mxu0 0.0
      %7439 = vmatpush.msra.mxu0 0.0
      %7440 = vmatpush.msra.mxu0 0.0
      %7441 = vmatpush.msra.mxu0 0.0
      %7442 = vmatpush.msra.mxu0 0.0
      %7443 = vmatpush.msra.mxu0 0.0
      %7444 = vmatpush.msra.mxu0 0.0
      %7445 = vmatpush.msra.mxu0 %v7422
      %7446 = vmatpush.msra.mxu0 %v7420
      %7447 = vmatmul.f32.gmra.mxu0 %v7426
      %v7448 = vpop.f32.mrf.mxu0
      %v7449 = vadd.f32 0.0, %v7448
      %7450 = vmatmul.f32.gmra.mxu0 %v7429
      %v7451 = vpop.f32.mrf.mxu0
      %v7452 = vadd.f32 0.0, %v7451
      %7453 = vdwg.mxu0
      %7454 = vrot.lane.b32.xlu0 %v2708, 64
      %v7455 = vpop.permute.xlu0 %7454
      %7456 = vrot.lane.b32.xlu0 %v2710, 64
      %v7457 = vpop.permute.xlu0 %7456
      %v7461 = vsel %vm4996, %v6699, 0
      %v7464 = vsel %vm4996, %v6700, 0
      %7466 = vmatpush.msra.mxu0 0.0
      %7467 = vmatpush.msra.mxu0 0.0
      %7468 = vmatpush.msra.mxu0 0.0
      %7469 = vmatpush.msra.mxu0 0.0
      %7470 = vmatpush.msra.mxu0 0.0
      %7471 = vmatpush.msra.mxu0 0.0
      %7472 = vmatpush.msra.mxu0 0.0
      %7473 = vmatpush.msra.mxu0 0.0
      %7474 = vmatpush.msra.mxu0 0.0
      %7475 = vmatpush.msra.mxu0 0.0
      %7476 = vmatpush.msra.mxu0 0.0
      %7477 = vmatpush.msra.mxu0 0.0
      %7478 = vmatpush.msra.mxu0 0.0
      %7479 = vmatpush.msra.mxu0 0.0
      %7480 = vmatpush.msra.mxu0 %v7457
      %7481 = vmatpush.msra.mxu0 %v7455
      %7482 = vmatmul.f32.gmra.mxu0 %v7461
      %v7483 = vpop.f32.mrf.mxu0
      %v7484 = vadd.f32 0.0, %v7483
      %7485 = vmatmul.f32.gmra.mxu0 %v7464
      %v7486 = vpop.f32.mrf.mxu0
      %v7487 = vadd.f32 0.0, %v7486
      %7488 = vdwg.mxu0
      %7489 = vrot.lane.b32.xlu0 %v2466, 64
      %v7490 = vpop.permute.xlu0 %7489
      %7491 = vrot.lane.b32.xlu0 %v2469, 64
      %v7492 = vpop.permute.xlu0 %7491
      %v7496 = vsel %vm4996, %v6701, 0
      %v7499 = vsel %vm4996, %v6702, 0
      %7501 = vmatpush.msra.mxu0 0.0
      %7502 = vmatpush.msra.mxu0 0.0
      %7503 = vmatpush.msra.mxu0 0.0
      %7504 = vmatpush.msra.mxu0 0.0
      %7505 = vmatpush.msra.mxu0 0.0
      %7506 = vmatpush.msra.mxu0 0.0
      %7507 = vmatpush.msra.mxu0 0.0
      %7508 = vmatpush.msra.mxu0 0.0
      %7509 = vmatpush.msra.mxu0 0.0
      %7510 = vmatpush.msra.mxu0 0.0
      %7511 = vmatpush.msra.mxu0 0.0
      %7512 = vmatpush.msra.mxu0 0.0
      %7513 = vmatpush.msra.mxu0 0.0
      %7514 = vmatpush.msra.mxu0 0.0
      %7515 = vmatpush.msra.mxu0 %v7492
      %7516 = vmatpush.msra.mxu0 %v7490
      %7517 = vmatmul.f32.gmra.mxu0 %v7496
      %v7518 = vpop.f32.mrf.mxu0
      %v7519 = vadd.f32 0.0, %v7518
      %7520 = vmatmul.f32.gmra.mxu0 %v7499
      %v7521 = vpop.f32.mrf.mxu0
      %v7522 = vadd.f32 0.0, %v7521
      %7523 = vdwg.mxu0
      %7524 = vrot.lane.b32.xlu0 %v2584, 64
      %v7525 = vpop.permute.xlu0 %7524
      %7526 = vrot.lane.b32.xlu0 %v2586, 64
      %v7527 = vpop.permute.xlu0 %7526
      %v7531 = vsel %vm4996, %v6703, 0
      %v7534 = vsel %vm4996, %v6704, 0
      %7536 = vmatpush.msra.mxu0 0.0
      %7537 = vmatpush.msra.mxu0 0.0
      %7538 = vmatpush.msra.mxu0 0.0
      %7539 = vmatpush.msra.mxu0 0.0
      %7540 = vmatpush.msra.mxu0 0.0
      %7541 = vmatpush.msra.mxu0 0.0
      %7542 = vmatpush.msra.mxu0 0.0
      %7543 = vmatpush.msra.mxu0 0.0
      %7544 = vmatpush.msra.mxu0 0.0
      %7545 = vmatpush.msra.mxu0 0.0
      %7546 = vmatpush.msra.mxu0 0.0
      %7547 = vmatpush.msra.mxu0 0.0
      %7548 = vmatpush.msra.mxu0 0.0
      %7549 = vmatpush.msra.mxu0 0.0
      %7550 = vmatpush.msra.mxu0 %v7527
      %7551 = vmatpush.msra.mxu0 %v7525
      %7552 = vmatmul.f32.gmra.mxu0 %v7531
      %v7553 = vpop.f32.mrf.mxu0
      %v7554 = vadd.f32 0.0, %v7553
      %7555 = vmatmul.f32.gmra.mxu0 %v7534
      %v7556 = vpop.f32.mrf.mxu0
      %v7557 = vadd.f32 0.0, %v7556
      %7558 = vdwg.mxu0
      %7559 = vrot.lane.b32.xlu0 %v2648, 64
      %v7560 = vpop.permute.xlu0 %7559
      %7561 = vrot.lane.b32.xlu0 %v2650, 64
      %v7562 = vpop.permute.xlu0 %7561
      %v7566 = vsel %vm4996, %v6705, 0
      %v7569 = vsel %vm4996, %v6706, 0
      %7571 = vmatpush.msra.mxu0 0.0
      %7572 = vmatpush.msra.mxu0 0.0
      %7573 = vmatpush.msra.mxu0 0.0
      %7574 = vmatpush.msra.mxu0 0.0
      %7575 = vmatpush.msra.mxu0 0.0
      %7576 = vmatpush.msra.mxu0 0.0
      %7577 = vmatpush.msra.mxu0 0.0
      %7578 = vmatpush.msra.mxu0 0.0
      %7579 = vmatpush.msra.mxu0 0.0
      %7580 = vmatpush.msra.mxu0 0.0
      %7581 = vmatpush.msra.mxu0 0.0
      %7582 = vmatpush.msra.mxu0 0.0
      %7583 = vmatpush.msra.mxu0 0.0
      %7584 = vmatpush.msra.mxu0 0.0
      %7585 = vmatpush.msra.mxu0 %v7562
      %7586 = vmatpush.msra.mxu0 %v7560
      %7587 = vmatmul.f32.gmra.mxu0 %v7566
      %v7588 = vpop.f32.mrf.mxu0
      %v7589 = vadd.f32 0.0, %v7588
      %7590 = vmatmul.f32.gmra.mxu0 %v7569
      %v7591 = vpop.f32.mrf.mxu0
      %v7592 = vadd.f32 0.0, %v7591
      %7593 = vdwg.mxu0
      %7594 = vrot.lane.b32.xlu0 %v2712, 64
      %v7595 = vpop.permute.xlu0 %7594
      %7596 = vrot.lane.b32.xlu0 %v2714, 64
      %v7597 = vpop.permute.xlu0 %7596
      %v7601 = vsel %vm4996, %v6707, 0
      %v7604 = vsel %vm4996, %v6708, 0
      %7606 = vmatpush.msra.mxu0 0.0
      %7607 = vmatpush.msra.mxu0 0.0
      %7608 = vmatpush.msra.mxu0 0.0
      %7609 = vmatpush.msra.mxu0 0.0
      %7610 = vmatpush.msra.mxu0 0.0
      %7611 = vmatpush.msra.mxu0 0.0
      %7612 = vmatpush.msra.mxu0 0.0
      %7613 = vmatpush.msra.mxu0 0.0
      %7614 = vmatpush.msra.mxu0 0.0
      %7615 = vmatpush.msra.mxu0 0.0
      %7616 = vmatpush.msra.mxu0 0.0
      %7617 = vmatpush.msra.mxu0 0.0
      %7618 = vmatpush.msra.mxu0 0.0
      %7619 = vmatpush.msra.mxu0 0.0
      %7620 = vmatpush.msra.mxu0 %v7597
      %7621 = vmatpush.msra.mxu0 %v7595
      %7622 = vmatmul.f32.gmra.mxu0 %v7601
      %v7623 = vpop.f32.mrf.mxu0
      %v7624 = vadd.f32 0.0, %v7623
      %7625 = vmatmul.f32.gmra.mxu0 %v7604
      %v7626 = vpop.f32.mrf.mxu0
      %v7627 = vadd.f32 0.0, %v7626
      %7628 = vdwg.mxu0
      %7629 = vrot.lane.b32.xlu0 %v2472, 64
      %v7630 = vpop.permute.xlu0 %7629
      %7631 = vrot.lane.b32.xlu0 %v2475, 64
      %v7632 = vpop.permute.xlu0 %7631
      %v7636 = vsel %vm4996, %v6709, 0
      %v7639 = vsel %vm4996, %v6710, 0
      %7641 = vmatpush.msra.mxu0 0.0
      %7642 = vmatpush.msra.mxu0 0.0
      %7643 = vmatpush.msra.mxu0 0.0
      %7644 = vmatpush.msra.mxu0 0.0
      %7645 = vmatpush.msra.mxu0 0.0
      %7646 = vmatpush.msra.mxu0 0.0
      %7647 = vmatpush.msra.mxu0 0.0
      %7648 = vmatpush.msra.mxu0 0.0
      %7649 = vmatpush.msra.mxu0 0.0
      %7650 = vmatpush.msra.mxu0 0.0
      %7651 = vmatpush.msra.mxu0 0.0
      %7652 = vmatpush.msra.mxu0 0.0
      %7653 = vmatpush.msra.mxu0 0.0
      %7654 = vmatpush.msra.mxu0 0.0
      %7655 = vmatpush.msra.mxu0 %v7632
      %7656 = vmatpush.msra.mxu0 %v7630
      %7657 = vmatmul.f32.gmra.mxu0 %v7636
      %v7658 = vpop.f32.mrf.mxu0
      %v7659 = vadd.f32 0.0, %v7658
      %7660 = vmatmul.f32.gmra.mxu0 %v7639
      %v7661 = vpop.f32.mrf.mxu0
      %v7662 = vadd.f32 0.0, %v7661
      %7663 = vdwg.mxu0
      %7664 = vrot.lane.b32.xlu0 %v2588, 64
      %v7665 = vpop.permute.xlu0 %7664
      %7666 = vrot.lane.b32.xlu0 %v2590, 64
      %v7667 = vpop.permute.xlu0 %7666
      %v7671 = vsel %vm4996, %v6711, 0
      %v7674 = vsel %vm4996, %v6712, 0
      %7676 = vmatpush.msra.mxu0 0.0
      %7677 = vmatpush.msra.mxu0 0.0
      %7678 = vmatpush.msra.mxu0 0.0
      %7679 = vmatpush.msra.mxu0 0.0
      %7680 = vmatpush.msra.mxu0 0.0
      %7681 = vmatpush.msra.mxu0 0.0
      %7682 = vmatpush.msra.mxu0 0.0
      %7683 = vmatpush.msra.mxu0 0.0
      %7684 = vmatpush.msra.mxu0 0.0
      %7685 = vmatpush.msra.mxu0 0.0
      %7686 = vmatpush.msra.mxu0 0.0
      %7687 = vmatpush.msra.mxu0 0.0
      %7688 = vmatpush.msra.mxu0 0.0
      %7689 = vmatpush.msra.mxu0 0.0
      %7690 = vmatpush.msra.mxu0 %v7667
      %7691 = vmatpush.msra.mxu0 %v7665
      %7692 = vmatmul.f32.gmra.mxu0 %v7671
      %v7693 = vpop.f32.mrf.mxu0
      %v7694 = vadd.f32 0.0, %v7693
      %7695 = vmatmul.f32.gmra.mxu0 %v7674
      %v7696 = vpop.f32.mrf.mxu0
      %v7697 = vadd.f32 0.0, %v7696
      %7698 = vdwg.mxu0
      %7699 = vrot.lane.b32.xlu0 %v2652, 64
      %v7700 = vpop.permute.xlu0 %7699
      %7701 = vrot.lane.b32.xlu0 %v2654, 64
      %v7702 = vpop.permute.xlu0 %7701
      %v7706 = vsel %vm4996, %v6713, 0
      %v7709 = vsel %vm4996, %v6714, 0
      %7711 = vmatpush.msra.mxu0 0.0
      %7712 = vmatpush.msra.mxu0 0.0
      %7713 = vmatpush.msra.mxu0 0.0
      %7714 = vmatpush.msra.mxu0 0.0
      %7715 = vmatpush.msra.mxu0 0.0
      %7716 = vmatpush.msra.mxu0 0.0
      %7717 = vmatpush.msra.mxu0 0.0
      %7718 = vmatpush.msra.mxu0 0.0
      %7719 = vmatpush.msra.mxu0 0.0
      %7720 = vmatpush.msra.mxu0 0.0
      %7721 = vmatpush.msra.mxu0 0.0
      %7722 = vmatpush.msra.mxu0 0.0
      %7723 = vmatpush.msra.mxu0 0.0
      %7724 = vmatpush.msra.mxu0 0.0
      %7725 = vmatpush.msra.mxu0 %v7702
      %7726 = vmatpush.msra.mxu0 %v7700
      %7727 = vmatmul.f32.gmra.mxu0 %v7706
      %v7728 = vpop.f32.mrf.mxu0
      %v7729 = vadd.f32 0.0, %v7728
      %7730 = vmatmul.f32.gmra.mxu0 %v7709
      %v7731 = vpop.f32.mrf.mxu0
      %v7732 = vadd.f32 0.0, %v7731
      %7733 = vdwg.mxu0
      %7734 = vrot.lane.b32.xlu0 %v2716, 64
      %v7735 = vpop.permute.xlu0 %7734
      %7736 = vrot.lane.b32.xlu0 %v2718, 64
      %v7737 = vpop.permute.xlu0 %7736
      %v7741 = vsel %vm4996, %v6715, 0
      %v7744 = vsel %vm4996, %v6716, 0
      %7746 = vmatpush.msra.mxu0 0.0
      %7747 = vmatpush.msra.mxu0 0.0
      %7748 = vmatpush.msra.mxu0 0.0
      %7749 = vmatpush.msra.mxu0 0.0
      %7750 = vmatpush.msra.mxu0 0.0
      %7751 = vmatpush.msra.mxu0 0.0
      %7752 = vmatpush.msra.mxu0 0.0
      %7753 = vmatpush.msra.mxu0 0.0
      %7754 = vmatpush.msra.mxu0 0.0
      %7755 = vmatpush.msra.mxu0 0.0
      %7756 = vmatpush.msra.mxu0 0.0
      %7757 = vmatpush.msra.mxu0 0.0
      %7758 = vmatpush.msra.mxu0 0.0
      %7759 = vmatpush.msra.mxu0 0.0
      %7760 = vmatpush.msra.mxu0 %v7737
      %7761 = vmatpush.msra.mxu0 %v7735
      %7762 = vmatmul.f32.gmra.mxu0 %v7741
      %v7763 = vpop.f32.mrf.mxu0
      %v7764 = vadd.f32 0.0, %v7763
      %7765 = vmatmul.f32.gmra.mxu0 %v7744
      %v7766 = vpop.f32.mrf.mxu0
      %v7767 = vadd.f32 0.0, %v7766
      %7768 = vdwg.mxu0
      %7769 = vrot.lane.b32.xlu0 %v2478, 64
      %v7770 = vpop.permute.xlu0 %7769
      %7771 = vrot.lane.b32.xlu0 %v2481, 64
      %v7772 = vpop.permute.xlu0 %7771
      %v7776 = vsel %vm4996, %v6717, 0
      %v7779 = vsel %vm4996, %v6718, 0
      %7781 = vmatpush.msra.mxu0 0.0
      %7782 = vmatpush.msra.mxu0 0.0
      %7783 = vmatpush.msra.mxu0 0.0
      %7784 = vmatpush.msra.mxu0 0.0
      %7785 = vmatpush.msra.mxu0 0.0
      %7786 = vmatpush.msra.mxu0 0.0
      %7787 = vmatpush.msra.mxu0 0.0
      %7788 = vmatpush.msra.mxu0 0.0
      %7789 = vmatpush.msra.mxu0 0.0
      %7790 = vmatpush.msra.mxu0 0.0
      %7791 = vmatpush.msra.mxu0 0.0
      %7792 = vmatpush.msra.mxu0 0.0
      %7793 = vmatpush.msra.mxu0 0.0
      %7794 = vmatpush.msra.mxu0 0.0
      %7795 = vmatpush.msra.mxu0 %v7772
      %7796 = vmatpush.msra.mxu0 %v7770
      %7797 = vmatmul.f32.gmra.mxu0 %v7776
      %v7798 = vpop.f32.mrf.mxu0
      %v7799 = vadd.f32 0.0, %v7798
      %7800 = vmatmul.f32.gmra.mxu0 %v7779
      %v7801 = vpop.f32.mrf.mxu0
      %v7802 = vadd.f32 0.0, %v7801
      %7803 = vdwg.mxu0
      %7804 = vrot.lane.b32.xlu0 %v2592, 64
      %v7805 = vpop.permute.xlu0 %7804
      %7806 = vrot.lane.b32.xlu0 %v2594, 64
      %v7807 = vpop.permute.xlu0 %7806
      %v7811 = vsel %vm4996, %v6719, 0
      %v7814 = vsel %vm4996, %v6720, 0
      %7816 = vmatpush.msra.mxu0 0.0
      %7817 = vmatpush.msra.mxu0 0.0
      %7818 = vmatpush.msra.mxu0 0.0
      %7819 = vmatpush.msra.mxu0 0.0
      %7820 = vmatpush.msra.mxu0 0.0
      %7821 = vmatpush.msra.mxu0 0.0
      %7822 = vmatpush.msra.mxu0 0.0
      %7823 = vmatpush.msra.mxu0 0.0
      %7824 = vmatpush.msra.mxu0 0.0
      %7825 = vmatpush.msra.mxu0 0.0
      %7826 = vmatpush.msra.mxu0 0.0
      %7827 = vmatpush.msra.mxu0 0.0
      %7828 = vmatpush.msra.mxu0 0.0
      %7829 = vmatpush.msra.mxu0 0.0
      %7830 = vmatpush.msra.mxu0 %v7807
      %7831 = vmatpush.msra.mxu0 %v7805
      %7832 = vmatmul.f32.gmra.mxu0 %v7811
      %v7833 = vpop.f32.mrf.mxu0
      %v7834 = vadd.f32 0.0, %v7833
      %7835 = vmatmul.f32.gmra.mxu0 %v7814
      %v7836 = vpop.f32.mrf.mxu0
      %v7837 = vadd.f32 0.0, %v7836
      %7838 = vdwg.mxu0
      %7839 = vrot.lane.b32.xlu0 %v2656, 64
      %v7840 = vpop.permute.xlu0 %7839
      %7841 = vrot.lane.b32.xlu0 %v2658, 64
      %v7842 = vpop.permute.xlu0 %7841
      %v7846 = vsel %vm4996, %v6721, 0
      %v7849 = vsel %vm4996, %v6722, 0
      %7851 = vmatpush.msra.mxu0 0.0
      %7852 = vmatpush.msra.mxu0 0.0
      %7853 = vmatpush.msra.mxu0 0.0
      %7854 = vmatpush.msra.mxu0 0.0
      %7855 = vmatpush.msra.mxu0 0.0
      %7856 = vmatpush.msra.mxu0 0.0
      %7857 = vmatpush.msra.mxu0 0.0
      %7858 = vmatpush.msra.mxu0 0.0
      %7859 = vmatpush.msra.mxu0 0.0
      %7860 = vmatpush.msra.mxu0 0.0
      %7861 = vmatpush.msra.mxu0 0.0
      %7862 = vmatpush.msra.mxu0 0.0
      %7863 = vmatpush.msra.mxu0 0.0
      %7864 = vmatpush.msra.mxu0 0.0
      %7865 = vmatpush.msra.mxu0 %v7842
      %7866 = vmatpush.msra.mxu0 %v7840
      %7867 = vmatmul.f32.gmra.mxu0 %v7846
      %v7868 = vpop.f32.mrf.mxu0
      %v7869 = vadd.f32 0.0, %v7868
      %7870 = vmatmul.f32.gmra.mxu0 %v7849
      %v7871 = vpop.f32.mrf.mxu0
      %v7872 = vadd.f32 0.0, %v7871
      %7873 = vdwg.mxu0
      %7874 = vrot.lane.b32.xlu0 %v2720, 64
      %v7875 = vpop.permute.xlu0 %7874
      %7876 = vrot.lane.b32.xlu0 %v2722, 64
      %v7877 = vpop.permute.xlu0 %7876
      %v7881 = vsel %vm4996, %v6723, 0
      %v7884 = vsel %vm4996, %v6724, 0
      %7886 = vmatpush.msra.mxu0 0.0
      %7887 = vmatpush.msra.mxu0 0.0
      %7888 = vmatpush.msra.mxu0 0.0
      %7889 = vmatpush.msra.mxu0 0.0
      %7890 = vmatpush.msra.mxu0 0.0
      %7891 = vmatpush.msra.mxu0 0.0
      %7892 = vmatpush.msra.mxu0 0.0
      %7893 = vmatpush.msra.mxu0 0.0
      %7894 = vmatpush.msra.mxu0 0.0
      %7895 = vmatpush.msra.mxu0 0.0
      %7896 = vmatpush.msra.mxu0 0.0
      %7897 = vmatpush.msra.mxu0 0.0
      %7898 = vmatpush.msra.mxu0 0.0
      %7899 = vmatpush.msra.mxu0 0.0
      %7900 = vmatpush.msra.mxu0 %v7877
      %7901 = vmatpush.msra.mxu0 %v7875
      %7902 = vmatmul.f32.gmra.mxu0 %v7881
      %v7903 = vpop.f32.mrf.mxu0
      %v7904 = vadd.f32 0.0, %v7903
      %7905 = vmatmul.f32.gmra.mxu0 %v7884
      %v7906 = vpop.f32.mrf.mxu0
      %v7907 = vadd.f32 0.0, %v7906
      %7908 = vdwg.mxu0
      %7909 = vrot.lane.b32.xlu0 %v2484, 64
      %v7910 = vpop.permute.xlu0 %7909
      %7911 = vrot.lane.b32.xlu0 %v2487, 64
      %v7912 = vpop.permute.xlu0 %7911
      %v7916 = vsel %vm4996, %v6725, 0
      %v7919 = vsel %vm4996, %v6726, 0
      %7921 = vmatpush.msra.mxu0 0.0
      %7922 = vmatpush.msra.mxu0 0.0
      %7923 = vmatpush.msra.mxu0 0.0
      %7924 = vmatpush.msra.mxu0 0.0
      %7925 = vmatpush.msra.mxu0 0.0
      %7926 = vmatpush.msra.mxu0 0.0
      %7927 = vmatpush.msra.mxu0 0.0
      %7928 = vmatpush.msra.mxu0 0.0
      %7929 = vmatpush.msra.mxu0 0.0
      %7930 = vmatpush.msra.mxu0 0.0
      %7931 = vmatpush.msra.mxu0 0.0
      %7932 = vmatpush.msra.mxu0 0.0
      %7933 = vmatpush.msra.mxu0 0.0
      %7934 = vmatpush.msra.mxu0 0.0
      %7935 = vmatpush.msra.mxu0 %v7912
      %7936 = vmatpush.msra.mxu0 %v7910
      %7937 = vmatmul.f32.gmra.mxu0 %v7916
      %v7938 = vpop.f32.mrf.mxu0
      %v7939 = vadd.f32 0.0, %v7938
      %7940 = vmatmul.f32.gmra.mxu0 %v7919
      %v7941 = vpop.f32.mrf.mxu0
      %v7942 = vadd.f32 0.0, %v7941
      %7943 = vdwg.mxu0
      %7944 = vrot.lane.b32.xlu0 %v2596, 64
      %v7945 = vpop.permute.xlu0 %7944
      %7946 = vrot.lane.b32.xlu0 %v2598, 64
      %v7947 = vpop.permute.xlu0 %7946
      %v7951 = vsel %vm4996, %v6727, 0
      %v7954 = vsel %vm4996, %v6728, 0
      %7956 = vmatpush.msra.mxu0 0.0
      %7957 = vmatpush.msra.mxu0 0.0
      %7958 = vmatpush.msra.mxu0 0.0
      %7959 = vmatpush.msra.mxu0 0.0
      %7960 = vmatpush.msra.mxu0 0.0
      %7961 = vmatpush.msra.mxu0 0.0
      %7962 = vmatpush.msra.mxu0 0.0
      %7963 = vmatpush.msra.mxu0 0.0
      %7964 = vmatpush.msra.mxu0 0.0
      %7965 = vmatpush.msra.mxu0 0.0
      %7966 = vmatpush.msra.mxu0 0.0
      %7967 = vmatpush.msra.mxu0 0.0
      %7968 = vmatpush.msra.mxu0 0.0
      %7969 = vmatpush.msra.mxu0 0.0
      %7970 = vmatpush.msra.mxu0 %v7947
      %7971 = vmatpush.msra.mxu0 %v7945
      %7972 = vmatmul.f32.gmra.mxu0 %v7951
      %v7973 = vpop.f32.mrf.mxu0
      %v7974 = vadd.f32 0.0, %v7973
      %7975 = vmatmul.f32.gmra.mxu0 %v7954
      %v7976 = vpop.f32.mrf.mxu0
      %v7977 = vadd.f32 0.0, %v7976
      %7978 = vdwg.mxu0
      %7979 = vrot.lane.b32.xlu0 %v2660, 64
      %v7980 = vpop.permute.xlu0 %7979
      %7981 = vrot.lane.b32.xlu0 %v2662, 64
      %v7982 = vpop.permute.xlu0 %7981
      %v7986 = vsel %vm4996, %v6729, 0
      %v7989 = vsel %vm4996, %v6730, 0
      %7991 = vmatpush.msra.mxu0 0.0
      %7992 = vmatpush.msra.mxu0 0.0
      %7993 = vmatpush.msra.mxu0 0.0
      %7994 = vmatpush.msra.mxu0 0.0
      %7995 = vmatpush.msra.mxu0 0.0
      %7996 = vmatpush.msra.mxu0 0.0
      %7997 = vmatpush.msra.mxu0 0.0
      %7998 = vmatpush.msra.mxu0 0.0
      %7999 = vmatpush.msra.mxu0 0.0
      %8000 = vmatpush.msra.mxu0 0.0
      %8001 = vmatpush.msra.mxu0 0.0
      %8002 = vmatpush.msra.mxu0 0.0
      %8003 = vmatpush.msra.mxu0 0.0
      %8004 = vmatpush.msra.mxu0 0.0
      %8005 = vmatpush.msra.mxu0 %v7982
      %8006 = vmatpush.msra.mxu0 %v7980
      %8007 = vmatmul.f32.gmra.mxu0 %v7986
      %v8008 = vpop.f32.mrf.mxu0
      %v8009 = vadd.f32 0.0, %v8008
      %8010 = vmatmul.f32.gmra.mxu0 %v7989
      %v8011 = vpop.f32.mrf.mxu0
      %v8012 = vadd.f32 0.0, %v8011
      %8013 = vdwg.mxu0
      %8014 = vrot.lane.b32.xlu0 %v2724, 64
      %v8015 = vpop.permute.xlu0 %8014
      %8016 = vrot.lane.b32.xlu0 %v2726, 64
      %v8017 = vpop.permute.xlu0 %8016
      %v8021 = vsel %vm4996, %v6731, 0
      %v8024 = vsel %vm4996, %v6732, 0
      %8026 = vmatpush.msra.mxu0 0.0
      %8027 = vmatpush.msra.mxu0 0.0
      %8028 = vmatpush.msra.mxu0 0.0
      %8029 = vmatpush.msra.mxu0 0.0
      %8030 = vmatpush.msra.mxu0 0.0
      %8031 = vmatpush.msra.mxu0 0.0
      %8032 = vmatpush.msra.mxu0 0.0
      %8033 = vmatpush.msra.mxu0 0.0
      %8034 = vmatpush.msra.mxu0 0.0
      %8035 = vmatpush.msra.mxu0 0.0
      %8036 = vmatpush.msra.mxu0 0.0
      %8037 = vmatpush.msra.mxu0 0.0
      %8038 = vmatpush.msra.mxu0 0.0
      %8039 = vmatpush.msra.mxu0 0.0
      %8040 = vmatpush.msra.mxu0 %v8017
      %8041 = vmatpush.msra.mxu0 %v8015
      %8042 = vmatmul.f32.gmra.mxu0 %v8021
      %v8043 = vpop.f32.mrf.mxu0
      %v8044 = vadd.f32 0.0, %v8043
      %8045 = vmatmul.f32.gmra.mxu0 %v8024
      %v8046 = vpop.f32.mrf.mxu0
      %v8047 = vadd.f32 0.0, %v8046
      %8048 = vdwg.mxu0
      %8049 = vrot.lane.b32.xlu0 %v2490, 64
      %v8050 = vpop.permute.xlu0 %8049
      %8051 = vrot.lane.b32.xlu0 %v2493, 64
      %v8052 = vpop.permute.xlu0 %8051
      %v8056 = vsel %vm4996, %v6733, 0
      %v8059 = vsel %vm4996, %v6734, 0
      %8061 = vmatpush.msra.mxu0 0.0
      %8062 = vmatpush.msra.mxu0 0.0
      %8063 = vmatpush.msra.mxu0 0.0
      %8064 = vmatpush.msra.mxu0 0.0
      %8065 = vmatpush.msra.mxu0 0.0
      %8066 = vmatpush.msra.mxu0 0.0
      %8067 = vmatpush.msra.mxu0 0.0
      %8068 = vmatpush.msra.mxu0 0.0
      %8069 = vmatpush.msra.mxu0 0.0
      %8070 = vmatpush.msra.mxu0 0.0
      %8071 = vmatpush.msra.mxu0 0.0
      %8072 = vmatpush.msra.mxu0 0.0
      %8073 = vmatpush.msra.mxu0 0.0
      %8074 = vmatpush.msra.mxu0 0.0
      %8075 = vmatpush.msra.mxu0 %v8052
      %8076 = vmatpush.msra.mxu0 %v8050
      %8077 = vmatmul.f32.gmra.mxu0 %v8056
      %v8078 = vpop.f32.mrf.mxu0
      %v8079 = vadd.f32 0.0, %v8078
      %8080 = vmatmul.f32.gmra.mxu0 %v8059
      %v8081 = vpop.f32.mrf.mxu0
      %v8082 = vadd.f32 0.0, %v8081
      %8083 = vdwg.mxu0
      %8084 = vrot.lane.b32.xlu0 %v2600, 64
      %v8085 = vpop.permute.xlu0 %8084
      %8086 = vrot.lane.b32.xlu0 %v2602, 64
      %v8087 = vpop.permute.xlu0 %8086
      %v8091 = vsel %vm4996, %v6735, 0
      %v8094 = vsel %vm4996, %v6736, 0
      %8096 = vmatpush.msra.mxu0 0.0
      %8097 = vmatpush.msra.mxu0 0.0
      %8098 = vmatpush.msra.mxu0 0.0
      %8099 = vmatpush.msra.mxu0 0.0
      %8100 = vmatpush.msra.mxu0 0.0
      %8101 = vmatpush.msra.mxu0 0.0
      %8102 = vmatpush.msra.mxu0 0.0
      %8103 = vmatpush.msra.mxu0 0.0
      %8104 = vmatpush.msra.mxu0 0.0
      %8105 = vmatpush.msra.mxu0 0.0
      %8106 = vmatpush.msra.mxu0 0.0
      %8107 = vmatpush.msra.mxu0 0.0
      %8108 = vmatpush.msra.mxu0 0.0
      %8109 = vmatpush.msra.mxu0 0.0
      %8110 = vmatpush.msra.mxu0 %v8087
      %8111 = vmatpush.msra.mxu0 %v8085
      %8112 = vmatmul.f32.gmra.mxu0 %v8091
      %v8113 = vpop.f32.mrf.mxu0
      %v8114 = vadd.f32 0.0, %v8113
      %8115 = vmatmul.f32.gmra.mxu0 %v8094
      %v8116 = vpop.f32.mrf.mxu0
      %v8117 = vadd.f32 0.0, %v8116
      %8118 = vdwg.mxu0
      %8119 = vrot.lane.b32.xlu0 %v2664, 64
      %v8120 = vpop.permute.xlu0 %8119
      %8121 = vrot.lane.b32.xlu0 %v2666, 64
      %v8122 = vpop.permute.xlu0 %8121
      %v8126 = vsel %vm4996, %v6737, 0
      %v8129 = vsel %vm4996, %v6738, 0
      %8131 = vmatpush.msra.mxu0 0.0
      %8132 = vmatpush.msra.mxu0 0.0
      %8133 = vmatpush.msra.mxu0 0.0
      %8134 = vmatpush.msra.mxu0 0.0
      %8135 = vmatpush.msra.mxu0 0.0
      %8136 = vmatpush.msra.mxu0 0.0
      %8137 = vmatpush.msra.mxu0 0.0
      %8138 = vmatpush.msra.mxu0 0.0
      %8139 = vmatpush.msra.mxu0 0.0
      %8140 = vmatpush.msra.mxu0 0.0
      %8141 = vmatpush.msra.mxu0 0.0
      %8142 = vmatpush.msra.mxu0 0.0
      %8143 = vmatpush.msra.mxu0 0.0
      %8144 = vmatpush.msra.mxu0 0.0
      %8145 = vmatpush.msra.mxu0 %v8122
      %8146 = vmatpush.msra.mxu0 %v8120
      %8147 = vmatmul.f32.gmra.mxu0 %v8126
      %v8148 = vpop.f32.mrf.mxu0
      %v8149 = vadd.f32 0.0, %v8148
      %8150 = vmatmul.f32.gmra.mxu0 %v8129
      %v8151 = vpop.f32.mrf.mxu0
      %v8152 = vadd.f32 0.0, %v8151
      %8153 = vdwg.mxu0
      %8154 = vrot.lane.b32.xlu0 %v2728, 64
      %v8155 = vpop.permute.xlu0 %8154
      %8156 = vrot.lane.b32.xlu0 %v2730, 64
      %v8157 = vpop.permute.xlu0 %8156
      %v8161 = vsel %vm4996, %v6739, 0
      %v8164 = vsel %vm4996, %v6740, 0
      %8166 = vmatpush.msra.mxu0 0.0
      %8167 = vmatpush.msra.mxu0 0.0
      %8168 = vmatpush.msra.mxu0 0.0
      %8169 = vmatpush.msra.mxu0 0.0
      %8170 = vmatpush.msra.mxu0 0.0
      %8171 = vmatpush.msra.mxu0 0.0
      %8172 = vmatpush.msra.mxu0 0.0
      %8173 = vmatpush.msra.mxu0 0.0
      %8174 = vmatpush.msra.mxu0 0.0
      %8175 = vmatpush.msra.mxu0 0.0
      %8176 = vmatpush.msra.mxu0 0.0
      %8177 = vmatpush.msra.mxu0 0.0
      %8178 = vmatpush.msra.mxu0 0.0
      %8179 = vmatpush.msra.mxu0 0.0
      %8180 = vmatpush.msra.mxu0 %v8157
      %8181 = vmatpush.msra.mxu0 %v8155
      %8182 = vmatmul.f32.gmra.mxu0 %v8161
      %v8183 = vpop.f32.mrf.mxu0
      %v8184 = vadd.f32 0.0, %v8183
      %8185 = vmatmul.f32.gmra.mxu0 %v8164
      %v8186 = vpop.f32.mrf.mxu0
      %v8187 = vadd.f32 0.0, %v8186
      %8188 = vdwg.mxu0
      %8189 = vrot.lane.b32.xlu0 %v2496, 64
      %v8190 = vpop.permute.xlu0 %8189
      %8191 = vrot.lane.b32.xlu0 %v2499, 64
      %v8192 = vpop.permute.xlu0 %8191
      %v8196 = vsel %vm4996, %v6741, 0
      %v8199 = vsel %vm4996, %v6742, 0
      %8201 = vmatpush.msra.mxu0 0.0
      %8202 = vmatpush.msra.mxu0 0.0
      %8203 = vmatpush.msra.mxu0 0.0
      %8204 = vmatpush.msra.mxu0 0.0
      %8205 = vmatpush.msra.mxu0 0.0
      %8206 = vmatpush.msra.mxu0 0.0
      %8207 = vmatpush.msra.mxu0 0.0
      %8208 = vmatpush.msra.mxu0 0.0
      %8209 = vmatpush.msra.mxu0 0.0
      %8210 = vmatpush.msra.mxu0 0.0
      %8211 = vmatpush.msra.mxu0 0.0
      %8212 = vmatpush.msra.mxu0 0.0
      %8213 = vmatpush.msra.mxu0 0.0
      %8214 = vmatpush.msra.mxu0 0.0
      %8215 = vmatpush.msra.mxu0 %v8192
      %8216 = vmatpush.msra.mxu0 %v8190
      %8217 = vmatmul.f32.gmra.mxu0 %v8196
      %v8218 = vpop.f32.mrf.mxu0
      %v8219 = vadd.f32 0.0, %v8218
      %8220 = vmatmul.f32.gmra.mxu0 %v8199
      %v8221 = vpop.f32.mrf.mxu0
      %v8222 = vadd.f32 0.0, %v8221
      %8223 = vdwg.mxu0
      %8224 = vrot.lane.b32.xlu0 %v2604, 64
      %v8225 = vpop.permute.xlu0 %8224
      %8226 = vrot.lane.b32.xlu0 %v2606, 64
      %v8227 = vpop.permute.xlu0 %8226
      %v8231 = vsel %vm4996, %v6743, 0
      %v8234 = vsel %vm4996, %v6744, 0
      %8236 = vmatpush.msra.mxu0 0.0
      %8237 = vmatpush.msra.mxu0 0.0
      %8238 = vmatpush.msra.mxu0 0.0
      %8239 = vmatpush.msra.mxu0 0.0
      %8240 = vmatpush.msra.mxu0 0.0
      %8241 = vmatpush.msra.mxu0 0.0
      %8242 = vmatpush.msra.mxu0 0.0
      %8243 = vmatpush.msra.mxu0 0.0
      %8244 = vmatpush.msra.mxu0 0.0
      %8245 = vmatpush.msra.mxu0 0.0
      %8246 = vmatpush.msra.mxu0 0.0
      %8247 = vmatpush.msra.mxu0 0.0
      %8248 = vmatpush.msra.mxu0 0.0
      %8249 = vmatpush.msra.mxu0 0.0
      %8250 = vmatpush.msra.mxu0 %v8227
      %8251 = vmatpush.msra.mxu0 %v8225
      %8252 = vmatmul.f32.gmra.mxu0 %v8231
      %v8253 = vpop.f32.mrf.mxu0
      %v8254 = vadd.f32 0.0, %v8253
      %8255 = vmatmul.f32.gmra.mxu0 %v8234
      %v8256 = vpop.f32.mrf.mxu0
      %v8257 = vadd.f32 0.0, %v8256
      %8258 = vdwg.mxu0
      %8259 = vrot.lane.b32.xlu0 %v2668, 64
      %v8260 = vpop.permute.xlu0 %8259
      %8261 = vrot.lane.b32.xlu0 %v2670, 64
      %v8262 = vpop.permute.xlu0 %8261
      %v8266 = vsel %vm4996, %v6745, 0
      %v8269 = vsel %vm4996, %v6746, 0
      %8271 = vmatpush.msra.mxu0 0.0
      %8272 = vmatpush.msra.mxu0 0.0
      %8273 = vmatpush.msra.mxu0 0.0
      %8274 = vmatpush.msra.mxu0 0.0
      %8275 = vmatpush.msra.mxu0 0.0
      %8276 = vmatpush.msra.mxu0 0.0
      %8277 = vmatpush.msra.mxu0 0.0
      %8278 = vmatpush.msra.mxu0 0.0
      %8279 = vmatpush.msra.mxu0 0.0
      %8280 = vmatpush.msra.mxu0 0.0
      %8281 = vmatpush.msra.mxu0 0.0
      %8282 = vmatpush.msra.mxu0 0.0
      %8283 = vmatpush.msra.mxu0 0.0
      %8284 = vmatpush.msra.mxu0 0.0
      %8285 = vmatpush.msra.mxu0 %v8262
      %8286 = vmatpush.msra.mxu0 %v8260
      %8287 = vmatmul.f32.gmra.mxu0 %v8266
      %v8288 = vpop.f32.mrf.mxu0
      %v8289 = vadd.f32 0.0, %v8288
      %8290 = vmatmul.f32.gmra.mxu0 %v8269
      %v8291 = vpop.f32.mrf.mxu0
      %v8292 = vadd.f32 0.0, %v8291
      %8293 = vdwg.mxu0
      %8294 = vrot.lane.b32.xlu0 %v2732, 64
      %v8295 = vpop.permute.xlu0 %8294
      %8296 = vrot.lane.b32.xlu0 %v2734, 64
      %v8297 = vpop.permute.xlu0 %8296
      %v8301 = vsel %vm4996, %v6747, 0
      %v8304 = vsel %vm4996, %v6748, 0
      %8306 = vmatpush.msra.mxu0 0.0
      %8307 = vmatpush.msra.mxu0 0.0
      %8308 = vmatpush.msra.mxu0 0.0
      %8309 = vmatpush.msra.mxu0 0.0
      %8310 = vmatpush.msra.mxu0 0.0
      %8311 = vmatpush.msra.mxu0 0.0
      %8312 = vmatpush.msra.mxu0 0.0
      %8313 = vmatpush.msra.mxu0 0.0
      %8314 = vmatpush.msra.mxu0 0.0
      %8315 = vmatpush.msra.mxu0 0.0
      %8316 = vmatpush.msra.mxu0 0.0
      %8317 = vmatpush.msra.mxu0 0.0
      %8318 = vmatpush.msra.mxu0 0.0
      %8319 = vmatpush.msra.mxu0 0.0
      %8320 = vmatpush.msra.mxu0 %v8297
      %8321 = vmatpush.msra.mxu0 %v8295
      %8322 = vmatmul.f32.gmra.mxu0 %v8301
      %v8323 = vpop.f32.mrf.mxu0
      %v8324 = vadd.f32 0.0, %v8323
      %8325 = vmatmul.f32.gmra.mxu0 %v8304
      %v8326 = vpop.f32.mrf.mxu0
      %v8327 = vadd.f32 0.0, %v8326
      %8328 = vdwg.mxu0
      %8329 = vrot.lane.b32.xlu0 %v2502, 64
      %v8330 = vpop.permute.xlu0 %8329
      %8331 = vrot.lane.b32.xlu0 %v2505, 64
      %v8332 = vpop.permute.xlu0 %8331
      %v8336 = vsel %vm4996, %v6749, 0
      %v8339 = vsel %vm4996, %v6750, 0
      %8341 = vmatpush.msra.mxu0 0.0
      %8342 = vmatpush.msra.mxu0 0.0
      %8343 = vmatpush.msra.mxu0 0.0
      %8344 = vmatpush.msra.mxu0 0.0
      %8345 = vmatpush.msra.mxu0 0.0
      %8346 = vmatpush.msra.mxu0 0.0
      %8347 = vmatpush.msra.mxu0 0.0
      %8348 = vmatpush.msra.mxu0 0.0
      %8349 = vmatpush.msra.mxu0 0.0
      %8350 = vmatpush.msra.mxu0 0.0
      %8351 = vmatpush.msra.mxu0 0.0
      %8352 = vmatpush.msra.mxu0 0.0
      %8353 = vmatpush.msra.mxu0 0.0
      %8354 = vmatpush.msra.mxu0 0.0
      %8355 = vmatpush.msra.mxu0 %v8332
      %8356 = vmatpush.msra.mxu0 %v8330
      %8357 = vmatmul.f32.gmra.mxu0 %v8336
      %v8358 = vpop.f32.mrf.mxu0
      %v8359 = vadd.f32 0.0, %v8358
      %8360 = vmatmul.f32.gmra.mxu0 %v8339
      %v8361 = vpop.f32.mrf.mxu0
      %v8362 = vadd.f32 0.0, %v8361
      %8363 = vdwg.mxu0
      %8364 = vrot.lane.b32.xlu0 %v2608, 64
      %v8365 = vpop.permute.xlu0 %8364
      %8366 = vrot.lane.b32.xlu0 %v2610, 64
      %v8367 = vpop.permute.xlu0 %8366
      %v8371 = vsel %vm4996, %v6751, 0
      %v8374 = vsel %vm4996, %v6752, 0
      %8376 = vmatpush.msra.mxu0 0.0
      %8377 = vmatpush.msra.mxu0 0.0
      %8378 = vmatpush.msra.mxu0 0.0
      %8379 = vmatpush.msra.mxu0 0.0
      %8380 = vmatpush.msra.mxu0 0.0
      %8381 = vmatpush.msra.mxu0 0.0
      %8382 = vmatpush.msra.mxu0 0.0
      %8383 = vmatpush.msra.mxu0 0.0
      %8384 = vmatpush.msra.mxu0 0.0
      %8385 = vmatpush.msra.mxu0 0.0
      %8386 = vmatpush.msra.mxu0 0.0
      %8387 = vmatpush.msra.mxu0 0.0
      %8388 = vmatpush.msra.mxu0 0.0
      %8389 = vmatpush.msra.mxu0 0.0
      %8390 = vmatpush.msra.mxu0 %v8367
      %8391 = vmatpush.msra.mxu0 %v8365
      %8392 = vmatmul.f32.gmra.mxu0 %v8371
      %v8393 = vpop.f32.mrf.mxu0
      %v8394 = vadd.f32 0.0, %v8393
      %8395 = vmatmul.f32.gmra.mxu0 %v8374
      %v8396 = vpop.f32.mrf.mxu0
      %v8397 = vadd.f32 0.0, %v8396
      %8398 = vdwg.mxu0
      %8399 = vrot.lane.b32.xlu0 %v2672, 64
      %v8400 = vpop.permute.xlu0 %8399
      %8401 = vrot.lane.b32.xlu0 %v2674, 64
      %v8402 = vpop.permute.xlu0 %8401
      %v8406 = vsel %vm4996, %v6753, 0
      %v8409 = vsel %vm4996, %v6754, 0
      %8411 = vmatpush.msra.mxu0 0.0
      %8412 = vmatpush.msra.mxu0 0.0
      %8413 = vmatpush.msra.mxu0 0.0
      %8414 = vmatpush.msra.mxu0 0.0
      %8415 = vmatpush.msra.mxu0 0.0
      %8416 = vmatpush.msra.mxu0 0.0
      %8417 = vmatpush.msra.mxu0 0.0
      %8418 = vmatpush.msra.mxu0 0.0
      %8419 = vmatpush.msra.mxu0 0.0
      %8420 = vmatpush.msra.mxu0 0.0
      %8421 = vmatpush.msra.mxu0 0.0
      %8422 = vmatpush.msra.mxu0 0.0
      %8423 = vmatpush.msra.mxu0 0.0
      %8424 = vmatpush.msra.mxu0 0.0
      %8425 = vmatpush.msra.mxu0 %v8402
      %8426 = vmatpush.msra.mxu0 %v8400
      %8427 = vmatmul.f32.gmra.mxu0 %v8406
      %v8428 = vpop.f32.mrf.mxu0
      %v8429 = vadd.f32 0.0, %v8428
      %8430 = vmatmul.f32.gmra.mxu0 %v8409
      %v8431 = vpop.f32.mrf.mxu0
      %v8432 = vadd.f32 0.0, %v8431
      %8433 = vdwg.mxu0
      %8434 = vrot.lane.b32.xlu0 %v2736, 64
      %v8435 = vpop.permute.xlu0 %8434
      %8436 = vrot.lane.b32.xlu0 %v2738, 64
      %v8437 = vpop.permute.xlu0 %8436
      %v8441 = vsel %vm4996, %v6755, 0
      %v8444 = vsel %vm4996, %v6756, 0
      %8446 = vmatpush.msra.mxu0 0.0
      %8447 = vmatpush.msra.mxu0 0.0
      %8448 = vmatpush.msra.mxu0 0.0
      %8449 = vmatpush.msra.mxu0 0.0
      %8450 = vmatpush.msra.mxu0 0.0
      %8451 = vmatpush.msra.mxu0 0.0
      %8452 = vmatpush.msra.mxu0 0.0
      %8453 = vmatpush.msra.mxu0 0.0
      %8454 = vmatpush.msra.mxu0 0.0
      %8455 = vmatpush.msra.mxu0 0.0
      %8456 = vmatpush.msra.mxu0 0.0
      %8457 = vmatpush.msra.mxu0 0.0
      %8458 = vmatpush.msra.mxu0 0.0
      %8459 = vmatpush.msra.mxu0 0.0
      %8460 = vmatpush.msra.mxu0 %v8437
      %8461 = vmatpush.msra.mxu0 %v8435
      %8462 = vmatmul.f32.gmra.mxu0 %v8441
      %v8463 = vpop.f32.mrf.mxu0
      %v8464 = vadd.f32 0.0, %v8463
      %8465 = vmatmul.f32.gmra.mxu0 %v8444
      %v8466 = vpop.f32.mrf.mxu0
      %v8467 = vadd.f32 0.0, %v8466
      %8468 = vdwg.mxu0
      %8469 = vrot.lane.b32.xlu0 %v2508, 64
      %v8470 = vpop.permute.xlu0 %8469
      %8471 = vrot.lane.b32.xlu0 %v2511, 64
      %v8472 = vpop.permute.xlu0 %8471
      %v8476 = vsel %vm4996, %v6757, 0
      %v8479 = vsel %vm4996, %v6758, 0
      %8481 = vmatpush.msra.mxu0 0.0
      %8482 = vmatpush.msra.mxu0 0.0
      %8483 = vmatpush.msra.mxu0 0.0
      %8484 = vmatpush.msra.mxu0 0.0
      %8485 = vmatpush.msra.mxu0 0.0
      %8486 = vmatpush.msra.mxu0 0.0
      %8487 = vmatpush.msra.mxu0 0.0
      %8488 = vmatpush.msra.mxu0 0.0
      %8489 = vmatpush.msra.mxu0 0.0
      %8490 = vmatpush.msra.mxu0 0.0
      %8491 = vmatpush.msra.mxu0 0.0
      %8492 = vmatpush.msra.mxu0 0.0
      %8493 = vmatpush.msra.mxu0 0.0
      %8494 = vmatpush.msra.mxu0 0.0
      %8495 = vmatpush.msra.mxu0 %v8472
      %8496 = vmatpush.msra.mxu0 %v8470
      %8497 = vmatmul.f32.gmra.mxu0 %v8476
      %v8498 = vpop.f32.mrf.mxu0
      %v8499 = vadd.f32 0.0, %v8498
      %8500 = vmatmul.f32.gmra.mxu0 %v8479
      %v8501 = vpop.f32.mrf.mxu0
      %v8502 = vadd.f32 0.0, %v8501
      %8503 = vdwg.mxu0
      %8504 = vrot.lane.b32.xlu0 %v2612, 64
      %v8505 = vpop.permute.xlu0 %8504
      %8506 = vrot.lane.b32.xlu0 %v2614, 64
      %v8507 = vpop.permute.xlu0 %8506
      %v8511 = vsel %vm4996, %v6759, 0
      %v8514 = vsel %vm4996, %v6760, 0
      %8516 = vmatpush.msra.mxu0 0.0
      %8517 = vmatpush.msra.mxu0 0.0
      %8518 = vmatpush.msra.mxu0 0.0
      %8519 = vmatpush.msra.mxu0 0.0
      %8520 = vmatpush.msra.mxu0 0.0
      %8521 = vmatpush.msra.mxu0 0.0
      %8522 = vmatpush.msra.mxu0 0.0
      %8523 = vmatpush.msra.mxu0 0.0
      %8524 = vmatpush.msra.mxu0 0.0
      %8525 = vmatpush.msra.mxu0 0.0
      %8526 = vmatpush.msra.mxu0 0.0
      %8527 = vmatpush.msra.mxu0 0.0
      %8528 = vmatpush.msra.mxu0 0.0
      %8529 = vmatpush.msra.mxu0 0.0
      %8530 = vmatpush.msra.mxu0 %v8507
      %8531 = vmatpush.msra.mxu0 %v8505
      %8532 = vmatmul.f32.gmra.mxu0 %v8511
      %v8533 = vpop.f32.mrf.mxu0
      %v8534 = vadd.f32 0.0, %v8533
      %8535 = vmatmul.f32.gmra.mxu0 %v8514
      %v8536 = vpop.f32.mrf.mxu0
      %v8537 = vadd.f32 0.0, %v8536
      %8538 = vdwg.mxu0
      %8539 = vrot.lane.b32.xlu0 %v2676, 64
      %v8540 = vpop.permute.xlu0 %8539
      %8541 = vrot.lane.b32.xlu0 %v2678, 64
      %v8542 = vpop.permute.xlu0 %8541
      %v8546 = vsel %vm4996, %v6761, 0
      %v8549 = vsel %vm4996, %v6762, 0
      %8551 = vmatpush.msra.mxu0 0.0
      %8552 = vmatpush.msra.mxu0 0.0
      %8553 = vmatpush.msra.mxu0 0.0
      %8554 = vmatpush.msra.mxu0 0.0
      %8555 = vmatpush.msra.mxu0 0.0
      %8556 = vmatpush.msra.mxu0 0.0
      %8557 = vmatpush.msra.mxu0 0.0
      %8558 = vmatpush.msra.mxu0 0.0
      %8559 = vmatpush.msra.mxu0 0.0
      %8560 = vmatpush.msra.mxu0 0.0
      %8561 = vmatpush.msra.mxu0 0.0
      %8562 = vmatpush.msra.mxu0 0.0
      %8563 = vmatpush.msra.mxu0 0.0
      %8564 = vmatpush.msra.mxu0 0.0
      %8565 = vmatpush.msra.mxu0 %v8542
      %8566 = vmatpush.msra.mxu0 %v8540
      %8567 = vmatmul.f32.gmra.mxu0 %v8546
      %v8568 = vpop.f32.mrf.mxu0
      %v8569 = vadd.f32 0.0, %v8568
      %8570 = vmatmul.f32.gmra.mxu0 %v8549
      %v8571 = vpop.f32.mrf.mxu0
      %v8572 = vadd.f32 0.0, %v8571
      %8573 = vdwg.mxu0
      %8574 = vrot.lane.b32.xlu0 %v2740, 64
      %v8575 = vpop.permute.xlu0 %8574
      %8576 = vrot.lane.b32.xlu0 %v2742, 64
      %v8577 = vpop.permute.xlu0 %8576
      %v8581 = vsel %vm4996, %v6763, 0
      %v8584 = vsel %vm4996, %v6764, 0
      %8586 = vmatpush.msra.mxu0 0.0
      %8587 = vmatpush.msra.mxu0 0.0
      %8588 = vmatpush.msra.mxu0 0.0
      %8589 = vmatpush.msra.mxu0 0.0
      %8590 = vmatpush.msra.mxu0 0.0
      %8591 = vmatpush.msra.mxu0 0.0
      %8592 = vmatpush.msra.mxu0 0.0
      %8593 = vmatpush.msra.mxu0 0.0
      %8594 = vmatpush.msra.mxu0 0.0
      %8595 = vmatpush.msra.mxu0 0.0
      %8596 = vmatpush.msra.mxu0 0.0
      %8597 = vmatpush.msra.mxu0 0.0
      %8598 = vmatpush.msra.mxu0 0.0
      %8599 = vmatpush.msra.mxu0 0.0
      %8600 = vmatpush.msra.mxu0 %v8577
      %8601 = vmatpush.msra.mxu0 %v8575
      %8602 = vmatmul.f32.gmra.mxu0 %v8581
      %v8603 = vpop.f32.mrf.mxu0
      %v8604 = vadd.f32 0.0, %v8603
      %8605 = vmatmul.f32.gmra.mxu0 %v8584
      %v8606 = vpop.f32.mrf.mxu0
      %v8607 = vadd.f32 0.0, %v8606
      %8608 = vdwg.mxu0
      %8609 = vrot.lane.b32.xlu0 %v2514, 64
      %v8610 = vpop.permute.xlu0 %8609
      %8611 = vrot.lane.b32.xlu0 %v2517, 64
      %v8612 = vpop.permute.xlu0 %8611
      %v8616 = vsel %vm4996, %v6765, 0
      %v8619 = vsel %vm4996, %v6766, 0
      %8621 = vmatpush.msra.mxu0 0.0
      %8622 = vmatpush.msra.mxu0 0.0
      %8623 = vmatpush.msra.mxu0 0.0
      %8624 = vmatpush.msra.mxu0 0.0
      %8625 = vmatpush.msra.mxu0 0.0
      %8626 = vmatpush.msra.mxu0 0.0
      %8627 = vmatpush.msra.mxu0 0.0
      %8628 = vmatpush.msra.mxu0 0.0
      %8629 = vmatpush.msra.mxu0 0.0
      %8630 = vmatpush.msra.mxu0 0.0
      %8631 = vmatpush.msra.mxu0 0.0
      %8632 = vmatpush.msra.mxu0 0.0
      %8633 = vmatpush.msra.mxu0 0.0
      %8634 = vmatpush.msra.mxu0 0.0
      %8635 = vmatpush.msra.mxu0 %v8612
      %8636 = vmatpush.msra.mxu0 %v8610
      %8637 = vmatmul.f32.gmra.mxu0 %v8616
      %v8638 = vpop.f32.mrf.mxu0
      %v8639 = vadd.f32 0.0, %v8638
      %8640 = vmatmul.f32.gmra.mxu0 %v8619
      %v8641 = vpop.f32.mrf.mxu0
      %v8642 = vadd.f32 0.0, %v8641
      %8643 = vdwg.mxu0
      %8644 = vrot.lane.b32.xlu0 %v2616, 64
      %v8645 = vpop.permute.xlu0 %8644
      %8646 = vrot.lane.b32.xlu0 %v2618, 64
      %v8647 = vpop.permute.xlu0 %8646
      %v8651 = vsel %vm4996, %v6767, 0
      %v8654 = vsel %vm4996, %v6768, 0
      %8656 = vmatpush.msra.mxu0 0.0
      %8657 = vmatpush.msra.mxu0 0.0
      %8658 = vmatpush.msra.mxu0 0.0
      %8659 = vmatpush.msra.mxu0 0.0
      %8660 = vmatpush.msra.mxu0 0.0
      %8661 = vmatpush.msra.mxu0 0.0
      %8662 = vmatpush.msra.mxu0 0.0
      %8663 = vmatpush.msra.mxu0 0.0
      %8664 = vmatpush.msra.mxu0 0.0
      %8665 = vmatpush.msra.mxu0 0.0
      %8666 = vmatpush.msra.mxu0 0.0
      %8667 = vmatpush.msra.mxu0 0.0
      %8668 = vmatpush.msra.mxu0 0.0
      %8669 = vmatpush.msra.mxu0 0.0
      %8670 = vmatpush.msra.mxu0 %v8647
      %8671 = vmatpush.msra.mxu0 %v8645
      %8672 = vmatmul.f32.gmra.mxu0 %v8651
      %v8673 = vpop.f32.mrf.mxu0
      %v8674 = vadd.f32 0.0, %v8673
      %8675 = vmatmul.f32.gmra.mxu0 %v8654
      %v8676 = vpop.f32.mrf.mxu0
      %v8677 = vadd.f32 0.0, %v8676
      %8678 = vdwg.mxu0
      %8679 = vrot.lane.b32.xlu0 %v2680, 64
      %v8680 = vpop.permute.xlu0 %8679
      %8681 = vrot.lane.b32.xlu0 %v2682, 64
      %v8682 = vpop.permute.xlu0 %8681
      %v8686 = vsel %vm4996, %v6769, 0
      %v8689 = vsel %vm4996, %v6770, 0
      %8691 = vmatpush.msra.mxu0 0.0
      %8692 = vmatpush.msra.mxu0 0.0
      %8693 = vmatpush.msra.mxu0 0.0
      %8694 = vmatpush.msra.mxu0 0.0
      %8695 = vmatpush.msra.mxu0 0.0
      %8696 = vmatpush.msra.mxu0 0.0
      %8697 = vmatpush.msra.mxu0 0.0
      %8698 = vmatpush.msra.mxu0 0.0
      %8699 = vmatpush.msra.mxu0 0.0
      %8700 = vmatpush.msra.mxu0 0.0
      %8701 = vmatpush.msra.mxu0 0.0
      %8702 = vmatpush.msra.mxu0 0.0
      %8703 = vmatpush.msra.mxu0 0.0
      %8704 = vmatpush.msra.mxu0 0.0
      %8705 = vmatpush.msra.mxu0 %v8682
      %8706 = vmatpush.msra.mxu0 %v8680
      %8707 = vmatmul.f32.gmra.mxu0 %v8686
      %v8708 = vpop.f32.mrf.mxu0
      %v8709 = vadd.f32 0.0, %v8708
      %8710 = vmatmul.f32.gmra.mxu0 %v8689
      %v8711 = vpop.f32.mrf.mxu0
      %v8712 = vadd.f32 0.0, %v8711
      %8713 = vdwg.mxu0
      %8714 = vrot.lane.b32.xlu0 %v2744, 64
      %v8715 = vpop.permute.xlu0 %8714
      %8716 = vrot.lane.b32.xlu0 %v2746, 64
      %v8717 = vpop.permute.xlu0 %8716
      %v8721 = vsel %vm4996, %v6771, 0
      %v8724 = vsel %vm4996, %v6772, 0
      %8726 = vmatpush.msra.mxu0 0.0
      %8727 = vmatpush.msra.mxu0 0.0
      %8728 = vmatpush.msra.mxu0 0.0
      %8729 = vmatpush.msra.mxu0 0.0
      %8730 = vmatpush.msra.mxu0 0.0
      %8731 = vmatpush.msra.mxu0 0.0
      %8732 = vmatpush.msra.mxu0 0.0
      %8733 = vmatpush.msra.mxu0 0.0
      %8734 = vmatpush.msra.mxu0 0.0
      %8735 = vmatpush.msra.mxu0 0.0
      %8736 = vmatpush.msra.mxu0 0.0
      %8737 = vmatpush.msra.mxu0 0.0
      %8738 = vmatpush.msra.mxu0 0.0
      %8739 = vmatpush.msra.mxu0 0.0
      %8740 = vmatpush.msra.mxu0 %v8717
      %8741 = vmatpush.msra.mxu0 %v8715
      %8742 = vmatmul.f32.gmra.mxu0 %v8721
      %v8743 = vpop.f32.mrf.mxu0
      %v8744 = vadd.f32 0.0, %v8743
      %8745 = vmatmul.f32.gmra.mxu0 %v8724
      %v8746 = vpop.f32.mrf.mxu0
      %v8747 = vadd.f32 0.0, %v8746
      %8748 = vdwg.mxu0
      %8749 = vrot.lane.b32.xlu0 %v2520, 64
      %v8750 = vpop.permute.xlu0 %8749
      %8751 = vrot.lane.b32.xlu0 %v2523, 64
      %v8752 = vpop.permute.xlu0 %8751
      %v8756 = vsel %vm4996, %v6773, 0
      %v8759 = vsel %vm4996, %v6774, 0
      %8761 = vmatpush.msra.mxu0 0.0
      %8762 = vmatpush.msra.mxu0 0.0
      %8763 = vmatpush.msra.mxu0 0.0
      %8764 = vmatpush.msra.mxu0 0.0
      %8765 = vmatpush.msra.mxu0 0.0
      %8766 = vmatpush.msra.mxu0 0.0
      %8767 = vmatpush.msra.mxu0 0.0
      %8768 = vmatpush.msra.mxu0 0.0
      %8769 = vmatpush.msra.mxu0 0.0
      %8770 = vmatpush.msra.mxu0 0.0
      %8771 = vmatpush.msra.mxu0 0.0
      %8772 = vmatpush.msra.mxu0 0.0
      %8773 = vmatpush.msra.mxu0 0.0
      %8774 = vmatpush.msra.mxu0 0.0
      %8775 = vmatpush.msra.mxu0 %v8752
      %8776 = vmatpush.msra.mxu0 %v8750
      %8777 = vmatmul.f32.gmra.mxu0 %v8756
      %v8778 = vpop.f32.mrf.mxu0
      %v8779 = vadd.f32 0.0, %v8778
      %8780 = vmatmul.f32.gmra.mxu0 %v8759
      %v8781 = vpop.f32.mrf.mxu0
      %v8782 = vadd.f32 0.0, %v8781
      %8783 = vdwg.mxu0
      %8784 = vrot.lane.b32.xlu0 %v2620, 64
      %v8785 = vpop.permute.xlu0 %8784
      %8786 = vrot.lane.b32.xlu0 %v2622, 64
      %v8787 = vpop.permute.xlu0 %8786
      %v8791 = vsel %vm4996, %v6775, 0
      %v8794 = vsel %vm4996, %v6776, 0
      %8796 = vmatpush.msra.mxu0 0.0
      %8797 = vmatpush.msra.mxu0 0.0
      %8798 = vmatpush.msra.mxu0 0.0
      %8799 = vmatpush.msra.mxu0 0.0
      %8800 = vmatpush.msra.mxu0 0.0
      %8801 = vmatpush.msra.mxu0 0.0
      %8802 = vmatpush.msra.mxu0 0.0
      %8803 = vmatpush.msra.mxu0 0.0
      %8804 = vmatpush.msra.mxu0 0.0
      %8805 = vmatpush.msra.mxu0 0.0
      %8806 = vmatpush.msra.mxu0 0.0
      %8807 = vmatpush.msra.mxu0 0.0
      %8808 = vmatpush.msra.mxu0 0.0
      %8809 = vmatpush.msra.mxu0 0.0
      %8810 = vmatpush.msra.mxu0 %v8787
      %8811 = vmatpush.msra.mxu0 %v8785
      %8812 = vmatmul.f32.gmra.mxu0 %v8791
      %v8813 = vpop.f32.mrf.mxu0
      %v8814 = vadd.f32 0.0, %v8813
      %8815 = vmatmul.f32.gmra.mxu0 %v8794
      %v8816 = vpop.f32.mrf.mxu0
      %v8817 = vadd.f32 0.0, %v8816
      %8818 = vdwg.mxu0
      %8819 = vrot.lane.b32.xlu0 %v2684, 64
      %v8820 = vpop.permute.xlu0 %8819
      %8821 = vrot.lane.b32.xlu0 %v2686, 64
      %v8822 = vpop.permute.xlu0 %8821
      %v8826 = vsel %vm4996, %v6777, 0
      %v8829 = vsel %vm4996, %v6778, 0
      %8831 = vmatpush.msra.mxu0 0.0
      %8832 = vmatpush.msra.mxu0 0.0
      %8833 = vmatpush.msra.mxu0 0.0
      %8834 = vmatpush.msra.mxu0 0.0
      %8835 = vmatpush.msra.mxu0 0.0
      %8836 = vmatpush.msra.mxu0 0.0
      %8837 = vmatpush.msra.mxu0 0.0
      %8838 = vmatpush.msra.mxu0 0.0
      %8839 = vmatpush.msra.mxu0 0.0
      %8840 = vmatpush.msra.mxu0 0.0
      %8841 = vmatpush.msra.mxu0 0.0
      %8842 = vmatpush.msra.mxu0 0.0
      %8843 = vmatpush.msra.mxu0 0.0
      %8844 = vmatpush.msra.mxu0 0.0
      %8845 = vmatpush.msra.mxu0 %v8822
      %8846 = vmatpush.msra.mxu0 %v8820
      %8847 = vmatmul.f32.gmra.mxu0 %v8826
      %v8848 = vpop.f32.mrf.mxu0
      %v8849 = vadd.f32 0.0, %v8848
      %8850 = vmatmul.f32.gmra.mxu0 %v8829
      %v8851 = vpop.f32.mrf.mxu0
      %v8852 = vadd.f32 0.0, %v8851
      %8853 = vdwg.mxu0
      %8854 = vrot.lane.b32.xlu0 %v2748, 64
      %v8855 = vpop.permute.xlu0 %8854
      %8856 = vrot.lane.b32.xlu0 %v2750, 64
      %v8857 = vpop.permute.xlu0 %8856
      %v8861 = vsel %vm4996, %v6779, 0
      %v8864 = vsel %vm4996, %v6780, 0
      %8866 = vmatpush.msra.mxu0 0.0
      %8867 = vmatpush.msra.mxu0 0.0
      %8868 = vmatpush.msra.mxu0 0.0
      %8869 = vmatpush.msra.mxu0 0.0
      %8870 = vmatpush.msra.mxu0 0.0
      %8871 = vmatpush.msra.mxu0 0.0
      %8872 = vmatpush.msra.mxu0 0.0
      %8873 = vmatpush.msra.mxu0 0.0
      %8874 = vmatpush.msra.mxu0 0.0
      %8875 = vmatpush.msra.mxu0 0.0
      %8876 = vmatpush.msra.mxu0 0.0
      %8877 = vmatpush.msra.mxu0 0.0
      %8878 = vmatpush.msra.mxu0 0.0
      %8879 = vmatpush.msra.mxu0 0.0
      %8880 = vmatpush.msra.mxu0 %v8857
      %8881 = vmatpush.msra.mxu0 %v8855
      %8882 = vmatmul.f32.gmra.mxu0 %v8861
      %v8883 = vpop.f32.mrf.mxu0
      %v8884 = vadd.f32 0.0, %v8883
      %8885 = vmatmul.f32.gmra.mxu0 %v8864
      %v8886 = vpop.f32.mrf.mxu0
      %v8887 = vadd.f32 0.0, %v8886
      %8888 = vdwg.mxu0
      %8889 = vrot.lane.b32.xlu0 %v2526, 64
      %v8890 = vpop.permute.xlu0 %8889
      %8891 = vrot.lane.b32.xlu0 %v2529, 64
      %v8892 = vpop.permute.xlu0 %8891
      %v8896 = vsel %vm4996, %v6781, 0
      %v8899 = vsel %vm4996, %v6782, 0
      %8901 = vmatpush.msra.mxu0 0.0
      %8902 = vmatpush.msra.mxu0 0.0
      %8903 = vmatpush.msra.mxu0 0.0
      %8904 = vmatpush.msra.mxu0 0.0
      %8905 = vmatpush.msra.mxu0 0.0
      %8906 = vmatpush.msra.mxu0 0.0
      %8907 = vmatpush.msra.mxu0 0.0
      %8908 = vmatpush.msra.mxu0 0.0
      %8909 = vmatpush.msra.mxu0 0.0
      %8910 = vmatpush.msra.mxu0 0.0
      %8911 = vmatpush.msra.mxu0 0.0
      %8912 = vmatpush.msra.mxu0 0.0
      %8913 = vmatpush.msra.mxu0 0.0
      %8914 = vmatpush.msra.mxu0 0.0
      %8915 = vmatpush.msra.mxu0 %v8892
      %8916 = vmatpush.msra.mxu0 %v8890
      %8917 = vmatmul.f32.gmra.mxu0 %v8896
      %v8918 = vpop.f32.mrf.mxu0
      %v8919 = vadd.f32 0.0, %v8918
      %8920 = vmatmul.f32.gmra.mxu0 %v8899
      %v8921 = vpop.f32.mrf.mxu0
      %v8922 = vadd.f32 0.0, %v8921
      %8923 = vdwg.mxu0
      %8924 = vrot.lane.b32.xlu0 %v2624, 64
      %v8925 = vpop.permute.xlu0 %8924
      %8926 = vrot.lane.b32.xlu0 %v2626, 64
      %v8927 = vpop.permute.xlu0 %8926
      %v8931 = vsel %vm4996, %v6783, 0
      %v8934 = vsel %vm4996, %v6784, 0
      %8936 = vmatpush.msra.mxu0 0.0
      %8937 = vmatpush.msra.mxu0 0.0
      %8938 = vmatpush.msra.mxu0 0.0
      %8939 = vmatpush.msra.mxu0 0.0
      %8940 = vmatpush.msra.mxu0 0.0
      %8941 = vmatpush.msra.mxu0 0.0
      %8942 = vmatpush.msra.mxu0 0.0
      %8943 = vmatpush.msra.mxu0 0.0
      %8944 = vmatpush.msra.mxu0 0.0
      %8945 = vmatpush.msra.mxu0 0.0
      %8946 = vmatpush.msra.mxu0 0.0
      %8947 = vmatpush.msra.mxu0 0.0
      %8948 = vmatpush.msra.mxu0 0.0
      %8949 = vmatpush.msra.mxu0 0.0
      %8950 = vmatpush.msra.mxu0 %v8927
      %8951 = vmatpush.msra.mxu0 %v8925
      %8952 = vmatmul.f32.gmra.mxu0 %v8931
      %v8953 = vpop.f32.mrf.mxu0
      %v8954 = vadd.f32 0.0, %v8953
      %8955 = vmatmul.f32.gmra.mxu0 %v8934
      %v8956 = vpop.f32.mrf.mxu0
      %v8957 = vadd.f32 0.0, %v8956
      %8958 = vdwg.mxu0
      %8959 = vrot.lane.b32.xlu0 %v2688, 64
      %v8960 = vpop.permute.xlu0 %8959
      %8961 = vrot.lane.b32.xlu0 %v2690, 64
      %v8962 = vpop.permute.xlu0 %8961
      %v8966 = vsel %vm4996, %v6785, 0
      %v8969 = vsel %vm4996, %v6786, 0
      %8971 = vmatpush.msra.mxu0 0.0
      %8972 = vmatpush.msra.mxu0 0.0
      %8973 = vmatpush.msra.mxu0 0.0
      %8974 = vmatpush.msra.mxu0 0.0
      %8975 = vmatpush.msra.mxu0 0.0
      %8976 = vmatpush.msra.mxu0 0.0
      %8977 = vmatpush.msra.mxu0 0.0
      %8978 = vmatpush.msra.mxu0 0.0
      %8979 = vmatpush.msra.mxu0 0.0
      %8980 = vmatpush.msra.mxu0 0.0
      %8981 = vmatpush.msra.mxu0 0.0
      %8982 = vmatpush.msra.mxu0 0.0
      %8983 = vmatpush.msra.mxu0 0.0
      %8984 = vmatpush.msra.mxu0 0.0
      %8985 = vmatpush.msra.mxu0 %v8962
      %8986 = vmatpush.msra.mxu0 %v8960
      %8987 = vmatmul.f32.gmra.mxu0 %v8966
      %v8988 = vpop.f32.mrf.mxu0
      %v8989 = vadd.f32 0.0, %v8988
      %8990 = vmatmul.f32.gmra.mxu0 %v8969
      %v8991 = vpop.f32.mrf.mxu0
      %v8992 = vadd.f32 0.0, %v8991
      %8993 = vdwg.mxu0
      %8994 = vrot.lane.b32.xlu0 %v2752, 64
      %v8995 = vpop.permute.xlu0 %8994
      %8996 = vrot.lane.b32.xlu0 %v2754, 64
      %v8997 = vpop.permute.xlu0 %8996
      %v9001 = vsel %vm4996, %v6787, 0
      %v9004 = vsel %vm4996, %v6788, 0
      %9006 = vmatpush.msra.mxu0 0.0
      %9007 = vmatpush.msra.mxu0 0.0
      %9008 = vmatpush.msra.mxu0 0.0
      %9009 = vmatpush.msra.mxu0 0.0
      %9010 = vmatpush.msra.mxu0 0.0
      %9011 = vmatpush.msra.mxu0 0.0
      %9012 = vmatpush.msra.mxu0 0.0
      %9013 = vmatpush.msra.mxu0 0.0
      %9014 = vmatpush.msra.mxu0 0.0
      %9015 = vmatpush.msra.mxu0 0.0
      %9016 = vmatpush.msra.mxu0 0.0
      %9017 = vmatpush.msra.mxu0 0.0
      %9018 = vmatpush.msra.mxu0 0.0
      %9019 = vmatpush.msra.mxu0 0.0
      %9020 = vmatpush.msra.mxu0 %v8997
      %9021 = vmatpush.msra.mxu0 %v8995
      %9022 = vmatmul.f32.gmra.mxu0 %v9001
      %v9023 = vpop.f32.mrf.mxu0
      %v9024 = vadd.f32 0.0, %v9023
      %9025 = vmatmul.f32.gmra.mxu0 %v9004
      %v9026 = vpop.f32.mrf.mxu0
      %v9027 = vadd.f32 0.0, %v9026
      %9028 = vdwg.mxu0
      %9061 = vrot.lane.b32.xlu0 %v6854, 8
      %v9062 = vpop.permute.xlu0 %9061
      %9063 = vrot.lane.b32.xlu0 %v6857, 8
      %v9064 = vpop.permute.xlu0 %9063
      %9065 = vrot.lane.b32.xlu0 %v6994, 8
      %v9066 = vpop.permute.xlu0 %9065
      %9067 = vrot.lane.b32.xlu0 %v6997, 8
      %v9068 = vpop.permute.xlu0 %9067
      %9069 = vrot.lane.b32.xlu0 %v7134, 8
      %v9070 = vpop.permute.xlu0 %9069
      %9071 = vrot.lane.b32.xlu0 %v7137, 8
      %v9072 = vpop.permute.xlu0 %9071
      %9073 = vrot.lane.b32.xlu0 %v7274, 8
      %v9074 = vpop.permute.xlu0 %9073
      %9075 = vrot.lane.b32.xlu0 %v7277, 8
      %v9076 = vpop.permute.xlu0 %9075
      %9077 = vrot.lane.b32.xlu0 %v7414, 8
      %v9078 = vpop.permute.xlu0 %9077
      %9079 = vrot.lane.b32.xlu0 %v7417, 8
      %v9080 = vpop.permute.xlu0 %9079
      %9081 = vrot.lane.b32.xlu0 %v7554, 8
      %v9082 = vpop.permute.xlu0 %9081
      %9083 = vrot.lane.b32.xlu0 %v7557, 8
      %v9084 = vpop.permute.xlu0 %9083
      %9085 = vrot.lane.b32.xlu0 %v7694, 8
      %v9086 = vpop.permute.xlu0 %9085
      %9087 = vrot.lane.b32.xlu0 %v7697, 8
      %v9088 = vpop.permute.xlu0 %9087
      %9089 = vrot.lane.b32.xlu0 %v7834, 8
      %v9090 = vpop.permute.xlu0 %9089
      %9091 = vrot.lane.b32.xlu0 %v7837, 8
      %v9092 = vpop.permute.xlu0 %9091
      %9093 = vrot.lane.b32.xlu0 %v7974, 8
      %v9094 = vpop.permute.xlu0 %9093
      %9095 = vrot.lane.b32.xlu0 %v7977, 8
      %v9096 = vpop.permute.xlu0 %9095
      %9097 = vrot.lane.b32.xlu0 %v8114, 8
      %v9098 = vpop.permute.xlu0 %9097
      %9099 = vrot.lane.b32.xlu0 %v8117, 8
      %v9100 = vpop.permute.xlu0 %9099
      %9101 = vrot.lane.b32.xlu0 %v8254, 8
      %v9102 = vpop.permute.xlu0 %9101
      %9103 = vrot.lane.b32.xlu0 %v8257, 8
      %v9104 = vpop.permute.xlu0 %9103
      %9105 = vrot.lane.b32.xlu0 %v8394, 8
      %v9106 = vpop.permute.xlu0 %9105
      %9107 = vrot.lane.b32.xlu0 %v8397, 8
      %v9108 = vpop.permute.xlu0 %9107
      %9109 = vrot.lane.b32.xlu0 %v8534, 8
      %v9110 = vpop.permute.xlu0 %9109
      %9111 = vrot.lane.b32.xlu0 %v8537, 8
      %v9112 = vpop.permute.xlu0 %9111
      %9113 = vrot.lane.b32.xlu0 %v8674, 8
      %v9114 = vpop.permute.xlu0 %9113
      %9115 = vrot.lane.b32.xlu0 %v8677, 8
      %v9116 = vpop.permute.xlu0 %9115
      %9117 = vrot.lane.b32.xlu0 %v8814, 8
      %v9118 = vpop.permute.xlu0 %9117
      %9119 = vrot.lane.b32.xlu0 %v8817, 8
      %v9120 = vpop.permute.xlu0 %9119
      %9121 = vrot.lane.b32.xlu0 %v8954, 8
      %v9122 = vpop.permute.xlu0 %9121
      %9123 = vrot.lane.b32.xlu0 %v8957, 8
      %v9124 = vpop.permute.xlu0 %9123
      %9189 = vrot.lane.b32.xlu0 %v6889, 16
      %v9190 = vpop.permute.xlu0 %9189
      %9191 = vrot.lane.b32.xlu0 %v6892, 16
      %v9192 = vpop.permute.xlu0 %9191
      %9193 = vrot.lane.b32.xlu0 %v7029, 16
      %v9194 = vpop.permute.xlu0 %9193
      %9195 = vrot.lane.b32.xlu0 %v7032, 16
      %v9196 = vpop.permute.xlu0 %9195
      %9197 = vrot.lane.b32.xlu0 %v7169, 16
      %v9198 = vpop.permute.xlu0 %9197
      %9199 = vrot.lane.b32.xlu0 %v7172, 16
      %v9200 = vpop.permute.xlu0 %9199
      %9201 = vrot.lane.b32.xlu0 %v7309, 16
      %v9202 = vpop.permute.xlu0 %9201
      %9203 = vrot.lane.b32.xlu0 %v7312, 16
      %v9204 = vpop.permute.xlu0 %9203
      %9205 = vrot.lane.b32.xlu0 %v7449, 16
      %v9206 = vpop.permute.xlu0 %9205
      %9207 = vrot.lane.b32.xlu0 %v7452, 16
      %v9208 = vpop.permute.xlu0 %9207
      %9209 = vrot.lane.b32.xlu0 %v7589, 16
      %v9210 = vpop.permute.xlu0 %9209
      %9211 = vrot.lane.b32.xlu0 %v7592, 16
      %v9212 = vpop.permute.xlu0 %9211
      %9213 = vrot.lane.b32.xlu0 %v7729, 16
      %v9214 = vpop.permute.xlu0 %9213
      %9215 = vrot.lane.b32.xlu0 %v7732, 16
      %v9216 = vpop.permute.xlu0 %9215
      %9217 = vrot.lane.b32.xlu0 %v7869, 16
      %v9218 = vpop.permute.xlu0 %9217
      %9219 = vrot.lane.b32.xlu0 %v7872, 16
      %v9220 = vpop.permute.xlu0 %9219
      %9221 = vrot.lane.b32.xlu0 %v8009, 16
      %v9222 = vpop.permute.xlu0 %9221
      %9223 = vrot.lane.b32.xlu0 %v8012, 16
      %v9224 = vpop.permute.xlu0 %9223
      %9225 = vrot.lane.b32.xlu0 %v8149, 16
      %v9226 = vpop.permute.xlu0 %9225
      %9227 = vrot.lane.b32.xlu0 %v8152, 16
      %v9228 = vpop.permute.xlu0 %9227
      %9229 = vrot.lane.b32.xlu0 %v8289, 16
      %v9230 = vpop.permute.xlu0 %9229
      %9231 = vrot.lane.b32.xlu0 %v8292, 16
      %v9232 = vpop.permute.xlu0 %9231
      %9233 = vrot.lane.b32.xlu0 %v8429, 16
      %v9234 = vpop.permute.xlu0 %9233
      %9235 = vrot.lane.b32.xlu0 %v8432, 16
      %v9236 = vpop.permute.xlu0 %9235
      %9237 = vrot.lane.b32.xlu0 %v8569, 16
      %v9238 = vpop.permute.xlu0 %9237
      %9239 = vrot.lane.b32.xlu0 %v8572, 16
      %v9240 = vpop.permute.xlu0 %9239
      %9241 = vrot.lane.b32.xlu0 %v8709, 16
      %v9242 = vpop.permute.xlu0 %9241
      %9243 = vrot.lane.b32.xlu0 %v8712, 16
      %v9244 = vpop.permute.xlu0 %9243
      %9245 = vrot.lane.b32.xlu0 %v8849, 16
      %v9246 = vpop.permute.xlu0 %9245
      %9247 = vrot.lane.b32.xlu0 %v8852, 16
      %v9248 = vpop.permute.xlu0 %9247
      %9249 = vrot.lane.b32.xlu0 %v8989, 16
      %v9250 = vpop.permute.xlu0 %9249
      %9251 = vrot.lane.b32.xlu0 %v8992, 16
      %v9252 = vpop.permute.xlu0 %9251
      %9317 = vrot.lane.b32.xlu0 %v6924, 24
      %v9318 = vpop.permute.xlu0 %9317
      %9319 = vrot.lane.b32.xlu0 %v6927, 24
      %v9320 = vpop.permute.xlu0 %9319
      %9321 = vrot.lane.b32.xlu0 %v7064, 24
      %v9322 = vpop.permute.xlu0 %9321
      %9323 = vrot.lane.b32.xlu0 %v7067, 24
      %v9324 = vpop.permute.xlu0 %9323
      %9325 = vrot.lane.b32.xlu0 %v7204, 24
      %v9326 = vpop.permute.xlu0 %9325
      %9327 = vrot.lane.b32.xlu0 %v7207, 24
      %v9328 = vpop.permute.xlu0 %9327
      %9329 = vrot.lane.b32.xlu0 %v7344, 24
      %v9330 = vpop.permute.xlu0 %9329
      %9331 = vrot.lane.b32.xlu0 %v7347, 24
      %v9332 = vpop.permute.xlu0 %9331
      %9333 = vrot.lane.b32.xlu0 %v7484, 24
      %v9334 = vpop.permute.xlu0 %9333
      %9335 = vrot.lane.b32.xlu0 %v7487, 24
      %v9336 = vpop.permute.xlu0 %9335
      %9337 = vrot.lane.b32.xlu0 %v7624, 24
      %v9338 = vpop.permute.xlu0 %9337
      %9339 = vrot.lane.b32.xlu0 %v7627, 24
      %v9340 = vpop.permute.xlu0 %9339
      %9341 = vrot.lane.b32.xlu0 %v7764, 24
      %v9342 = vpop.permute.xlu0 %9341
      %9343 = vrot.lane.b32.xlu0 %v7767, 24
      %v9344 = vpop.permute.xlu0 %9343
      %9345 = vrot.lane.b32.xlu0 %v7904, 24
      %v9346 = vpop.permute.xlu0 %9345
      %9347 = vrot.lane.b32.xlu0 %v7907, 24
      %v9348 = vpop.permute.xlu0 %9347
      %9349 = vrot.lane.b32.xlu0 %v8044, 24
      %v9350 = vpop.permute.xlu0 %9349
      %9351 = vrot.lane.b32.xlu0 %v8047, 24
      %v9352 = vpop.permute.xlu0 %9351
      %9353 = vrot.lane.b32.xlu0 %v8184, 24
      %v9354 = vpop.permute.xlu0 %9353
      %9355 = vrot.lane.b32.xlu0 %v8187, 24
      %v9356 = vpop.permute.xlu0 %9355
      %9357 = vrot.lane.b32.xlu0 %v8324, 24
      %v9358 = vpop.permute.xlu0 %9357
      %9359 = vrot.lane.b32.xlu0 %v8327, 24
      %v9360 = vpop.permute.xlu0 %9359
      %9361 = vrot.lane.b32.xlu0 %v8464, 24
      %v9362 = vpop.permute.xlu0 %9361
      %9363 = vrot.lane.b32.xlu0 %v8467, 24
      %v9364 = vpop.permute.xlu0 %9363
      %9365 = vrot.lane.b32.xlu0 %v8604, 24
      %v9366 = vpop.permute.xlu0 %9365
      %9367 = vrot.lane.b32.xlu0 %v8607, 24
      %v9368 = vpop.permute.xlu0 %9367
      %9369 = vrot.lane.b32.xlu0 %v8744, 24
      %v9370 = vpop.permute.xlu0 %9369
      %9371 = vrot.lane.b32.xlu0 %v8747, 24
      %v9372 = vpop.permute.xlu0 %9371
      %9373 = vrot.lane.b32.xlu0 %v8884, 24
      %v9374 = vpop.permute.xlu0 %9373
      %9375 = vrot.lane.b32.xlu0 %v8887, 24
      %v9376 = vpop.permute.xlu0 %9375
      %9377 = vrot.lane.b32.xlu0 %v9024, 24
      %v9378 = vpop.permute.xlu0 %9377
      %9379 = vrot.lane.b32.xlu0 %v9027, 24
      %v9380 = vpop.permute.xlu0 %9379
      %v9413 = vsel %vm2759, %v6819, %v9062
      %v9414 = vsel %vm2759, %v6822, %v9064
      %v9415 = vsel %vm2759, %v6959, %v9066
      %v9416 = vsel %vm2759, %v6962, %v9068
      %v9417 = vsel %vm2759, %v7099, %v9070
      %v9418 = vsel %vm2759, %v7102, %v9072
      %v9419 = vsel %vm2759, %v7239, %v9074
      %v9420 = vsel %vm2759, %v7242, %v9076
      %v9421 = vsel %vm2759, %v7379, %v9078
      %v9422 = vsel %vm2759, %v7382, %v9080
      %v9423 = vsel %vm2759, %v7519, %v9082
      %v9424 = vsel %vm2759, %v7522, %v9084
      %v9425 = vsel %vm2759, %v7659, %v9086
      %v9426 = vsel %vm2759, %v7662, %v9088
      %v9427 = vsel %vm2759, %v7799, %v9090
      %v9428 = vsel %vm2759, %v7802, %v9092
      %v9429 = vsel %vm2759, %v7939, %v9094
      %v9430 = vsel %vm2759, %v7942, %v9096
      %v9431 = vsel %vm2759, %v8079, %v9098
      %v9432 = vsel %vm2759, %v8082, %v9100
      %v9433 = vsel %vm2759, %v8219, %v9102
      %v9434 = vsel %vm2759, %v8222, %v9104
      %v9435 = vsel %vm2759, %v8359, %v9106
      %v9436 = vsel %vm2759, %v8362, %v9108
      %v9437 = vsel %vm2759, %v8499, %v9110
      %v9438 = vsel %vm2759, %v8502, %v9112
      %v9439 = vsel %vm2759, %v8639, %v9114
      %v9440 = vsel %vm2759, %v8642, %v9116
      %v9441 = vsel %vm2759, %v8779, %v9118
      %v9442 = vsel %vm2759, %v8782, %v9120
      %v9443 = vsel %vm2759, %v8919, %v9122
      %v9444 = vsel %vm2759, %v8922, %v9124
      %v9445 = vsel %vm4996, %v9413, %v9190
      %v9446 = vsel %vm4996, %v9414, %v9192
      %v9447 = vsel %vm4996, %v9415, %v9194
      %v9448 = vsel %vm4996, %v9416, %v9196
      %v9449 = vsel %vm4996, %v9417, %v9198
      %v9450 = vsel %vm4996, %v9418, %v9200
      %v9451 = vsel %vm4996, %v9419, %v9202
      %v9452 = vsel %vm4996, %v9420, %v9204
      %v9453 = vsel %vm4996, %v9421, %v9206
      %v9454 = vsel %vm4996, %v9422, %v9208
      %v9455 = vsel %vm4996, %v9423, %v9210
      %v9456 = vsel %vm4996, %v9424, %v9212
      %v9457 = vsel %vm4996, %v9425, %v9214
      %v9458 = vsel %vm4996, %v9426, %v9216
      %v9459 = vsel %vm4996, %v9427, %v9218
      %v9460 = vsel %vm4996, %v9428, %v9220
      %v9461 = vsel %vm4996, %v9429, %v9222
      %v9462 = vsel %vm4996, %v9430, %v9224
      %v9463 = vsel %vm4996, %v9431, %v9226
      %v9464 = vsel %vm4996, %v9432, %v9228
      %v9465 = vsel %vm4996, %v9433, %v9230
      %v9466 = vsel %vm4996, %v9434, %v9232
      %v9467 = vsel %vm4996, %v9435, %v9234
      %v9468 = vsel %vm4996, %v9436, %v9236
      %v9469 = vsel %vm4996, %v9437, %v9238
      %v9470 = vsel %vm4996, %v9438, %v9240
      %v9471 = vsel %vm4996, %v9439, %v9242
      %v9472 = vsel %vm4996, %v9440, %v9244
      %v9473 = vsel %vm4996, %v9441, %v9246
      %v9474 = vsel %vm4996, %v9442, %v9248
      %v9475 = vsel %vm4996, %v9443, %v9250
      %v9476 = vsel %vm4996, %v9444, %v9252
      %vm9477 = vcmask 195584
      %v9478 = vsel %vm9477, %v9445, %v9318
      %v9479 = vsel %vm9477, %v9446, %v9320
      %v9480 = vsel %vm9477, %v9447, %v9322
      %v9481 = vsel %vm9477, %v9448, %v9324
      %v9482 = vsel %vm9477, %v9449, %v9326
      %v9483 = vsel %vm9477, %v9450, %v9328
      %v9484 = vsel %vm9477, %v9451, %v9330
      %v9485 = vsel %vm9477, %v9452, %v9332
      %v9486 = vsel %vm9477, %v9453, %v9334
      %v9487 = vsel %vm9477, %v9454, %v9336
      %v9488 = vsel %vm9477, %v9455, %v9338
      %v9489 = vsel %vm9477, %v9456, %v9340
      %v9490 = vsel %vm9477, %v9457, %v9342
      %v9491 = vsel %vm9477, %v9458, %v9344
      %v9492 = vsel %vm9477, %v9459, %v9346
      %v9493 = vsel %vm9477, %v9460, %v9348
      %v9494 = vsel %vm9477, %v9461, %v9350
      %v9495 = vsel %vm9477, %v9462, %v9352
      %v9496 = vsel %vm9477, %v9463, %v9354
      %v9497 = vsel %vm9477, %v9464, %v9356
      %v9498 = vsel %vm9477, %v9465, %v9358
      %v9499 = vsel %vm9477, %v9466, %v9360
      %v9500 = vsel %vm9477, %v9467, %v9362
      %v9501 = vsel %vm9477, %v9468, %v9364
      %v9502 = vsel %vm9477, %v9469, %v9366
      %v9503 = vsel %vm9477, %v9470, %v9368
      %v9504 = vsel %vm9477, %v9471, %v9370
      %v9505 = vsel %vm9477, %v9472, %v9372
      %v9506 = vsel %vm9477, %v9473, %v9374
      %v9507 = vsel %vm9477, %v9474, %v9376
      %v9508 = vsel %vm9477, %v9475, %v9378
      %v9509 = vsel %vm9477, %v9476, %v9380
      %v9510 = vld [vmem:[%s11] sm:$0xff]
      %v9511 = vld [vmem:[%s11 + $0x8] sm:$0xff]
      %v9512 = vld [vmem:[%s11 + $0x10] sm:$0xff]
      %v9513 = vld [vmem:[%s11 + $0x18] sm:$0xff]
      %v9514 = vld [vmem:[%s12] sm:$0x1]
      %v9516 = vperm.slane %v9514, 0
      %v9519 = vsel %vm1257, %v9478, 0
      %v9522 = vsel %vm1257, %v9479, 0
      %v9525 = vsel %vm1257, %v9480, 0
      %v9528 = vsel %vm1257, %v9481, 0
      %v9531 = vsel %vm1257, %v9482, 0
      %v9534 = vsel %vm1257, %v9483, 0
      %v9537 = vsel %vm1257, %v9484, 0
      %v9540 = vsel %vm1257, %v9485, 0
      %v9543 = vsel %vm1257, %v9486, 0
      %v9546 = vsel %vm1257, %v9487, 0
      %v9549 = vsel %vm1257, %v9488, 0
      %v9552 = vsel %vm1257, %v9489, 0
      %v9555 = vsel %vm1257, %v9490, 0
      %v9558 = vsel %vm1257, %v9491, 0
      %v9561 = vsel %vm1257, %v9492, 0
      %v9564 = vsel %vm1257, %v9493, 0
      %v9567 = vsel %vm1257, %v9494, 0
      %v9570 = vsel %vm1257, %v9495, 0
      %v9573 = vsel %vm1257, %v9496, 0
      %v9576 = vsel %vm1257, %v9497, 0
      %v9579 = vsel %vm1257, %v9498, 0
      %v9582 = vsel %vm1257, %v9499, 0
      %v9585 = vsel %vm1257, %v9500, 0
      %v9588 = vsel %vm1257, %v9501, 0
      %v9591 = vsel %vm1257, %v9502, 0
      %v9594 = vsel %vm1257, %v9503, 0
      %v9597 = vsel %vm1257, %v9504, 0
      %v9600 = vsel %vm1257, %v9505, 0
      %v9603 = vsel %vm1257, %v9506, 0
      %v9606 = vsel %vm1257, %v9507, 0
      %v9609 = vsel %vm1257, %v9508, 0
      %v9612 = vsel %vm1257, %v9509, 0
      %9614 = vmatpush.msra.mxu0 0.0
      %9615 = vmatpush.msra.mxu0 0.0
      %9616 = vmatpush.msra.mxu0 0.0
      %9617 = vmatpush.msra.mxu0 0.0
      %9618 = vmatpush.msra.mxu0 0.0
      %9619 = vmatpush.msra.mxu0 0.0
      %9620 = vmatpush.msra.mxu0 0.0
      %9621 = vmatpush.msra.mxu0 0.0
      %9622 = vmatpush.msra.mxu0 0.0
      %9623 = vmatpush.msra.mxu0 0.0
      %9624 = vmatpush.msra.mxu0 0.0
      %9625 = vmatpush.msra.mxu0 0.0
      %9626 = vmatpush.msra.mxu0 %v9513
      %9627 = vmatpush.msra.mxu0 %v9512
      %9628 = vmatpush.msra.mxu0 %v9511
      %9629 = vmatpush.msra.mxu0 %v9510
      %9630 = vmatmul.f32.gmra.mxu0 %v9519
      %v9631 = vpop.f32.mrf.mxu0
      %v9632 = vadd.f32 %v9516, %v9631
      %9633 = vmatmul.f32.gmra.mxu0 %v9522
      %v9634 = vpop.f32.mrf.mxu0
      %v9635 = vadd.f32 %v9516, %v9634
      %9636 = vmatmul.f32.gmra.mxu0 %v9525
      %v9637 = vpop.f32.mrf.mxu0
      %v9638 = vadd.f32 %v9516, %v9637
      %9639 = vmatmul.f32.gmra.mxu0 %v9528
      %v9640 = vpop.f32.mrf.mxu0
      %v9641 = vadd.f32 %v9516, %v9640
      %9642 = vmatmul.f32.gmra.mxu0 %v9531
      %v9643 = vpop.f32.mrf.mxu0
      %v9644 = vadd.f32 %v9516, %v9643
      %9645 = vmatmul.f32.gmra.mxu0 %v9534
      %v9646 = vpop.f32.mrf.mxu0
      %v9647 = vadd.f32 %v9516, %v9646
      %9648 = vmatmul.f32.gmra.mxu0 %v9537
      %v9649 = vpop.f32.mrf.mxu0
      %v9650 = vadd.f32 %v9516, %v9649
      %9651 = vmatmul.f32.gmra.mxu0 %v9540
      %v9652 = vpop.f32.mrf.mxu0
      %v9653 = vadd.f32 %v9516, %v9652
      %9654 = vmatmul.f32.gmra.mxu0 %v9543
      %v9655 = vpop.f32.mrf.mxu0
      %v9656 = vadd.f32 %v9516, %v9655
      %9657 = vmatmul.f32.gmra.mxu0 %v9546
      %v9658 = vpop.f32.mrf.mxu0
      %v9659 = vadd.f32 %v9516, %v9658
      %9660 = vmatmul.f32.gmra.mxu0 %v9549
      %v9661 = vpop.f32.mrf.mxu0
      %v9662 = vadd.f32 %v9516, %v9661
      %9663 = vmatmul.f32.gmra.mxu0 %v9552
      %v9664 = vpop.f32.mrf.mxu0
      %v9665 = vadd.f32 %v9516, %v9664
      %9666 = vmatmul.f32.gmra.mxu0 %v9555
      %v9667 = vpop.f32.mrf.mxu0
      %v9668 = vadd.f32 %v9516, %v9667
      %9669 = vmatmul.f32.gmra.mxu0 %v9558
      %v9670 = vpop.f32.mrf.mxu0
      %v9671 = vadd.f32 %v9516, %v9670
      %9672 = vmatmul.f32.gmra.mxu0 %v9561
      %v9673 = vpop.f32.mrf.mxu0
      %v9674 = vadd.f32 %v9516, %v9673
      %9675 = vmatmul.f32.gmra.mxu0 %v9564
      %v9676 = vpop.f32.mrf.mxu0
      %v9677 = vadd.f32 %v9516, %v9676
      %9678 = vmatmul.f32.gmra.mxu0 %v9567
      %v9679 = vpop.f32.mrf.mxu0
      %v9680 = vadd.f32 %v9516, %v9679
      %9681 = vmatmul.f32.gmra.mxu0 %v9570
      %v9682 = vpop.f32.mrf.mxu0
      %v9683 = vadd.f32 %v9516, %v9682
      %9684 = vmatmul.f32.gmra.mxu0 %v9573
      %v9685 = vpop.f32.mrf.mxu0
      %v9686 = vadd.f32 %v9516, %v9685
      %9687 = vmatmul.f32.gmra.mxu0 %v9576
      %v9688 = vpop.f32.mrf.mxu0
      %v9689 = vadd.f32 %v9516, %v9688
      %9690 = vmatmul.f32.gmra.mxu0 %v9579
      %v9691 = vpop.f32.mrf.mxu0
      %v9692 = vadd.f32 %v9516, %v9691
      %9693 = vmatmul.f32.gmra.mxu0 %v9582
      %v9694 = vpop.f32.mrf.mxu0
      %v9695 = vadd.f32 %v9516, %v9694
      %9696 = vmatmul.f32.gmra.mxu0 %v9585
      %v9697 = vpop.f32.mrf.mxu0
      %v9698 = vadd.f32 %v9516, %v9697
      %9699 = vmatmul.f32.gmra.mxu0 %v9588
      %v9700 = vpop.f32.mrf.mxu0
      %v9701 = vadd.f32 %v9516, %v9700
      %9702 = vmatmul.f32.gmra.mxu0 %v9591
      %v9703 = vpop.f32.mrf.mxu0
      %v9704 = vadd.f32 %v9516, %v9703
      %9705 = vmatmul.f32.gmra.mxu0 %v9594
      %v9706 = vpop.f32.mrf.mxu0
      %v9707 = vadd.f32 %v9516, %v9706
      %9708 = vmatmul.f32.gmra.mxu0 %v9597
      %v9709 = vpop.f32.mrf.mxu0
      %v9710 = vadd.f32 %v9516, %v9709
      %9711 = vmatmul.f32.gmra.mxu0 %v9600
      %v9712 = vpop.f32.mrf.mxu0
      %v9713 = vadd.f32 %v9516, %v9712
      %9714 = vmatmul.f32.gmra.mxu0 %v9603
      %v9715 = vpop.f32.mrf.mxu0
      %v9716 = vadd.f32 %v9516, %v9715
      %9717 = vmatmul.f32.gmra.mxu0 %v9606
      %v9718 = vpop.f32.mrf.mxu0
      %v9719 = vadd.f32 %v9516, %v9718
      %9720 = vmatmul.f32.gmra.mxu0 %v9609
      %v9721 = vpop.f32.mrf.mxu0
      %v9722 = vadd.f32 %v9516, %v9721
      %9723 = vmatmul.f32.gmra.mxu0 %v9612
      %v9724 = vpop.f32.mrf.mxu0
      %v9725 = vadd.f32 %v9516, %v9724
      %9726 = vdwg.mxu0
      %v9727 = vsel %vm1257, %v9632, -inf
      %v9728 = vsel %vm1257, %v9635, -inf
      %v9729 = vmax.f32 %v9727, %v9728
      %v9730 = vrot.slane %v9729, 4
      %v9731 = vmax.f32 %v9729, %v9730
      %v9732 = vrot.slane %v9731, 2
      %v9733 = vmax.f32 %v9731, %v9732
      %v9734 = vrot.slane %v9733, 1
      %v9735 = vmax.f32 %v9733, %v9734
      %v9736 = vsel %vm1257, %v9638, -inf
      %v9737 = vsel %vm1257, %v9641, -inf
      %v9738 = vmax.f32 %v9736, %v9737
      %v9739 = vrot.slane %v9738, 4
      %v9740 = vmax.f32 %v9738, %v9739
      %v9741 = vrot.slane %v9740, 2
      %v9742 = vmax.f32 %v9740, %v9741
      %v9743 = vrot.slane %v9742, 1
      %v9744 = vmax.f32 %v9742, %v9743
      %v9745 = vsel %vm1257, %v9644, -inf
      %v9746 = vsel %vm1257, %v9647, -inf
      %v9747 = vmax.f32 %v9745, %v9746
      %v9748 = vrot.slane %v9747, 4
      %v9749 = vmax.f32 %v9747, %v9748
      %v9750 = vrot.slane %v9749, 2
      %v9751 = vmax.f32 %v9749, %v9750
      %v9752 = vrot.slane %v9751, 1
      %v9753 = vmax.f32 %v9751, %v9752
      %v9754 = vsel %vm1257, %v9650, -inf
      %v9755 = vsel %vm1257, %v9653, -inf
      %v9756 = vmax.f32 %v9754, %v9755
      %v9757 = vrot.slane %v9756, 4
      %v9758 = vmax.f32 %v9756, %v9757
      %v9759 = vrot.slane %v9758, 2
      %v9760 = vmax.f32 %v9758, %v9759
      %v9761 = vrot.slane %v9760, 1
      %v9762 = vmax.f32 %v9760, %v9761
      %v9763 = vsel %vm1257, %v9656, -inf
      %v9764 = vsel %vm1257, %v9659, -inf
      %v9765 = vmax.f32 %v9763, %v9764
      %v9766 = vrot.slane %v9765, 4
      %v9767 = vmax.f32 %v9765, %v9766
      %v9768 = vrot.slane %v9767, 2
      %v9769 = vmax.f32 %v9767, %v9768
      %v9770 = vrot.slane %v9769, 1
      %v9771 = vmax.f32 %v9769, %v9770
      %v9772 = vsel %vm1257, %v9662, -inf
      %v9773 = vsel %vm1257, %v9665, -inf
      %v9774 = vmax.f32 %v9772, %v9773
      %v9775 = vrot.slane %v9774, 4
      %v9776 = vmax.f32 %v9774, %v9775
      %v9777 = vrot.slane %v9776, 2
      %v9778 = vmax.f32 %v9776, %v9777
      %v9779 = vrot.slane %v9778, 1
      %v9780 = vmax.f32 %v9778, %v9779
      %v9781 = vsel %vm1257, %v9668, -inf
      %v9782 = vsel %vm1257, %v9671, -inf
      %v9783 = vmax.f32 %v9781, %v9782
      %v9784 = vrot.slane %v9783, 4
      %v9785 = vmax.f32 %v9783, %v9784
      %v9786 = vrot.slane %v9785, 2
      %v9787 = vmax.f32 %v9785, %v9786
      %v9788 = vrot.slane %v9787, 1
      %v9789 = vmax.f32 %v9787, %v9788
      %v9790 = vsel %vm1257, %v9674, -inf
      %v9791 = vsel %vm1257, %v9677, -inf
      %v9792 = vmax.f32 %v9790, %v9791
      %v9793 = vrot.slane %v9792, 4
      %v9794 = vmax.f32 %v9792, %v9793
      %v9795 = vrot.slane %v9794, 2
      %v9796 = vmax.f32 %v9794, %v9795
      %v9797 = vrot.slane %v9796, 1
      %v9798 = vmax.f32 %v9796, %v9797
      %v9799 = vsel %vm1257, %v9680, -inf
      %v9800 = vsel %vm1257, %v9683, -inf
      %v9801 = vmax.f32 %v9799, %v9800
      %v9802 = vrot.slane %v9801, 4
      %v9803 = vmax.f32 %v9801, %v9802
      %v9804 = vrot.slane %v9803, 2
      %v9805 = vmax.f32 %v9803, %v9804
      %v9806 = vrot.slane %v9805, 1
      %v9807 = vmax.f32 %v9805, %v9806
      %v9808 = vsel %vm1257, %v9686, -inf
      %v9809 = vsel %vm1257, %v9689, -inf
      %v9810 = vmax.f32 %v9808, %v9809
      %v9811 = vrot.slane %v9810, 4
      %v9812 = vmax.f32 %v9810, %v9811
      %v9813 = vrot.slane %v9812, 2
      %v9814 = vmax.f32 %v9812, %v9813
      %v9815 = vrot.slane %v9814, 1
      %v9816 = vmax.f32 %v9814, %v9815
      %v9817 = vsel %vm1257, %v9692, -inf
      %v9818 = vsel %vm1257, %v9695, -inf
      %v9819 = vmax.f32 %v9817, %v9818
      %v9820 = vrot.slane %v9819, 4
      %v9821 = vmax.f32 %v9819, %v9820
      %v9822 = vrot.slane %v9821, 2
      %v9823 = vmax.f32 %v9821, %v9822
      %v9824 = vrot.slane %v9823, 1
      %v9825 = vmax.f32 %v9823, %v9824
      %v9826 = vsel %vm1257, %v9698, -inf
      %v9827 = vsel %vm1257, %v9701, -inf
      %v9828 = vmax.f32 %v9826, %v9827
      %v9829 = vrot.slane %v9828, 4
      %v9830 = vmax.f32 %v9828, %v9829
      %v9831 = vrot.slane %v9830, 2
      %v9832 = vmax.f32 %v9830, %v9831
      %v9833 = vrot.slane %v9832, 1
      %v9834 = vmax.f32 %v9832, %v9833
      %v9835 = vsel %vm1257, %v9704, -inf
      %v9836 = vsel %vm1257, %v9707, -inf
      %v9837 = vmax.f32 %v9835, %v9836
      %v9838 = vrot.slane %v9837, 4
      %v9839 = vmax.f32 %v9837, %v9838
      %v9840 = vrot.slane %v9839, 2
      %v9841 = vmax.f32 %v9839, %v9840
      %v9842 = vrot.slane %v9841, 1
      %v9843 = vmax.f32 %v9841, %v9842
      %v9844 = vsel %vm1257, %v9710, -inf
      %v9845 = vsel %vm1257, %v9713, -inf
      %v9846 = vmax.f32 %v9844, %v9845
      %v9847 = vrot.slane %v9846, 4
      %v9848 = vmax.f32 %v9846, %v9847
      %v9849 = vrot.slane %v9848, 2
      %v9850 = vmax.f32 %v9848, %v9849
      %v9851 = vrot.slane %v9850, 1
      %v9852 = vmax.f32 %v9850, %v9851
      %v9853 = vsel %vm1257, %v9716, -inf
      %v9854 = vsel %vm1257, %v9719, -inf
      %v9855 = vmax.f32 %v9853, %v9854
      %v9856 = vrot.slane %v9855, 4
      %v9857 = vmax.f32 %v9855, %v9856
      %v9858 = vrot.slane %v9857, 2
      %v9859 = vmax.f32 %v9857, %v9858
      %v9860 = vrot.slane %v9859, 1
      %v9861 = vmax.f32 %v9859, %v9860
      %v9862 = vsel %vm1257, %v9722, -inf
      %v9863 = vsel %vm1257, %v9725, -inf
      %v9864 = vmax.f32 %v9862, %v9863
      %v9865 = vrot.slane %v9864, 4
      %v9866 = vmax.f32 %v9864, %v9865
      %v9867 = vrot.slane %v9866, 2
      %v9868 = vmax.f32 %v9866, %v9867
      %v9869 = vrot.slane %v9868, 1
      %v9870 = vmax.f32 %v9868, %v9869
      %v9871 = vld [vmem:[%s13] sm:$0xff]
      %v9872 = vld [vmem:[%s13 + $0x8] sm:$0xff]
      %v9873 = vld [vmem:[%s13 + $0x10] sm:$0xff]
      %v9874 = vld [vmem:[%s13 + $0x18] sm:$0xff]
      %v9875 = vld [vmem:[%s14] sm:$0x1]
      %v9877 = vperm.slane %v9875, 0
      %vm9895 = vcmask 1041409
      %v9896 = vsel %vm9895, %v9744, %v9735
      %vm9897 = vcmask 1042434
      %v9898 = vsel %vm9897, %v9753, %v9896
      %vm9899 = vcmask 1043459
      %v9900 = vsel %vm9899, %v9762, %v9898
      %vm9901 = vcmask 1044484
      %v9902 = vsel %vm9901, %v9771, %v9900
      %vm9903 = vcmask 1045509
      %v9904 = vsel %vm9903, %v9780, %v9902
      %vm9905 = vcmask 1046534
      %v9906 = vsel %vm9905, %v9789, %v9904
      %vm9907 = vcmask 1047559
      %v9908 = vsel %vm9907, %v9798, %v9906
      %v9909 = vsel %vm9895, %v9816, %v9807
      %v9910 = vsel %vm9897, %v9825, %v9909
      %v9911 = vsel %vm9899, %v9834, %v9910
      %v9912 = vsel %vm9901, %v9843, %v9911
      %v9913 = vsel %vm9903, %v9852, %v9912
      %v9914 = vsel %vm9905, %v9861, %v9913
      %v9915 = vsel %vm9907, %v9870, %v9914
      %v9916 = vsel %vm1257, %v9908, 0
      %v9918 = vsel %vm1257, %v9915, 0
      %9920 = vmatpush.msra.mxu0 0.0
      %9921 = vmatpush.msra.mxu0 0.0
      %9922 = vmatpush.msra.mxu0 0.0
      %9923 = vmatpush.msra.mxu0 0.0
      %9924 = vmatpush.msra.mxu0 0.0
      %9925 = vmatpush.msra.mxu0 0.0
      %9926 = vmatpush.msra.mxu0 0.0
      %9927 = vmatpush.msra.mxu0 0.0
      %9928 = vmatpush.msra.mxu0 0.0
      %9929 = vmatpush.msra.mxu0 0.0
      %9930 = vmatpush.msra.mxu0 0.0
      %9931 = vmatpush.msra.mxu0 0.0
      %9932 = vmatpush.msra.mxu0 %v9874
      %9933 = vmatpush.msra.mxu0 %v9873
      %9934 = vmatpush.msra.mxu0 %v9872
      %9935 = vmatpush.msra.mxu0 %v9871
      %9936 = vmatmul.f32.gmra.mxu0 %v9916
      %v9937 = vpop.f32.mrf.mxu0
      %v9938 = vadd.f32 %v9877, %v9937
      %9939 = vmatmul.f32.gmra.mxu0 %v9918
      %v9940 = vpop.f32.mrf.mxu0
      %v9941 = vadd.f32 %v9877, %v9940
      %9942 = vdwg.mxu0
      %v9943 = vmul.f32 %v9938, 0.01
      %v9944 = vmul.f32 %v9941, 0.01
      %v9945 = vmax.f32 %v9938, %v9943
      %v9946 = vmax.f32 %v9941, %v9944
      %v9947 = vld [vmem:[%s15] sm:$0xff]
      %v9948 = vld [vmem:[%s15 + $0x8] sm:$0xff]
      %v9949 = vld [vmem:[%s15 + $0x10] sm:$0xff]
      %v9950 = vld [vmem:[%s15 + $0x18] sm:$0xff]
      %v9951 = vld [vmem:[%s15 + $0x20] sm:$0xff]
      %v9952 = vld [vmem:[%s15 + $0x28] sm:$0xff]
      %v9953 = vld [vmem:[%s15 + $0x30] sm:$0xff]
      %v9954 = vld [vmem:[%s15 + $0x38] sm:$0xff]
      %v9955 = vld [vmem:[%s16] sm:$0x1]
      %v9957 = vperm.slane %v9955, 0
      %vm9959 = vcmask 523264
      %v9961 = vsel %vm9959, %v9945, 0
      %v9964 = vsel %vm9959, %v9946, 0
      %9966 = vmatpush.msra.mxu0 0.0
      %9967 = vmatpush.msra.mxu0 0.0
      %9968 = vmatpush.msra.mxu0 0.0
      %9969 = vmatpush.msra.mxu0 0.0
      %9970 = vmatpush.msra.mxu0 0.0
      %9971 = vmatpush.msra.mxu0 0.0
      %9972 = vmatpush.msra.mxu0 0.0
      %9973 = vmatpush.msra.mxu0 0.0
      %9974 = vmatpush.msra.mxu0 %v9954
      %9975 = vmatpush.msra.mxu0 %v9953
      %9976 = vmatpush.msra.mxu0 %v9952
      %9977 = vmatpush.msra.mxu0 %v9951
      %9978 = vmatpush.msra.mxu0 %v9950
      %9979 = vmatpush.msra.mxu0 %v9949
      %9980 = vmatpush.msra.mxu0 %v9948
      %9981 = vmatpush.msra.mxu0 %v9947
      %9982 = vmatmul.f32.gmra.mxu0 %v9961
      %v9983 = vpop.f32.mrf.mxu0
      %v9984 = vadd.f32 %v9957, %v9983
      %9985 = vmatmul.f32.gmra.mxu0 %v9964
      %v9986 = vpop.f32.mrf.mxu0
      %v9987 = vadd.f32 %v9957, %v9986
      %9988 = vdwg.mxu0
      %vm9989 = vcmask 15360
      %9990 = vst.msk [vmem:[%s572] sm:$0xff] %vm9989, %v9984
      %9991 = vst.msk [vmem:[%s572 + $0x8] sm:$0xff] %vm9989, %v9987
      %s9992 = smul.u32 2, %s28
      %p9993 = scmp.lt.s32.totalorder %s9992, 3
      %s9994 = scalar_select %p9993, %s9992, 3
      %s9995 = smul.addr %s9994, 8
      %s9996 = scalar_lea.vmem %s17, %s9995
      // Predicated region
      $region89: #{qnetworkk_forward.1} parent=87 // pred_check
        %p9997 = pneg %p413
      $region90: #{qnetworkk_forward.1} parent=87 // pred_check_branch
        %9999 = sbr.rel (%p9997) target = $region92
      $region91: #{qnetworkk_forward.1} parent=87 // pred_region
        %s10000 = smul.u32 2, %s28
      $region92: #{qnetworkk_forward.1} parent=87 // pred_fallthru
        _
    $region88: #{qnetworkk_forward.1} parent=5 // pred_fallthru
      _
    %p10001 = scmp.le.s32.totalorder 2, %s23
    // Predicated region
    $region93: #{qnetworkk_forward.1} parent=5 // pred_check
      %p10002 = pneg %p10001
    $region94: #{qnetworkk_forward.1} parent=5 // pred_check_branch
      %10004 = sbr.rel (%p10002) target = $region96
    $region95: #{qnetworkk_forward.1} parent=5 // pred_region
      %s10005 = ssub.s32 %s23, 2
      // Predicated region
      $region97: #{qnetworkk_forward.1} parent=95 // pred_check
        %p10006 = pneg %p419
      $region98: #{qnetworkk_forward.1} parent=95 // pred_check_branch
        %10008 = sbr.rel (%p10006) target = $region100
      $region99: #{qnetworkk_forward.1} parent=95 // pred_region
        %s10009 = smul.u32 2, %s29
        %p10010 = scmp.lt.s32.totalorder %s10009, 3
        %s10011 = scalar_select %p10010, %s10009, 3
        %s10012 = smul.addr %s10011, 8
        %s10013 = scalar_lea.vmem %s17, %s10012
      $region100: #{qnetworkk_forward.1} parent=95 // pred_fallthru
        _
    $region96: #{qnetworkk_forward.1} parent=5 // pred_fallthru
      _
  $region6: #{qnetworkk_forward.1} parent=0 // loop_footer
    %s27 = sadd.s32 1, %s23
  $region7: #{qnetworkk_forward.1} parent=0 // loop_footer_branch
    %22 = sbr.rel target = $region3
  $region8: #{qnetworkk_forward.1} parent=0 // loop_exit
    _

</llo_original>
